<compile_context>
chip_gen: v7x
topology: tpu7x:2x2x1
jax: 0.10.0
libtpu: 0.0.40
codegen_flags: <defaults>
</compile_context>

<pallas_src>
import jax
import jax.numpy as jnp
from jax.experimental import pallas as pl
from jax.experimental.pallas import tpu as pltpu

# True layer widths (PyTorch module) and lane-friendly padded widths.
TRUE_DIMS = (28 * 28, 700, 700, 200, 10)
PAD_DIMS = (896, 768, 768, 256, 128)  # multiples of 128 on every matmul dim


def mlp_kernel(x_ref,
               w1_ref, b1_ref,
               w2_ref, b2_ref,
               w3_ref, b3_ref,
               w4_ref, b4_ref,
               o_ref):
    """Fused (Linear -> ReLU) x 4 on one batch tile.

    Operands enter the MXU as bf16; accumulation is f32 (preferred_element_type).
    Biases are f32 (1, N) and broadcast once per layer per grid step.
    """
    def layer(h_bf16, w_ref, b_ref):
        acc = jnp.dot(h_bf16, w_ref[...], preferred_element_type=jnp.float32)
        acc = jnp.maximum(acc + b_ref[...], 0.0)   # ReLU matches the PyTorch forward
        return acc

    h = layer(x_ref[...], w1_ref, b1_ref)
    h = layer(h.astype(jnp.bfloat16), w2_ref, b2_ref)
    h = layer(h.astype(jnp.bfloat16), w3_ref, b3_ref)
    h = layer(h.astype(jnp.bfloat16), w4_ref, b4_ref)
    o_ref[...] = h.astype(o_ref.dtype)


def _pad_to(a, shape):
    return jnp.pad(a, [(0, t - s) for s, t in zip(a.shape, shape)])


def simple_mnist_dnn_forward(x, params, *, tb=128):
    """x: (B, 784) f32.  params: w{i}: (in, out) f32, b{i}: (1, out) f32.

    Pads batch to a multiple of `tb`, widths to PAD_DIMS (zero fill), casts MXU
    operands to bf16, runs a batch-tiled fused kernel, and slices back to (B, 10).
    """
    B = x.shape[0]
    B_pad = ((B + tb - 1) // tb) * tb
    x_p = _pad_to(x, (B_pad, PAD_DIMS[0])).astype(jnp.bfloat16)

    ws, bs = [], []
    for i in range(4):
        w = _pad_to(params[f"w{i+1}"], (PAD_DIMS[i], PAD_DIMS[i + 1])).astype(jnp.bfloat16)
        b = _pad_to(params[f"b{i+1}"], (1, PAD_DIMS[i + 1])).astype(jnp.float32)
        ws.append(w)
        bs.append(b)

    def resident_spec(shape):
        # Constant block index -> weights/biases stay in VMEM across batch tiles.
        return pl.BlockSpec(shape, lambda i: tuple(0 for _ in shape))

    out = pl.pallas_call(
        mlp_kernel,
        out_shape=jax.ShapeDtypeStruct((B_pad, PAD_DIMS[4]), jnp.float32),
        grid=(B_pad // tb,),
        in_specs=[
            pl.BlockSpec((tb, PAD_DIMS[0]), lambda i: (i, 0)),   # x: tiled over batch
            resident_spec(ws[0].shape), resident_spec(bs[0].shape),
            resident_spec(ws[1].shape), resident_spec(bs[1].shape),
            resident_spec(ws[2].shape), resident_spec(bs[2].shape),
            resident_spec(ws[3].shape), resident_spec(bs[3].shape),
        ],
        out_specs=pl.BlockSpec((tb, PAD_DIMS[4]), lambda i: (i, 0)),
        compiler_params=pltpu.CompilerParams(
            dimension_semantics=("parallel",),       # megacore-shard batch tiles on v7x
            vmem_limit_bytes=16 << 20,               # ~3 MiB weights + tiles: plenty of headroom
        ),
    )(x_p, ws[0], bs[0], ws[1], bs[1], ws[2], bs[2], ws[3], bs[3])

    return out[:B, :TRUE_DIMS[4]]


def init_params(key):
    """PyTorch nn.Linear default init: U(-1/sqrt(fan_in), +1/sqrt(fan_in)); W stored (in, out)."""
    dims = list(zip(TRUE_DIMS[:-1], TRUE_DIMS[1:]))
    params = {}
    for idx, (fan_in, fan_out) in enumerate(dims, start=1):
        key, kw, kb = jax.random.split(key, 3)
        bound = 1.0 / jnp.sqrt(fan_in)
        params[f"w{idx}"] = jax.random.uniform(
            kw, (fan_in, fan_out), jnp.float32, minval=-bound, maxval=bound)
        params[f"b{idx}"] = jax.random.uniform(
            kb, (1, fan_out), jnp.float32, minval=-bound, maxval=bound)
    return params


if __name__ == "__main__":
    key = jax.random.PRNGKey(0)
    key, kx = jax.random.split(key)

    B = 8
    x = jax.random.normal(kx, (B, 28 * 28), jnp.float32)
    params = init_params(key)

    out = simple_mnist_dnn_forward(x, params)
    out = jax.block_until_ready(out)

    # Reference mirroring the kernel numerics (bf16 operands, f32 accumulation),
    # on the unpadded shapes -- zero padding is exact so results must match.
    ref = x
    for i in range(1, 5):
        w = params[f"w{i}"].astype(jnp.bfloat16)
        b = params[f"b{i}"].astype(jnp.float32)
        acc = jnp.dot(ref.astype(jnp.bfloat16), w, preferred_element_type=jnp.float32)
        ref = jnp.maximum(acc + b, 0.0)

    assert out.shape == (B, 10)
    assert jnp.allclose(out, ref, atol=1e-3, rtol=1e-3)

    print("KERNEL_OK")
</pallas_src>

<mosaic_0001>
module attributes {stable_mosaic.version = 11 : i64} {
  func.func @mlp_kernel(%arg0: i32, %arg1: memref<128x896xbf16, #tpu.memory_space<vmem>>, %arg2: memref<896x768xbf16, #tpu.memory_space<vmem>>, %arg3: memref<1x768xf32, #tpu.memory_space<vmem>>, %arg4: memref<768x768xbf16, #tpu.memory_space<vmem>>, %arg5: memref<1x768xf32, #tpu.memory_space<vmem>>, %arg6: memref<768x256xbf16, #tpu.memory_space<vmem>>, %arg7: memref<1x256xf32, #tpu.memory_space<vmem>>, %arg8: memref<256x128xbf16, #tpu.memory_space<vmem>>, %arg9: memref<1x128xf32, #tpu.memory_space<vmem>>, %arg10: memref<128x128xf32, #tpu.memory_space<vmem>>) attributes {dimension_semantics = [#tpu.dimension_semantics<parallel>], iteration_bounds = array<i64: 1>, scalar_prefetch = 0 : i64, scratch_operands = 0 : i64, tpu.core_type = #tpu.core_type<tc>, window_params = [{transform_indices = @transform_0, window_bounds = array<i64: 128, 896>}, {pipeline_mode = #tpu.pipeline_mode<synchronous>, transform_indices = @transform_1, window_bounds = array<i64: 896, 768>}, {pipeline_mode = #tpu.pipeline_mode<synchronous>, transform_indices = @transform_2, window_bounds = array<i64: 1, 768>}, {pipeline_mode = #tpu.pipeline_mode<synchronous>, transform_indices = @transform_3, window_bounds = array<i64: 768, 768>}, {pipeline_mode = #tpu.pipeline_mode<synchronous>, transform_indices = @transform_4, window_bounds = array<i64: 1, 768>}, {pipeline_mode = #tpu.pipeline_mode<synchronous>, transform_indices = @transform_5, window_bounds = array<i64: 768, 256>}, {pipeline_mode = #tpu.pipeline_mode<synchronous>, transform_indices = @transform_6, window_bounds = array<i64: 1, 256>}, {pipeline_mode = #tpu.pipeline_mode<synchronous>, transform_indices = @transform_7, window_bounds = array<i64: 256, 128>}, {pipeline_mode = #tpu.pipeline_mode<synchronous>, transform_indices = @transform_8, window_bounds = array<i64: 1, 128>}, {transform_indices = @transform_9, window_bounds = array<i64: 128, 128>}]} {
    %c0 = arith.constant 0 : index
    %c0_0 = arith.constant 0 : index
    %0 = vector.load %arg1[%c0, %c0_0] : memref<128x896xbf16, #tpu.memory_space<vmem>>, vector<128x896xbf16>
    %c0_1 = arith.constant 0 : index
    %c0_2 = arith.constant 0 : index
    %1 = vector.load %arg2[%c0_1, %c0_2] : memref<896x768xbf16, #tpu.memory_space<vmem>>, vector<896x768xbf16>
    %cst = arith.constant dense<0.000000e+00> : vector<128x768xf32>
    %2 = tpu.matmul %0, %1, %cst {dimension_numbers = #tpu.dot_dimension_numbers<[1], [0], [0], [1], [0, 0, 1, 1], [], []>} : vector<128x896xbf16>, vector<896x768xbf16>, vector<128x768xf32> -> vector<128x768xf32>
    %c0_3 = arith.constant 0 : index
    %c0_4 = arith.constant 0 : index
    %3 = vector.load %arg3[%c0_3, %c0_4] : memref<1x768xf32, #tpu.memory_space<vmem>>, vector<1x768xf32>
    %4 = vector.broadcast %3 : vector<1x768xf32> to vector<128x768xf32>
    %5 = arith.addf %2, %4 : vector<128x768xf32>
    %cst_5 = arith.constant 0.000000e+00 : f32
    %6 = vector.broadcast %cst_5 : f32 to vector<128x768xf32>
    %7 = arith.maximumf %5, %6 : vector<128x768xf32>
    %8 = arith.truncf %7 : vector<128x768xf32> to vector<128x768xbf16>
    %c0_6 = arith.constant 0 : index
    %c0_7 = arith.constant 0 : index
    %9 = vector.load %arg4[%c0_6, %c0_7] : memref<768x768xbf16, #tpu.memory_space<vmem>>, vector<768x768xbf16>
    %cst_8 = arith.constant dense<0.000000e+00> : vector<128x768xf32>
    %10 = tpu.matmul %8, %9, %cst_8 {dimension_numbers = #tpu.dot_dimension_numbers<[1], [0], [0], [1], [0, 0, 1, 1], [], []>} : vector<128x768xbf16>, vector<768x768xbf16>, vector<128x768xf32> -> vector<128x768xf32>
    %c0_9 = arith.constant 0 : index
    %c0_10 = arith.constant 0 : index
    %11 = vector.load %arg5[%c0_9, %c0_10] : memref<1x768xf32, #tpu.memory_space<vmem>>, vector<1x768xf32>
    %12 = vector.broadcast %11 : vector<1x768xf32> to vector<128x768xf32>
    %13 = arith.addf %10, %12 : vector<128x768xf32>
    %cst_11 = arith.constant 0.000000e+00 : f32
    %14 = vector.broadcast %cst_11 : f32 to vector<128x768xf32>
    %15 = arith.maximumf %13, %14 : vector<128x768xf32>
    %16 = arith.truncf %15 : vector<128x768xf32> to vector<128x768xbf16>
    %c0_12 = arith.constant 0 : index
    %c0_13 = arith.constant 0 : index
    %17 = vector.load %arg6[%c0_12, %c0_13] : memref<768x256xbf16, #tpu.memory_space<vmem>>, vector<768x256xbf16>
    %cst_14 = arith.constant dense<0.000000e+00> : vector<128x256xf32>
    %18 = tpu.matmul %16, %17, %cst_14 {dimension_numbers = #tpu.dot_dimension_numbers<[1], [0], [0], [1], [0, 0, 1, 1], [], []>} : vector<128x768xbf16>, vector<768x256xbf16>, vector<128x256xf32> -> vector<128x256xf32>
    %c0_15 = arith.constant 0 : index
    %c0_16 = arith.constant 0 : index
    %19 = vector.load %arg7[%c0_15, %c0_16] : memref<1x256xf32, #tpu.memory_space<vmem>>, vector<1x256xf32>
    %20 = vector.broadcast %19 : vector<1x256xf32> to vector<128x256xf32>
    %21 = arith.addf %18, %20 : vector<128x256xf32>
    %cst_17 = arith.constant 0.000000e+00 : f32
    %22 = vector.broadcast %cst_17 : f32 to vector<128x256xf32>
    %23 = arith.maximumf %21, %22 : vector<128x256xf32>
    %24 = arith.truncf %23 : vector<128x256xf32> to vector<128x256xbf16>
    %c0_18 = arith.constant 0 : index
    %c0_19 = arith.constant 0 : index
    %25 = vector.load %arg8[%c0_18, %c0_19] : memref<256x128xbf16, #tpu.memory_space<vmem>>, vector<256x128xbf16>
    %cst_20 = arith.constant dense<0.000000e+00> : vector<128x128xf32>
    %26 = tpu.matmul %24, %25, %cst_20 {dimension_numbers = #tpu.dot_dimension_numbers<[1], [0], [0], [1], [0, 0, 1, 1], [], []>} : vector<128x256xbf16>, vector<256x128xbf16>, vector<128x128xf32> -> vector<128x128xf32>
    %c0_21 = arith.constant 0 : index
    %c0_22 = arith.constant 0 : index
    %27 = vector.load %arg9[%c0_21, %c0_22] : memref<1x128xf32, #tpu.memory_space<vmem>>, vector<1x128xf32>
    %28 = vector.broadcast %27 : vector<1x128xf32> to vector<128x128xf32>
    %29 = arith.addf %26, %28 : vector<128x128xf32>
    %cst_23 = arith.constant 0.000000e+00 : f32
    %30 = vector.broadcast %cst_23 : f32 to vector<128x128xf32>
    %31 = arith.maximumf %29, %30 : vector<128x128xf32>
    %c0_24 = arith.constant 0 : index
    %c0_25 = arith.constant 0 : index
    %32 = vector.load %arg10[%c0_24, %c0_25] : memref<128x128xf32, #tpu.memory_space<vmem>>, vector<128x128xf32>
    tpu.vector_store %arg10[%c0_24, %c0_25], %31 {strides = array<i32>} : memref<128x128xf32, #tpu.memory_space<vmem>>, vector<128x128xf32>,
    return
  }
  func.func @transform_0(%arg0: i32) -> (i32, i32) {
    %c0_i32 = arith.constant 0 : i32
    %c0_i32_0 = arith.constant 0 : i32
    return %arg0, %c0_i32 : i32, i32
  }
  func.func @transform_1(%arg0: i32) -> (i32, i32) {
    %c0_i32 = arith.constant 0 : i32
    %c0_i32_0 = arith.constant 0 : i32
    %c0_i32_1 = arith.constant 0 : i32
    return %c0_i32, %c0_i32_0 : i32, i32
  }
  func.func @transform_2(%arg0: i32) -> (i32, i32) {
    %c0_i32 = arith.constant 0 : i32
    %c0_i32_0 = arith.constant 0 : i32
    %c0_i32_1 = arith.constant 0 : i32
    return %c0_i32, %c0_i32_0 : i32, i32
  }
  func.func @transform_3(%arg0: i32) -> (i32, i32) {
    %c0_i32 = arith.constant 0 : i32
    %c0_i32_0 = arith.constant 0 : i32
    %c0_i32_1 = arith.constant 0 : i32
    return %c0_i32, %c0_i32_0 : i32, i32
  }
  func.func @transform_4(%arg0: i32) -> (i32, i32) {
    %c0_i32 = arith.constant 0 : i32
    %c0_i32_0 = arith.constant 0 : i32
    %c0_i32_1 = arith.constant 0 : i32
    return %c0_i32, %c0_i32_0 : i32, i32
  }
  func.func @transform_5(%arg0: i32) -> (i32, i32) {
    %c0_i32 = arith.constant 0 : i32
    %c0_i32_0 = arith.constant 0 : i32
    %c0_i32_1 = arith.constant 0 : i32
    return %c0_i32, %c0_i32_0 : i32, i32
  }
  func.func @transform_6(%arg0: i32) -> (i32, i32) {
    %c0_i32 = arith.constant 0 : i32
    %c0_i32_0 = arith.constant 0 : i32
    %c0_i32_1 = arith.constant 0 : i32
    return %c0_i32, %c0_i32_0 : i32, i32
  }
  func.func @transform_7(%arg0: i32) -> (i32, i32) {
    %c0_i32 = arith.constant 0 : i32
    %c0_i32_0 = arith.constant 0 : i32
    %c0_i32_1 = arith.constant 0 : i32
    return %c0_i32, %c0_i32_0 : i32, i32
  }
  func.func @transform_8(%arg0: i32) -> (i32, i32) {
    %c0_i32 = arith.constant 0 : i32
    %c0_i32_0 = arith.constant 0 : i32
    %c0_i32_1 = arith.constant 0 : i32
    return %c0_i32, %c0_i32_0 : i32, i32
  }
  func.func @transform_9(%arg0: i32) -> (i32, i32) {
    %c0_i32 = arith.constant 0 : i32
    %c0_i32_0 = arith.constant 0 : i32
    return %arg0, %c0_i32 : i32, i32
  }
}

</mosaic_0001>

<llo_original>
// kernel: tpu_custom_call.1
$region0: #{tpu_custom_call.1}
  #allocation0 [shape = 'u32[]', space=smem, size = 0x4, offset = 0x4, fixed_abs, tag = 'smem constant byte address 0x4 - core index']
  #allocation1 [shape = 'u32[144,128]{1,0:T(1,128)}', space=vmem, size = 0x12000, scoped, tag = 'internal scratch']
  %s0 = inlined_call_operand.hbm [shape: bf16[128,896], index: 0, kind: input, shape index: {}]
  %s1 = inlined_call_operand.hbm [shape: bf16[896,768], index: 1, kind: input, shape index: {}]
  %s2 = inlined_call_operand.hbm [shape: f32[1,768], index: 2, kind: input, shape index: {}]
  %s3 = inlined_call_operand.hbm [shape: bf16[768,768], index: 3, kind: input, shape index: {}]
  %s4 = inlined_call_operand.hbm [shape: f32[1,768], index: 4, kind: input, shape index: {}]
  %s5 = inlined_call_operand.hbm [shape: bf16[768,256], index: 5, kind: input, shape index: {}]
  %s6 = inlined_call_operand.hbm [shape: f32[1,256], index: 6, kind: input, shape index: {}]
  %s7 = inlined_call_operand.hbm [shape: bf16[256,128], index: 7, kind: input, shape index: {}]
  %s8 = inlined_call_operand.hbm [shape: f32[1,128], index: 8, kind: input, shape index: {}]
  %s9 = inlined_call_operand.hbm [shape: f32[128,128], index: 9, kind: output, shape index: {}]
  %s10 = sld [smem:[#allocation0]]
  $region82: #{tpu_custom_call.1} parent=0
    _
  %s12 = ssub.s32 1, %s10
  %s13 = scalar_select 0, %s12, %s10
  $region1: #{tpu_custom_call.1} parent=0
    #allocation2 [shape = 'u8[229376]{0}', space=vmem, size = 0x38000, scoped, tag = 'input window, operand 0, single buffered']
    #allocation3 [shape = 's32[1]{0}', space=sflag, size = 0x4, scoped, tag = 'scoped memory for tpu_custom_call.1']
    #allocation4 [shape = 's32[1]{0}', space=sflag, size = 0x4, scoped, tag = 'scoped memory for tpu_custom_call.1']
    #allocation5 [shape = 'u8[1376256]{0}', space=vmem, size = 0x150000, scoped, tag = 'input window, operand 1, single buffered']
    #allocation6 [shape = 's32[1]{0}', space=sflag, size = 0x4, scoped, tag = 'scoped memory for tpu_custom_call.1']
    #allocation7 [shape = 'u8[3072]{0}', space=vmem, size = 0xc00, scoped, tag = 'input window, operand 2, single buffered']
    #allocation8 [shape = 'u8[1179648]{0}', space=vmem, size = 0x120000, scoped, tag = 'input window, operand 3, single buffered']
    #allocation9 [shape = 's32[1]{0}', space=sflag, size = 0x4, scoped, tag = 'scoped memory for tpu_custom_call.1']
    #allocation10 [shape = 'u8[3072]{0}', space=vmem, size = 0xc00, scoped, tag = 'input window, operand 4, single buffered']
    #allocation11 [shape = 'u8[393216]{0}', space=vmem, size = 0x60000, scoped, tag = 'input window, operand 5, single buffered']
    #allocation12 [shape = 's32[1]{0}', space=sflag, size = 0x4, scoped, tag = 'scoped memory for tpu_custom_call.1']
    #allocation13 [shape = 'u8[1024]{0}', space=vmem, size = 0x400, scoped, tag = 'input window, operand 6, single buffered']
    #allocation14 [shape = 'u8[65536]{0}', space=vmem, size = 0x10000, scoped, tag = 'input window, operand 7, single buffered']
    #allocation15 [shape = 's32[1]{0}', space=sflag, size = 0x4, scoped, tag = 'scoped memory for tpu_custom_call.1']
    #allocation16 [shape = 'u8[512]{0}', space=vmem, size = 0x400, scoped, tag = 'input window, operand 8, single buffered']
    #allocation17 [shape = 'u8[65536]{0}', space=vmem, size = 0x10000, scoped, tag = 'output window, operand 0, single buffered']
    %14 = vsyncpa [#allocation3], 0
    %15 = vsyncpa [#allocation6], 0
    %16 = vsyncpa [#allocation9], 0
    %17 = vsyncpa [#allocation12], 0
    %18 = vsyncpa [#allocation15], 0
    %19 = vsyncpa [#allocation4], 0
    // Predicated region
    $region2: #{tpu_custom_call.1} parent=1 // pred_check
      _
    $region3: #{tpu_custom_call.1} parent=1 // pred_check_branch
      %21 = sbr.rel (0) target = $region5
    $region4: #{tpu_custom_call.1} parent=1 // pred_region
      %s23 = ssub.s32 7168, 7168
      %24 = vsyncadd [#allocation3], %s23
      %s25 = sshll.u32 [#allocation2], 4
      %s26 = int_to_ptr.vmem [resolvable:$true] %s25
      %31 = dma.hbm_to_vmem [thread:$0]  %s0, 7168, %s26, [#allocation3], 448, 448, 28
    $region5: #{tpu_custom_call.1} parent=1 // pred_fallthru
      _
    // Predicated region
    $region6: #{tpu_custom_call.1} parent=1 // pred_check
      _
    $region7: #{tpu_custom_call.1} parent=1 // pred_check_branch
      %33 = sbr.rel (0) target = $region9
    $region8: #{tpu_custom_call.1} parent=1 // pred_region
      %s35 = ssub.s32 43008, 43008
      %36 = vsyncadd [#allocation6], %s35
      %s37 = sshll.u32 [#allocation5], 4
      %s38 = int_to_ptr.vmem [resolvable:$true] %s37
      %43 = dma.hbm_to_vmem [thread:$0]  %s1, 43008, %s38, [#allocation6], 384, 384, 24
    $region9: #{tpu_custom_call.1} parent=1 // pred_fallthru
      _
    // Predicated region
    $region10: #{tpu_custom_call.1} parent=1 // pred_check
      _
    $region11: #{tpu_custom_call.1} parent=1 // pred_check_branch
      %45 = sbr.rel (0) target = $region13
    $region12: #{tpu_custom_call.1} parent=1 // pred_region
      %s47 = ssub.s32 96, 96
      %48 = vsyncadd [#allocation6], %s47
      %s50 = sshll.u32 [#allocation7], 4
      %s51 = int_to_ptr.vmem [resolvable:$true] %s50
      %53 = dma.hbm_to_vmem [thread:$0]  %s2, 96, %s51, [#allocation6]
    $region13: #{tpu_custom_call.1} parent=1 // pred_fallthru
      _
    // Predicated region
    $region14: #{tpu_custom_call.1} parent=1 // pred_check
      _
    $region15: #{tpu_custom_call.1} parent=1 // pred_check_branch
      %55 = sbr.rel (0) target = $region17
    $region16: #{tpu_custom_call.1} parent=1 // pred_region
      %s57 = ssub.s32 36864, 36864
      %58 = vsyncadd [#allocation9], %s57
      %s59 = sshll.u32 [#allocation8], 4
      %s60 = int_to_ptr.vmem [resolvable:$true] %s59
      %65 = dma.hbm_to_vmem [thread:$0]  %s3, 36864, %s60, [#allocation9], 384, 384, 24
    $region17: #{tpu_custom_call.1} parent=1 // pred_fallthru
      _
    // Predicated region
    $region18: #{tpu_custom_call.1} parent=1 // pred_check
      _
    $region19: #{tpu_custom_call.1} parent=1 // pred_check_branch
      %67 = sbr.rel (0) target = $region21
    $region20: #{tpu_custom_call.1} parent=1 // pred_region
      %s69 = ssub.s32 96, 96
      %70 = vsyncadd [#allocation9], %s69
      %s72 = sshll.u32 [#allocation10], 4
      %s73 = int_to_ptr.vmem [resolvable:$true] %s72
      %75 = dma.hbm_to_vmem [thread:$0]  %s4, 96, %s73, [#allocation9]
    $region21: #{tpu_custom_call.1} parent=1 // pred_fallthru
      _
    // Predicated region
    $region22: #{tpu_custom_call.1} parent=1 // pred_check
      _
    $region23: #{tpu_custom_call.1} parent=1 // pred_check_branch
      %77 = sbr.rel (0) target = $region25
    $region24: #{tpu_custom_call.1} parent=1 // pred_region
      %s79 = ssub.s32 12288, 12288
      %80 = vsyncadd [#allocation12], %s79
      %s81 = sshll.u32 [#allocation11], 4
      %s82 = int_to_ptr.vmem [resolvable:$true] %s81
      %87 = dma.hbm_to_vmem [thread:$0]  %s5, 12288, %s82, [#allocation12], 128, 128, 8
    $region25: #{tpu_custom_call.1} parent=1 // pred_fallthru
      _
    // Predicated region
    $region26: #{tpu_custom_call.1} parent=1 // pred_check
      _
    $region27: #{tpu_custom_call.1} parent=1 // pred_check_branch
      %89 = sbr.rel (0) target = $region29
    $region28: #{tpu_custom_call.1} parent=1 // pred_region
      %s91 = ssub.s32 32, 32
      %92 = vsyncadd [#allocation12], %s91
      %s94 = sshll.u32 [#allocation13], 4
      %s95 = int_to_ptr.vmem [resolvable:$true] %s94
      %97 = dma.hbm_to_vmem [thread:$0]  %s6, 32, %s95, [#allocation12]
    $region29: #{tpu_custom_call.1} parent=1 // pred_fallthru
      _
    // Predicated region
    $region30: #{tpu_custom_call.1} parent=1 // pred_check
      _
    $region31: #{tpu_custom_call.1} parent=1 // pred_check_branch
      %99 = sbr.rel (0) target = $region33
    $region32: #{tpu_custom_call.1} parent=1 // pred_region
      %s101 = ssub.s32 2048, 2048
      %102 = vsyncadd [#allocation15], %s101
      %s103 = sshll.u32 [#allocation14], 4
      %s104 = int_to_ptr.vmem [resolvable:$true] %s103
      %109 = dma.hbm_to_vmem [thread:$0]  %s7, 2048, %s104, [#allocation15], 64, 64, 4
    $region33: #{tpu_custom_call.1} parent=1 // pred_fallthru
      _
    // Predicated region
    $region34: #{tpu_custom_call.1} parent=1 // pred_check
      _
    $region35: #{tpu_custom_call.1} parent=1 // pred_check_branch
      %111 = sbr.rel (0) target = $region37
    $region36: #{tpu_custom_call.1} parent=1 // pred_region
      %s113 = ssub.s32 16, 16
      %114 = vsyncadd [#allocation15], %s113
      %s116 = sshll.u32 [#allocation16], 4
      %s117 = int_to_ptr.vmem [resolvable:$true] %s116
      %119 = dma.hbm_to_vmem [thread:$0]  %s8, 16, %s117, [#allocation15]
    $region37: #{tpu_custom_call.1} parent=1 // pred_fallthru
      _
    // Predicated region
    $region38: #{tpu_custom_call.1} parent=1 // pred_check
      _
    $region39: #{tpu_custom_call.1} parent=1 // pred_check_branch
      %121 = sbr.rel (0) target = $region41
    $region40: #{tpu_custom_call.1} parent=1 // pred_region
      %122 = dma.done [#allocation3], 7168
    $region41: #{tpu_custom_call.1} parent=1 // pred_fallthru
      _
    // Predicated region
    $region42: #{tpu_custom_call.1} parent=1 // pred_check
      _
    $region43: #{tpu_custom_call.1} parent=1 // pred_check_branch
      %124 = sbr.rel (0) target = $region45
    $region44: #{tpu_custom_call.1} parent=1 // pred_region
      %125 = dma.done [#allocation6], 43008
    $region45: #{tpu_custom_call.1} parent=1 // pred_fallthru
      _
    // Predicated region
    $region46: #{tpu_custom_call.1} parent=1 // pred_check
      _
    $region47: #{tpu_custom_call.1} parent=1 // pred_check_branch
      %127 = sbr.rel (0) target = $region49
    $region48: #{tpu_custom_call.1} parent=1 // pred_region
      %128 = dma.done [#allocation6], 96
    $region49: #{tpu_custom_call.1} parent=1 // pred_fallthru
      _
    // Predicated region
    $region50: #{tpu_custom_call.1} parent=1 // pred_check
      _
    $region51: #{tpu_custom_call.1} parent=1 // pred_check_branch
      %130 = sbr.rel (0) target = $region53
    $region52: #{tpu_custom_call.1} parent=1 // pred_region
      %131 = dma.done [#allocation9], 36864
    $region53: #{tpu_custom_call.1} parent=1 // pred_fallthru
      _
    // Predicated region
    $region54: #{tpu_custom_call.1} parent=1 // pred_check
      _
    $region55: #{tpu_custom_call.1} parent=1 // pred_check_branch
      %133 = sbr.rel (0) target = $region57
    $region56: #{tpu_custom_call.1} parent=1 // pred_region
      %134 = dma.done [#allocation9], 96
    $region57: #{tpu_custom_call.1} parent=1 // pred_fallthru
      _
    // Predicated region
    $region58: #{tpu_custom_call.1} parent=1 // pred_check
      _
    $region59: #{tpu_custom_call.1} parent=1 // pred_check_branch
      %136 = sbr.rel (0) target = $region61
    $region60: #{tpu_custom_call.1} parent=1 // pred_region
      %137 = dma.done [#allocation12], 12288
    $region61: #{tpu_custom_call.1} parent=1 // pred_fallthru
      _
    // Predicated region
    $region62: #{tpu_custom_call.1} parent=1 // pred_check
      _
    $region63: #{tpu_custom_call.1} parent=1 // pred_check_branch
      %139 = sbr.rel (0) target = $region65
    $region64: #{tpu_custom_call.1} parent=1 // pred_region
      %140 = dma.done [#allocation12], 32
    $region65: #{tpu_custom_call.1} parent=1 // pred_fallthru
      _
    // Predicated region
    $region66: #{tpu_custom_call.1} parent=1 // pred_check
      _
    $region67: #{tpu_custom_call.1} parent=1 // pred_check_branch
      %142 = sbr.rel (0) target = $region69
    $region68: #{tpu_custom_call.1} parent=1 // pred_region
      %143 = dma.done [#allocation15], 2048
    $region69: #{tpu_custom_call.1} parent=1 // pred_fallthru
      _
    // Predicated region
    $region70: #{tpu_custom_call.1} parent=1 // pred_check
      _
    $region71: #{tpu_custom_call.1} parent=1 // pred_check_branch
      %145 = sbr.rel (0) target = $region73
    $region72: #{tpu_custom_call.1} parent=1 // pred_region
      %146 = dma.done [#allocation15], 16
    $region73: #{tpu_custom_call.1} parent=1 // pred_fallthru
      _
    %v148 = vld [vmem:[#allocation2] sm:$0xff]
    %v149 = vld [vmem:[#allocation2 + $0x8] sm:$0xff]
    %v150 = vld [vmem:[#allocation2 + $0x10] sm:$0xff]
    %v151 = vld [vmem:[#allocation2 + $0x18] sm:$0xf]
    %v152 = vld [vmem:[#allocation2 + $0x1c] sm:$0xff]
    %v153 = vld [vmem:[#allocation2 + $0x24] sm:$0xff]
    %v154 = vld [vmem:[#allocation2 + $0x2c] sm:$0xff]
    %v155 = vld [vmem:[#allocation2 + $0x34] sm:$0xf]
    %v156 = vld [vmem:[#allocation2 + $0x38] sm:$0xff]
    %v157 = vld [vmem:[#allocation2 + $0x40] sm:$0xff]
    %v158 = vld [vmem:[#allocation2 + $0x48] sm:$0xff]
    %v159 = vld [vmem:[#allocation2 + $0x50] sm:$0xf]
    %v160 = vld [vmem:[#allocation2 + $0x54] sm:$0xff]
    %v161 = vld [vmem:[#allocation2 + $0x5c] sm:$0xff]
    %v162 = vld [vmem:[#allocation2 + $0x64] sm:$0xff]
    %v163 = vld [vmem:[#allocation2 + $0x6c] sm:$0xf]
    %v164 = vld [vmem:[#allocation2 + $0x70] sm:$0xff]
    %v165 = vld [vmem:[#allocation2 + $0x78] sm:$0xff]
    %v166 = vld [vmem:[#allocation2 + $0x80] sm:$0xff]
    %v167 = vld [vmem:[#allocation2 + $0x88] sm:$0xf]
    %v168 = vld [vmem:[#allocation2 + $0x8c] sm:$0xff]
    %v169 = vld [vmem:[#allocation2 + $0x94] sm:$0xff]
    %v170 = vld [vmem:[#allocation2 + $0x9c] sm:$0xff]
    %v171 = vld [vmem:[#allocation2 + $0xa4] sm:$0xf]
    %v172 = vld [vmem:[#allocation2 + $0xa8] sm:$0xff]
    %v173 = vld [vmem:[#allocation2 + $0xb0] sm:$0xff]
    %v174 = vld [vmem:[#allocation2 + $0xb8] sm:$0xff]
    %v175 = vld [vmem:[#allocation2 + $0xc0] sm:$0xf]
    %v176 = vld [vmem:[#allocation2 + $0xc4] sm:$0xff]
    %v177 = vld [vmem:[#allocation2 + $0xcc] sm:$0xff]
    %v178 = vld [vmem:[#allocation2 + $0xd4] sm:$0xff]
    %v179 = vld [vmem:[#allocation2 + $0xdc] sm:$0xf]
    %v180 = vld [vmem:[#allocation2 + $0xe0] sm:$0xff]
    %v181 = vld [vmem:[#allocation2 + $0xe8] sm:$0xff]
    %v182 = vld [vmem:[#allocation2 + $0xf0] sm:$0xff]
    %v183 = vld [vmem:[#allocation2 + $0xf8] sm:$0xf]
    %v184 = vld [vmem:[#allocation2 + $0xfc] sm:$0xff]
    %v185 = vld [vmem:[#allocation2 + $0x104] sm:$0xff]
    %v186 = vld [vmem:[#allocation2 + $0x10c] sm:$0xff]
    %v187 = vld [vmem:[#allocation2 + $0x114] sm:$0xf]
    %v188 = vld [vmem:[#allocation2 + $0x118] sm:$0xff]
    %v189 = vld [vmem:[#allocation2 + $0x120] sm:$0xff]
    %v190 = vld [vmem:[#allocation2 + $0x128] sm:$0xff]
    %v191 = vld [vmem:[#allocation2 + $0x130] sm:$0xf]
    %v192 = vld [vmem:[#allocation2 + $0x134] sm:$0xff]
    %v193 = vld [vmem:[#allocation2 + $0x13c] sm:$0xff]
    %v194 = vld [vmem:[#allocation2 + $0x144] sm:$0xff]
    %v195 = vld [vmem:[#allocation2 + $0x14c] sm:$0xf]
    %v196 = vld [vmem:[#allocation2 + $0x150] sm:$0xff]
    %v197 = vld [vmem:[#allocation2 + $0x158] sm:$0xff]
    %v198 = vld [vmem:[#allocation2 + $0x160] sm:$0xff]
    %v199 = vld [vmem:[#allocation2 + $0x168] sm:$0xf]
    %v200 = vld [vmem:[#allocation2 + $0x16c] sm:$0xff]
    %v201 = vld [vmem:[#allocation2 + $0x174] sm:$0xff]
    %v202 = vld [vmem:[#allocation2 + $0x17c] sm:$0xff]
    %v203 = vld [vmem:[#allocation2 + $0x184] sm:$0xf]
    %v204 = vld [vmem:[#allocation2 + $0x188] sm:$0xff]
    %v205 = vld [vmem:[#allocation2 + $0x190] sm:$0xff]
    %v206 = vld [vmem:[#allocation2 + $0x198] sm:$0xff]
    %v207 = vld [vmem:[#allocation2 + $0x1a0] sm:$0xf]
    %v208 = vld [vmem:[#allocation2 + $0x1a4] sm:$0xff]
    %v209 = vld [vmem:[#allocation2 + $0x1ac] sm:$0xff]
    %v210 = vld [vmem:[#allocation2 + $0x1b4] sm:$0xff]
    %v211 = vld [vmem:[#allocation2 + $0x1bc] sm:$0xf]
    %v212 = vld [vmem:[#allocation5] sm:$0xff]
    %v213 = vld [vmem:[#allocation5 + $0x8] sm:$0xff]
    %v214 = vld [vmem:[#allocation5 + $0x10] sm:$0xff]
    %v215 = vld [vmem:[#allocation5 + $0x18] sm:$0xff]
    %v216 = vld [vmem:[#allocation5 + $0x20] sm:$0xff]
    %v217 = vld [vmem:[#allocation5 + $0x28] sm:$0xff]
    %v218 = vld [vmem:[#allocation5 + $0x30] sm:$0xff]
    %v219 = vld [vmem:[#allocation5 + $0x38] sm:$0xff]
    %v220 = vld [vmem:[#allocation5 + $0x40] sm:$0xff]
    %v221 = vld [vmem:[#allocation5 + $0x48] sm:$0xff]
    %v222 = vld [vmem:[#allocation5 + $0x50] sm:$0xff]
    %v223 = vld [vmem:[#allocation5 + $0x58] sm:$0xff]
    %v224 = vld [vmem:[#allocation5 + $0x60] sm:$0xff]
    %v225 = vld [vmem:[#allocation5 + $0x68] sm:$0xff]
    %v226 = vld [vmem:[#allocation5 + $0x70] sm:$0xff]
    %v227 = vld [vmem:[#allocation5 + $0x78] sm:$0xff]
    %v228 = vld [vmem:[#allocation5 + $0x80] sm:$0xff]
    %v229 = vld [vmem:[#allocation5 + $0x88] sm:$0xff]
    %v230 = vld [vmem:[#allocation5 + $0x90] sm:$0xff]
    %v231 = vld [vmem:[#allocation5 + $0x98] sm:$0xff]
    %v232 = vld [vmem:[#allocation5 + $0xa0] sm:$0xff]
    %v233 = vld [vmem:[#allocation5 + $0xa8] sm:$0xff]
    %v234 = vld [vmem:[#allocation5 + $0xb0] sm:$0xff]
    %v235 = vld [vmem:[#allocation5 + $0xb8] sm:$0xff]
    %v236 = vld [vmem:[#allocation5 + $0xc0] sm:$0xff]
    %v237 = vld [vmem:[#allocation5 + $0xc8] sm:$0xff]
    %v238 = vld [vmem:[#allocation5 + $0xd0] sm:$0xff]
    %v239 = vld [vmem:[#allocation5 + $0xd8] sm:$0xff]
    %v240 = vld [vmem:[#allocation5 + $0xe0] sm:$0xff]
    %v241 = vld [vmem:[#allocation5 + $0xe8] sm:$0xff]
    %v242 = vld [vmem:[#allocation5 + $0xf0] sm:$0xff]
    %v243 = vld [vmem:[#allocation5 + $0xf8] sm:$0xff]
    %v244 = vld [vmem:[#allocation5 + $0x100] sm:$0xff]
    %v245 = vld [vmem:[#allocation5 + $0x108] sm:$0xff]
    %v246 = vld [vmem:[#allocation5 + $0x110] sm:$0xff]
    %v247 = vld [vmem:[#allocation5 + $0x118] sm:$0xff]
    %v248 = vld [vmem:[#allocation5 + $0x120] sm:$0xff]
    %v249 = vld [vmem:[#allocation5 + $0x128] sm:$0xff]
    %v250 = vld [vmem:[#allocation5 + $0x130] sm:$0xff]
    %v251 = vld [vmem:[#allocation5 + $0x138] sm:$0xff]
    %v252 = vld [vmem:[#allocation5 + $0x140] sm:$0xff]
    %v253 = vld [vmem:[#allocation5 + $0x148] sm:$0xff]
    %v254 = vld [vmem:[#allocation5 + $0x150] sm:$0xff]
    %v255 = vld [vmem:[#allocation5 + $0x158] sm:$0xff]
    %v256 = vld [vmem:[#allocation5 + $0x160] sm:$0xff]
    %v257 = vld [vmem:[#allocation5 + $0x168] sm:$0xff]
    %v258 = vld [vmem:[#allocation5 + $0x170] sm:$0xff]
    %v259 = vld [vmem:[#allocation5 + $0x178] sm:$0xff]
    %v260 = vld [vmem:[#allocation5 + $0x180] sm:$0xff]
    %v261 = vld [vmem:[#allocation5 + $0x188] sm:$0xff]
    %v262 = vld [vmem:[#allocation5 + $0x190] sm:$0xff]
    %v263 = vld [vmem:[#allocation5 + $0x198] sm:$0xff]
    %v264 = vld [vmem:[#allocation5 + $0x1a0] sm:$0xff]
    %v265 = vld [vmem:[#allocation5 + $0x1a8] sm:$0xff]
    %v266 = vld [vmem:[#allocation5 + $0x1b0] sm:$0xff]
    %v267 = vld [vmem:[#allocation5 + $0x1b8] sm:$0xff]
    %v268 = vld [vmem:[#allocation5 + $0x1c0] sm:$0xff]
    %v269 = vld [vmem:[#allocation5 + $0x1c8] sm:$0xff]
    %v270 = vld [vmem:[#allocation5 + $0x1d0] sm:$0xff]
    %v271 = vld [vmem:[#allocation5 + $0x1d8] sm:$0xff]
    %v272 = vld [vmem:[#allocation5 + $0x1e0] sm:$0xff]
    %v273 = vld [vmem:[#allocation5 + $0x1e8] sm:$0xff]
    %v274 = vld [vmem:[#allocation5 + $0x1f0] sm:$0xff]
    %v275 = vld [vmem:[#allocation5 + $0x1f8] sm:$0xff]
    %v276 = vld [vmem:[#allocation5 + $0x200] sm:$0xff]
    %v277 = vld [vmem:[#allocation5 + $0x208] sm:$0xff]
    %v278 = vld [vmem:[#allocation5 + $0x210] sm:$0xff]
    %v279 = vld [vmem:[#allocation5 + $0x218] sm:$0xff]
    %v280 = vld [vmem:[#allocation5 + $0x220] sm:$0xff]
    %v281 = vld [vmem:[#allocation5 + $0x228] sm:$0xff]
    %v282 = vld [vmem:[#allocation5 + $0x230] sm:$0xff]
    %v283 = vld [vmem:[#allocation5 + $0x238] sm:$0xff]
    %v284 = vld [vmem:[#allocation5 + $0x240] sm:$0xff]
    %v285 = vld [vmem:[#allocation5 + $0x248] sm:$0xff]
    %v286 = vld [vmem:[#allocation5 + $0x250] sm:$0xff]
    %v287 = vld [vmem:[#allocation5 + $0x258] sm:$0xff]
    %v288 = vld [vmem:[#allocation5 + $0x260] sm:$0xff]
    %v289 = vld [vmem:[#allocation5 + $0x268] sm:$0xff]
    %v290 = vld [vmem:[#allocation5 + $0x270] sm:$0xff]
    %v291 = vld [vmem:[#allocation5 + $0x278] sm:$0xff]
    %v292 = vld [vmem:[#allocation5 + $0x280] sm:$0xff]
    %v293 = vld [vmem:[#allocation5 + $0x288] sm:$0xff]
    %v294 = vld [vmem:[#allocation5 + $0x290] sm:$0xff]
    %v295 = vld [vmem:[#allocation5 + $0x298] sm:$0xff]
    %v296 = vld [vmem:[#allocation5 + $0x2a0] sm:$0xff]
    %v297 = vld [vmem:[#allocation5 + $0x2a8] sm:$0xff]
    %v298 = vld [vmem:[#allocation5 + $0x2b0] sm:$0xff]
    %v299 = vld [vmem:[#allocation5 + $0x2b8] sm:$0xff]
    %v300 = vld [vmem:[#allocation5 + $0x2c0] sm:$0xff]
    %v301 = vld [vmem:[#allocation5 + $0x2c8] sm:$0xff]
    %v302 = vld [vmem:[#allocation5 + $0x2d0] sm:$0xff]
    %v303 = vld [vmem:[#allocation5 + $0x2d8] sm:$0xff]
    %v304 = vld [vmem:[#allocation5 + $0x2e0] sm:$0xff]
    %v305 = vld [vmem:[#allocation5 + $0x2e8] sm:$0xff]
    %v306 = vld [vmem:[#allocation5 + $0x2f0] sm:$0xff]
    %v307 = vld [vmem:[#allocation5 + $0x2f8] sm:$0xff]
    %v308 = vld [vmem:[#allocation5 + $0x300] sm:$0xff]
    %v309 = vld [vmem:[#allocation5 + $0x308] sm:$0xff]
    %v310 = vld [vmem:[#allocation5 + $0x310] sm:$0xff]
    %v311 = vld [vmem:[#allocation5 + $0x318] sm:$0xff]
    %v312 = vld [vmem:[#allocation5 + $0x320] sm:$0xff]
    %v313 = vld [vmem:[#allocation5 + $0x328] sm:$0xff]
    %v314 = vld [vmem:[#allocation5 + $0x330] sm:$0xff]
    %v315 = vld [vmem:[#allocation5 + $0x338] sm:$0xff]
    %v316 = vld [vmem:[#allocation5 + $0x340] sm:$0xff]
    %v317 = vld [vmem:[#allocation5 + $0x348] sm:$0xff]
    %v318 = vld [vmem:[#allocation5 + $0x350] sm:$0xff]
    %v319 = vld [vmem:[#allocation5 + $0x358] sm:$0xff]
    %v320 = vld [vmem:[#allocation5 + $0x360] sm:$0xff]
    %v321 = vld [vmem:[#allocation5 + $0x368] sm:$0xff]
    %v322 = vld [vmem:[#allocation5 + $0x370] sm:$0xff]
    %v323 = vld [vmem:[#allocation5 + $0x378] sm:$0xff]
    %v324 = vld [vmem:[#allocation5 + $0x380] sm:$0xff]
    %v325 = vld [vmem:[#allocation5 + $0x388] sm:$0xff]
    %v326 = vld [vmem:[#allocation5 + $0x390] sm:$0xff]
    %v327 = vld [vmem:[#allocation5 + $0x398] sm:$0xff]
    %v328 = vld [vmem:[#allocation5 + $0x3a0] sm:$0xff]
    %v329 = vld [vmem:[#allocation5 + $0x3a8] sm:$0xff]
    %v330 = vld [vmem:[#allocation5 + $0x3b0] sm:$0xff]
    %v331 = vld [vmem:[#allocation5 + $0x3b8] sm:$0xff]
    %v332 = vld [vmem:[#allocation5 + $0x3c0] sm:$0xff]
    %v333 = vld [vmem:[#allocation5 + $0x3c8] sm:$0xff]
    %v334 = vld [vmem:[#allocation5 + $0x3d0] sm:$0xff]
    %v335 = vld [vmem:[#allocation5 + $0x3d8] sm:$0xff]
    %v336 = vld [vmem:[#allocation5 + $0x3e0] sm:$0xff]
    %v337 = vld [vmem:[#allocation5 + $0x3e8] sm:$0xff]
    %v338 = vld [vmem:[#allocation5 + $0x3f0] sm:$0xff]
    %v339 = vld [vmem:[#allocation5 + $0x3f8] sm:$0xff]
    %v340 = vld [vmem:[#allocation5 + $0x400] sm:$0xff]
    %v341 = vld [vmem:[#allocation5 + $0x408] sm:$0xff]
    %v342 = vld [vmem:[#allocation5 + $0x410] sm:$0xff]
    %v343 = vld [vmem:[#allocation5 + $0x418] sm:$0xff]
    %v344 = vld [vmem:[#allocation5 + $0x420] sm:$0xff]
    %v345 = vld [vmem:[#allocation5 + $0x428] sm:$0xff]
    %v346 = vld [vmem:[#allocation5 + $0x430] sm:$0xff]
    %v347 = vld [vmem:[#allocation5 + $0x438] sm:$0xff]
    %v348 = vld [vmem:[#allocation5 + $0x440] sm:$0xff]
    %v349 = vld [vmem:[#allocation5 + $0x448] sm:$0xff]
    %v350 = vld [vmem:[#allocation5 + $0x450] sm:$0xff]
    %v351 = vld [vmem:[#allocation5 + $0x458] sm:$0xff]
    %v352 = vld [vmem:[#allocation5 + $0x460] sm:$0xff]
    %v353 = vld [vmem:[#allocation5 + $0x468] sm:$0xff]
    %v354 = vld [vmem:[#allocation5 + $0x470] sm:$0xff]
    %v355 = vld [vmem:[#allocation5 + $0x478] sm:$0xff]
    %v356 = vld [vmem:[#allocation5 + $0x480] sm:$0xff]
    %v357 = vld [vmem:[#allocation5 + $0x488] sm:$0xff]
    %v358 = vld [vmem:[#allocation5 + $0x490] sm:$0xff]
    %v359 = vld [vmem:[#allocation5 + $0x498] sm:$0xff]
    %v360 = vld [vmem:[#allocation5 + $0x4a0] sm:$0xff]
    %v361 = vld [vmem:[#allocation5 + $0x4a8] sm:$0xff]
    %v362 = vld [vmem:[#allocation5 + $0x4b0] sm:$0xff]
    %v363 = vld [vmem:[#allocation5 + $0x4b8] sm:$0xff]
    %v364 = vld [vmem:[#allocation5 + $0x4c0] sm:$0xff]
    %v365 = vld [vmem:[#allocation5 + $0x4c8] sm:$0xff]
    %v366 = vld [vmem:[#allocation5 + $0x4d0] sm:$0xff]
    %v367 = vld [vmem:[#allocation5 + $0x4d8] sm:$0xff]
    %v368 = vld [vmem:[#allocation5 + $0x4e0] sm:$0xff]
    %v369 = vld [vmem:[#allocation5 + $0x4e8] sm:$0xff]
    %v370 = vld [vmem:[#allocation5 + $0x4f0] sm:$0xff]
    %v371 = vld [vmem:[#allocation5 + $0x4f8] sm:$0xff]
    %v372 = vld [vmem:[#allocation5 + $0x500] sm:$0xff]
    %v373 = vld [vmem:[#allocation5 + $0x508] sm:$0xff]
    %v374 = vld [vmem:[#allocation5 + $0x510] sm:$0xff]
    %v375 = vld [vmem:[#allocation5 + $0x518] sm:$0xff]
    %v376 = vld [vmem:[#allocation5 + $0x520] sm:$0xff]
    %v377 = vld [vmem:[#allocation5 + $0x528] sm:$0xff]
    %v378 = vld [vmem:[#allocation5 + $0x530] sm:$0xff]
    %v379 = vld [vmem:[#allocation5 + $0x538] sm:$0xff]
    %v380 = vld [vmem:[#allocation5 + $0x540] sm:$0xff]
    %v381 = vld [vmem:[#allocation5 + $0x548] sm:$0xff]
    %v382 = vld [vmem:[#allocation5 + $0x550] sm:$0xff]
    %v383 = vld [vmem:[#allocation5 + $0x558] sm:$0xff]
    %v384 = vld [vmem:[#allocation5 + $0x560] sm:$0xff]
    %v385 = vld [vmem:[#allocation5 + $0x568] sm:$0xff]
    %v386 = vld [vmem:[#allocation5 + $0x570] sm:$0xff]
    %v387 = vld [vmem:[#allocation5 + $0x578] sm:$0xff]
    %v388 = vld [vmem:[#allocation5 + $0x580] sm:$0xff]
    %v389 = vld [vmem:[#allocation5 + $0x588] sm:$0xff]
    %v390 = vld [vmem:[#allocation5 + $0x590] sm:$0xff]
    %v391 = vld [vmem:[#allocation5 + $0x598] sm:$0xff]
    %v392 = vld [vmem:[#allocation5 + $0x5a0] sm:$0xff]
    %v393 = vld [vmem:[#allocation5 + $0x5a8] sm:$0xff]
    %v394 = vld [vmem:[#allocation5 + $0x5b0] sm:$0xff]
    %v395 = vld [vmem:[#allocation5 + $0x5b8] sm:$0xff]
    %v396 = vld [vmem:[#allocation5 + $0x5c0] sm:$0xff]
    %v397 = vld [vmem:[#allocation5 + $0x5c8] sm:$0xff]
    %v398 = vld [vmem:[#allocation5 + $0x5d0] sm:$0xff]
    %v399 = vld [vmem:[#allocation5 + $0x5d8] sm:$0xff]
    %v400 = vld [vmem:[#allocation5 + $0x5e0] sm:$0xff]
    %v401 = vld [vmem:[#allocation5 + $0x5e8] sm:$0xff]
    %v402 = vld [vmem:[#allocation5 + $0x5f0] sm:$0xff]
    %v403 = vld [vmem:[#allocation5 + $0x5f8] sm:$0xff]
    %v404 = vld [vmem:[#allocation5 + $0x600] sm:$0xff]
    %v405 = vld [vmem:[#allocation5 + $0x608] sm:$0xff]
    %v406 = vld [vmem:[#allocation5 + $0x610] sm:$0xff]
    %v407 = vld [vmem:[#allocation5 + $0x618] sm:$0xff]
    %v408 = vld [vmem:[#allocation5 + $0x620] sm:$0xff]
    %v409 = vld [vmem:[#allocation5 + $0x628] sm:$0xff]
    %v410 = vld [vmem:[#allocation5 + $0x630] sm:$0xff]
    %v411 = vld [vmem:[#allocation5 + $0x638] sm:$0xff]
    %v412 = vld [vmem:[#allocation5 + $0x640] sm:$0xff]
    %v413 = vld [vmem:[#allocation5 + $0x648] sm:$0xff]
    %v414 = vld [vmem:[#allocation5 + $0x650] sm:$0xff]
    %v415 = vld [vmem:[#allocation5 + $0x658] sm:$0xff]
    %v416 = vld [vmem:[#allocation5 + $0x660] sm:$0xff]
    %v417 = vld [vmem:[#allocation5 + $0x668] sm:$0xff]
    %v418 = vld [vmem:[#allocation5 + $0x670] sm:$0xff]
    %v419 = vld [vmem:[#allocation5 + $0x678] sm:$0xff]
    %v420 = vld [vmem:[#allocation5 + $0x680] sm:$0xff]
    %v421 = vld [vmem:[#allocation5 + $0x688] sm:$0xff]
    %v422 = vld [vmem:[#allocation5 + $0x690] sm:$0xff]
    %v423 = vld [vmem:[#allocation5 + $0x698] sm:$0xff]
    %v424 = vld [vmem:[#allocation5 + $0x6a0] sm:$0xff]
    %v425 = vld [vmem:[#allocation5 + $0x6a8] sm:$0xff]
    %v426 = vld [vmem:[#allocation5 + $0x6b0] sm:$0xff]
    %v427 = vld [vmem:[#allocation5 + $0x6b8] sm:$0xff]
    %v428 = vld [vmem:[#allocation5 + $0x6c0] sm:$0xff]
    %v429 = vld [vmem:[#allocation5 + $0x6c8] sm:$0xff]
    %v430 = vld [vmem:[#allocation5 + $0x6d0] sm:$0xff]
    %v431 = vld [vmem:[#allocation5 + $0x6d8] sm:$0xff]
    %v432 = vld [vmem:[#allocation5 + $0x6e0] sm:$0xff]
    %v433 = vld [vmem:[#allocation5 + $0x6e8] sm:$0xff]
    %v434 = vld [vmem:[#allocation5 + $0x6f0] sm:$0xff]
    %v435 = vld [vmem:[#allocation5 + $0x6f8] sm:$0xff]
    %v436 = vld [vmem:[#allocation5 + $0x700] sm:$0xff]
    %v437 = vld [vmem:[#allocation5 + $0x708] sm:$0xff]
    %v438 = vld [vmem:[#allocation5 + $0x710] sm:$0xff]
    %v439 = vld [vmem:[#allocation5 + $0x718] sm:$0xff]
    %v440 = vld [vmem:[#allocation5 + $0x720] sm:$0xff]
    %v441 = vld [vmem:[#allocation5 + $0x728] sm:$0xff]
    %v442 = vld [vmem:[#allocation5 + $0x730] sm:$0xff]
    %v443 = vld [vmem:[#allocation5 + $0x738] sm:$0xff]
    %v444 = vld [vmem:[#allocation5 + $0x740] sm:$0xff]
    %v445 = vld [vmem:[#allocation5 + $0x748] sm:$0xff]
    %v446 = vld [vmem:[#allocation5 + $0x750] sm:$0xff]
    %v447 = vld [vmem:[#allocation5 + $0x758] sm:$0xff]
    %v448 = vld [vmem:[#allocation5 + $0x760] sm:$0xff]
    %v449 = vld [vmem:[#allocation5 + $0x768] sm:$0xff]
    %v450 = vld [vmem:[#allocation5 + $0x770] sm:$0xff]
    %v451 = vld [vmem:[#allocation5 + $0x778] sm:$0xff]
    %v452 = vld [vmem:[#allocation5 + $0x780] sm:$0xff]
    %v453 = vld [vmem:[#allocation5 + $0x788] sm:$0xff]
    %v454 = vld [vmem:[#allocation5 + $0x790] sm:$0xff]
    %v455 = vld [vmem:[#allocation5 + $0x798] sm:$0xff]
    %v456 = vld [vmem:[#allocation5 + $0x7a0] sm:$0xff]
    %v457 = vld [vmem:[#allocation5 + $0x7a8] sm:$0xff]
    %v458 = vld [vmem:[#allocation5 + $0x7b0] sm:$0xff]
    %v459 = vld [vmem:[#allocation5 + $0x7b8] sm:$0xff]
    %v460 = vld [vmem:[#allocation5 + $0x7c0] sm:$0xff]
    %v461 = vld [vmem:[#allocation5 + $0x7c8] sm:$0xff]
    %v462 = vld [vmem:[#allocation5 + $0x7d0] sm:$0xff]
    %v463 = vld [vmem:[#allocation5 + $0x7d8] sm:$0xff]
    %v464 = vld [vmem:[#allocation5 + $0x7e0] sm:$0xff]
    %v465 = vld [vmem:[#allocation5 + $0x7e8] sm:$0xff]
    %v466 = vld [vmem:[#allocation5 + $0x7f0] sm:$0xff]
    %v467 = vld [vmem:[#allocation5 + $0x7f8] sm:$0xff]
    %v468 = vld [vmem:[#allocation5 + $0x800] sm:$0xff]
    %v469 = vld [vmem:[#allocation5 + $0x808] sm:$0xff]
    %v470 = vld [vmem:[#allocation5 + $0x810] sm:$0xff]
    %v471 = vld [vmem:[#allocation5 + $0x818] sm:$0xff]
    %v472 = vld [vmem:[#allocation5 + $0x820] sm:$0xff]
    %v473 = vld [vmem:[#allocation5 + $0x828] sm:$0xff]
    %v474 = vld [vmem:[#allocation5 + $0x830] sm:$0xff]
    %v475 = vld [vmem:[#allocation5 + $0x838] sm:$0xff]
    %v476 = vld [vmem:[#allocation5 + $0x840] sm:$0xff]
    %v477 = vld [vmem:[#allocation5 + $0x848] sm:$0xff]
    %v478 = vld [vmem:[#allocation5 + $0x850] sm:$0xff]
    %v479 = vld [vmem:[#allocation5 + $0x858] sm:$0xff]
    %v480 = vld [vmem:[#allocation5 + $0x860] sm:$0xff]
    %v481 = vld [vmem:[#allocation5 + $0x868] sm:$0xff]
    %v482 = vld [vmem:[#allocation5 + $0x870] sm:$0xff]
    %v483 = vld [vmem:[#allocation5 + $0x878] sm:$0xff]
    %v484 = vld [vmem:[#allocation5 + $0x880] sm:$0xff]
    %v485 = vld [vmem:[#allocation5 + $0x888] sm:$0xff]
    %v486 = vld [vmem:[#allocation5 + $0x890] sm:$0xff]
    %v487 = vld [vmem:[#allocation5 + $0x898] sm:$0xff]
    %v488 = vld [vmem:[#allocation5 + $0x8a0] sm:$0xff]
    %v489 = vld [vmem:[#allocation5 + $0x8a8] sm:$0xff]
    %v490 = vld [vmem:[#allocation5 + $0x8b0] sm:$0xff]
    %v491 = vld [vmem:[#allocation5 + $0x8b8] sm:$0xff]
    %v492 = vld [vmem:[#allocation5 + $0x8c0] sm:$0xff]
    %v493 = vld [vmem:[#allocation5 + $0x8c8] sm:$0xff]
    %v494 = vld [vmem:[#allocation5 + $0x8d0] sm:$0xff]
    %v495 = vld [vmem:[#allocation5 + $0x8d8] sm:$0xff]
    %v496 = vld [vmem:[#allocation5 + $0x8e0] sm:$0xff]
    %v497 = vld [vmem:[#allocation5 + $0x8e8] sm:$0xff]
    %v498 = vld [vmem:[#allocation5 + $0x8f0] sm:$0xff]
    %v499 = vld [vmem:[#allocation5 + $0x8f8] sm:$0xff]
    %v500 = vld [vmem:[#allocation5 + $0x900] sm:$0xff]
    %v501 = vld [vmem:[#allocation5 + $0x908] sm:$0xff]
    %v502 = vld [vmem:[#allocation5 + $0x910] sm:$0xff]
    %v503 = vld [vmem:[#allocation5 + $0x918] sm:$0xff]
    %v504 = vld [vmem:[#allocation5 + $0x920] sm:$0xff]
    %v505 = vld [vmem:[#allocation5 + $0x928] sm:$0xff]
    %v506 = vld [vmem:[#allocation5 + $0x930] sm:$0xff]
    %v507 = vld [vmem:[#allocation5 + $0x938] sm:$0xff]
    %v508 = vld [vmem:[#allocation5 + $0x940] sm:$0xff]
    %v509 = vld [vmem:[#allocation5 + $0x948] sm:$0xff]
    %v510 = vld [vmem:[#allocation5 + $0x950] sm:$0xff]
    %v511 = vld [vmem:[#allocation5 + $0x958] sm:$0xff]
    %v512 = vld [vmem:[#allocation5 + $0x960] sm:$0xff]
    %v513 = vld [vmem:[#allocation5 + $0x968] sm:$0xff]
    %v514 = vld [vmem:[#allocation5 + $0x970] sm:$0xff]
    %v515 = vld [vmem:[#allocation5 + $0x978] sm:$0xff]
    %v516 = vld [vmem:[#allocation5 + $0x980] sm:$0xff]
    %v517 = vld [vmem:[#allocation5 + $0x988] sm:$0xff]
    %v518 = vld [vmem:[#allocation5 + $0x990] sm:$0xff]
    %v519 = vld [vmem:[#allocation5 + $0x998] sm:$0xff]
    %v520 = vld [vmem:[#allocation5 + $0x9a0] sm:$0xff]
    %v521 = vld [vmem:[#allocation5 + $0x9a8] sm:$0xff]
    %v522 = vld [vmem:[#allocation5 + $0x9b0] sm:$0xff]
    %v523 = vld [vmem:[#allocation5 + $0x9b8] sm:$0xff]
    %v524 = vld [vmem:[#allocation5 + $0x9c0] sm:$0xff]
    %v525 = vld [vmem:[#allocation5 + $0x9c8] sm:$0xff]
    %v526 = vld [vmem:[#allocation5 + $0x9d0] sm:$0xff]
    %v527 = vld [vmem:[#allocation5 + $0x9d8] sm:$0xff]
    %v528 = vld [vmem:[#allocation5 + $0x9e0] sm:$0xff]
    %v529 = vld [vmem:[#allocation5 + $0x9e8] sm:$0xff]
    %v530 = vld [vmem:[#allocation5 + $0x9f0] sm:$0xff]
    %v531 = vld [vmem:[#allocation5 + $0x9f8] sm:$0xff]
    %v532 = vld [vmem:[#allocation5 + $0xa00] sm:$0xff]
    %v533 = vld [vmem:[#allocation5 + $0xa08] sm:$0xff]
    %v534 = vld [vmem:[#allocation5 + $0xa10] sm:$0xff]
    %v535 = vld [vmem:[#allocation5 + $0xa18] sm:$0xff]
    %v536 = vld [vmem:[#allocation5 + $0xa20] sm:$0xff]
    %v537 = vld [vmem:[#allocation5 + $0xa28] sm:$0xff]
    %v538 = vld [vmem:[#allocation5 + $0xa30] sm:$0xff]
    %v539 = vld [vmem:[#allocation5 + $0xa38] sm:$0xff]
    %v540 = vld [vmem:[#allocation5 + $0xa40] sm:$0xff]
    %v541 = vld [vmem:[#allocation5 + $0xa48] sm:$0xff]
    %v542 = vld [vmem:[#allocation5 + $0xa50] sm:$0xff]
    %v543 = vld [vmem:[#allocation5 + $0xa58] sm:$0xff]
    %v544 = vld [vmem:[#allocation5 + $0xa60] sm:$0xff]
    %v545 = vld [vmem:[#allocation5 + $0xa68] sm:$0xff]
    %v546 = vld [vmem:[#allocation5 + $0xa70] sm:$0xff]
    %v547 = vld [vmem:[#allocation5 + $0xa78] sm:$0xff]
    %v548 = vld [vmem:[#allocation7] sm:$0x3f]
    %v550 = vlaneseq
    %v551 = vshrl.u32 %v550, 7
    %v552 = vsub.s32 0, %v551
    %v553 = vrot.slane %v548, %v552
    %v554 = vlaneseq
    %v555 = vshrl.u32 %v554, 7
    %v556 = vsub.s32 1, %v555
    %v557 = vrot.slane %v548, %v556
    %v558 = vlaneseq
    %v559 = vshrl.u32 %v558, 7
    %v560 = vsub.s32 2, %v559
    %v561 = vrot.slane %v548, %v560
    %v562 = vlaneseq
    %v563 = vshrl.u32 %v562, 7
    %v564 = vsub.s32 3, %v563
    %v565 = vrot.slane %v548, %v564
    %v566 = vlaneseq
    %v567 = vshrl.u32 %v566, 7
    %v568 = vsub.s32 4, %v567
    %v569 = vrot.slane %v548, %v568
    %v570 = vlaneseq
    %v571 = vshrl.u32 %v570, 7
    %v572 = vsub.s32 5, %v571
    %v573 = vrot.slane %v548, %v572
    %v644 = vunpack.c.l.b16 %v148
    %v645 = vunpack.c.h.b16 %v148
    %v646 = vunpack.c.l.b16 %v149
    %v647 = vunpack.c.h.b16 %v149
    %v648 = vunpack.c.l.b16 %v150
    %v649 = vunpack.c.h.b16 %v150
    %v650 = vunpack.c.l.b16 %v151
    %v651 = vunpack.c.l.b16 %v152
    %v652 = vunpack.c.h.b16 %v152
    %v653 = vunpack.c.l.b16 %v153
    %v654 = vunpack.c.h.b16 %v153
    %v655 = vunpack.c.l.b16 %v154
    %v656 = vunpack.c.h.b16 %v154
    %v657 = vunpack.c.l.b16 %v155
    %v658 = vunpack.c.l.b16 %v156
    %v659 = vunpack.c.h.b16 %v156
    %v660 = vunpack.c.l.b16 %v157
    %v661 = vunpack.c.h.b16 %v157
    %v662 = vunpack.c.l.b16 %v158
    %v663 = vunpack.c.h.b16 %v158
    %v664 = vunpack.c.l.b16 %v159
    %v665 = vunpack.c.l.b16 %v160
    %v666 = vunpack.c.h.b16 %v160
    %v667 = vunpack.c.l.b16 %v161
    %v668 = vunpack.c.h.b16 %v161
    %v669 = vunpack.c.l.b16 %v162
    %v670 = vunpack.c.h.b16 %v162
    %v671 = vunpack.c.l.b16 %v163
    %v672 = vunpack.c.l.b16 %v164
    %v673 = vunpack.c.h.b16 %v164
    %v674 = vunpack.c.l.b16 %v165
    %v675 = vunpack.c.h.b16 %v165
    %v676 = vunpack.c.l.b16 %v166
    %v677 = vunpack.c.h.b16 %v166
    %v678 = vunpack.c.l.b16 %v167
    %v679 = vunpack.c.l.b16 %v168
    %v680 = vunpack.c.h.b16 %v168
    %v681 = vunpack.c.l.b16 %v169
    %v682 = vunpack.c.h.b16 %v169
    %v683 = vunpack.c.l.b16 %v170
    %v684 = vunpack.c.h.b16 %v170
    %v685 = vunpack.c.l.b16 %v171
    %v686 = vunpack.c.l.b16 %v172
    %v687 = vunpack.c.h.b16 %v172
    %v688 = vunpack.c.l.b16 %v173
    %v689 = vunpack.c.h.b16 %v173
    %v690 = vunpack.c.l.b16 %v174
    %v691 = vunpack.c.h.b16 %v174
    %v692 = vunpack.c.l.b16 %v175
    %v693 = vunpack.c.l.b16 %v176
    %v694 = vunpack.c.h.b16 %v176
    %v695 = vunpack.c.l.b16 %v177
    %v696 = vunpack.c.h.b16 %v177
    %v697 = vunpack.c.l.b16 %v178
    %v698 = vunpack.c.h.b16 %v178
    %v699 = vunpack.c.l.b16 %v179
    %v700 = vunpack.c.l.b16 %v180
    %v701 = vunpack.c.h.b16 %v180
    %v702 = vunpack.c.l.b16 %v181
    %v703 = vunpack.c.h.b16 %v181
    %v704 = vunpack.c.l.b16 %v182
    %v705 = vunpack.c.h.b16 %v182
    %v706 = vunpack.c.l.b16 %v183
    %v707 = vunpack.c.l.b16 %v184
    %v708 = vunpack.c.h.b16 %v184
    %v709 = vunpack.c.l.b16 %v185
    %v710 = vunpack.c.h.b16 %v185
    %v711 = vunpack.c.l.b16 %v186
    %v712 = vunpack.c.h.b16 %v186
    %v713 = vunpack.c.l.b16 %v187
    %v714 = vunpack.c.l.b16 %v188
    %v715 = vunpack.c.h.b16 %v188
    %v716 = vunpack.c.l.b16 %v189
    %v717 = vunpack.c.h.b16 %v189
    %v718 = vunpack.c.l.b16 %v190
    %v719 = vunpack.c.h.b16 %v190
    %v720 = vunpack.c.l.b16 %v191
    %v721 = vunpack.c.l.b16 %v192
    %v722 = vunpack.c.h.b16 %v192
    %v723 = vunpack.c.l.b16 %v193
    %v724 = vunpack.c.h.b16 %v193
    %v725 = vunpack.c.l.b16 %v194
    %v726 = vunpack.c.h.b16 %v194
    %v727 = vunpack.c.l.b16 %v195
    %v728 = vunpack.c.l.b16 %v196
    %v729 = vunpack.c.h.b16 %v196
    %v730 = vunpack.c.l.b16 %v197
    %v731 = vunpack.c.h.b16 %v197
    %v732 = vunpack.c.l.b16 %v198
    %v733 = vunpack.c.h.b16 %v198
    %v734 = vunpack.c.l.b16 %v199
    %v735 = vunpack.c.l.b16 %v200
    %v736 = vunpack.c.h.b16 %v200
    %v737 = vunpack.c.l.b16 %v201
    %v738 = vunpack.c.h.b16 %v201
    %v739 = vunpack.c.l.b16 %v202
    %v740 = vunpack.c.h.b16 %v202
    %v741 = vunpack.c.l.b16 %v203
    %v742 = vunpack.c.l.b16 %v204
    %v743 = vunpack.c.h.b16 %v204
    %v744 = vunpack.c.l.b16 %v205
    %v745 = vunpack.c.h.b16 %v205
    %v746 = vunpack.c.l.b16 %v206
    %v747 = vunpack.c.h.b16 %v206
    %v748 = vunpack.c.l.b16 %v207
    %v749 = vunpack.c.l.b16 %v208
    %v750 = vunpack.c.h.b16 %v208
    %v751 = vunpack.c.l.b16 %v209
    %v752 = vunpack.c.h.b16 %v209
    %v753 = vunpack.c.l.b16 %v210
    %v754 = vunpack.c.h.b16 %v210
    %v755 = vunpack.c.l.b16 %v211
    %v756 = vpack.c.b16 %v651, %v644
    %v757 = vpack.c.b16 %v652, %v645
    %v758 = vpack.c.b16 %v653, %v646
    %v759 = vpack.c.b16 %v654, %v647
    %v760 = vpack.c.b16 %v655, %v648
    %v761 = vpack.c.b16 %v656, %v649
    %v762 = vpack.c.b16 %v657, %v650
    %v763 = vpack.c.b16 %v665, %v658
    %v764 = vpack.c.b16 %v666, %v659
    %v765 = vpack.c.b16 %v667, %v660
    %v766 = vpack.c.b16 %v668, %v661
    %v767 = vpack.c.b16 %v669, %v662
    %v768 = vpack.c.b16 %v670, %v663
    %v769 = vpack.c.b16 %v671, %v664
    %v770 = vpack.c.b16 %v679, %v672
    %v771 = vpack.c.b16 %v680, %v673
    %v772 = vpack.c.b16 %v681, %v674
    %v773 = vpack.c.b16 %v682, %v675
    %v774 = vpack.c.b16 %v683, %v676
    %v775 = vpack.c.b16 %v684, %v677
    %v776 = vpack.c.b16 %v685, %v678
    %v777 = vpack.c.b16 %v693, %v686
    %v778 = vpack.c.b16 %v694, %v687
    %v779 = vpack.c.b16 %v695, %v688
    %v780 = vpack.c.b16 %v696, %v689
    %v781 = vpack.c.b16 %v697, %v690
    %v782 = vpack.c.b16 %v698, %v691
    %v783 = vpack.c.b16 %v699, %v692
    %v784 = vpack.c.b16 %v707, %v700
    %v785 = vpack.c.b16 %v708, %v701
    %v786 = vpack.c.b16 %v709, %v702
    %v787 = vpack.c.b16 %v710, %v703
    %v788 = vpack.c.b16 %v711, %v704
    %v789 = vpack.c.b16 %v712, %v705
    %v790 = vpack.c.b16 %v713, %v706
    %v791 = vpack.c.b16 %v721, %v714
    %v792 = vpack.c.b16 %v722, %v715
    %v793 = vpack.c.b16 %v723, %v716
    %v794 = vpack.c.b16 %v724, %v717
    %v795 = vpack.c.b16 %v725, %v718
    %v796 = vpack.c.b16 %v726, %v719
    %v797 = vpack.c.b16 %v727, %v720
    %v798 = vpack.c.b16 %v735, %v728
    %v799 = vpack.c.b16 %v736, %v729
    %v800 = vpack.c.b16 %v737, %v730
    %v801 = vpack.c.b16 %v738, %v731
    %v802 = vpack.c.b16 %v739, %v732
    %v803 = vpack.c.b16 %v740, %v733
    %v804 = vpack.c.b16 %v741, %v734
    %v805 = vpack.c.b16 %v749, %v742
    %v806 = vpack.c.b16 %v750, %v743
    %v807 = vpack.c.b16 %v751, %v744
    %v808 = vpack.c.b16 %v752, %v745
    %v809 = vpack.c.b16 %v753, %v746
    %v810 = vpack.c.b16 %v754, %v747
    %v811 = vpack.c.b16 %v755, %v748
    %v1204 = vunpack.c.l.b16 %v212
    %v1205 = vunpack.c.h.b16 %v212
    %v1206 = vunpack.c.l.b16 %v213
    %v1207 = vunpack.c.h.b16 %v213
    %v1208 = vunpack.c.l.b16 %v214
    %v1209 = vunpack.c.h.b16 %v214
    %v1210 = vunpack.c.l.b16 %v215
    %v1211 = vunpack.c.h.b16 %v215
    %v1212 = vunpack.c.l.b16 %v216
    %v1213 = vunpack.c.h.b16 %v216
    %v1214 = vunpack.c.l.b16 %v217
    %v1215 = vunpack.c.h.b16 %v217
    %v1216 = vunpack.c.l.b16 %v218
    %v1217 = vunpack.c.h.b16 %v218
    %v1218 = vunpack.c.l.b16 %v219
    %v1219 = vunpack.c.h.b16 %v219
    %v1220 = vunpack.c.l.b16 %v220
    %v1221 = vunpack.c.h.b16 %v220
    %v1222 = vunpack.c.l.b16 %v221
    %v1223 = vunpack.c.h.b16 %v221
    %v1224 = vunpack.c.l.b16 %v222
    %v1225 = vunpack.c.h.b16 %v222
    %v1226 = vunpack.c.l.b16 %v223
    %v1227 = vunpack.c.h.b16 %v223
    %v1228 = vunpack.c.l.b16 %v224
    %v1229 = vunpack.c.h.b16 %v224
    %v1230 = vunpack.c.l.b16 %v225
    %v1231 = vunpack.c.h.b16 %v225
    %v1232 = vunpack.c.l.b16 %v226
    %v1233 = vunpack.c.h.b16 %v226
    %v1234 = vunpack.c.l.b16 %v227
    %v1235 = vunpack.c.h.b16 %v227
    %v1236 = vunpack.c.l.b16 %v228
    %v1237 = vunpack.c.h.b16 %v228
    %v1238 = vunpack.c.l.b16 %v229
    %v1239 = vunpack.c.h.b16 %v229
    %v1240 = vunpack.c.l.b16 %v230
    %v1241 = vunpack.c.h.b16 %v230
    %v1242 = vunpack.c.l.b16 %v231
    %v1243 = vunpack.c.h.b16 %v231
    %v1244 = vunpack.c.l.b16 %v232
    %v1245 = vunpack.c.h.b16 %v232
    %v1246 = vunpack.c.l.b16 %v233
    %v1247 = vunpack.c.h.b16 %v233
    %v1248 = vunpack.c.l.b16 %v234
    %v1249 = vunpack.c.h.b16 %v234
    %v1250 = vunpack.c.l.b16 %v235
    %v1251 = vunpack.c.h.b16 %v235
    %v1252 = vunpack.c.l.b16 %v236
    %v1253 = vunpack.c.h.b16 %v236
    %v1254 = vunpack.c.l.b16 %v237
    %v1255 = vunpack.c.h.b16 %v237
    %v1256 = vunpack.c.l.b16 %v238
    %v1257 = vunpack.c.h.b16 %v238
    %v1258 = vunpack.c.l.b16 %v239
    %v1259 = vunpack.c.h.b16 %v239
    %v1260 = vunpack.c.l.b16 %v240
    %v1261 = vunpack.c.h.b16 %v240
    %v1262 = vunpack.c.l.b16 %v241
    %v1263 = vunpack.c.h.b16 %v241
    %v1264 = vunpack.c.l.b16 %v242
    %v1265 = vunpack.c.h.b16 %v242
    %v1266 = vunpack.c.l.b16 %v243
    %v1267 = vunpack.c.h.b16 %v243
    %v1268 = vunpack.c.l.b16 %v244
    %v1269 = vunpack.c.h.b16 %v244
    %v1270 = vunpack.c.l.b16 %v245
    %v1271 = vunpack.c.h.b16 %v245
    %v1272 = vunpack.c.l.b16 %v246
    %v1273 = vunpack.c.h.b16 %v246
    %v1274 = vunpack.c.l.b16 %v247
    %v1275 = vunpack.c.h.b16 %v247
    %v1276 = vunpack.c.l.b16 %v248
    %v1277 = vunpack.c.h.b16 %v248
    %v1278 = vunpack.c.l.b16 %v249
    %v1279 = vunpack.c.h.b16 %v249
    %v1280 = vunpack.c.l.b16 %v250
    %v1281 = vunpack.c.h.b16 %v250
    %v1282 = vunpack.c.l.b16 %v251
    %v1283 = vunpack.c.h.b16 %v251
    %v1284 = vunpack.c.l.b16 %v252
    %v1285 = vunpack.c.h.b16 %v252
    %v1286 = vunpack.c.l.b16 %v253
    %v1287 = vunpack.c.h.b16 %v253
    %v1288 = vunpack.c.l.b16 %v254
    %v1289 = vunpack.c.h.b16 %v254
    %v1290 = vunpack.c.l.b16 %v255
    %v1291 = vunpack.c.h.b16 %v255
    %v1292 = vunpack.c.l.b16 %v256
    %v1293 = vunpack.c.h.b16 %v256
    %v1294 = vunpack.c.l.b16 %v257
    %v1295 = vunpack.c.h.b16 %v257
    %v1296 = vunpack.c.l.b16 %v258
    %v1297 = vunpack.c.h.b16 %v258
    %v1298 = vunpack.c.l.b16 %v259
    %v1299 = vunpack.c.h.b16 %v259
    %v1300 = vunpack.c.l.b16 %v260
    %v1301 = vunpack.c.h.b16 %v260
    %v1302 = vunpack.c.l.b16 %v261
    %v1303 = vunpack.c.h.b16 %v261
    %v1304 = vunpack.c.l.b16 %v262
    %v1305 = vunpack.c.h.b16 %v262
    %v1306 = vunpack.c.l.b16 %v263
    %v1307 = vunpack.c.h.b16 %v263
    %v1308 = vunpack.c.l.b16 %v264
    %v1309 = vunpack.c.h.b16 %v264
    %v1310 = vunpack.c.l.b16 %v265
    %v1311 = vunpack.c.h.b16 %v265
    %v1312 = vunpack.c.l.b16 %v266
    %v1313 = vunpack.c.h.b16 %v266
    %v1314 = vunpack.c.l.b16 %v267
    %v1315 = vunpack.c.h.b16 %v267
    %v1316 = vunpack.c.l.b16 %v268
    %v1317 = vunpack.c.h.b16 %v268
    %v1318 = vunpack.c.l.b16 %v269
    %v1319 = vunpack.c.h.b16 %v269
    %v1320 = vunpack.c.l.b16 %v270
    %v1321 = vunpack.c.h.b16 %v270
    %v1322 = vunpack.c.l.b16 %v271
    %v1323 = vunpack.c.h.b16 %v271
    %v1324 = vunpack.c.l.b16 %v272
    %v1325 = vunpack.c.h.b16 %v272
    %v1326 = vunpack.c.l.b16 %v273
    %v1327 = vunpack.c.h.b16 %v273
    %v1328 = vunpack.c.l.b16 %v274
    %v1329 = vunpack.c.h.b16 %v274
    %v1330 = vunpack.c.l.b16 %v275
    %v1331 = vunpack.c.h.b16 %v275
    %v1332 = vunpack.c.l.b16 %v276
    %v1333 = vunpack.c.h.b16 %v276
    %v1334 = vunpack.c.l.b16 %v277
    %v1335 = vunpack.c.h.b16 %v277
    %v1336 = vunpack.c.l.b16 %v278
    %v1337 = vunpack.c.h.b16 %v278
    %v1338 = vunpack.c.l.b16 %v279
    %v1339 = vunpack.c.h.b16 %v279
    %v1340 = vunpack.c.l.b16 %v280
    %v1341 = vunpack.c.h.b16 %v280
    %v1342 = vunpack.c.l.b16 %v281
    %v1343 = vunpack.c.h.b16 %v281
    %v1344 = vunpack.c.l.b16 %v282
    %v1345 = vunpack.c.h.b16 %v282
    %v1346 = vunpack.c.l.b16 %v283
    %v1347 = vunpack.c.h.b16 %v283
    %v1348 = vunpack.c.l.b16 %v284
    %v1349 = vunpack.c.h.b16 %v284
    %v1350 = vunpack.c.l.b16 %v285
    %v1351 = vunpack.c.h.b16 %v285
    %v1352 = vunpack.c.l.b16 %v286
    %v1353 = vunpack.c.h.b16 %v286
    %v1354 = vunpack.c.l.b16 %v287
    %v1355 = vunpack.c.h.b16 %v287
    %v1356 = vunpack.c.l.b16 %v288
    %v1357 = vunpack.c.h.b16 %v288
    %v1358 = vunpack.c.l.b16 %v289
    %v1359 = vunpack.c.h.b16 %v289
    %v1360 = vunpack.c.l.b16 %v290
    %v1361 = vunpack.c.h.b16 %v290
    %v1362 = vunpack.c.l.b16 %v291
    %v1363 = vunpack.c.h.b16 %v291
    %v1364 = vunpack.c.l.b16 %v292
    %v1365 = vunpack.c.h.b16 %v292
    %v1366 = vunpack.c.l.b16 %v293
    %v1367 = vunpack.c.h.b16 %v293
    %v1368 = vunpack.c.l.b16 %v294
    %v1369 = vunpack.c.h.b16 %v294
    %v1370 = vunpack.c.l.b16 %v295
    %v1371 = vunpack.c.h.b16 %v295
    %v1372 = vunpack.c.l.b16 %v296
    %v1373 = vunpack.c.h.b16 %v296
    %v1374 = vunpack.c.l.b16 %v297
    %v1375 = vunpack.c.h.b16 %v297
    %v1376 = vunpack.c.l.b16 %v298
    %v1377 = vunpack.c.h.b16 %v298
    %v1378 = vunpack.c.l.b16 %v299
    %v1379 = vunpack.c.h.b16 %v299
    %v1380 = vunpack.c.l.b16 %v300
    %v1381 = vunpack.c.h.b16 %v300
    %v1382 = vunpack.c.l.b16 %v301
    %v1383 = vunpack.c.h.b16 %v301
    %v1384 = vunpack.c.l.b16 %v302
    %v1385 = vunpack.c.h.b16 %v302
    %v1386 = vunpack.c.l.b16 %v303
    %v1387 = vunpack.c.h.b16 %v303
    %v1388 = vunpack.c.l.b16 %v304
    %v1389 = vunpack.c.h.b16 %v304
    %v1390 = vunpack.c.l.b16 %v305
    %v1391 = vunpack.c.h.b16 %v305
    %v1392 = vunpack.c.l.b16 %v306
    %v1393 = vunpack.c.h.b16 %v306
    %v1394 = vunpack.c.l.b16 %v307
    %v1395 = vunpack.c.h.b16 %v307
    %v1396 = vunpack.c.l.b16 %v308
    %v1397 = vunpack.c.h.b16 %v308
    %v1398 = vunpack.c.l.b16 %v309
    %v1399 = vunpack.c.h.b16 %v309
    %v1400 = vunpack.c.l.b16 %v310
    %v1401 = vunpack.c.h.b16 %v310
    %v1402 = vunpack.c.l.b16 %v311
    %v1403 = vunpack.c.h.b16 %v311
    %v1404 = vunpack.c.l.b16 %v312
    %v1405 = vunpack.c.h.b16 %v312
    %v1406 = vunpack.c.l.b16 %v313
    %v1407 = vunpack.c.h.b16 %v313
    %v1408 = vunpack.c.l.b16 %v314
    %v1409 = vunpack.c.h.b16 %v314
    %v1410 = vunpack.c.l.b16 %v315
    %v1411 = vunpack.c.h.b16 %v315
    %v1412 = vunpack.c.l.b16 %v316
    %v1413 = vunpack.c.h.b16 %v316
    %v1414 = vunpack.c.l.b16 %v317
    %v1415 = vunpack.c.h.b16 %v317
    %v1416 = vunpack.c.l.b16 %v318
    %v1417 = vunpack.c.h.b16 %v318
    %v1418 = vunpack.c.l.b16 %v319
    %v1419 = vunpack.c.h.b16 %v319
    %v1420 = vunpack.c.l.b16 %v320
    %v1421 = vunpack.c.h.b16 %v320
    %v1422 = vunpack.c.l.b16 %v321
    %v1423 = vunpack.c.h.b16 %v321
    %v1424 = vunpack.c.l.b16 %v322
    %v1425 = vunpack.c.h.b16 %v322
    %v1426 = vunpack.c.l.b16 %v323
    %v1427 = vunpack.c.h.b16 %v323
    %v1428 = vunpack.c.l.b16 %v324
    %v1429 = vunpack.c.h.b16 %v324
    %v1430 = vunpack.c.l.b16 %v325
    %v1431 = vunpack.c.h.b16 %v325
    %v1432 = vunpack.c.l.b16 %v326
    %v1433 = vunpack.c.h.b16 %v326
    %v1434 = vunpack.c.l.b16 %v327
    %v1435 = vunpack.c.h.b16 %v327
    %v1436 = vunpack.c.l.b16 %v328
    %v1437 = vunpack.c.h.b16 %v328
    %v1438 = vunpack.c.l.b16 %v329
    %v1439 = vunpack.c.h.b16 %v329
    %v1440 = vunpack.c.l.b16 %v330
    %v1441 = vunpack.c.h.b16 %v330
    %v1442 = vunpack.c.l.b16 %v331
    %v1443 = vunpack.c.h.b16 %v331
    %v1444 = vunpack.c.l.b16 %v332
    %v1445 = vunpack.c.h.b16 %v332
    %v1446 = vunpack.c.l.b16 %v333
    %v1447 = vunpack.c.h.b16 %v333
    %v1448 = vunpack.c.l.b16 %v334
    %v1449 = vunpack.c.h.b16 %v334
    %v1450 = vunpack.c.l.b16 %v335
    %v1451 = vunpack.c.h.b16 %v335
    %v1452 = vunpack.c.l.b16 %v336
    %v1453 = vunpack.c.h.b16 %v336
    %v1454 = vunpack.c.l.b16 %v337
    %v1455 = vunpack.c.h.b16 %v337
    %v1456 = vunpack.c.l.b16 %v338
    %v1457 = vunpack.c.h.b16 %v338
    %v1458 = vunpack.c.l.b16 %v339
    %v1459 = vunpack.c.h.b16 %v339
    %v1460 = vunpack.c.l.b16 %v340
    %v1461 = vunpack.c.h.b16 %v340
    %v1462 = vunpack.c.l.b16 %v341
    %v1463 = vunpack.c.h.b16 %v341
    %v1464 = vunpack.c.l.b16 %v342
    %v1465 = vunpack.c.h.b16 %v342
    %v1466 = vunpack.c.l.b16 %v343
    %v1467 = vunpack.c.h.b16 %v343
    %v1468 = vunpack.c.l.b16 %v344
    %v1469 = vunpack.c.h.b16 %v344
    %v1470 = vunpack.c.l.b16 %v345
    %v1471 = vunpack.c.h.b16 %v345
    %v1472 = vunpack.c.l.b16 %v346
    %v1473 = vunpack.c.h.b16 %v346
    %v1474 = vunpack.c.l.b16 %v347
    %v1475 = vunpack.c.h.b16 %v347
    %v1476 = vunpack.c.l.b16 %v348
    %v1477 = vunpack.c.h.b16 %v348
    %v1478 = vunpack.c.l.b16 %v349
    %v1479 = vunpack.c.h.b16 %v349
    %v1480 = vunpack.c.l.b16 %v350
    %v1481 = vunpack.c.h.b16 %v350
    %v1482 = vunpack.c.l.b16 %v351
    %v1483 = vunpack.c.h.b16 %v351
    %v1484 = vunpack.c.l.b16 %v352
    %v1485 = vunpack.c.h.b16 %v352
    %v1486 = vunpack.c.l.b16 %v353
    %v1487 = vunpack.c.h.b16 %v353
    %v1488 = vunpack.c.l.b16 %v354
    %v1489 = vunpack.c.h.b16 %v354
    %v1490 = vunpack.c.l.b16 %v355
    %v1491 = vunpack.c.h.b16 %v355
    %v1492 = vunpack.c.l.b16 %v356
    %v1493 = vunpack.c.h.b16 %v356
    %v1494 = vunpack.c.l.b16 %v357
    %v1495 = vunpack.c.h.b16 %v357
    %v1496 = vunpack.c.l.b16 %v358
    %v1497 = vunpack.c.h.b16 %v358
    %v1498 = vunpack.c.l.b16 %v359
    %v1499 = vunpack.c.h.b16 %v359
    %v1500 = vunpack.c.l.b16 %v360
    %v1501 = vunpack.c.h.b16 %v360
    %v1502 = vunpack.c.l.b16 %v361
    %v1503 = vunpack.c.h.b16 %v361
    %v1504 = vunpack.c.l.b16 %v362
    %v1505 = vunpack.c.h.b16 %v362
    %v1506 = vunpack.c.l.b16 %v363
    %v1507 = vunpack.c.h.b16 %v363
    %v1508 = vunpack.c.l.b16 %v364
    %v1509 = vunpack.c.h.b16 %v364
    %v1510 = vunpack.c.l.b16 %v365
    %v1511 = vunpack.c.h.b16 %v365
    %v1512 = vunpack.c.l.b16 %v366
    %v1513 = vunpack.c.h.b16 %v366
    %v1514 = vunpack.c.l.b16 %v367
    %v1515 = vunpack.c.h.b16 %v367
    %v1516 = vunpack.c.l.b16 %v368
    %v1517 = vunpack.c.h.b16 %v368
    %v1518 = vunpack.c.l.b16 %v369
    %v1519 = vunpack.c.h.b16 %v369
    %v1520 = vunpack.c.l.b16 %v370
    %v1521 = vunpack.c.h.b16 %v370
    %v1522 = vunpack.c.l.b16 %v371
    %v1523 = vunpack.c.h.b16 %v371
    %v1524 = vunpack.c.l.b16 %v372
    %v1525 = vunpack.c.h.b16 %v372
    %v1526 = vunpack.c.l.b16 %v373
    %v1527 = vunpack.c.h.b16 %v373
    %v1528 = vunpack.c.l.b16 %v374
    %v1529 = vunpack.c.h.b16 %v374
    %v1530 = vunpack.c.l.b16 %v375
    %v1531 = vunpack.c.h.b16 %v375
    %v1532 = vunpack.c.l.b16 %v376
    %v1533 = vunpack.c.h.b16 %v376
    %v1534 = vunpack.c.l.b16 %v377
    %v1535 = vunpack.c.h.b16 %v377
    %v1536 = vunpack.c.l.b16 %v378
    %v1537 = vunpack.c.h.b16 %v378
    %v1538 = vunpack.c.l.b16 %v379
    %v1539 = vunpack.c.h.b16 %v379
    %v1540 = vunpack.c.l.b16 %v380
    %v1541 = vunpack.c.h.b16 %v380
    %v1542 = vunpack.c.l.b16 %v381
    %v1543 = vunpack.c.h.b16 %v381
    %v1544 = vunpack.c.l.b16 %v382
    %v1545 = vunpack.c.h.b16 %v382
    %v1546 = vunpack.c.l.b16 %v383
    %v1547 = vunpack.c.h.b16 %v383
    %v1548 = vunpack.c.l.b16 %v384
    %v1549 = vunpack.c.h.b16 %v384
    %v1550 = vunpack.c.l.b16 %v385
    %v1551 = vunpack.c.h.b16 %v385
    %v1552 = vunpack.c.l.b16 %v386
    %v1553 = vunpack.c.h.b16 %v386
    %v1554 = vunpack.c.l.b16 %v387
    %v1555 = vunpack.c.h.b16 %v387
    %v1556 = vunpack.c.l.b16 %v388
    %v1557 = vunpack.c.h.b16 %v388
    %v1558 = vunpack.c.l.b16 %v389
    %v1559 = vunpack.c.h.b16 %v389
    %v1560 = vunpack.c.l.b16 %v390
    %v1561 = vunpack.c.h.b16 %v390
    %v1562 = vunpack.c.l.b16 %v391
    %v1563 = vunpack.c.h.b16 %v391
    %v1564 = vunpack.c.l.b16 %v392
    %v1565 = vunpack.c.h.b16 %v392
    %v1566 = vunpack.c.l.b16 %v393
    %v1567 = vunpack.c.h.b16 %v393
    %v1568 = vunpack.c.l.b16 %v394
    %v1569 = vunpack.c.h.b16 %v394
    %v1570 = vunpack.c.l.b16 %v395
    %v1571 = vunpack.c.h.b16 %v395
    %v1572 = vunpack.c.l.b16 %v396
    %v1573 = vunpack.c.h.b16 %v396
    %v1574 = vunpack.c.l.b16 %v397
    %v1575 = vunpack.c.h.b16 %v397
    %v1576 = vunpack.c.l.b16 %v398
    %v1577 = vunpack.c.h.b16 %v398
    %v1578 = vunpack.c.l.b16 %v399
    %v1579 = vunpack.c.h.b16 %v399
    %v1580 = vunpack.c.l.b16 %v400
    %v1581 = vunpack.c.h.b16 %v400
    %v1582 = vunpack.c.l.b16 %v401
    %v1583 = vunpack.c.h.b16 %v401
    %v1584 = vunpack.c.l.b16 %v402
    %v1585 = vunpack.c.h.b16 %v402
    %v1586 = vunpack.c.l.b16 %v403
    %v1587 = vunpack.c.h.b16 %v403
    %v1588 = vunpack.c.l.b16 %v404
    %v1589 = vunpack.c.h.b16 %v404
    %v1590 = vunpack.c.l.b16 %v405
    %v1591 = vunpack.c.h.b16 %v405
    %v1592 = vunpack.c.l.b16 %v406
    %v1593 = vunpack.c.h.b16 %v406
    %v1594 = vunpack.c.l.b16 %v407
    %v1595 = vunpack.c.h.b16 %v407
    %v1596 = vunpack.c.l.b16 %v408
    %v1597 = vunpack.c.h.b16 %v408
    %v1598 = vunpack.c.l.b16 %v409
    %v1599 = vunpack.c.h.b16 %v409
    %v1600 = vunpack.c.l.b16 %v410
    %v1601 = vunpack.c.h.b16 %v410
    %v1602 = vunpack.c.l.b16 %v411
    %v1603 = vunpack.c.h.b16 %v411
    %v1604 = vunpack.c.l.b16 %v412
    %v1605 = vunpack.c.h.b16 %v412
    %v1606 = vunpack.c.l.b16 %v413
    %v1607 = vunpack.c.h.b16 %v413
    %v1608 = vunpack.c.l.b16 %v414
    %v1609 = vunpack.c.h.b16 %v414
    %v1610 = vunpack.c.l.b16 %v415
    %v1611 = vunpack.c.h.b16 %v415
    %v1612 = vunpack.c.l.b16 %v416
    %v1613 = vunpack.c.h.b16 %v416
    %v1614 = vunpack.c.l.b16 %v417
    %v1615 = vunpack.c.h.b16 %v417
    %v1616 = vunpack.c.l.b16 %v418
    %v1617 = vunpack.c.h.b16 %v418
    %v1618 = vunpack.c.l.b16 %v419
    %v1619 = vunpack.c.h.b16 %v419
    %v1620 = vunpack.c.l.b16 %v420
    %v1621 = vunpack.c.h.b16 %v420
    %v1622 = vunpack.c.l.b16 %v421
    %v1623 = vunpack.c.h.b16 %v421
    %v1624 = vunpack.c.l.b16 %v422
    %v1625 = vunpack.c.h.b16 %v422
    %v1626 = vunpack.c.l.b16 %v423
    %v1627 = vunpack.c.h.b16 %v423
    %v1628 = vunpack.c.l.b16 %v424
    %v1629 = vunpack.c.h.b16 %v424
    %v1630 = vunpack.c.l.b16 %v425
    %v1631 = vunpack.c.h.b16 %v425
    %v1632 = vunpack.c.l.b16 %v426
    %v1633 = vunpack.c.h.b16 %v426
    %v1634 = vunpack.c.l.b16 %v427
    %v1635 = vunpack.c.h.b16 %v427
    %v1636 = vunpack.c.l.b16 %v428
    %v1637 = vunpack.c.h.b16 %v428
    %v1638 = vunpack.c.l.b16 %v429
    %v1639 = vunpack.c.h.b16 %v429
    %v1640 = vunpack.c.l.b16 %v430
    %v1641 = vunpack.c.h.b16 %v430
    %v1642 = vunpack.c.l.b16 %v431
    %v1643 = vunpack.c.h.b16 %v431
    %v1644 = vunpack.c.l.b16 %v432
    %v1645 = vunpack.c.h.b16 %v432
    %v1646 = vunpack.c.l.b16 %v433
    %v1647 = vunpack.c.h.b16 %v433
    %v1648 = vunpack.c.l.b16 %v434
    %v1649 = vunpack.c.h.b16 %v434
    %v1650 = vunpack.c.l.b16 %v435
    %v1651 = vunpack.c.h.b16 %v435
    %v1652 = vunpack.c.l.b16 %v436
    %v1653 = vunpack.c.h.b16 %v436
    %v1654 = vunpack.c.l.b16 %v437
    %v1655 = vunpack.c.h.b16 %v437
    %v1656 = vunpack.c.l.b16 %v438
    %v1657 = vunpack.c.h.b16 %v438
    %v1658 = vunpack.c.l.b16 %v439
    %v1659 = vunpack.c.h.b16 %v439
    %v1660 = vunpack.c.l.b16 %v440
    %v1661 = vunpack.c.h.b16 %v440
    %v1662 = vunpack.c.l.b16 %v441
    %v1663 = vunpack.c.h.b16 %v441
    %v1664 = vunpack.c.l.b16 %v442
    %v1665 = vunpack.c.h.b16 %v442
    %v1666 = vunpack.c.l.b16 %v443
    %v1667 = vunpack.c.h.b16 %v443
    %v1668 = vunpack.c.l.b16 %v444
    %v1669 = vunpack.c.h.b16 %v444
    %v1670 = vunpack.c.l.b16 %v445
    %v1671 = vunpack.c.h.b16 %v445
    %v1672 = vunpack.c.l.b16 %v446
    %v1673 = vunpack.c.h.b16 %v446
    %v1674 = vunpack.c.l.b16 %v447
    %v1675 = vunpack.c.h.b16 %v447
    %v1676 = vunpack.c.l.b16 %v448
    %v1677 = vunpack.c.h.b16 %v448
    %v1678 = vunpack.c.l.b16 %v449
    %v1679 = vunpack.c.h.b16 %v449
    %v1680 = vunpack.c.l.b16 %v450
    %v1681 = vunpack.c.h.b16 %v450
    %v1682 = vunpack.c.l.b16 %v451
    %v1683 = vunpack.c.h.b16 %v451
    %v1684 = vunpack.c.l.b16 %v452
    %v1685 = vunpack.c.h.b16 %v452
    %v1686 = vunpack.c.l.b16 %v453
    %v1687 = vunpack.c.h.b16 %v453
    %v1688 = vunpack.c.l.b16 %v454
    %v1689 = vunpack.c.h.b16 %v454
    %v1690 = vunpack.c.l.b16 %v455
    %v1691 = vunpack.c.h.b16 %v455
    %v1692 = vunpack.c.l.b16 %v456
    %v1693 = vunpack.c.h.b16 %v456
    %v1694 = vunpack.c.l.b16 %v457
    %v1695 = vunpack.c.h.b16 %v457
    %v1696 = vunpack.c.l.b16 %v458
    %v1697 = vunpack.c.h.b16 %v458
    %v1698 = vunpack.c.l.b16 %v459
    %v1699 = vunpack.c.h.b16 %v459
    %v1700 = vunpack.c.l.b16 %v460
    %v1701 = vunpack.c.h.b16 %v460
    %v1702 = vunpack.c.l.b16 %v461
    %v1703 = vunpack.c.h.b16 %v461
    %v1704 = vunpack.c.l.b16 %v462
    %v1705 = vunpack.c.h.b16 %v462
    %v1706 = vunpack.c.l.b16 %v463
    %v1707 = vunpack.c.h.b16 %v463
    %v1708 = vunpack.c.l.b16 %v464
    %v1709 = vunpack.c.h.b16 %v464
    %v1710 = vunpack.c.l.b16 %v465
    %v1711 = vunpack.c.h.b16 %v465
    %v1712 = vunpack.c.l.b16 %v466
    %v1713 = vunpack.c.h.b16 %v466
    %v1714 = vunpack.c.l.b16 %v467
    %v1715 = vunpack.c.h.b16 %v467
    %v1716 = vunpack.c.l.b16 %v468
    %v1717 = vunpack.c.h.b16 %v468
    %v1718 = vunpack.c.l.b16 %v469
    %v1719 = vunpack.c.h.b16 %v469
    %v1720 = vunpack.c.l.b16 %v470
    %v1721 = vunpack.c.h.b16 %v470
    %v1722 = vunpack.c.l.b16 %v471
    %v1723 = vunpack.c.h.b16 %v471
    %v1724 = vunpack.c.l.b16 %v472
    %v1725 = vunpack.c.h.b16 %v472
    %v1726 = vunpack.c.l.b16 %v473
    %v1727 = vunpack.c.h.b16 %v473
    %v1728 = vunpack.c.l.b16 %v474
    %v1729 = vunpack.c.h.b16 %v474
    %v1730 = vunpack.c.l.b16 %v475
    %v1731 = vunpack.c.h.b16 %v475
    %v1732 = vunpack.c.l.b16 %v476
    %v1733 = vunpack.c.h.b16 %v476
    %v1734 = vunpack.c.l.b16 %v477
    %v1735 = vunpack.c.h.b16 %v477
    %v1736 = vunpack.c.l.b16 %v478
    %v1737 = vunpack.c.h.b16 %v478
    %v1738 = vunpack.c.l.b16 %v479
    %v1739 = vunpack.c.h.b16 %v479
    %v1740 = vunpack.c.l.b16 %v480
    %v1741 = vunpack.c.h.b16 %v480
    %v1742 = vunpack.c.l.b16 %v481
    %v1743 = vunpack.c.h.b16 %v481
    %v1744 = vunpack.c.l.b16 %v482
    %v1745 = vunpack.c.h.b16 %v482
    %v1746 = vunpack.c.l.b16 %v483
    %v1747 = vunpack.c.h.b16 %v483
    %v1748 = vunpack.c.l.b16 %v484
    %v1749 = vunpack.c.h.b16 %v484
    %v1750 = vunpack.c.l.b16 %v485
    %v1751 = vunpack.c.h.b16 %v485
    %v1752 = vunpack.c.l.b16 %v486
    %v1753 = vunpack.c.h.b16 %v486
    %v1754 = vunpack.c.l.b16 %v487
    %v1755 = vunpack.c.h.b16 %v487
    %v1756 = vunpack.c.l.b16 %v488
    %v1757 = vunpack.c.h.b16 %v488
    %v1758 = vunpack.c.l.b16 %v489
    %v1759 = vunpack.c.h.b16 %v489
    %v1760 = vunpack.c.l.b16 %v490
    %v1761 = vunpack.c.h.b16 %v490
    %v1762 = vunpack.c.l.b16 %v491
    %v1763 = vunpack.c.h.b16 %v491
    %v1764 = vunpack.c.l.b16 %v492
    %v1765 = vunpack.c.h.b16 %v492
    %v1766 = vunpack.c.l.b16 %v493
    %v1767 = vunpack.c.h.b16 %v493
    %v1768 = vunpack.c.l.b16 %v494
    %v1769 = vunpack.c.h.b16 %v494
    %v1770 = vunpack.c.l.b16 %v495
    %v1771 = vunpack.c.h.b16 %v495
    %v1772 = vunpack.c.l.b16 %v496
    %v1773 = vunpack.c.h.b16 %v496
    %v1774 = vunpack.c.l.b16 %v497
    %v1775 = vunpack.c.h.b16 %v497
    %v1776 = vunpack.c.l.b16 %v498
    %v1777 = vunpack.c.h.b16 %v498
    %v1778 = vunpack.c.l.b16 %v499
    %v1779 = vunpack.c.h.b16 %v499
    %v1780 = vunpack.c.l.b16 %v500
    %v1781 = vunpack.c.h.b16 %v500
    %v1782 = vunpack.c.l.b16 %v501
    %v1783 = vunpack.c.h.b16 %v501
    %v1784 = vunpack.c.l.b16 %v502
    %v1785 = vunpack.c.h.b16 %v502
    %v1786 = vunpack.c.l.b16 %v503
    %v1787 = vunpack.c.h.b16 %v503
    %v1788 = vunpack.c.l.b16 %v504
    %v1789 = vunpack.c.h.b16 %v504
    %v1790 = vunpack.c.l.b16 %v505
    %v1791 = vunpack.c.h.b16 %v505
    %v1792 = vunpack.c.l.b16 %v506
    %v1793 = vunpack.c.h.b16 %v506
    %v1794 = vunpack.c.l.b16 %v507
    %v1795 = vunpack.c.h.b16 %v507
    %v1796 = vunpack.c.l.b16 %v508
    %v1797 = vunpack.c.h.b16 %v508
    %v1798 = vunpack.c.l.b16 %v509
    %v1799 = vunpack.c.h.b16 %v509
    %v1800 = vunpack.c.l.b16 %v510
    %v1801 = vunpack.c.h.b16 %v510
    %v1802 = vunpack.c.l.b16 %v511
    %v1803 = vunpack.c.h.b16 %v511
    %v1804 = vunpack.c.l.b16 %v512
    %v1805 = vunpack.c.h.b16 %v512
    %v1806 = vunpack.c.l.b16 %v513
    %v1807 = vunpack.c.h.b16 %v513
    %v1808 = vunpack.c.l.b16 %v514
    %v1809 = vunpack.c.h.b16 %v514
    %v1810 = vunpack.c.l.b16 %v515
    %v1811 = vunpack.c.h.b16 %v515
    %v1812 = vunpack.c.l.b16 %v516
    %v1813 = vunpack.c.h.b16 %v516
    %v1814 = vunpack.c.l.b16 %v517
    %v1815 = vunpack.c.h.b16 %v517
    %v1816 = vunpack.c.l.b16 %v518
    %v1817 = vunpack.c.h.b16 %v518
    %v1818 = vunpack.c.l.b16 %v519
    %v1819 = vunpack.c.h.b16 %v519
    %v1820 = vunpack.c.l.b16 %v520
    %v1821 = vunpack.c.h.b16 %v520
    %v1822 = vunpack.c.l.b16 %v521
    %v1823 = vunpack.c.h.b16 %v521
    %v1824 = vunpack.c.l.b16 %v522
    %v1825 = vunpack.c.h.b16 %v522
    %v1826 = vunpack.c.l.b16 %v523
    %v1827 = vunpack.c.h.b16 %v523
    %v1828 = vunpack.c.l.b16 %v524
    %v1829 = vunpack.c.h.b16 %v524
    %v1830 = vunpack.c.l.b16 %v525
    %v1831 = vunpack.c.h.b16 %v525
    %v1832 = vunpack.c.l.b16 %v526
    %v1833 = vunpack.c.h.b16 %v526
    %v1834 = vunpack.c.l.b16 %v527
    %v1835 = vunpack.c.h.b16 %v527
    %v1836 = vunpack.c.l.b16 %v528
    %v1837 = vunpack.c.h.b16 %v528
    %v1838 = vunpack.c.l.b16 %v529
    %v1839 = vunpack.c.h.b16 %v529
    %v1840 = vunpack.c.l.b16 %v530
    %v1841 = vunpack.c.h.b16 %v530
    %v1842 = vunpack.c.l.b16 %v531
    %v1843 = vunpack.c.h.b16 %v531
    %v1844 = vunpack.c.l.b16 %v532
    %v1845 = vunpack.c.h.b16 %v532
    %v1846 = vunpack.c.l.b16 %v533
    %v1847 = vunpack.c.h.b16 %v533
    %v1848 = vunpack.c.l.b16 %v534
    %v1849 = vunpack.c.h.b16 %v534
    %v1850 = vunpack.c.l.b16 %v535
    %v1851 = vunpack.c.h.b16 %v535
    %v1852 = vunpack.c.l.b16 %v536
    %v1853 = vunpack.c.h.b16 %v536
    %v1854 = vunpack.c.l.b16 %v537
    %v1855 = vunpack.c.h.b16 %v537
    %v1856 = vunpack.c.l.b16 %v538
    %v1857 = vunpack.c.h.b16 %v538
    %v1858 = vunpack.c.l.b16 %v539
    %v1859 = vunpack.c.h.b16 %v539
    %v1860 = vunpack.c.l.b16 %v540
    %v1861 = vunpack.c.h.b16 %v540
    %v1862 = vunpack.c.l.b16 %v541
    %v1863 = vunpack.c.h.b16 %v541
    %v1864 = vunpack.c.l.b16 %v542
    %v1865 = vunpack.c.h.b16 %v542
    %v1866 = vunpack.c.l.b16 %v543
    %v1867 = vunpack.c.h.b16 %v543
    %v1868 = vunpack.c.l.b16 %v544
    %v1869 = vunpack.c.h.b16 %v544
    %v1870 = vunpack.c.l.b16 %v545
    %v1871 = vunpack.c.h.b16 %v545
    %v1872 = vunpack.c.l.b16 %v546
    %v1873 = vunpack.c.h.b16 %v546
    %v1874 = vunpack.c.l.b16 %v547
    %v1875 = vunpack.c.h.b16 %v547
    %v1876 = vpack.c.b16 %v1210, %v1204
    %v1877 = vpack.c.b16 %v1211, %v1205
    %v1878 = vpack.c.b16 %v1212, %v1206
    %v1879 = vpack.c.b16 %v1213, %v1207
    %v1880 = vpack.c.b16 %v1214, %v1208
    %v1881 = vpack.c.b16 %v1215, %v1209
    %v1882 = vpack.c.b16 %v1222, %v1216
    %v1883 = vpack.c.b16 %v1223, %v1217
    %v1884 = vpack.c.b16 %v1224, %v1218
    %v1885 = vpack.c.b16 %v1225, %v1219
    %v1886 = vpack.c.b16 %v1226, %v1220
    %v1887 = vpack.c.b16 %v1227, %v1221
    %v1888 = vpack.c.b16 %v1234, %v1228
    %v1889 = vpack.c.b16 %v1235, %v1229
    %v1890 = vpack.c.b16 %v1236, %v1230
    %v1891 = vpack.c.b16 %v1237, %v1231
    %v1892 = vpack.c.b16 %v1238, %v1232
    %v1893 = vpack.c.b16 %v1239, %v1233
    %v1894 = vpack.c.b16 %v1246, %v1240
    %v1895 = vpack.c.b16 %v1247, %v1241
    %v1896 = vpack.c.b16 %v1248, %v1242
    %v1897 = vpack.c.b16 %v1249, %v1243
    %v1898 = vpack.c.b16 %v1250, %v1244
    %v1899 = vpack.c.b16 %v1251, %v1245
    %v1900 = vpack.c.b16 %v1258, %v1252
    %v1901 = vpack.c.b16 %v1259, %v1253
    %v1902 = vpack.c.b16 %v1260, %v1254
    %v1903 = vpack.c.b16 %v1261, %v1255
    %v1904 = vpack.c.b16 %v1262, %v1256
    %v1905 = vpack.c.b16 %v1263, %v1257
    %v1906 = vpack.c.b16 %v1270, %v1264
    %v1907 = vpack.c.b16 %v1271, %v1265
    %v1908 = vpack.c.b16 %v1272, %v1266
    %v1909 = vpack.c.b16 %v1273, %v1267
    %v1910 = vpack.c.b16 %v1274, %v1268
    %v1911 = vpack.c.b16 %v1275, %v1269
    %v1912 = vpack.c.b16 %v1282, %v1276
    %v1913 = vpack.c.b16 %v1283, %v1277
    %v1914 = vpack.c.b16 %v1284, %v1278
    %v1915 = vpack.c.b16 %v1285, %v1279
    %v1916 = vpack.c.b16 %v1286, %v1280
    %v1917 = vpack.c.b16 %v1287, %v1281
    %v1918 = vpack.c.b16 %v1294, %v1288
    %v1919 = vpack.c.b16 %v1295, %v1289
    %v1920 = vpack.c.b16 %v1296, %v1290
    %v1921 = vpack.c.b16 %v1297, %v1291
    %v1922 = vpack.c.b16 %v1298, %v1292
    %v1923 = vpack.c.b16 %v1299, %v1293
    %v1924 = vpack.c.b16 %v1306, %v1300
    %v1925 = vpack.c.b16 %v1307, %v1301
    %v1926 = vpack.c.b16 %v1308, %v1302
    %v1927 = vpack.c.b16 %v1309, %v1303
    %v1928 = vpack.c.b16 %v1310, %v1304
    %v1929 = vpack.c.b16 %v1311, %v1305
    %v1930 = vpack.c.b16 %v1318, %v1312
    %v1931 = vpack.c.b16 %v1319, %v1313
    %v1932 = vpack.c.b16 %v1320, %v1314
    %v1933 = vpack.c.b16 %v1321, %v1315
    %v1934 = vpack.c.b16 %v1322, %v1316
    %v1935 = vpack.c.b16 %v1323, %v1317
    %v1936 = vpack.c.b16 %v1330, %v1324
    %v1937 = vpack.c.b16 %v1331, %v1325
    %v1938 = vpack.c.b16 %v1332, %v1326
    %v1939 = vpack.c.b16 %v1333, %v1327
    %v1940 = vpack.c.b16 %v1334, %v1328
    %v1941 = vpack.c.b16 %v1335, %v1329
    %v1942 = vpack.c.b16 %v1342, %v1336
    %v1943 = vpack.c.b16 %v1343, %v1337
    %v1944 = vpack.c.b16 %v1344, %v1338
    %v1945 = vpack.c.b16 %v1345, %v1339
    %v1946 = vpack.c.b16 %v1346, %v1340
    %v1947 = vpack.c.b16 %v1347, %v1341
    %v1948 = vpack.c.b16 %v1354, %v1348
    %v1949 = vpack.c.b16 %v1355, %v1349
    %v1950 = vpack.c.b16 %v1356, %v1350
    %v1951 = vpack.c.b16 %v1357, %v1351
    %v1952 = vpack.c.b16 %v1358, %v1352
    %v1953 = vpack.c.b16 %v1359, %v1353
    %v1954 = vpack.c.b16 %v1366, %v1360
    %v1955 = vpack.c.b16 %v1367, %v1361
    %v1956 = vpack.c.b16 %v1368, %v1362
    %v1957 = vpack.c.b16 %v1369, %v1363
    %v1958 = vpack.c.b16 %v1370, %v1364
    %v1959 = vpack.c.b16 %v1371, %v1365
    %v1960 = vpack.c.b16 %v1378, %v1372
    %v1961 = vpack.c.b16 %v1379, %v1373
    %v1962 = vpack.c.b16 %v1380, %v1374
    %v1963 = vpack.c.b16 %v1381, %v1375
    %v1964 = vpack.c.b16 %v1382, %v1376
    %v1965 = vpack.c.b16 %v1383, %v1377
    %v1966 = vpack.c.b16 %v1390, %v1384
    %v1967 = vpack.c.b16 %v1391, %v1385
    %v1968 = vpack.c.b16 %v1392, %v1386
    %v1969 = vpack.c.b16 %v1393, %v1387
    %v1970 = vpack.c.b16 %v1394, %v1388
    %v1971 = vpack.c.b16 %v1395, %v1389
    %v1972 = vpack.c.b16 %v1402, %v1396
    %v1973 = vpack.c.b16 %v1403, %v1397
    %v1974 = vpack.c.b16 %v1404, %v1398
    %v1975 = vpack.c.b16 %v1405, %v1399
    %v1976 = vpack.c.b16 %v1406, %v1400
    %v1977 = vpack.c.b16 %v1407, %v1401
    %v1978 = vpack.c.b16 %v1414, %v1408
    %v1979 = vpack.c.b16 %v1415, %v1409
    %v1980 = vpack.c.b16 %v1416, %v1410
    %v1981 = vpack.c.b16 %v1417, %v1411
    %v1982 = vpack.c.b16 %v1418, %v1412
    %v1983 = vpack.c.b16 %v1419, %v1413
    %v1984 = vpack.c.b16 %v1426, %v1420
    %v1985 = vpack.c.b16 %v1427, %v1421
    %v1986 = vpack.c.b16 %v1428, %v1422
    %v1987 = vpack.c.b16 %v1429, %v1423
    %v1988 = vpack.c.b16 %v1430, %v1424
    %v1989 = vpack.c.b16 %v1431, %v1425
    %v1990 = vpack.c.b16 %v1438, %v1432
    %v1991 = vpack.c.b16 %v1439, %v1433
    %v1992 = vpack.c.b16 %v1440, %v1434
    %v1993 = vpack.c.b16 %v1441, %v1435
    %v1994 = vpack.c.b16 %v1442, %v1436
    %v1995 = vpack.c.b16 %v1443, %v1437
    %v1996 = vpack.c.b16 %v1450, %v1444
    %v1997 = vpack.c.b16 %v1451, %v1445
    %v1998 = vpack.c.b16 %v1452, %v1446
    %v1999 = vpack.c.b16 %v1453, %v1447
    %v2000 = vpack.c.b16 %v1454, %v1448
    %v2001 = vpack.c.b16 %v1455, %v1449
    %v2002 = vpack.c.b16 %v1462, %v1456
    %v2003 = vpack.c.b16 %v1463, %v1457
    %v2004 = vpack.c.b16 %v1464, %v1458
    %v2005 = vpack.c.b16 %v1465, %v1459
    %v2006 = vpack.c.b16 %v1466, %v1460
    %v2007 = vpack.c.b16 %v1467, %v1461
    %v2008 = vpack.c.b16 %v1474, %v1468
    %v2009 = vpack.c.b16 %v1475, %v1469
    %v2010 = vpack.c.b16 %v1476, %v1470
    %v2011 = vpack.c.b16 %v1477, %v1471
    %v2012 = vpack.c.b16 %v1478, %v1472
    %v2013 = vpack.c.b16 %v1479, %v1473
    %v2014 = vpack.c.b16 %v1486, %v1480
    %v2015 = vpack.c.b16 %v1487, %v1481
    %v2016 = vpack.c.b16 %v1488, %v1482
    %v2017 = vpack.c.b16 %v1489, %v1483
    %v2018 = vpack.c.b16 %v1490, %v1484
    %v2019 = vpack.c.b16 %v1491, %v1485
    %v2020 = vpack.c.b16 %v1498, %v1492
    %v2021 = vpack.c.b16 %v1499, %v1493
    %v2022 = vpack.c.b16 %v1500, %v1494
    %v2023 = vpack.c.b16 %v1501, %v1495
    %v2024 = vpack.c.b16 %v1502, %v1496
    %v2025 = vpack.c.b16 %v1503, %v1497
    %v2026 = vpack.c.b16 %v1510, %v1504
    %v2027 = vpack.c.b16 %v1511, %v1505
    %v2028 = vpack.c.b16 %v1512, %v1506
    %v2029 = vpack.c.b16 %v1513, %v1507
    %v2030 = vpack.c.b16 %v1514, %v1508
    %v2031 = vpack.c.b16 %v1515, %v1509
    %v2032 = vpack.c.b16 %v1522, %v1516
    %v2033 = vpack.c.b16 %v1523, %v1517
    %v2034 = vpack.c.b16 %v1524, %v1518
    %v2035 = vpack.c.b16 %v1525, %v1519
    %v2036 = vpack.c.b16 %v1526, %v1520
    %v2037 = vpack.c.b16 %v1527, %v1521
    %v2038 = vpack.c.b16 %v1534, %v1528
    %v2039 = vpack.c.b16 %v1535, %v1529
    %v2040 = vpack.c.b16 %v1536, %v1530
    %v2041 = vpack.c.b16 %v1537, %v1531
    %v2042 = vpack.c.b16 %v1538, %v1532
    %v2043 = vpack.c.b16 %v1539, %v1533
    %v2044 = vpack.c.b16 %v1546, %v1540
    %v2045 = vpack.c.b16 %v1547, %v1541
    %v2046 = vpack.c.b16 %v1548, %v1542
    %v2047 = vpack.c.b16 %v1549, %v1543
    %v2048 = vpack.c.b16 %v1550, %v1544
    %v2049 = vpack.c.b16 %v1551, %v1545
    %v2050 = vpack.c.b16 %v1558, %v1552
    %v2051 = vpack.c.b16 %v1559, %v1553
    %v2052 = vpack.c.b16 %v1560, %v1554
    %v2053 = vpack.c.b16 %v1561, %v1555
    %v2054 = vpack.c.b16 %v1562, %v1556
    %v2055 = vpack.c.b16 %v1563, %v1557
    %v2056 = vpack.c.b16 %v1570, %v1564
    %v2057 = vpack.c.b16 %v1571, %v1565
    %v2058 = vpack.c.b16 %v1572, %v1566
    %v2059 = vpack.c.b16 %v1573, %v1567
    %v2060 = vpack.c.b16 %v1574, %v1568
    %v2061 = vpack.c.b16 %v1575, %v1569
    %v2062 = vpack.c.b16 %v1582, %v1576
    %v2063 = vpack.c.b16 %v1583, %v1577
    %v2064 = vpack.c.b16 %v1584, %v1578
    %v2065 = vpack.c.b16 %v1585, %v1579
    %v2066 = vpack.c.b16 %v1586, %v1580
    %v2067 = vpack.c.b16 %v1587, %v1581
    %v2068 = vpack.c.b16 %v1594, %v1588
    %v2069 = vpack.c.b16 %v1595, %v1589
    %v2070 = vpack.c.b16 %v1596, %v1590
    %v2071 = vpack.c.b16 %v1597, %v1591
    %v2072 = vpack.c.b16 %v1598, %v1592
    %v2073 = vpack.c.b16 %v1599, %v1593
    %v2074 = vpack.c.b16 %v1606, %v1600
    %v2075 = vpack.c.b16 %v1607, %v1601
    %v2076 = vpack.c.b16 %v1608, %v1602
    %v2077 = vpack.c.b16 %v1609, %v1603
    %v2078 = vpack.c.b16 %v1610, %v1604
    %v2079 = vpack.c.b16 %v1611, %v1605
    %v2080 = vpack.c.b16 %v1618, %v1612
    %v2081 = vpack.c.b16 %v1619, %v1613
    %v2082 = vpack.c.b16 %v1620, %v1614
    %v2083 = vpack.c.b16 %v1621, %v1615
    %v2084 = vpack.c.b16 %v1622, %v1616
    %v2085 = vpack.c.b16 %v1623, %v1617
    %v2086 = vpack.c.b16 %v1630, %v1624
    %v2087 = vpack.c.b16 %v1631, %v1625
    %v2088 = vpack.c.b16 %v1632, %v1626
    %v2089 = vpack.c.b16 %v1633, %v1627
    %v2090 = vpack.c.b16 %v1634, %v1628
    %v2091 = vpack.c.b16 %v1635, %v1629
    %v2092 = vpack.c.b16 %v1642, %v1636
    %v2093 = vpack.c.b16 %v1643, %v1637
    %v2094 = vpack.c.b16 %v1644, %v1638
    %v2095 = vpack.c.b16 %v1645, %v1639
    %v2096 = vpack.c.b16 %v1646, %v1640
    %v2097 = vpack.c.b16 %v1647, %v1641
    %v2098 = vpack.c.b16 %v1654, %v1648
    %v2099 = vpack.c.b16 %v1655, %v1649
    %v2100 = vpack.c.b16 %v1656, %v1650
    %v2101 = vpack.c.b16 %v1657, %v1651
    %v2102 = vpack.c.b16 %v1658, %v1652
    %v2103 = vpack.c.b16 %v1659, %v1653
    %v2104 = vpack.c.b16 %v1666, %v1660
    %v2105 = vpack.c.b16 %v1667, %v1661
    %v2106 = vpack.c.b16 %v1668, %v1662
    %v2107 = vpack.c.b16 %v1669, %v1663
    %v2108 = vpack.c.b16 %v1670, %v1664
    %v2109 = vpack.c.b16 %v1671, %v1665
    %v2110 = vpack.c.b16 %v1678, %v1672
    %v2111 = vpack.c.b16 %v1679, %v1673
    %v2112 = vpack.c.b16 %v1680, %v1674
    %v2113 = vpack.c.b16 %v1681, %v1675
    %v2114 = vpack.c.b16 %v1682, %v1676
    %v2115 = vpack.c.b16 %v1683, %v1677
    %v2116 = vpack.c.b16 %v1690, %v1684
    %v2117 = vpack.c.b16 %v1691, %v1685
    %v2118 = vpack.c.b16 %v1692, %v1686
    %v2119 = vpack.c.b16 %v1693, %v1687
    %v2120 = vpack.c.b16 %v1694, %v1688
    %v2121 = vpack.c.b16 %v1695, %v1689
    %v2122 = vpack.c.b16 %v1702, %v1696
    %v2123 = vpack.c.b16 %v1703, %v1697
    %v2124 = vpack.c.b16 %v1704, %v1698
    %v2125 = vpack.c.b16 %v1705, %v1699
    %v2126 = vpack.c.b16 %v1706, %v1700
    %v2127 = vpack.c.b16 %v1707, %v1701
    %v2128 = vpack.c.b16 %v1714, %v1708
    %v2129 = vpack.c.b16 %v1715, %v1709
    %v2130 = vpack.c.b16 %v1716, %v1710
    %v2131 = vpack.c.b16 %v1717, %v1711
    %v2132 = vpack.c.b16 %v1718, %v1712
    %v2133 = vpack.c.b16 %v1719, %v1713
    %v2134 = vpack.c.b16 %v1726, %v1720
    %v2135 = vpack.c.b16 %v1727, %v1721
    %v2136 = vpack.c.b16 %v1728, %v1722
    %v2137 = vpack.c.b16 %v1729, %v1723
    %v2138 = vpack.c.b16 %v1730, %v1724
    %v2139 = vpack.c.b16 %v1731, %v1725
    %v2140 = vpack.c.b16 %v1738, %v1732
    %v2141 = vpack.c.b16 %v1739, %v1733
    %v2142 = vpack.c.b16 %v1740, %v1734
    %v2143 = vpack.c.b16 %v1741, %v1735
    %v2144 = vpack.c.b16 %v1742, %v1736
    %v2145 = vpack.c.b16 %v1743, %v1737
    %v2146 = vpack.c.b16 %v1750, %v1744
    %v2147 = vpack.c.b16 %v1751, %v1745
    %v2148 = vpack.c.b16 %v1752, %v1746
    %v2149 = vpack.c.b16 %v1753, %v1747
    %v2150 = vpack.c.b16 %v1754, %v1748
    %v2151 = vpack.c.b16 %v1755, %v1749
    %v2152 = vpack.c.b16 %v1762, %v1756
    %v2153 = vpack.c.b16 %v1763, %v1757
    %v2154 = vpack.c.b16 %v1764, %v1758
    %v2155 = vpack.c.b16 %v1765, %v1759
    %v2156 = vpack.c.b16 %v1766, %v1760
    %v2157 = vpack.c.b16 %v1767, %v1761
    %v2158 = vpack.c.b16 %v1774, %v1768
    %v2159 = vpack.c.b16 %v1775, %v1769
    %v2160 = vpack.c.b16 %v1776, %v1770
    %v2161 = vpack.c.b16 %v1777, %v1771
    %v2162 = vpack.c.b16 %v1778, %v1772
    %v2163 = vpack.c.b16 %v1779, %v1773
    %v2164 = vpack.c.b16 %v1786, %v1780
    %v2165 = vpack.c.b16 %v1787, %v1781
    %v2166 = vpack.c.b16 %v1788, %v1782
    %v2167 = vpack.c.b16 %v1789, %v1783
    %v2168 = vpack.c.b16 %v1790, %v1784
    %v2169 = vpack.c.b16 %v1791, %v1785
    %v2170 = vpack.c.b16 %v1798, %v1792
    %v2171 = vpack.c.b16 %v1799, %v1793
    %v2172 = vpack.c.b16 %v1800, %v1794
    %v2173 = vpack.c.b16 %v1801, %v1795
    %v2174 = vpack.c.b16 %v1802, %v1796
    %v2175 = vpack.c.b16 %v1803, %v1797
    %v2176 = vpack.c.b16 %v1810, %v1804
    %v2177 = vpack.c.b16 %v1811, %v1805
    %v2178 = vpack.c.b16 %v1812, %v1806
    %v2179 = vpack.c.b16 %v1813, %v1807
    %v2180 = vpack.c.b16 %v1814, %v1808
    %v2181 = vpack.c.b16 %v1815, %v1809
    %v2182 = vpack.c.b16 %v1822, %v1816
    %v2183 = vpack.c.b16 %v1823, %v1817
    %v2184 = vpack.c.b16 %v1824, %v1818
    %v2185 = vpack.c.b16 %v1825, %v1819
    %v2186 = vpack.c.b16 %v1826, %v1820
    %v2187 = vpack.c.b16 %v1827, %v1821
    %v2188 = vpack.c.b16 %v1834, %v1828
    %v2189 = vpack.c.b16 %v1835, %v1829
    %v2190 = vpack.c.b16 %v1836, %v1830
    %v2191 = vpack.c.b16 %v1837, %v1831
    %v2192 = vpack.c.b16 %v1838, %v1832
    %v2193 = vpack.c.b16 %v1839, %v1833
    %v2194 = vpack.c.b16 %v1846, %v1840
    %v2195 = vpack.c.b16 %v1847, %v1841
    %v2196 = vpack.c.b16 %v1848, %v1842
    %v2197 = vpack.c.b16 %v1849, %v1843
    %v2198 = vpack.c.b16 %v1850, %v1844
    %v2199 = vpack.c.b16 %v1851, %v1845
    %v2200 = vpack.c.b16 %v1858, %v1852
    %v2201 = vpack.c.b16 %v1859, %v1853
    %v2202 = vpack.c.b16 %v1860, %v1854
    %v2203 = vpack.c.b16 %v1861, %v1855
    %v2204 = vpack.c.b16 %v1862, %v1856
    %v2205 = vpack.c.b16 %v1863, %v1857
    %v2206 = vpack.c.b16 %v1870, %v1864
    %v2207 = vpack.c.b16 %v1871, %v1865
    %v2208 = vpack.c.b16 %v1872, %v1866
    %v2209 = vpack.c.b16 %v1873, %v1867
    %v2210 = vpack.c.b16 %v1874, %v1868
    %v2211 = vpack.c.b16 %v1875, %v1869
    %2548 = vmatprep.subr.bf16.mxu0 %v1877
    %2549 = vmatpush1.bf16.msra.mxu0 %v1876
    %2550 = vmatprep.subr.bf16.mxu0 %v1883
    %2551 = vmatpush1.bf16.msra.mxu0 %v1882
    %2552 = vmatprep.subr.bf16.mxu0 %v1889
    %2553 = vmatpush1.bf16.msra.mxu0 %v1888
    %2554 = vmatprep.subr.bf16.mxu0 %v1895
    %2555 = vmatpush1.bf16.msra.mxu0 %v1894
    %2556 = vmatprep.subr.bf16.mxu0 %v1901
    %2557 = vmatpush1.bf16.msra.mxu0 %v1900
    %2558 = vmatprep.subr.bf16.mxu0 %v1907
    %2559 = vmatpush1.bf16.msra.mxu0 %v1906
    %2560 = vmatprep.subr.bf16.mxu0 %v1913
    %2561 = vmatpush1.bf16.msra.mxu0 %v1912
    %2562 = vmatprep.subr.bf16.mxu0 %v1919
    %2563 = vmatpush1.bf16.msra.mxu0 %v1918
    %2564 = vmatprep.subr.bf16.mxu0 %v1925
    %2565 = vmatpush1.bf16.msra.mxu0 %v1924
    %2566 = vmatprep.subr.bf16.mxu0 %v1931
    %2567 = vmatpush1.bf16.msra.mxu0 %v1930
    %2568 = vmatprep.subr.bf16.mxu0 %v1937
    %2569 = vmatpush1.bf16.msra.mxu0 %v1936
    %2570 = vmatprep.subr.bf16.mxu0 %v1943
    %2571 = vmatpush1.bf16.msra.mxu0 %v1942
    %2572 = vmatprep.subr.bf16.mxu0 %v1949
    %2573 = vmatpush1.bf16.msra.mxu0 %v1948
    %2574 = vmatprep.subr.bf16.mxu0 %v1955
    %2575 = vmatpush1.bf16.msra.mxu0 %v1954
    %2576 = vmatprep.subr.bf16.mxu0 %v1961
    %2577 = vmatpush1.bf16.msra.mxu0 %v1960
    %2578 = vmatprep.subr.bf16.mxu0 %v1967
    %2579 = vmatpush1.bf16.msra.mxu0 %v1966
    %2580 = vmatprep.mubr.bf16.mxu0 %v757
    %2581 = vmatmul.mubr.bf16.gmra.mrb[0].mxu0 %v756
    %v2582 = vpop.f32.mrb[0].mxu0
    %v2583 = vadd.f32 %v553, %v2582
    %v2584 = vpop.f32.mrb[0].mxu0
    %v2585 = vadd.f32 %v557, %v2584
    %v2586 = vpop.f32.mrb[0].mxu0
    %v2587 = vadd.f32 %v553, %v2586
    %v2588 = vpop.f32.mrb[0].mxu0
    %v2589 = vadd.f32 %v557, %v2588
    %2590 = vmatprep.mubr.bf16.mxu0 %v764
    %2591 = vmatmul.mubr.bf16.gmra.mrb[0].mxu0 %v763
    %v2592 = vpop.f32.mrb[0].mxu0
    %v2593 = vadd.f32 %v553, %v2592
    %v2594 = vpop.f32.mrb[0].mxu0
    %v2595 = vadd.f32 %v557, %v2594
    %v2596 = vpop.f32.mrb[0].mxu0
    %v2597 = vadd.f32 %v553, %v2596
    %v2598 = vpop.f32.mrb[0].mxu0
    %v2599 = vadd.f32 %v557, %v2598
    %2600 = vmatprep.mubr.bf16.mxu0 %v771
    %2601 = vmatmul.mubr.bf16.gmra.mrb[0].mxu0 %v770
    %v2602 = vpop.f32.mrb[0].mxu0
    %v2603 = vadd.f32 %v553, %v2602
    %v2604 = vpop.f32.mrb[0].mxu0
    %v2605 = vadd.f32 %v557, %v2604
    %v2606 = vpop.f32.mrb[0].mxu0
    %v2607 = vadd.f32 %v553, %v2606
    %v2608 = vpop.f32.mrb[0].mxu0
    %v2609 = vadd.f32 %v557, %v2608
    %2610 = vmatprep.mubr.bf16.mxu0 %v778
    %2611 = vmatmul.mubr.bf16.gmra.mrb[0].mxu0 %v777
    %v2612 = vpop.f32.mrb[0].mxu0
    %v2613 = vadd.f32 %v553, %v2612
    %v2614 = vpop.f32.mrb[0].mxu0
    %v2615 = vadd.f32 %v557, %v2614
    %v2616 = vpop.f32.mrb[0].mxu0
    %v2617 = vadd.f32 %v553, %v2616
    %v2618 = vpop.f32.mrb[0].mxu0
    %v2619 = vadd.f32 %v557, %v2618
    %2620 = vmatprep.mubr.bf16.mxu0 %v785
    %2621 = vmatmul.mubr.bf16.gmra.mrb[0].mxu0 %v784
    %v2622 = vpop.f32.mrb[0].mxu0
    %v2623 = vadd.f32 %v553, %v2622
    %v2624 = vpop.f32.mrb[0].mxu0
    %v2625 = vadd.f32 %v557, %v2624
    %v2626 = vpop.f32.mrb[0].mxu0
    %v2627 = vadd.f32 %v553, %v2626
    %v2628 = vpop.f32.mrb[0].mxu0
    %v2629 = vadd.f32 %v557, %v2628
    %2630 = vmatprep.mubr.bf16.mxu0 %v792
    %2631 = vmatmul.mubr.bf16.gmra.mrb[0].mxu0 %v791
    %v2632 = vpop.f32.mrb[0].mxu0
    %v2633 = vadd.f32 %v553, %v2632
    %v2634 = vpop.f32.mrb[0].mxu0
    %v2635 = vadd.f32 %v557, %v2634
    %v2636 = vpop.f32.mrb[0].mxu0
    %v2637 = vadd.f32 %v553, %v2636
    %v2638 = vpop.f32.mrb[0].mxu0
    %v2639 = vadd.f32 %v557, %v2638
    %2640 = vmatprep.mubr.bf16.mxu0 %v799
    %2641 = vmatmul.mubr.bf16.gmra.mrb[0].mxu0 %v798
    %v2642 = vpop.f32.mrb[0].mxu0
    %v2643 = vadd.f32 %v553, %v2642
    %v2644 = vpop.f32.mrb[0].mxu0
    %v2645 = vadd.f32 %v557, %v2644
    %v2646 = vpop.f32.mrb[0].mxu0
    %v2647 = vadd.f32 %v553, %v2646
    %v2648 = vpop.f32.mrb[0].mxu0
    %v2649 = vadd.f32 %v557, %v2648
    %2650 = vmatprep.mubr.bf16.mxu0 %v806
    %2651 = vmatmul.mubr.bf16.gmra.mrb[0].mxu0 %v805
    %v2652 = vpop.f32.mrb[0].mxu0
    %v2653 = vadd.f32 %v553, %v2652
    %v2654 = vpop.f32.mrb[0].mxu0
    %v2655 = vadd.f32 %v557, %v2654
    %v2656 = vpop.f32.mrb[0].mxu0
    %v2657 = vadd.f32 %v553, %v2656
    %v2658 = vpop.f32.mrb[0].mxu0
    %v2659 = vadd.f32 %v557, %v2658
    %2660 = vdwg.mxu0
    %2661 = vmatprep.subr.bf16.mxu0 %v1973
    %2662 = vmatpush1.bf16.msra.mxu0 %v1972
    %2663 = vmatprep.subr.bf16.mxu0 %v1979
    %2664 = vmatpush1.bf16.msra.mxu0 %v1978
    %2665 = vmatprep.subr.bf16.mxu0 %v1985
    %2666 = vmatpush1.bf16.msra.mxu0 %v1984
    %2667 = vmatprep.subr.bf16.mxu0 %v1991
    %2668 = vmatpush1.bf16.msra.mxu0 %v1990
    %2669 = vmatprep.subr.bf16.mxu0 %v1997
    %2670 = vmatpush1.bf16.msra.mxu0 %v1996
    %2671 = vmatprep.subr.bf16.mxu0 %v2003
    %2672 = vmatpush1.bf16.msra.mxu0 %v2002
    %2673 = vmatprep.subr.bf16.mxu0 %v2009
    %2674 = vmatpush1.bf16.msra.mxu0 %v2008
    %2675 = vmatprep.subr.bf16.mxu0 %v2015
    %2676 = vmatpush1.bf16.msra.mxu0 %v2014
    %2677 = vmatprep.subr.bf16.mxu0 %v2021
    %2678 = vmatpush1.bf16.msra.mxu0 %v2020
    %2679 = vmatprep.subr.bf16.mxu0 %v2027
    %2680 = vmatpush1.bf16.msra.mxu0 %v2026
    %2681 = vmatprep.subr.bf16.mxu0 %v2033
    %2682 = vmatpush1.bf16.msra.mxu0 %v2032
    %2683 = vmatprep.subr.bf16.mxu0 %v2039
    %2684 = vmatpush1.bf16.msra.mxu0 %v2038
    %2685 = vmatprep.subr.bf16.mxu0 %v2045
    %2686 = vmatpush1.bf16.msra.mxu0 %v2044
    %2687 = vmatprep.subr.bf16.mxu0 %v2051
    %2688 = vmatpush1.bf16.msra.mxu0 %v2050
    %2689 = vmatprep.subr.bf16.mxu0 %v2057
    %2690 = vmatpush1.bf16.msra.mxu0 %v2056
    %2691 = vmatprep.subr.bf16.mxu0 %v2063
    %2692 = vmatpush1.bf16.msra.mxu0 %v2062
    %2693 = vmatprep.mubr.bf16.mxu0 %v759
    %2694 = vmatmul.mubr.bf16.gmra.mrb[0].mxu0 %v758
    %v2695 = vpop.f32.mrb[0].mxu0
    %v2696 = vadd.f32 %v2583, %v2695
    %v2697 = vpop.f32.mrb[0].mxu0
    %v2698 = vadd.f32 %v2585, %v2697
    %v2699 = vpop.f32.mrb[0].mxu0
    %v2700 = vadd.f32 %v2587, %v2699
    %v2701 = vpop.f32.mrb[0].mxu0
    %v2702 = vadd.f32 %v2589, %v2701
    %2703 = vmatprep.mubr.bf16.mxu0 %v766
    %2704 = vmatmul.mubr.bf16.gmra.mrb[0].mxu0 %v765
    %v2705 = vpop.f32.mrb[0].mxu0
    %v2706 = vadd.f32 %v2593, %v2705
    %v2707 = vpop.f32.mrb[0].mxu0
    %v2708 = vadd.f32 %v2595, %v2707
    %v2709 = vpop.f32.mrb[0].mxu0
    %v2710 = vadd.f32 %v2597, %v2709
    %v2711 = vpop.f32.mrb[0].mxu0
    %v2712 = vadd.f32 %v2599, %v2711
    %2713 = vmatprep.mubr.bf16.mxu0 %v773
    %2714 = vmatmul.mubr.bf16.gmra.mrb[0].mxu0 %v772
    %v2715 = vpop.f32.mrb[0].mxu0
    %v2716 = vadd.f32 %v2603, %v2715
    %v2717 = vpop.f32.mrb[0].mxu0
    %v2718 = vadd.f32 %v2605, %v2717
    %v2719 = vpop.f32.mrb[0].mxu0
    %v2720 = vadd.f32 %v2607, %v2719
    %v2721 = vpop.f32.mrb[0].mxu0
    %v2722 = vadd.f32 %v2609, %v2721
    %2723 = vmatprep.mubr.bf16.mxu0 %v780
    %2724 = vmatmul.mubr.bf16.gmra.mrb[0].mxu0 %v779
    %v2725 = vpop.f32.mrb[0].mxu0
    %v2726 = vadd.f32 %v2613, %v2725
    %v2727 = vpop.f32.mrb[0].mxu0
    %v2728 = vadd.f32 %v2615, %v2727
    %v2729 = vpop.f32.mrb[0].mxu0
    %v2730 = vadd.f32 %v2617, %v2729
    %v2731 = vpop.f32.mrb[0].mxu0
    %v2732 = vadd.f32 %v2619, %v2731
    %2733 = vmatprep.mubr.bf16.mxu0 %v787
    %2734 = vmatmul.mubr.bf16.gmra.mrb[0].mxu0 %v786
    %v2735 = vpop.f32.mrb[0].mxu0
    %v2736 = vadd.f32 %v2623, %v2735
    %v2737 = vpop.f32.mrb[0].mxu0
    %v2738 = vadd.f32 %v2625, %v2737
    %v2739 = vpop.f32.mrb[0].mxu0
    %v2740 = vadd.f32 %v2627, %v2739
    %v2741 = vpop.f32.mrb[0].mxu0
    %v2742 = vadd.f32 %v2629, %v2741
    %2743 = vmatprep.mubr.bf16.mxu0 %v794
    %2744 = vmatmul.mubr.bf16.gmra.mrb[0].mxu0 %v793
    %v2745 = vpop.f32.mrb[0].mxu0
    %v2746 = vadd.f32 %v2633, %v2745
    %v2747 = vpop.f32.mrb[0].mxu0
    %v2748 = vadd.f32 %v2635, %v2747
    %v2749 = vpop.f32.mrb[0].mxu0
    %v2750 = vadd.f32 %v2637, %v2749
    %v2751 = vpop.f32.mrb[0].mxu0
    %v2752 = vadd.f32 %v2639, %v2751
    %2753 = vmatprep.mubr.bf16.mxu0 %v801
    %2754 = vmatmul.mubr.bf16.gmra.mrb[0].mxu0 %v800
    %v2755 = vpop.f32.mrb[0].mxu0
    %v2756 = vadd.f32 %v2643, %v2755
    %v2757 = vpop.f32.mrb[0].mxu0
    %v2758 = vadd.f32 %v2645, %v2757
    %v2759 = vpop.f32.mrb[0].mxu0
    %v2760 = vadd.f32 %v2647, %v2759
    %v2761 = vpop.f32.mrb[0].mxu0
    %v2762 = vadd.f32 %v2649, %v2761
    %2763 = vmatprep.mubr.bf16.mxu0 %v808
    %2764 = vmatmul.mubr.bf16.gmra.mrb[0].mxu0 %v807
    %v2765 = vpop.f32.mrb[0].mxu0
    %v2766 = vadd.f32 %v2653, %v2765
    %v2767 = vpop.f32.mrb[0].mxu0
    %v2768 = vadd.f32 %v2655, %v2767
    %v2769 = vpop.f32.mrb[0].mxu0
    %v2770 = vadd.f32 %v2657, %v2769
    %v2771 = vpop.f32.mrb[0].mxu0
    %v2772 = vadd.f32 %v2659, %v2771
    %2773 = vdwg.mxu0
    %2774 = vmatprep.subr.bf16.mxu0 %v2069
    %2775 = vmatpush1.bf16.msra.mxu0 %v2068
    %2776 = vmatprep.subr.bf16.mxu0 %v2075
    %2777 = vmatpush1.bf16.msra.mxu0 %v2074
    %2778 = vmatprep.subr.bf16.mxu0 %v2081
    %2779 = vmatpush1.bf16.msra.mxu0 %v2080
    %2780 = vmatprep.subr.bf16.mxu0 %v2087
    %2781 = vmatpush1.bf16.msra.mxu0 %v2086
    %2782 = vmatprep.subr.bf16.mxu0 %v2093
    %2783 = vmatpush1.bf16.msra.mxu0 %v2092
    %2784 = vmatprep.subr.bf16.mxu0 %v2099
    %2785 = vmatpush1.bf16.msra.mxu0 %v2098
    %2786 = vmatprep.subr.bf16.mxu0 %v2105
    %2787 = vmatpush1.bf16.msra.mxu0 %v2104
    %2788 = vmatprep.subr.bf16.mxu0 %v2111
    %2789 = vmatpush1.bf16.msra.mxu0 %v2110
    %2790 = vmatprep.subr.bf16.mxu0 %v2117
    %2791 = vmatpush1.bf16.msra.mxu0 %v2116
    %2792 = vmatprep.subr.bf16.mxu0 %v2123
    %2793 = vmatpush1.bf16.msra.mxu0 %v2122
    %2794 = vmatprep.subr.bf16.mxu0 %v2129
    %2795 = vmatpush1.bf16.msra.mxu0 %v2128
    %2796 = vmatprep.subr.bf16.mxu0 %v2135
    %2797 = vmatpush1.bf16.msra.mxu0 %v2134
    %2798 = vmatprep.subr.bf16.mxu0 %v2141
    %2799 = vmatpush1.bf16.msra.mxu0 %v2140
    %2800 = vmatprep.subr.bf16.mxu0 %v2147
    %2801 = vmatpush1.bf16.msra.mxu0 %v2146
    %2802 = vmatprep.subr.bf16.mxu0 %v2153
    %2803 = vmatpush1.bf16.msra.mxu0 %v2152
    %2804 = vmatprep.subr.bf16.mxu0 %v2159
    %2805 = vmatpush1.bf16.msra.mxu0 %v2158
    %2806 = vmatprep.mubr.bf16.mxu0 %v761
    %2807 = vmatmul.mubr.bf16.gmra.mrb[0].mxu0 %v760
    %v2808 = vpop.f32.mrb[0].mxu0
    %v2809 = vadd.f32 %v2696, %v2808
    %v2810 = vpop.f32.mrb[0].mxu0
    %v2811 = vadd.f32 %v2698, %v2810
    %v2812 = vpop.f32.mrb[0].mxu0
    %v2813 = vadd.f32 %v2700, %v2812
    %v2814 = vpop.f32.mrb[0].mxu0
    %v2815 = vadd.f32 %v2702, %v2814
    %2816 = vmatprep.mubr.bf16.mxu0 %v768
    %2817 = vmatmul.mubr.bf16.gmra.mrb[0].mxu0 %v767
    %v2818 = vpop.f32.mrb[0].mxu0
    %v2819 = vadd.f32 %v2706, %v2818
    %v2820 = vpop.f32.mrb[0].mxu0
    %v2821 = vadd.f32 %v2708, %v2820
    %v2822 = vpop.f32.mrb[0].mxu0
    %v2823 = vadd.f32 %v2710, %v2822
    %v2824 = vpop.f32.mrb[0].mxu0
    %v2825 = vadd.f32 %v2712, %v2824
    %2826 = vmatprep.mubr.bf16.mxu0 %v775
    %2827 = vmatmul.mubr.bf16.gmra.mrb[0].mxu0 %v774
    %v2828 = vpop.f32.mrb[0].mxu0
    %v2829 = vadd.f32 %v2716, %v2828
    %v2830 = vpop.f32.mrb[0].mxu0
    %v2831 = vadd.f32 %v2718, %v2830
    %v2832 = vpop.f32.mrb[0].mxu0
    %v2833 = vadd.f32 %v2720, %v2832
    %v2834 = vpop.f32.mrb[0].mxu0
    %v2835 = vadd.f32 %v2722, %v2834
    %2836 = vmatprep.mubr.bf16.mxu0 %v782
    %2837 = vmatmul.mubr.bf16.gmra.mrb[0].mxu0 %v781
    %v2838 = vpop.f32.mrb[0].mxu0
    %v2839 = vadd.f32 %v2726, %v2838
    %v2840 = vpop.f32.mrb[0].mxu0
    %v2841 = vadd.f32 %v2728, %v2840
    %v2842 = vpop.f32.mrb[0].mxu0
    %v2843 = vadd.f32 %v2730, %v2842
    %v2844 = vpop.f32.mrb[0].mxu0
    %v2845 = vadd.f32 %v2732, %v2844
    %2846 = vmatprep.mubr.bf16.mxu0 %v789
    %2847 = vmatmul.mubr.bf16.gmra.mrb[0].mxu0 %v788
    %v2848 = vpop.f32.mrb[0].mxu0
    %v2849 = vadd.f32 %v2736, %v2848
    %v2850 = vpop.f32.mrb[0].mxu0
    %v2851 = vadd.f32 %v2738, %v2850
    %v2852 = vpop.f32.mrb[0].mxu0
    %v2853 = vadd.f32 %v2740, %v2852
    %v2854 = vpop.f32.mrb[0].mxu0
    %v2855 = vadd.f32 %v2742, %v2854
    %2856 = vmatprep.mubr.bf16.mxu0 %v796
    %2857 = vmatmul.mubr.bf16.gmra.mrb[0].mxu0 %v795
    %v2858 = vpop.f32.mrb[0].mxu0
    %v2859 = vadd.f32 %v2746, %v2858
    %v2860 = vpop.f32.mrb[0].mxu0
    %v2861 = vadd.f32 %v2748, %v2860
    %v2862 = vpop.f32.mrb[0].mxu0
    %v2863 = vadd.f32 %v2750, %v2862
    %v2864 = vpop.f32.mrb[0].mxu0
    %v2865 = vadd.f32 %v2752, %v2864
    %2866 = vmatprep.mubr.bf16.mxu0 %v803
    %2867 = vmatmul.mubr.bf16.gmra.mrb[0].mxu0 %v802
    %v2868 = vpop.f32.mrb[0].mxu0
    %v2869 = vadd.f32 %v2756, %v2868
    %v2870 = vpop.f32.mrb[0].mxu0
    %v2871 = vadd.f32 %v2758, %v2870
    %v2872 = vpop.f32.mrb[0].mxu0
    %v2873 = vadd.f32 %v2760, %v2872
    %v2874 = vpop.f32.mrb[0].mxu0
    %v2875 = vadd.f32 %v2762, %v2874
    %2876 = vmatprep.mubr.bf16.mxu0 %v810
    %2877 = vmatmul.mubr.bf16.gmra.mrb[0].mxu0 %v809
    %v2878 = vpop.f32.mrb[0].mxu0
    %v2879 = vadd.f32 %v2766, %v2878
    %v2880 = vpop.f32.mrb[0].mxu0
    %v2881 = vadd.f32 %v2768, %v2880
    %v2882 = vpop.f32.mrb[0].mxu0
    %v2883 = vadd.f32 %v2770, %v2882
    %v2884 = vpop.f32.mrb[0].mxu0
    %v2885 = vadd.f32 %v2772, %v2884
    %2886 = vdwg.mxu0
    %2887 = vmatprep.subr.bf16.mxu0 %v2165
    %2888 = vmatpush1.bf16.msra.mxu0 %v2164
    %2889 = vmatprep.subr.bf16.mxu0 %v2171
    %2890 = vmatpush1.bf16.msra.mxu0 %v2170
    %2891 = vmatprep.subr.bf16.mxu0 %v2177
    %2892 = vmatpush1.bf16.msra.mxu0 %v2176
    %2893 = vmatprep.subr.bf16.mxu0 %v2183
    %2894 = vmatpush1.bf16.msra.mxu0 %v2182
    %2895 = vmatprep.subr.bf16.mxu0 %v2189
    %2896 = vmatpush1.bf16.msra.mxu0 %v2188
    %2897 = vmatprep.subr.bf16.mxu0 %v2195
    %2898 = vmatpush1.bf16.msra.mxu0 %v2194
    %2899 = vmatprep.subr.bf16.mxu0 %v2201
    %2900 = vmatpush1.bf16.msra.mxu0 %v2200
    %2901 = vmatprep.subr.bf16.mxu0 %v2207
    %2902 = vmatpush1.bf16.msra.mxu0 %v2206
    %2903 = vmatprep.subr.bf16.mxu0 0
    %2904 = vmatpush1.bf16.msra.mxu0 0
    %2905 = vmatprep.subr.bf16.mxu0 0
    %2906 = vmatpush1.bf16.msra.mxu0 0
    %2907 = vmatprep.subr.bf16.mxu0 0
    %2908 = vmatpush1.bf16.msra.mxu0 0
    %2909 = vmatprep.subr.bf16.mxu0 0
    %2910 = vmatpush1.bf16.msra.mxu0 0
    %2911 = vmatprep.subr.bf16.mxu0 0
    %2912 = vmatpush1.bf16.msra.mxu0 0
    %2913 = vmatprep.subr.bf16.mxu0 0
    %2914 = vmatpush1.bf16.msra.mxu0 0
    %2915 = vmatprep.subr.bf16.mxu0 0
    %2916 = vmatpush1.bf16.msra.mxu0 0
    %2917 = vmatprep.subr.bf16.mxu0 0
    %2918 = vmatpush1.bf16.msra.mxu0 0
    %2919 = vmatprep.mubr.bf16.mxu0 0
    %2920 = vmatmul.mubr.bf16.gmra.mrb[0].mxu0 %v762
    %v2921 = vpop.f32.mrb[0].mxu0
    %v2922 = vadd.f32 %v2809, %v2921
    %v2923 = vpop.f32.mrb[0].mxu0
    %v2924 = vadd.f32 %v2811, %v2923
    %v2925 = vpop.f32.mrb[0].mxu0
    %v2926 = vadd.f32 %v2813, %v2925
    %v2927 = vpop.f32.mrb[0].mxu0
    %v2928 = vadd.f32 %v2815, %v2927
    %2929 = vmatprep.mubr.bf16.mxu0 0
    %2930 = vmatmul.mubr.bf16.gmra.mrb[0].mxu0 %v769
    %v2931 = vpop.f32.mrb[0].mxu0
    %v2932 = vadd.f32 %v2819, %v2931
    %v2933 = vpop.f32.mrb[0].mxu0
    %v2934 = vadd.f32 %v2821, %v2933
    %v2935 = vpop.f32.mrb[0].mxu0
    %v2936 = vadd.f32 %v2823, %v2935
    %v2937 = vpop.f32.mrb[0].mxu0
    %v2938 = vadd.f32 %v2825, %v2937
    %2939 = vmatprep.mubr.bf16.mxu0 0
    %2940 = vmatmul.mubr.bf16.gmra.mrb[0].mxu0 %v776
    %v2941 = vpop.f32.mrb[0].mxu0
    %v2942 = vadd.f32 %v2829, %v2941
    %v2943 = vpop.f32.mrb[0].mxu0
    %v2944 = vadd.f32 %v2831, %v2943
    %v2945 = vpop.f32.mrb[0].mxu0
    %v2946 = vadd.f32 %v2833, %v2945
    %v2947 = vpop.f32.mrb[0].mxu0
    %v2948 = vadd.f32 %v2835, %v2947
    %2949 = vmatprep.mubr.bf16.mxu0 0
    %2950 = vmatmul.mubr.bf16.gmra.mrb[0].mxu0 %v783
    %v2951 = vpop.f32.mrb[0].mxu0
    %v2952 = vadd.f32 %v2839, %v2951
    %v2953 = vpop.f32.mrb[0].mxu0
    %v2954 = vadd.f32 %v2841, %v2953
    %v2955 = vpop.f32.mrb[0].mxu0
    %v2956 = vadd.f32 %v2843, %v2955
    %v2957 = vpop.f32.mrb[0].mxu0
    %v2958 = vadd.f32 %v2845, %v2957
    %2959 = vmatprep.mubr.bf16.mxu0 0
    %2960 = vmatmul.mubr.bf16.gmra.mrb[0].mxu0 %v790
    %v2961 = vpop.f32.mrb[0].mxu0
    %v2962 = vadd.f32 %v2849, %v2961
    %v2963 = vpop.f32.mrb[0].mxu0
    %v2964 = vadd.f32 %v2851, %v2963
    %v2965 = vpop.f32.mrb[0].mxu0
    %v2966 = vadd.f32 %v2853, %v2965
    %v2967 = vpop.f32.mrb[0].mxu0
    %v2968 = vadd.f32 %v2855, %v2967
    %2969 = vmatprep.mubr.bf16.mxu0 0
    %2970 = vmatmul.mubr.bf16.gmra.mrb[0].mxu0 %v797
    %v2971 = vpop.f32.mrb[0].mxu0
    %v2972 = vadd.f32 %v2859, %v2971
    %v2973 = vpop.f32.mrb[0].mxu0
    %v2974 = vadd.f32 %v2861, %v2973
    %v2975 = vpop.f32.mrb[0].mxu0
    %v2976 = vadd.f32 %v2863, %v2975
    %v2977 = vpop.f32.mrb[0].mxu0
    %v2978 = vadd.f32 %v2865, %v2977
    %2979 = vmatprep.mubr.bf16.mxu0 0
    %2980 = vmatmul.mubr.bf16.gmra.mrb[0].mxu0 %v804
    %v2981 = vpop.f32.mrb[0].mxu0
    %v2982 = vadd.f32 %v2869, %v2981
    %v2983 = vpop.f32.mrb[0].mxu0
    %v2984 = vadd.f32 %v2871, %v2983
    %v2985 = vpop.f32.mrb[0].mxu0
    %v2986 = vadd.f32 %v2873, %v2985
    %v2987 = vpop.f32.mrb[0].mxu0
    %v2988 = vadd.f32 %v2875, %v2987
    %2989 = vmatprep.mubr.bf16.mxu0 0
    %2990 = vmatmul.mubr.bf16.gmra.mrb[0].mxu0 %v811
    %v2991 = vpop.f32.mrb[0].mxu0
    %v2992 = vadd.f32 %v2879, %v2991
    %v2993 = vpop.f32.mrb[0].mxu0
    %v2994 = vadd.f32 %v2881, %v2993
    %v2995 = vpop.f32.mrb[0].mxu0
    %v2996 = vadd.f32 %v2883, %v2995
    %v2997 = vpop.f32.mrb[0].mxu0
    %v2998 = vadd.f32 %v2885, %v2997
    %2999 = vdwg.mxu0
    %3000 = vmatprep.subr.bf16.mxu0 %v1879
    %3001 = vmatpush1.bf16.msra.mxu0 %v1878
    %3002 = vmatprep.subr.bf16.mxu0 %v1885
    %3003 = vmatpush1.bf16.msra.mxu0 %v1884
    %3004 = vmatprep.subr.bf16.mxu0 %v1891
    %3005 = vmatpush1.bf16.msra.mxu0 %v1890
    %3006 = vmatprep.subr.bf16.mxu0 %v1897
    %3007 = vmatpush1.bf16.msra.mxu0 %v1896
    %3008 = vmatprep.subr.bf16.mxu0 %v1903
    %3009 = vmatpush1.bf16.msra.mxu0 %v1902
    %3010 = vmatprep.subr.bf16.mxu0 %v1909
    %3011 = vmatpush1.bf16.msra.mxu0 %v1908
    %3012 = vmatprep.subr.bf16.mxu0 %v1915
    %3013 = vmatpush1.bf16.msra.mxu0 %v1914
    %3014 = vmatprep.subr.bf16.mxu0 %v1921
    %3015 = vmatpush1.bf16.msra.mxu0 %v1920
    %3016 = vmatprep.subr.bf16.mxu0 %v1927
    %3017 = vmatpush1.bf16.msra.mxu0 %v1926
    %3018 = vmatprep.subr.bf16.mxu0 %v1933
    %3019 = vmatpush1.bf16.msra.mxu0 %v1932
    %3020 = vmatprep.subr.bf16.mxu0 %v1939
    %3021 = vmatpush1.bf16.msra.mxu0 %v1938
    %3022 = vmatprep.subr.bf16.mxu0 %v1945
    %3023 = vmatpush1.bf16.msra.mxu0 %v1944
    %3024 = vmatprep.subr.bf16.mxu0 %v1951
    %3025 = vmatpush1.bf16.msra.mxu0 %v1950
    %3026 = vmatprep.subr.bf16.mxu0 %v1957
    %3027 = vmatpush1.bf16.msra.mxu0 %v1956
    %3028 = vmatprep.subr.bf16.mxu0 %v1963
    %3029 = vmatpush1.bf16.msra.mxu0 %v1962
    %3030 = vmatprep.subr.bf16.mxu0 %v1969
    %3031 = vmatpush1.bf16.msra.mxu0 %v1968
    %3032 = vmatprep.mubr.bf16.mxu0 %v757
    %3033 = vmatmul.mubr.bf16.gmra.mrb[0].mxu0 %v756
    %v3034 = vpop.f32.mrb[0].mxu0
    %v3035 = vadd.f32 %v561, %v3034
    %v3036 = vpop.f32.mrb[0].mxu0
    %v3037 = vadd.f32 %v565, %v3036
    %v3038 = vpop.f32.mrb[0].mxu0
    %v3039 = vadd.f32 %v561, %v3038
    %v3040 = vpop.f32.mrb[0].mxu0
    %v3041 = vadd.f32 %v565, %v3040
    %3042 = vmatprep.mubr.bf16.mxu0 %v764
    %3043 = vmatmul.mubr.bf16.gmra.mrb[0].mxu0 %v763
    %v3044 = vpop.f32.mrb[0].mxu0
    %v3045 = vadd.f32 %v561, %v3044
    %v3046 = vpop.f32.mrb[0].mxu0
    %v3047 = vadd.f32 %v565, %v3046
    %v3048 = vpop.f32.mrb[0].mxu0
    %v3049 = vadd.f32 %v561, %v3048
    %v3050 = vpop.f32.mrb[0].mxu0
    %v3051 = vadd.f32 %v565, %v3050
    %3052 = vmatprep.mubr.bf16.mxu0 %v771
    %3053 = vmatmul.mubr.bf16.gmra.mrb[0].mxu0 %v770
    %v3054 = vpop.f32.mrb[0].mxu0
    %v3055 = vadd.f32 %v561, %v3054
    %v3056 = vpop.f32.mrb[0].mxu0
    %v3057 = vadd.f32 %v565, %v3056
    %v3058 = vpop.f32.mrb[0].mxu0
    %v3059 = vadd.f32 %v561, %v3058
    %v3060 = vpop.f32.mrb[0].mxu0
    %v3061 = vadd.f32 %v565, %v3060
    %3062 = vmatprep.mubr.bf16.mxu0 %v778
    %3063 = vmatmul.mubr.bf16.gmra.mrb[0].mxu0 %v777
    %v3064 = vpop.f32.mrb[0].mxu0
    %v3065 = vadd.f32 %v561, %v3064
    %v3066 = vpop.f32.mrb[0].mxu0
    %v3067 = vadd.f32 %v565, %v3066
    %v3068 = vpop.f32.mrb[0].mxu0
    %v3069 = vadd.f32 %v561, %v3068
    %v3070 = vpop.f32.mrb[0].mxu0
    %v3071 = vadd.f32 %v565, %v3070
    %3072 = vmatprep.mubr.bf16.mxu0 %v785
    %3073 = vmatmul.mubr.bf16.gmra.mrb[0].mxu0 %v784
    %v3074 = vpop.f32.mrb[0].mxu0
    %v3075 = vadd.f32 %v561, %v3074
    %v3076 = vpop.f32.mrb[0].mxu0
    %v3077 = vadd.f32 %v565, %v3076
    %v3078 = vpop.f32.mrb[0].mxu0
    %v3079 = vadd.f32 %v561, %v3078
    %v3080 = vpop.f32.mrb[0].mxu0
    %v3081 = vadd.f32 %v565, %v3080
    %3082 = vmatprep.mubr.bf16.mxu0 %v792
    %3083 = vmatmul.mubr.bf16.gmra.mrb[0].mxu0 %v791
    %v3084 = vpop.f32.mrb[0].mxu0
    %v3085 = vadd.f32 %v561, %v3084
    %v3086 = vpop.f32.mrb[0].mxu0
    %v3087 = vadd.f32 %v565, %v3086
    %v3088 = vpop.f32.mrb[0].mxu0
    %v3089 = vadd.f32 %v561, %v3088
    %v3090 = vpop.f32.mrb[0].mxu0
    %v3091 = vadd.f32 %v565, %v3090
    %3092 = vmatprep.mubr.bf16.mxu0 %v799
    %3093 = vmatmul.mubr.bf16.gmra.mrb[0].mxu0 %v798
    %v3094 = vpop.f32.mrb[0].mxu0
    %v3095 = vadd.f32 %v561, %v3094
    %v3096 = vpop.f32.mrb[0].mxu0
    %v3097 = vadd.f32 %v565, %v3096
    %v3098 = vpop.f32.mrb[0].mxu0
    %v3099 = vadd.f32 %v561, %v3098
    %v3100 = vpop.f32.mrb[0].mxu0
    %v3101 = vadd.f32 %v565, %v3100
    %3102 = vmatprep.mubr.bf16.mxu0 %v806
    %3103 = vmatmul.mubr.bf16.gmra.mrb[0].mxu0 %v805
    %v3104 = vpop.f32.mrb[0].mxu0
    %v3105 = vadd.f32 %v561, %v3104
    %v3106 = vpop.f32.mrb[0].mxu0
    %v3107 = vadd.f32 %v565, %v3106
    %v3108 = vpop.f32.mrb[0].mxu0
    %v3109 = vadd.f32 %v561, %v3108
    %v3110 = vpop.f32.mrb[0].mxu0
    %v3111 = vadd.f32 %v565, %v3110
    %3112 = vdwg.mxu0
    %3113 = vmatprep.subr.bf16.mxu0 %v1975
    %3114 = vmatpush1.bf16.msra.mxu0 %v1974
    %3115 = vmatprep.subr.bf16.mxu0 %v1981
    %3116 = vmatpush1.bf16.msra.mxu0 %v1980
    %3117 = vmatprep.subr.bf16.mxu0 %v1987
    %3118 = vmatpush1.bf16.msra.mxu0 %v1986
    %3119 = vmatprep.subr.bf16.mxu0 %v1993
    %3120 = vmatpush1.bf16.msra.mxu0 %v1992
    %3121 = vmatprep.subr.bf16.mxu0 %v1999
    %3122 = vmatpush1.bf16.msra.mxu0 %v1998
    %3123 = vmatprep.subr.bf16.mxu0 %v2005
    %3124 = vmatpush1.bf16.msra.mxu0 %v2004
    %3125 = vmatprep.subr.bf16.mxu0 %v2011
    %3126 = vmatpush1.bf16.msra.mxu0 %v2010
    %3127 = vmatprep.subr.bf16.mxu0 %v2017
    %3128 = vmatpush1.bf16.msra.mxu0 %v2016
    %3129 = vmatprep.subr.bf16.mxu0 %v2023
    %3130 = vmatpush1.bf16.msra.mxu0 %v2022
    %3131 = vmatprep.subr.bf16.mxu0 %v2029
    %3132 = vmatpush1.bf16.msra.mxu0 %v2028
    %3133 = vmatprep.subr.bf16.mxu0 %v2035
    %3134 = vmatpush1.bf16.msra.mxu0 %v2034
    %3135 = vmatprep.subr.bf16.mxu0 %v2041
    %3136 = vmatpush1.bf16.msra.mxu0 %v2040
    %3137 = vmatprep.subr.bf16.mxu0 %v2047
    %3138 = vmatpush1.bf16.msra.mxu0 %v2046
    %3139 = vmatprep.subr.bf16.mxu0 %v2053
    %3140 = vmatpush1.bf16.msra.mxu0 %v2052
    %3141 = vmatprep.subr.bf16.mxu0 %v2059
    %3142 = vmatpush1.bf16.msra.mxu0 %v2058
    %3143 = vmatprep.subr.bf16.mxu0 %v2065
    %3144 = vmatpush1.bf16.msra.mxu0 %v2064
    %3145 = vmatprep.mubr.bf16.mxu0 %v759
    %3146 = vmatmul.mubr.bf16.gmra.mrb[0].mxu0 %v758
    %v3147 = vpop.f32.mrb[0].mxu0
    %v3148 = vadd.f32 %v3035, %v3147
    %v3149 = vpop.f32.mrb[0].mxu0
    %v3150 = vadd.f32 %v3037, %v3149
    %v3151 = vpop.f32.mrb[0].mxu0
    %v3152 = vadd.f32 %v3039, %v3151
    %v3153 = vpop.f32.mrb[0].mxu0
    %v3154 = vadd.f32 %v3041, %v3153
    %3155 = vmatprep.mubr.bf16.mxu0 %v766
    %3156 = vmatmul.mubr.bf16.gmra.mrb[0].mxu0 %v765
    %v3157 = vpop.f32.mrb[0].mxu0
    %v3158 = vadd.f32 %v3045, %v3157
    %v3159 = vpop.f32.mrb[0].mxu0
    %v3160 = vadd.f32 %v3047, %v3159
    %v3161 = vpop.f32.mrb[0].mxu0
    %v3162 = vadd.f32 %v3049, %v3161
    %v3163 = vpop.f32.mrb[0].mxu0
    %v3164 = vadd.f32 %v3051, %v3163
    %3165 = vmatprep.mubr.bf16.mxu0 %v773
    %3166 = vmatmul.mubr.bf16.gmra.mrb[0].mxu0 %v772
    %v3167 = vpop.f32.mrb[0].mxu0
    %v3168 = vadd.f32 %v3055, %v3167
    %v3169 = vpop.f32.mrb[0].mxu0
    %v3170 = vadd.f32 %v3057, %v3169
    %v3171 = vpop.f32.mrb[0].mxu0
    %v3172 = vadd.f32 %v3059, %v3171
    %v3173 = vpop.f32.mrb[0].mxu0
    %v3174 = vadd.f32 %v3061, %v3173
    %3175 = vmatprep.mubr.bf16.mxu0 %v780
    %3176 = vmatmul.mubr.bf16.gmra.mrb[0].mxu0 %v779
    %v3177 = vpop.f32.mrb[0].mxu0
    %v3178 = vadd.f32 %v3065, %v3177
    %v3179 = vpop.f32.mrb[0].mxu0
    %v3180 = vadd.f32 %v3067, %v3179
    %v3181 = vpop.f32.mrb[0].mxu0
    %v3182 = vadd.f32 %v3069, %v3181
    %v3183 = vpop.f32.mrb[0].mxu0
    %v3184 = vadd.f32 %v3071, %v3183
    %3185 = vmatprep.mubr.bf16.mxu0 %v787
    %3186 = vmatmul.mubr.bf16.gmra.mrb[0].mxu0 %v786
    %v3187 = vpop.f32.mrb[0].mxu0
    %v3188 = vadd.f32 %v3075, %v3187
    %v3189 = vpop.f32.mrb[0].mxu0
    %v3190 = vadd.f32 %v3077, %v3189
    %v3191 = vpop.f32.mrb[0].mxu0
    %v3192 = vadd.f32 %v3079, %v3191
    %v3193 = vpop.f32.mrb[0].mxu0
    %v3194 = vadd.f32 %v3081, %v3193
    %3195 = vmatprep.mubr.bf16.mxu0 %v794
    %3196 = vmatmul.mubr.bf16.gmra.mrb[0].mxu0 %v793
    %v3197 = vpop.f32.mrb[0].mxu0
    %v3198 = vadd.f32 %v3085, %v3197
    %v3199 = vpop.f32.mrb[0].mxu0
    %v3200 = vadd.f32 %v3087, %v3199
    %v3201 = vpop.f32.mrb[0].mxu0
    %v3202 = vadd.f32 %v3089, %v3201
    %v3203 = vpop.f32.mrb[0].mxu0
    %v3204 = vadd.f32 %v3091, %v3203
    %3205 = vmatprep.mubr.bf16.mxu0 %v801
    %3206 = vmatmul.mubr.bf16.gmra.mrb[0].mxu0 %v800
    %v3207 = vpop.f32.mrb[0].mxu0
    %v3208 = vadd.f32 %v3095, %v3207
    %v3209 = vpop.f32.mrb[0].mxu0
    %v3210 = vadd.f32 %v3097, %v3209
    %v3211 = vpop.f32.mrb[0].mxu0
    %v3212 = vadd.f32 %v3099, %v3211
    %v3213 = vpop.f32.mrb[0].mxu0
    %v3214 = vadd.f32 %v3101, %v3213
    %3215 = vmatprep.mubr.bf16.mxu0 %v808
    %3216 = vmatmul.mubr.bf16.gmra.mrb[0].mxu0 %v807
    %v3217 = vpop.f32.mrb[0].mxu0
    %v3218 = vadd.f32 %v3105, %v3217
    %v3219 = vpop.f32.mrb[0].mxu0
    %v3220 = vadd.f32 %v3107, %v3219
    %v3221 = vpop.f32.mrb[0].mxu0
    %v3222 = vadd.f32 %v3109, %v3221
    %v3223 = vpop.f32.mrb[0].mxu0
    %v3224 = vadd.f32 %v3111, %v3223
    %3225 = vdwg.mxu0
    %3226 = vmatprep.subr.bf16.mxu0 %v2071
    %3227 = vmatpush1.bf16.msra.mxu0 %v2070
    %3228 = vmatprep.subr.bf16.mxu0 %v2077
    %3229 = vmatpush1.bf16.msra.mxu0 %v2076
    %3230 = vmatprep.subr.bf16.mxu0 %v2083
    %3231 = vmatpush1.bf16.msra.mxu0 %v2082
    %3232 = vmatprep.subr.bf16.mxu0 %v2089
    %3233 = vmatpush1.bf16.msra.mxu0 %v2088
    %3234 = vmatprep.subr.bf16.mxu0 %v2095
    %3235 = vmatpush1.bf16.msra.mxu0 %v2094
    %3236 = vmatprep.subr.bf16.mxu0 %v2101
    %3237 = vmatpush1.bf16.msra.mxu0 %v2100
    %3238 = vmatprep.subr.bf16.mxu0 %v2107
    %3239 = vmatpush1.bf16.msra.mxu0 %v2106
    %3240 = vmatprep.subr.bf16.mxu0 %v2113
    %3241 = vmatpush1.bf16.msra.mxu0 %v2112
    %3242 = vmatprep.subr.bf16.mxu0 %v2119
    %3243 = vmatpush1.bf16.msra.mxu0 %v2118
    %3244 = vmatprep.subr.bf16.mxu0 %v2125
    %3245 = vmatpush1.bf16.msra.mxu0 %v2124
    %3246 = vmatprep.subr.bf16.mxu0 %v2131
    %3247 = vmatpush1.bf16.msra.mxu0 %v2130
    %3248 = vmatprep.subr.bf16.mxu0 %v2137
    %3249 = vmatpush1.bf16.msra.mxu0 %v2136
    %3250 = vmatprep.subr.bf16.mxu0 %v2143
    %3251 = vmatpush1.bf16.msra.mxu0 %v2142
    %3252 = vmatprep.subr.bf16.mxu0 %v2149
    %3253 = vmatpush1.bf16.msra.mxu0 %v2148
    %3254 = vmatprep.subr.bf16.mxu0 %v2155
    %3255 = vmatpush1.bf16.msra.mxu0 %v2154
    %3256 = vmatprep.subr.bf16.mxu0 %v2161
    %3257 = vmatpush1.bf16.msra.mxu0 %v2160
    %3258 = vmatprep.mubr.bf16.mxu0 %v761
    %3259 = vmatmul.mubr.bf16.gmra.mrb[0].mxu0 %v760
    %v3260 = vpop.f32.mrb[0].mxu0
    %v3261 = vadd.f32 %v3148, %v3260
    %v3262 = vpop.f32.mrb[0].mxu0
    %v3263 = vadd.f32 %v3150, %v3262
    %v3264 = vpop.f32.mrb[0].mxu0
    %v3265 = vadd.f32 %v3152, %v3264
    %v3266 = vpop.f32.mrb[0].mxu0
    %v3267 = vadd.f32 %v3154, %v3266
    %3268 = vmatprep.mubr.bf16.mxu0 %v768
    %3269 = vmatmul.mubr.bf16.gmra.mrb[0].mxu0 %v767
    %v3270 = vpop.f32.mrb[0].mxu0
    %v3271 = vadd.f32 %v3158, %v3270
    %v3272 = vpop.f32.mrb[0].mxu0
    %v3273 = vadd.f32 %v3160, %v3272
    %v3274 = vpop.f32.mrb[0].mxu0
    %v3275 = vadd.f32 %v3162, %v3274
    %v3276 = vpop.f32.mrb[0].mxu0
    %v3277 = vadd.f32 %v3164, %v3276
    %3278 = vmatprep.mubr.bf16.mxu0 %v775
    %3279 = vmatmul.mubr.bf16.gmra.mrb[0].mxu0 %v774
    %v3280 = vpop.f32.mrb[0].mxu0
    %v3281 = vadd.f32 %v3168, %v3280
    %v3282 = vpop.f32.mrb[0].mxu0
    %v3283 = vadd.f32 %v3170, %v3282
    %v3284 = vpop.f32.mrb[0].mxu0
    %v3285 = vadd.f32 %v3172, %v3284
    %v3286 = vpop.f32.mrb[0].mxu0
    %v3287 = vadd.f32 %v3174, %v3286
    %3288 = vmatprep.mubr.bf16.mxu0 %v782
    %3289 = vmatmul.mubr.bf16.gmra.mrb[0].mxu0 %v781
    %v3290 = vpop.f32.mrb[0].mxu0
    %v3291 = vadd.f32 %v3178, %v3290
    %v3292 = vpop.f32.mrb[0].mxu0
    %v3293 = vadd.f32 %v3180, %v3292
    %v3294 = vpop.f32.mrb[0].mxu0
    %v3295 = vadd.f32 %v3182, %v3294
    %v3296 = vpop.f32.mrb[0].mxu0
    %v3297 = vadd.f32 %v3184, %v3296
    %3298 = vmatprep.mubr.bf16.mxu0 %v789
    %3299 = vmatmul.mubr.bf16.gmra.mrb[0].mxu0 %v788
    %v3300 = vpop.f32.mrb[0].mxu0
    %v3301 = vadd.f32 %v3188, %v3300
    %v3302 = vpop.f32.mrb[0].mxu0
    %v3303 = vadd.f32 %v3190, %v3302
    %v3304 = vpop.f32.mrb[0].mxu0
    %v3305 = vadd.f32 %v3192, %v3304
    %v3306 = vpop.f32.mrb[0].mxu0
    %v3307 = vadd.f32 %v3194, %v3306
    %3308 = vmatprep.mubr.bf16.mxu0 %v796
    %3309 = vmatmul.mubr.bf16.gmra.mrb[0].mxu0 %v795
    %v3310 = vpop.f32.mrb[0].mxu0
    %v3311 = vadd.f32 %v3198, %v3310
    %v3312 = vpop.f32.mrb[0].mxu0
    %v3313 = vadd.f32 %v3200, %v3312
    %v3314 = vpop.f32.mrb[0].mxu0
    %v3315 = vadd.f32 %v3202, %v3314
    %v3316 = vpop.f32.mrb[0].mxu0
    %v3317 = vadd.f32 %v3204, %v3316
    %3318 = vmatprep.mubr.bf16.mxu0 %v803
    %3319 = vmatmul.mubr.bf16.gmra.mrb[0].mxu0 %v802
    %v3320 = vpop.f32.mrb[0].mxu0
    %v3321 = vadd.f32 %v3208, %v3320
    %v3322 = vpop.f32.mrb[0].mxu0
    %v3323 = vadd.f32 %v3210, %v3322
    %v3324 = vpop.f32.mrb[0].mxu0
    %v3325 = vadd.f32 %v3212, %v3324
    %v3326 = vpop.f32.mrb[0].mxu0
    %v3327 = vadd.f32 %v3214, %v3326
    %3328 = vmatprep.mubr.bf16.mxu0 %v810
    %3329 = vmatmul.mubr.bf16.gmra.mrb[0].mxu0 %v809
    %v3330 = vpop.f32.mrb[0].mxu0
    %v3331 = vadd.f32 %v3218, %v3330
    %v3332 = vpop.f32.mrb[0].mxu0
    %v3333 = vadd.f32 %v3220, %v3332
    %v3334 = vpop.f32.mrb[0].mxu0
    %v3335 = vadd.f32 %v3222, %v3334
    %v3336 = vpop.f32.mrb[0].mxu0
    %v3337 = vadd.f32 %v3224, %v3336
    %3338 = vdwg.mxu0
    %3339 = vmatprep.subr.bf16.mxu0 %v2167
    %3340 = vmatpush1.bf16.msra.mxu0 %v2166
    %3341 = vmatprep.subr.bf16.mxu0 %v2173
    %3342 = vmatpush1.bf16.msra.mxu0 %v2172
    %3343 = vmatprep.subr.bf16.mxu0 %v2179
    %3344 = vmatpush1.bf16.msra.mxu0 %v2178
    %3345 = vmatprep.subr.bf16.mxu0 %v2185
    %3346 = vmatpush1.bf16.msra.mxu0 %v2184
    %3347 = vmatprep.subr.bf16.mxu0 %v2191
    %3348 = vmatpush1.bf16.msra.mxu0 %v2190
    %3349 = vmatprep.subr.bf16.mxu0 %v2197
    %3350 = vmatpush1.bf16.msra.mxu0 %v2196
    %3351 = vmatprep.subr.bf16.mxu0 %v2203
    %3352 = vmatpush1.bf16.msra.mxu0 %v2202
    %3353 = vmatprep.subr.bf16.mxu0 %v2209
    %3354 = vmatpush1.bf16.msra.mxu0 %v2208
    %3355 = vmatprep.subr.bf16.mxu0 0
    %3356 = vmatpush1.bf16.msra.mxu0 0
    %3357 = vmatprep.subr.bf16.mxu0 0
    %3358 = vmatpush1.bf16.msra.mxu0 0
    %3359 = vmatprep.subr.bf16.mxu0 0
    %3360 = vmatpush1.bf16.msra.mxu0 0
    %3361 = vmatprep.subr.bf16.mxu0 0
    %3362 = vmatpush1.bf16.msra.mxu0 0
    %3363 = vmatprep.subr.bf16.mxu0 0
    %3364 = vmatpush1.bf16.msra.mxu0 0
    %3365 = vmatprep.subr.bf16.mxu0 0
    %3366 = vmatpush1.bf16.msra.mxu0 0
    %3367 = vmatprep.subr.bf16.mxu0 0
    %3368 = vmatpush1.bf16.msra.mxu0 0
    %3369 = vmatprep.subr.bf16.mxu0 0
    %3370 = vmatpush1.bf16.msra.mxu0 0
    %3371 = vmatprep.mubr.bf16.mxu0 0
    %3372 = vmatmul.mubr.bf16.gmra.mrb[0].mxu0 %v762
    %v3373 = vpop.f32.mrb[0].mxu0
    %v3374 = vadd.f32 %v3261, %v3373
    %v3375 = vpop.f32.mrb[0].mxu0
    %v3376 = vadd.f32 %v3263, %v3375
    %v3377 = vpop.f32.mrb[0].mxu0
    %v3378 = vadd.f32 %v3265, %v3377
    %v3379 = vpop.f32.mrb[0].mxu0
    %v3380 = vadd.f32 %v3267, %v3379
    %3381 = vmatprep.mubr.bf16.mxu0 0
    %3382 = vmatmul.mubr.bf16.gmra.mrb[0].mxu0 %v769
    %v3383 = vpop.f32.mrb[0].mxu0
    %v3384 = vadd.f32 %v3271, %v3383
    %v3385 = vpop.f32.mrb[0].mxu0
    %v3386 = vadd.f32 %v3273, %v3385
    %v3387 = vpop.f32.mrb[0].mxu0
    %v3388 = vadd.f32 %v3275, %v3387
    %v3389 = vpop.f32.mrb[0].mxu0
    %v3390 = vadd.f32 %v3277, %v3389
    %3391 = vmatprep.mubr.bf16.mxu0 0
    %3392 = vmatmul.mubr.bf16.gmra.mrb[0].mxu0 %v776
    %v3393 = vpop.f32.mrb[0].mxu0
    %v3394 = vadd.f32 %v3281, %v3393
    %v3395 = vpop.f32.mrb[0].mxu0
    %v3396 = vadd.f32 %v3283, %v3395
    %v3397 = vpop.f32.mrb[0].mxu0
    %v3398 = vadd.f32 %v3285, %v3397
    %v3399 = vpop.f32.mrb[0].mxu0
    %v3400 = vadd.f32 %v3287, %v3399
    %3401 = vmatprep.mubr.bf16.mxu0 0
    %3402 = vmatmul.mubr.bf16.gmra.mrb[0].mxu0 %v783
    %v3403 = vpop.f32.mrb[0].mxu0
    %v3404 = vadd.f32 %v3291, %v3403
    %v3405 = vpop.f32.mrb[0].mxu0
    %v3406 = vadd.f32 %v3293, %v3405
    %v3407 = vpop.f32.mrb[0].mxu0
    %v3408 = vadd.f32 %v3295, %v3407
    %v3409 = vpop.f32.mrb[0].mxu0
    %v3410 = vadd.f32 %v3297, %v3409
    %3411 = vmatprep.mubr.bf16.mxu0 0
    %3412 = vmatmul.mubr.bf16.gmra.mrb[0].mxu0 %v790
    %v3413 = vpop.f32.mrb[0].mxu0
    %v3414 = vadd.f32 %v3301, %v3413
    %v3415 = vpop.f32.mrb[0].mxu0
    %v3416 = vadd.f32 %v3303, %v3415
    %v3417 = vpop.f32.mrb[0].mxu0
    %v3418 = vadd.f32 %v3305, %v3417
    %v3419 = vpop.f32.mrb[0].mxu0
    %v3420 = vadd.f32 %v3307, %v3419
    %3421 = vmatprep.mubr.bf16.mxu0 0
    %3422 = vmatmul.mubr.bf16.gmra.mrb[0].mxu0 %v797
    %v3423 = vpop.f32.mrb[0].mxu0
    %v3424 = vadd.f32 %v3311, %v3423
    %v3425 = vpop.f32.mrb[0].mxu0
    %v3426 = vadd.f32 %v3313, %v3425
    %v3427 = vpop.f32.mrb[0].mxu0
    %v3428 = vadd.f32 %v3315, %v3427
    %v3429 = vpop.f32.mrb[0].mxu0
    %v3430 = vadd.f32 %v3317, %v3429
    %3431 = vmatprep.mubr.bf16.mxu0 0
    %3432 = vmatmul.mubr.bf16.gmra.mrb[0].mxu0 %v804
    %v3433 = vpop.f32.mrb[0].mxu0
    %v3434 = vadd.f32 %v3321, %v3433
    %v3435 = vpop.f32.mrb[0].mxu0
    %v3436 = vadd.f32 %v3323, %v3435
    %v3437 = vpop.f32.mrb[0].mxu0
    %v3438 = vadd.f32 %v3325, %v3437
    %v3439 = vpop.f32.mrb[0].mxu0
    %v3440 = vadd.f32 %v3327, %v3439
    %3441 = vmatprep.mubr.bf16.mxu0 0
    %3442 = vmatmul.mubr.bf16.gmra.mrb[0].mxu0 %v811
    %v3443 = vpop.f32.mrb[0].mxu0
    %v3444 = vadd.f32 %v3331, %v3443
    %v3445 = vpop.f32.mrb[0].mxu0
    %v3446 = vadd.f32 %v3333, %v3445
    %v3447 = vpop.f32.mrb[0].mxu0
    %v3448 = vadd.f32 %v3335, %v3447
    %v3449 = vpop.f32.mrb[0].mxu0
    %v3450 = vadd.f32 %v3337, %v3449
    %3451 = vdwg.mxu0
    %3452 = vmatprep.subr.bf16.mxu0 %v1881
    %3453 = vmatpush1.bf16.msra.mxu0 %v1880
    %3454 = vmatprep.subr.bf16.mxu0 %v1887
    %3455 = vmatpush1.bf16.msra.mxu0 %v1886
    %3456 = vmatprep.subr.bf16.mxu0 %v1893
    %3457 = vmatpush1.bf16.msra.mxu0 %v1892
    %3458 = vmatprep.subr.bf16.mxu0 %v1899
    %3459 = vmatpush1.bf16.msra.mxu0 %v1898
    %3460 = vmatprep.subr.bf16.mxu0 %v1905
    %3461 = vmatpush1.bf16.msra.mxu0 %v1904
    %3462 = vmatprep.subr.bf16.mxu0 %v1911
    %3463 = vmatpush1.bf16.msra.mxu0 %v1910
    %3464 = vmatprep.subr.bf16.mxu0 %v1917
    %3465 = vmatpush1.bf16.msra.mxu0 %v1916
    %3466 = vmatprep.subr.bf16.mxu0 %v1923
    %3467 = vmatpush1.bf16.msra.mxu0 %v1922
    %3468 = vmatprep.subr.bf16.mxu0 %v1929
    %3469 = vmatpush1.bf16.msra.mxu0 %v1928
    %3470 = vmatprep.subr.bf16.mxu0 %v1935
    %3471 = vmatpush1.bf16.msra.mxu0 %v1934
    %3472 = vmatprep.subr.bf16.mxu0 %v1941
    %3473 = vmatpush1.bf16.msra.mxu0 %v1940
    %3474 = vmatprep.subr.bf16.mxu0 %v1947
    %3475 = vmatpush1.bf16.msra.mxu0 %v1946
    %3476 = vmatprep.subr.bf16.mxu0 %v1953
    %3477 = vmatpush1.bf16.msra.mxu0 %v1952
    %3478 = vmatprep.subr.bf16.mxu0 %v1959
    %3479 = vmatpush1.bf16.msra.mxu0 %v1958
    %3480 = vmatprep.subr.bf16.mxu0 %v1965
    %3481 = vmatpush1.bf16.msra.mxu0 %v1964
    %3482 = vmatprep.subr.bf16.mxu0 %v1971
    %3483 = vmatpush1.bf16.msra.mxu0 %v1970
    %3484 = vmatprep.mubr.bf16.mxu0 %v757
    %3485 = vmatmul.mubr.bf16.gmra.mrb[0].mxu0 %v756
    %v3486 = vpop.f32.mrb[0].mxu0
    %v3487 = vadd.f32 %v569, %v3486
    %v3488 = vpop.f32.mrb[0].mxu0
    %v3489 = vadd.f32 %v573, %v3488
    %v3490 = vpop.f32.mrb[0].mxu0
    %v3491 = vadd.f32 %v569, %v3490
    %v3492 = vpop.f32.mrb[0].mxu0
    %v3493 = vadd.f32 %v573, %v3492
    %3494 = vmatprep.mubr.bf16.mxu0 %v764
    %3495 = vmatmul.mubr.bf16.gmra.mrb[0].mxu0 %v763
    %v3496 = vpop.f32.mrb[0].mxu0
    %v3497 = vadd.f32 %v569, %v3496
    %v3498 = vpop.f32.mrb[0].mxu0
    %v3499 = vadd.f32 %v573, %v3498
    %v3500 = vpop.f32.mrb[0].mxu0
    %v3501 = vadd.f32 %v569, %v3500
    %v3502 = vpop.f32.mrb[0].mxu0
    %v3503 = vadd.f32 %v573, %v3502
    %3504 = vmatprep.mubr.bf16.mxu0 %v771
    %3505 = vmatmul.mubr.bf16.gmra.mrb[0].mxu0 %v770
    %v3506 = vpop.f32.mrb[0].mxu0
    %v3507 = vadd.f32 %v569, %v3506
    %v3508 = vpop.f32.mrb[0].mxu0
    %v3509 = vadd.f32 %v573, %v3508
    %v3510 = vpop.f32.mrb[0].mxu0
    %v3511 = vadd.f32 %v569, %v3510
    %v3512 = vpop.f32.mrb[0].mxu0
    %v3513 = vadd.f32 %v573, %v3512
    %3514 = vmatprep.mubr.bf16.mxu0 %v778
    %3515 = vmatmul.mubr.bf16.gmra.mrb[0].mxu0 %v777
    %v3516 = vpop.f32.mrb[0].mxu0
    %v3517 = vadd.f32 %v569, %v3516
    %v3518 = vpop.f32.mrb[0].mxu0
    %v3519 = vadd.f32 %v573, %v3518
    %v3520 = vpop.f32.mrb[0].mxu0
    %v3521 = vadd.f32 %v569, %v3520
    %v3522 = vpop.f32.mrb[0].mxu0
    %v3523 = vadd.f32 %v573, %v3522
    %3524 = vmatprep.mubr.bf16.mxu0 %v785
    %3525 = vmatmul.mubr.bf16.gmra.mrb[0].mxu0 %v784
    %v3526 = vpop.f32.mrb[0].mxu0
    %v3527 = vadd.f32 %v569, %v3526
    %v3528 = vpop.f32.mrb[0].mxu0
    %v3529 = vadd.f32 %v573, %v3528
    %v3530 = vpop.f32.mrb[0].mxu0
    %v3531 = vadd.f32 %v569, %v3530
    %v3532 = vpop.f32.mrb[0].mxu0
    %v3533 = vadd.f32 %v573, %v3532
    %3534 = vmatprep.mubr.bf16.mxu0 %v792
    %3535 = vmatmul.mubr.bf16.gmra.mrb[0].mxu0 %v791
    %v3536 = vpop.f32.mrb[0].mxu0
    %v3537 = vadd.f32 %v569, %v3536
    %v3538 = vpop.f32.mrb[0].mxu0
    %v3539 = vadd.f32 %v573, %v3538
    %v3540 = vpop.f32.mrb[0].mxu0
    %v3541 = vadd.f32 %v569, %v3540
    %v3542 = vpop.f32.mrb[0].mxu0
    %v3543 = vadd.f32 %v573, %v3542
    %3544 = vmatprep.mubr.bf16.mxu0 %v799
    %3545 = vmatmul.mubr.bf16.gmra.mrb[0].mxu0 %v798
    %v3546 = vpop.f32.mrb[0].mxu0
    %v3547 = vadd.f32 %v569, %v3546
    %v3548 = vpop.f32.mrb[0].mxu0
    %v3549 = vadd.f32 %v573, %v3548
    %v3550 = vpop.f32.mrb[0].mxu0
    %v3551 = vadd.f32 %v569, %v3550
    %v3552 = vpop.f32.mrb[0].mxu0
    %v3553 = vadd.f32 %v573, %v3552
    %3554 = vmatprep.mubr.bf16.mxu0 %v806
    %3555 = vmatmul.mubr.bf16.gmra.mrb[0].mxu0 %v805
    %v3556 = vpop.f32.mrb[0].mxu0
    %v3557 = vadd.f32 %v569, %v3556
    %v3558 = vpop.f32.mrb[0].mxu0
    %v3559 = vadd.f32 %v573, %v3558
    %v3560 = vpop.f32.mrb[0].mxu0
    %v3561 = vadd.f32 %v569, %v3560
    %v3562 = vpop.f32.mrb[0].mxu0
    %v3563 = vadd.f32 %v573, %v3562
    %3564 = vdwg.mxu0
    %3565 = vmatprep.subr.bf16.mxu0 %v1977
    %3566 = vmatpush1.bf16.msra.mxu0 %v1976
    %3567 = vmatprep.subr.bf16.mxu0 %v1983
    %3568 = vmatpush1.bf16.msra.mxu0 %v1982
    %3569 = vmatprep.subr.bf16.mxu0 %v1989
    %3570 = vmatpush1.bf16.msra.mxu0 %v1988
    %3571 = vmatprep.subr.bf16.mxu0 %v1995
    %3572 = vmatpush1.bf16.msra.mxu0 %v1994
    %3573 = vmatprep.subr.bf16.mxu0 %v2001
    %3574 = vmatpush1.bf16.msra.mxu0 %v2000
    %3575 = vmatprep.subr.bf16.mxu0 %v2007
    %3576 = vmatpush1.bf16.msra.mxu0 %v2006
    %3577 = vmatprep.subr.bf16.mxu0 %v2013
    %3578 = vmatpush1.bf16.msra.mxu0 %v2012
    %3579 = vmatprep.subr.bf16.mxu0 %v2019
    %3580 = vmatpush1.bf16.msra.mxu0 %v2018
    %3581 = vmatprep.subr.bf16.mxu0 %v2025
    %3582 = vmatpush1.bf16.msra.mxu0 %v2024
    %3583 = vmatprep.subr.bf16.mxu0 %v2031
    %3584 = vmatpush1.bf16.msra.mxu0 %v2030
    %3585 = vmatprep.subr.bf16.mxu0 %v2037
    %3586 = vmatpush1.bf16.msra.mxu0 %v2036
    %3587 = vmatprep.subr.bf16.mxu0 %v2043
    %3588 = vmatpush1.bf16.msra.mxu0 %v2042
    %3589 = vmatprep.subr.bf16.mxu0 %v2049
    %3590 = vmatpush1.bf16.msra.mxu0 %v2048
    %3591 = vmatprep.subr.bf16.mxu0 %v2055
    %3592 = vmatpush1.bf16.msra.mxu0 %v2054
    %3593 = vmatprep.subr.bf16.mxu0 %v2061
    %3594 = vmatpush1.bf16.msra.mxu0 %v2060
    %3595 = vmatprep.subr.bf16.mxu0 %v2067
    %3596 = vmatpush1.bf16.msra.mxu0 %v2066
    %3597 = vmatprep.mubr.bf16.mxu0 %v759
    %3598 = vmatmul.mubr.bf16.gmra.mrb[0].mxu0 %v758
    %v3599 = vpop.f32.mrb[0].mxu0
    %v3600 = vadd.f32 %v3487, %v3599
    %v3601 = vpop.f32.mrb[0].mxu0
    %v3602 = vadd.f32 %v3489, %v3601
    %v3603 = vpop.f32.mrb[0].mxu0
    %v3604 = vadd.f32 %v3491, %v3603
    %v3605 = vpop.f32.mrb[0].mxu0
    %v3606 = vadd.f32 %v3493, %v3605
    %3607 = vmatprep.mubr.bf16.mxu0 %v766
    %3608 = vmatmul.mubr.bf16.gmra.mrb[0].mxu0 %v765
    %v3609 = vpop.f32.mrb[0].mxu0
    %v3610 = vadd.f32 %v3497, %v3609
    %v3611 = vpop.f32.mrb[0].mxu0
    %v3612 = vadd.f32 %v3499, %v3611
    %v3613 = vpop.f32.mrb[0].mxu0
    %v3614 = vadd.f32 %v3501, %v3613
    %v3615 = vpop.f32.mrb[0].mxu0
    %v3616 = vadd.f32 %v3503, %v3615
    %3617 = vmatprep.mubr.bf16.mxu0 %v773
    %3618 = vmatmul.mubr.bf16.gmra.mrb[0].mxu0 %v772
    %v3619 = vpop.f32.mrb[0].mxu0
    %v3620 = vadd.f32 %v3507, %v3619
    %v3621 = vpop.f32.mrb[0].mxu0
    %v3622 = vadd.f32 %v3509, %v3621
    %v3623 = vpop.f32.mrb[0].mxu0
    %v3624 = vadd.f32 %v3511, %v3623
    %v3625 = vpop.f32.mrb[0].mxu0
    %v3626 = vadd.f32 %v3513, %v3625
    %3627 = vmatprep.mubr.bf16.mxu0 %v780
    %3628 = vmatmul.mubr.bf16.gmra.mrb[0].mxu0 %v779
    %v3629 = vpop.f32.mrb[0].mxu0
    %v3630 = vadd.f32 %v3517, %v3629
    %v3631 = vpop.f32.mrb[0].mxu0
    %v3632 = vadd.f32 %v3519, %v3631
    %v3633 = vpop.f32.mrb[0].mxu0
    %v3634 = vadd.f32 %v3521, %v3633
    %v3635 = vpop.f32.mrb[0].mxu0
    %v3636 = vadd.f32 %v3523, %v3635
    %3637 = vmatprep.mubr.bf16.mxu0 %v787
    %3638 = vmatmul.mubr.bf16.gmra.mrb[0].mxu0 %v786
    %v3639 = vpop.f32.mrb[0].mxu0
    %v3640 = vadd.f32 %v3527, %v3639
    %v3641 = vpop.f32.mrb[0].mxu0
    %v3642 = vadd.f32 %v3529, %v3641
    %v3643 = vpop.f32.mrb[0].mxu0
    %v3644 = vadd.f32 %v3531, %v3643
    %v3645 = vpop.f32.mrb[0].mxu0
    %v3646 = vadd.f32 %v3533, %v3645
    %3647 = vmatprep.mubr.bf16.mxu0 %v794
    %3648 = vmatmul.mubr.bf16.gmra.mrb[0].mxu0 %v793
    %v3649 = vpop.f32.mrb[0].mxu0
    %v3650 = vadd.f32 %v3537, %v3649
    %v3651 = vpop.f32.mrb[0].mxu0
    %v3652 = vadd.f32 %v3539, %v3651
    %v3653 = vpop.f32.mrb[0].mxu0
    %v3654 = vadd.f32 %v3541, %v3653
    %v3655 = vpop.f32.mrb[0].mxu0
    %v3656 = vadd.f32 %v3543, %v3655
    %3657 = vmatprep.mubr.bf16.mxu0 %v801
    %3658 = vmatmul.mubr.bf16.gmra.mrb[0].mxu0 %v800
    %v3659 = vpop.f32.mrb[0].mxu0
    %v3660 = vadd.f32 %v3547, %v3659
    %v3661 = vpop.f32.mrb[0].mxu0
    %v3662 = vadd.f32 %v3549, %v3661
    %v3663 = vpop.f32.mrb[0].mxu0
    %v3664 = vadd.f32 %v3551, %v3663
    %v3665 = vpop.f32.mrb[0].mxu0
    %v3666 = vadd.f32 %v3553, %v3665
    %3667 = vmatprep.mubr.bf16.mxu0 %v808
    %3668 = vmatmul.mubr.bf16.gmra.mrb[0].mxu0 %v807
    %v3669 = vpop.f32.mrb[0].mxu0
    %v3670 = vadd.f32 %v3557, %v3669
    %v3671 = vpop.f32.mrb[0].mxu0
    %v3672 = vadd.f32 %v3559, %v3671
    %v3673 = vpop.f32.mrb[0].mxu0
    %v3674 = vadd.f32 %v3561, %v3673
    %v3675 = vpop.f32.mrb[0].mxu0
    %v3676 = vadd.f32 %v3563, %v3675
    %3677 = vdwg.mxu0
    %3678 = vmatprep.subr.bf16.mxu0 %v2073
    %3679 = vmatpush1.bf16.msra.mxu0 %v2072
    %3680 = vmatprep.subr.bf16.mxu0 %v2079
    %3681 = vmatpush1.bf16.msra.mxu0 %v2078
    %3682 = vmatprep.subr.bf16.mxu0 %v2085
    %3683 = vmatpush1.bf16.msra.mxu0 %v2084
    %3684 = vmatprep.subr.bf16.mxu0 %v2091
    %3685 = vmatpush1.bf16.msra.mxu0 %v2090
    %3686 = vmatprep.subr.bf16.mxu0 %v2097
    %3687 = vmatpush1.bf16.msra.mxu0 %v2096
    %3688 = vmatprep.subr.bf16.mxu0 %v2103
    %3689 = vmatpush1.bf16.msra.mxu0 %v2102
    %3690 = vmatprep.subr.bf16.mxu0 %v2109
    %3691 = vmatpush1.bf16.msra.mxu0 %v2108
    %3692 = vmatprep.subr.bf16.mxu0 %v2115
    %3693 = vmatpush1.bf16.msra.mxu0 %v2114
    %3694 = vmatprep.subr.bf16.mxu0 %v2121
    %3695 = vmatpush1.bf16.msra.mxu0 %v2120
    %3696 = vmatprep.subr.bf16.mxu0 %v2127
    %3697 = vmatpush1.bf16.msra.mxu0 %v2126
    %3698 = vmatprep.subr.bf16.mxu0 %v2133
    %3699 = vmatpush1.bf16.msra.mxu0 %v2132
    %3700 = vmatprep.subr.bf16.mxu0 %v2139
    %3701 = vmatpush1.bf16.msra.mxu0 %v2138
    %3702 = vmatprep.subr.bf16.mxu0 %v2145
    %3703 = vmatpush1.bf16.msra.mxu0 %v2144
    %3704 = vmatprep.subr.bf16.mxu0 %v2151
    %3705 = vmatpush1.bf16.msra.mxu0 %v2150
    %3706 = vmatprep.subr.bf16.mxu0 %v2157
    %3707 = vmatpush1.bf16.msra.mxu0 %v2156
    %3708 = vmatprep.subr.bf16.mxu0 %v2163
    %3709 = vmatpush1.bf16.msra.mxu0 %v2162
    %3710 = vmatprep.mubr.bf16.mxu0 %v761
    %3711 = vmatmul.mubr.bf16.gmra.mrb[0].mxu0 %v760
    %v3712 = vpop.f32.mrb[0].mxu0
    %v3713 = vadd.f32 %v3600, %v3712
    %v3714 = vpop.f32.mrb[0].mxu0
    %v3715 = vadd.f32 %v3602, %v3714
    %v3716 = vpop.f32.mrb[0].mxu0
    %v3717 = vadd.f32 %v3604, %v3716
    %v3718 = vpop.f32.mrb[0].mxu0
    %v3719 = vadd.f32 %v3606, %v3718
    %3720 = vmatprep.mubr.bf16.mxu0 %v768
    %3721 = vmatmul.mubr.bf16.gmra.mrb[0].mxu0 %v767
    %v3722 = vpop.f32.mrb[0].mxu0
    %v3723 = vadd.f32 %v3610, %v3722
    %v3724 = vpop.f32.mrb[0].mxu0
    %v3725 = vadd.f32 %v3612, %v3724
    %v3726 = vpop.f32.mrb[0].mxu0
    %v3727 = vadd.f32 %v3614, %v3726
    %v3728 = vpop.f32.mrb[0].mxu0
    %v3729 = vadd.f32 %v3616, %v3728
    %3730 = vmatprep.mubr.bf16.mxu0 %v775
    %3731 = vmatmul.mubr.bf16.gmra.mrb[0].mxu0 %v774
    %v3732 = vpop.f32.mrb[0].mxu0
    %v3733 = vadd.f32 %v3620, %v3732
    %v3734 = vpop.f32.mrb[0].mxu0
    %v3735 = vadd.f32 %v3622, %v3734
    %v3736 = vpop.f32.mrb[0].mxu0
    %v3737 = vadd.f32 %v3624, %v3736
    %v3738 = vpop.f32.mrb[0].mxu0
    %v3739 = vadd.f32 %v3626, %v3738
    %3740 = vmatprep.mubr.bf16.mxu0 %v782
    %3741 = vmatmul.mubr.bf16.gmra.mrb[0].mxu0 %v781
    %v3742 = vpop.f32.mrb[0].mxu0
    %v3743 = vadd.f32 %v3630, %v3742
    %v3744 = vpop.f32.mrb[0].mxu0
    %v3745 = vadd.f32 %v3632, %v3744
    %v3746 = vpop.f32.mrb[0].mxu0
    %v3747 = vadd.f32 %v3634, %v3746
    %v3748 = vpop.f32.mrb[0].mxu0
    %v3749 = vadd.f32 %v3636, %v3748
    %3750 = vmatprep.mubr.bf16.mxu0 %v789
    %3751 = vmatmul.mubr.bf16.gmra.mrb[0].mxu0 %v788
    %v3752 = vpop.f32.mrb[0].mxu0
    %v3753 = vadd.f32 %v3640, %v3752
    %v3754 = vpop.f32.mrb[0].mxu0
    %v3755 = vadd.f32 %v3642, %v3754
    %v3756 = vpop.f32.mrb[0].mxu0
    %v3757 = vadd.f32 %v3644, %v3756
    %v3758 = vpop.f32.mrb[0].mxu0
    %v3759 = vadd.f32 %v3646, %v3758
    %3760 = vmatprep.mubr.bf16.mxu0 %v796
    %3761 = vmatmul.mubr.bf16.gmra.mrb[0].mxu0 %v795
    %v3762 = vpop.f32.mrb[0].mxu0
    %v3763 = vadd.f32 %v3650, %v3762
    %v3764 = vpop.f32.mrb[0].mxu0
    %v3765 = vadd.f32 %v3652, %v3764
    %v3766 = vpop.f32.mrb[0].mxu0
    %v3767 = vadd.f32 %v3654, %v3766
    %v3768 = vpop.f32.mrb[0].mxu0
    %v3769 = vadd.f32 %v3656, %v3768
    %3770 = vmatprep.mubr.bf16.mxu0 %v803
    %3771 = vmatmul.mubr.bf16.gmra.mrb[0].mxu0 %v802
    %v3772 = vpop.f32.mrb[0].mxu0
    %v3773 = vadd.f32 %v3660, %v3772
    %v3774 = vpop.f32.mrb[0].mxu0
    %v3775 = vadd.f32 %v3662, %v3774
    %v3776 = vpop.f32.mrb[0].mxu0
    %v3777 = vadd.f32 %v3664, %v3776
    %v3778 = vpop.f32.mrb[0].mxu0
    %v3779 = vadd.f32 %v3666, %v3778
    %3780 = vmatprep.mubr.bf16.mxu0 %v810
    %3781 = vmatmul.mubr.bf16.gmra.mrb[0].mxu0 %v809
    %v3782 = vpop.f32.mrb[0].mxu0
    %v3783 = vadd.f32 %v3670, %v3782
    %v3784 = vpop.f32.mrb[0].mxu0
    %v3785 = vadd.f32 %v3672, %v3784
    %v3786 = vpop.f32.mrb[0].mxu0
    %v3787 = vadd.f32 %v3674, %v3786
    %v3788 = vpop.f32.mrb[0].mxu0
    %v3789 = vadd.f32 %v3676, %v3788
    %3790 = vdwg.mxu0
    %3791 = vmatprep.subr.bf16.mxu0 %v2169
    %3792 = vmatpush1.bf16.msra.mxu0 %v2168
    %3793 = vmatprep.subr.bf16.mxu0 %v2175
    %3794 = vmatpush1.bf16.msra.mxu0 %v2174
    %3795 = vmatprep.subr.bf16.mxu0 %v2181
    %3796 = vmatpush1.bf16.msra.mxu0 %v2180
    %3797 = vmatprep.subr.bf16.mxu0 %v2187
    %3798 = vmatpush1.bf16.msra.mxu0 %v2186
    %3799 = vmatprep.subr.bf16.mxu0 %v2193
    %3800 = vmatpush1.bf16.msra.mxu0 %v2192
    %3801 = vmatprep.subr.bf16.mxu0 %v2199
    %3802 = vmatpush1.bf16.msra.mxu0 %v2198
    %3803 = vmatprep.subr.bf16.mxu0 %v2205
    %3804 = vmatpush1.bf16.msra.mxu0 %v2204
    %3805 = vmatprep.subr.bf16.mxu0 %v2211
    %3806 = vmatpush1.bf16.msra.mxu0 %v2210
    %3807 = vmatprep.subr.bf16.mxu0 0
    %3808 = vmatpush1.bf16.msra.mxu0 0
    %3809 = vmatprep.subr.bf16.mxu0 0
    %3810 = vmatpush1.bf16.msra.mxu0 0
    %3811 = vmatprep.subr.bf16.mxu0 0
    %3812 = vmatpush1.bf16.msra.mxu0 0
    %3813 = vmatprep.subr.bf16.mxu0 0
    %3814 = vmatpush1.bf16.msra.mxu0 0
    %3815 = vmatprep.subr.bf16.mxu0 0
    %3816 = vmatpush1.bf16.msra.mxu0 0
    %3817 = vmatprep.subr.bf16.mxu0 0
    %3818 = vmatpush1.bf16.msra.mxu0 0
    %3819 = vmatprep.subr.bf16.mxu0 0
    %3820 = vmatpush1.bf16.msra.mxu0 0
    %3821 = vmatprep.subr.bf16.mxu0 0
    %3822 = vmatpush1.bf16.msra.mxu0 0
    %3823 = vmatprep.mubr.bf16.mxu0 0
    %3824 = vmatmul.mubr.bf16.gmra.mrb[0].mxu0 %v762
    %v3825 = vpop.f32.mrb[0].mxu0
    %v3826 = vadd.f32 %v3713, %v3825
    %v3827 = vpop.f32.mrb[0].mxu0
    %v3828 = vadd.f32 %v3715, %v3827
    %v3829 = vpop.f32.mrb[0].mxu0
    %v3830 = vadd.f32 %v3717, %v3829
    %v3831 = vpop.f32.mrb[0].mxu0
    %v3832 = vadd.f32 %v3719, %v3831
    %3833 = vmatprep.mubr.bf16.mxu0 0
    %3834 = vmatmul.mubr.bf16.gmra.mrb[0].mxu0 %v769
    %v3835 = vpop.f32.mrb[0].mxu0
    %v3836 = vadd.f32 %v3723, %v3835
    %v3837 = vpop.f32.mrb[0].mxu0
    %v3838 = vadd.f32 %v3725, %v3837
    %v3839 = vpop.f32.mrb[0].mxu0
    %v3840 = vadd.f32 %v3727, %v3839
    %v3841 = vpop.f32.mrb[0].mxu0
    %v3842 = vadd.f32 %v3729, %v3841
    %3843 = vmatprep.mubr.bf16.mxu0 0
    %3844 = vmatmul.mubr.bf16.gmra.mrb[0].mxu0 %v776
    %v3845 = vpop.f32.mrb[0].mxu0
    %v3846 = vadd.f32 %v3733, %v3845
    %v3847 = vpop.f32.mrb[0].mxu0
    %v3848 = vadd.f32 %v3735, %v3847
    %v3849 = vpop.f32.mrb[0].mxu0
    %v3850 = vadd.f32 %v3737, %v3849
    %v3851 = vpop.f32.mrb[0].mxu0
    %v3852 = vadd.f32 %v3739, %v3851
    %3853 = vmatprep.mubr.bf16.mxu0 0
    %3854 = vmatmul.mubr.bf16.gmra.mrb[0].mxu0 %v783
    %v3855 = vpop.f32.mrb[0].mxu0
    %v3856 = vadd.f32 %v3743, %v3855
    %v3857 = vpop.f32.mrb[0].mxu0
    %v3858 = vadd.f32 %v3745, %v3857
    %v3859 = vpop.f32.mrb[0].mxu0
    %v3860 = vadd.f32 %v3747, %v3859
    %v3861 = vpop.f32.mrb[0].mxu0
    %v3862 = vadd.f32 %v3749, %v3861
    %3863 = vmatprep.mubr.bf16.mxu0 0
    %3864 = vmatmul.mubr.bf16.gmra.mrb[0].mxu0 %v790
    %v3865 = vpop.f32.mrb[0].mxu0
    %v3866 = vadd.f32 %v3753, %v3865
    %v3867 = vpop.f32.mrb[0].mxu0
    %v3868 = vadd.f32 %v3755, %v3867
    %v3869 = vpop.f32.mrb[0].mxu0
    %v3870 = vadd.f32 %v3757, %v3869
    %v3871 = vpop.f32.mrb[0].mxu0
    %v3872 = vadd.f32 %v3759, %v3871
    %3873 = vmatprep.mubr.bf16.mxu0 0
    %3874 = vmatmul.mubr.bf16.gmra.mrb[0].mxu0 %v797
    %v3875 = vpop.f32.mrb[0].mxu0
    %v3876 = vadd.f32 %v3763, %v3875
    %v3877 = vpop.f32.mrb[0].mxu0
    %v3878 = vadd.f32 %v3765, %v3877
    %v3879 = vpop.f32.mrb[0].mxu0
    %v3880 = vadd.f32 %v3767, %v3879
    %v3881 = vpop.f32.mrb[0].mxu0
    %v3882 = vadd.f32 %v3769, %v3881
    %3883 = vmatprep.mubr.bf16.mxu0 0
    %3884 = vmatmul.mubr.bf16.gmra.mrb[0].mxu0 %v804
    %v3885 = vpop.f32.mrb[0].mxu0
    %v3886 = vadd.f32 %v3773, %v3885
    %v3887 = vpop.f32.mrb[0].mxu0
    %v3888 = vadd.f32 %v3775, %v3887
    %v3889 = vpop.f32.mrb[0].mxu0
    %v3890 = vadd.f32 %v3777, %v3889
    %v3891 = vpop.f32.mrb[0].mxu0
    %v3892 = vadd.f32 %v3779, %v3891
    %3893 = vmatprep.mubr.bf16.mxu0 0
    %3894 = vmatmul.mubr.bf16.gmra.mrb[0].mxu0 %v811
    %v3895 = vpop.f32.mrb[0].mxu0
    %v3896 = vadd.f32 %v3783, %v3895
    %v3897 = vpop.f32.mrb[0].mxu0
    %v3898 = vadd.f32 %v3785, %v3897
    %v3899 = vpop.f32.mrb[0].mxu0
    %v3900 = vadd.f32 %v3787, %v3899
    %v3901 = vpop.f32.mrb[0].mxu0
    %v3902 = vadd.f32 %v3789, %v3901
    %3903 = vdwg.mxu0
    %v3904 = vmax.f32 %v2922, 0.0
    %v3905 = vmax.f32 %v2924, 0.0
    %v3906 = vmax.f32 %v3374, 0.0
    %v3907 = vmax.f32 %v3376, 0.0
    %v3908 = vmax.f32 %v3826, 0.0
    %v3909 = vmax.f32 %v3828, 0.0
    %v3910 = vmax.f32 %v2926, 0.0
    %v3911 = vmax.f32 %v2928, 0.0
    %v3912 = vmax.f32 %v3378, 0.0
    %v3913 = vmax.f32 %v3380, 0.0
    %v3914 = vmax.f32 %v3830, 0.0
    %v3915 = vmax.f32 %v3832, 0.0
    %v3916 = vmax.f32 %v2932, 0.0
    %v3917 = vmax.f32 %v2934, 0.0
    %v3918 = vmax.f32 %v3384, 0.0
    %v3919 = vmax.f32 %v3386, 0.0
    %v3920 = vmax.f32 %v3836, 0.0
    %v3921 = vmax.f32 %v3838, 0.0
    %v3922 = vmax.f32 %v2936, 0.0
    %v3923 = vmax.f32 %v2938, 0.0
    %v3924 = vmax.f32 %v3388, 0.0
    %v3925 = vmax.f32 %v3390, 0.0
    %v3926 = vmax.f32 %v3840, 0.0
    %v3927 = vmax.f32 %v3842, 0.0
    %v3928 = vmax.f32 %v2942, 0.0
    %v3929 = vmax.f32 %v2944, 0.0
    %v3930 = vmax.f32 %v3394, 0.0
    %v3931 = vmax.f32 %v3396, 0.0
    %v3932 = vmax.f32 %v3846, 0.0
    %v3933 = vmax.f32 %v3848, 0.0
    %v3934 = vmax.f32 %v2946, 0.0
    %v3935 = vmax.f32 %v2948, 0.0
    %v3936 = vmax.f32 %v3398, 0.0
    %v3937 = vmax.f32 %v3400, 0.0
    %v3938 = vmax.f32 %v3850, 0.0
    %v3939 = vmax.f32 %v3852, 0.0
    %v3940 = vmax.f32 %v2952, 0.0
    %v3941 = vmax.f32 %v2954, 0.0
    %v3942 = vmax.f32 %v3404, 0.0
    %v3943 = vmax.f32 %v3406, 0.0
    %v3944 = vmax.f32 %v3856, 0.0
    %v3945 = vmax.f32 %v3858, 0.0
    %v3946 = vmax.f32 %v2956, 0.0
    %v3947 = vmax.f32 %v2958, 0.0
    %v3948 = vmax.f32 %v3408, 0.0
    %v3949 = vmax.f32 %v3410, 0.0
    %v3950 = vmax.f32 %v3860, 0.0
    %v3951 = vmax.f32 %v3862, 0.0
    %v3952 = vmax.f32 %v2962, 0.0
    %v3953 = vmax.f32 %v2964, 0.0
    %v3954 = vmax.f32 %v3414, 0.0
    %v3955 = vmax.f32 %v3416, 0.0
    %v3956 = vmax.f32 %v3866, 0.0
    %v3957 = vmax.f32 %v3868, 0.0
    %v3958 = vmax.f32 %v2966, 0.0
    %v3959 = vmax.f32 %v2968, 0.0
    %v3960 = vmax.f32 %v3418, 0.0
    %v3961 = vmax.f32 %v3420, 0.0
    %v3962 = vmax.f32 %v3870, 0.0
    %v3963 = vmax.f32 %v3872, 0.0
    %v3964 = vmax.f32 %v2972, 0.0
    %v3965 = vmax.f32 %v2974, 0.0
    %v3966 = vmax.f32 %v3424, 0.0
    %v3967 = vmax.f32 %v3426, 0.0
    %v3968 = vmax.f32 %v3876, 0.0
    %v3969 = vmax.f32 %v3878, 0.0
    %v3970 = vmax.f32 %v2976, 0.0
    %v3971 = vmax.f32 %v2978, 0.0
    %v3972 = vmax.f32 %v3428, 0.0
    %v3973 = vmax.f32 %v3430, 0.0
    %v3974 = vmax.f32 %v3880, 0.0
    %v3975 = vmax.f32 %v3882, 0.0
    %v3976 = vmax.f32 %v2982, 0.0
    %v3977 = vmax.f32 %v2984, 0.0
    %v3978 = vmax.f32 %v3434, 0.0
    %v3979 = vmax.f32 %v3436, 0.0
    %v3980 = vmax.f32 %v3886, 0.0
    %v3981 = vmax.f32 %v3888, 0.0
    %v3982 = vmax.f32 %v2986, 0.0
    %v3983 = vmax.f32 %v2988, 0.0
    %v3984 = vmax.f32 %v3438, 0.0
    %v3985 = vmax.f32 %v3440, 0.0
    %v3986 = vmax.f32 %v3890, 0.0
    %v3987 = vmax.f32 %v3892, 0.0
    %v3988 = vmax.f32 %v2992, 0.0
    %v3989 = vmax.f32 %v2994, 0.0
    %v3990 = vmax.f32 %v3444, 0.0
    %v3991 = vmax.f32 %v3446, 0.0
    %v3992 = vmax.f32 %v3896, 0.0
    %v3993 = vmax.f32 %v3898, 0.0
    %v3994 = vmax.f32 %v2996, 0.0
    %v3995 = vmax.f32 %v2998, 0.0
    %v3996 = vmax.f32 %v3448, 0.0
    %v3997 = vmax.f32 %v3450, 0.0
    %v3998 = vmax.f32 %v3900, 0.0
    %v3999 = vmax.f32 %v3902, 0.0
    %v4000 = vpack.c.bf16 %v3910, %v3904
    %v4001 = vpack.c.bf16 %v3911, %v3905
    %v4002 = vpack.c.bf16 %v3912, %v3906
    %v4003 = vpack.c.bf16 %v3913, %v3907
    %v4004 = vpack.c.bf16 %v3914, %v3908
    %v4005 = vpack.c.bf16 %v3915, %v3909
    %v4006 = vpack.c.bf16 %v3922, %v3916
    %v4007 = vpack.c.bf16 %v3923, %v3917
    %v4008 = vpack.c.bf16 %v3924, %v3918
    %v4009 = vpack.c.bf16 %v3925, %v3919
    %v4010 = vpack.c.bf16 %v3926, %v3920
    %v4011 = vpack.c.bf16 %v3927, %v3921
    %v4012 = vpack.c.bf16 %v3934, %v3928
    %v4013 = vpack.c.bf16 %v3935, %v3929
    %v4014 = vpack.c.bf16 %v3936, %v3930
    %v4015 = vpack.c.bf16 %v3937, %v3931
    %v4016 = vpack.c.bf16 %v3938, %v3932
    %v4017 = vpack.c.bf16 %v3939, %v3933
    %v4018 = vpack.c.bf16 %v3946, %v3940
    %v4019 = vpack.c.bf16 %v3947, %v3941
    %v4020 = vpack.c.bf16 %v3948, %v3942
    %v4021 = vpack.c.bf16 %v3949, %v3943
    %v4022 = vpack.c.bf16 %v3950, %v3944
    %v4023 = vpack.c.bf16 %v3951, %v3945
    %v4024 = vpack.c.bf16 %v3958, %v3952
    %v4025 = vpack.c.bf16 %v3959, %v3953
    %v4026 = vpack.c.bf16 %v3960, %v3954
    %v4027 = vpack.c.bf16 %v3961, %v3955
    %v4028 = vpack.c.bf16 %v3962, %v3956
    %v4029 = vpack.c.bf16 %v3963, %v3957
    %v4030 = vpack.c.bf16 %v3970, %v3964
    %v4031 = vpack.c.bf16 %v3971, %v3965
    %v4032 = vpack.c.bf16 %v3972, %v3966
    %v4033 = vpack.c.bf16 %v3973, %v3967
    %v4034 = vpack.c.bf16 %v3974, %v3968
    %v4035 = vpack.c.bf16 %v3975, %v3969
    %v4036 = vpack.c.bf16 %v3982, %v3976
    %v4037 = vpack.c.bf16 %v3983, %v3977
    %v4038 = vpack.c.bf16 %v3984, %v3978
    %v4039 = vpack.c.bf16 %v3985, %v3979
    %v4040 = vpack.c.bf16 %v3986, %v3980
    %v4041 = vpack.c.bf16 %v3987, %v3981
    %v4042 = vpack.c.bf16 %v3994, %v3988
    %v4043 = vpack.c.bf16 %v3995, %v3989
    %v4044 = vpack.c.bf16 %v3996, %v3990
    %v4045 = vpack.c.bf16 %v3997, %v3991
    %v4046 = vpack.c.bf16 %v3998, %v3992
    %v4047 = vpack.c.bf16 %v3999, %v3993
    %v4048 = vld [vmem:[#allocation8] sm:$0xff]
    %v4049 = vld [vmem:[#allocation8 + $0x8] sm:$0xff]
    %v4050 = vld [vmem:[#allocation8 + $0x10] sm:$0xff]
    %v4051 = vld [vmem:[#allocation8 + $0x18] sm:$0xff]
    %v4052 = vld [vmem:[#allocation8 + $0x20] sm:$0xff]
    %v4053 = vld [vmem:[#allocation8 + $0x28] sm:$0xff]
    %v4054 = vld [vmem:[#allocation8 + $0x30] sm:$0xff]
    %v4055 = vld [vmem:[#allocation8 + $0x38] sm:$0xff]
    %v4056 = vld [vmem:[#allocation8 + $0x40] sm:$0xff]
    %v4057 = vld [vmem:[#allocation8 + $0x48] sm:$0xff]
    %v4058 = vld [vmem:[#allocation8 + $0x50] sm:$0xff]
    %v4059 = vld [vmem:[#allocation8 + $0x58] sm:$0xff]
    %v4060 = vld [vmem:[#allocation8 + $0x60] sm:$0xff]
    %v4061 = vld [vmem:[#allocation8 + $0x68] sm:$0xff]
    %v4062 = vld [vmem:[#allocation8 + $0x70] sm:$0xff]
    %v4063 = vld [vmem:[#allocation8 + $0x78] sm:$0xff]
    %v4064 = vld [vmem:[#allocation8 + $0x80] sm:$0xff]
    %v4065 = vld [vmem:[#allocation8 + $0x88] sm:$0xff]
    %v4066 = vld [vmem:[#allocation8 + $0x90] sm:$0xff]
    %v4067 = vld [vmem:[#allocation8 + $0x98] sm:$0xff]
    %v4068 = vld [vmem:[#allocation8 + $0xa0] sm:$0xff]
    %v4069 = vld [vmem:[#allocation8 + $0xa8] sm:$0xff]
    %v4070 = vld [vmem:[#allocation8 + $0xb0] sm:$0xff]
    %v4071 = vld [vmem:[#allocation8 + $0xb8] sm:$0xff]
    %v4072 = vld [vmem:[#allocation8 + $0xc0] sm:$0xff]
    %v4073 = vld [vmem:[#allocation8 + $0xc8] sm:$0xff]
    %v4074 = vld [vmem:[#allocation8 + $0xd0] sm:$0xff]
    %v4075 = vld [vmem:[#allocation8 + $0xd8] sm:$0xff]
    %v4076 = vld [vmem:[#allocation8 + $0xe0] sm:$0xff]
    %v4077 = vld [vmem:[#allocation8 + $0xe8] sm:$0xff]
    %v4078 = vld [vmem:[#allocation8 + $0xf0] sm:$0xff]
    %v4079 = vld [vmem:[#allocation8 + $0xf8] sm:$0xff]
    %v4080 = vld [vmem:[#allocation8 + $0x100] sm:$0xff]
    %v4081 = vld [vmem:[#allocation8 + $0x108] sm:$0xff]
    %v4082 = vld [vmem:[#allocation8 + $0x110] sm:$0xff]
    %v4083 = vld [vmem:[#allocation8 + $0x118] sm:$0xff]
    %v4084 = vld [vmem:[#allocation8 + $0x120] sm:$0xff]
    %v4085 = vld [vmem:[#allocation8 + $0x128] sm:$0xff]
    %v4086 = vld [vmem:[#allocation8 + $0x130] sm:$0xff]
    %v4087 = vld [vmem:[#allocation8 + $0x138] sm:$0xff]
    %v4088 = vld [vmem:[#allocation8 + $0x140] sm:$0xff]
    %v4089 = vld [vmem:[#allocation8 + $0x148] sm:$0xff]
    %v4090 = vld [vmem:[#allocation8 + $0x150] sm:$0xff]
    %v4091 = vld [vmem:[#allocation8 + $0x158] sm:$0xff]
    %v4092 = vld [vmem:[#allocation8 + $0x160] sm:$0xff]
    %v4093 = vld [vmem:[#allocation8 + $0x168] sm:$0xff]
    %v4094 = vld [vmem:[#allocation8 + $0x170] sm:$0xff]
    %v4095 = vld [vmem:[#allocation8 + $0x178] sm:$0xff]
    %v4096 = vld [vmem:[#allocation8 + $0x180] sm:$0xff]
    %v4097 = vld [vmem:[#allocation8 + $0x188] sm:$0xff]
    %v4098 = vld [vmem:[#allocation8 + $0x190] sm:$0xff]
    %v4099 = vld [vmem:[#allocation8 + $0x198] sm:$0xff]
    %v4100 = vld [vmem:[#allocation8 + $0x1a0] sm:$0xff]
    %v4101 = vld [vmem:[#allocation8 + $0x1a8] sm:$0xff]
    %v4102 = vld [vmem:[#allocation8 + $0x1b0] sm:$0xff]
    %v4103 = vld [vmem:[#allocation8 + $0x1b8] sm:$0xff]
    %v4104 = vld [vmem:[#allocation8 + $0x1c0] sm:$0xff]
    %v4105 = vld [vmem:[#allocation8 + $0x1c8] sm:$0xff]
    %v4106 = vld [vmem:[#allocation8 + $0x1d0] sm:$0xff]
    %v4107 = vld [vmem:[#allocation8 + $0x1d8] sm:$0xff]
    %v4108 = vld [vmem:[#allocation8 + $0x1e0] sm:$0xff]
    %v4109 = vld [vmem:[#allocation8 + $0x1e8] sm:$0xff]
    %v4110 = vld [vmem:[#allocation8 + $0x1f0] sm:$0xff]
    %v4111 = vld [vmem:[#allocation8 + $0x1f8] sm:$0xff]
    %v4112 = vld [vmem:[#allocation8 + $0x200] sm:$0xff]
    %v4113 = vld [vmem:[#allocation8 + $0x208] sm:$0xff]
    %v4114 = vld [vmem:[#allocation8 + $0x210] sm:$0xff]
    %v4115 = vld [vmem:[#allocation8 + $0x218] sm:$0xff]
    %v4116 = vld [vmem:[#allocation8 + $0x220] sm:$0xff]
    %v4117 = vld [vmem:[#allocation8 + $0x228] sm:$0xff]
    %v4118 = vld [vmem:[#allocation8 + $0x230] sm:$0xff]
    %v4119 = vld [vmem:[#allocation8 + $0x238] sm:$0xff]
    %v4120 = vld [vmem:[#allocation8 + $0x240] sm:$0xff]
    %v4121 = vld [vmem:[#allocation8 + $0x248] sm:$0xff]
    %v4122 = vld [vmem:[#allocation8 + $0x250] sm:$0xff]
    %v4123 = vld [vmem:[#allocation8 + $0x258] sm:$0xff]
    %v4124 = vld [vmem:[#allocation8 + $0x260] sm:$0xff]
    %v4125 = vld [vmem:[#allocation8 + $0x268] sm:$0xff]
    %v4126 = vld [vmem:[#allocation8 + $0x270] sm:$0xff]
    %v4127 = vld [vmem:[#allocation8 + $0x278] sm:$0xff]
    %v4128 = vld [vmem:[#allocation8 + $0x280] sm:$0xff]
    %v4129 = vld [vmem:[#allocation8 + $0x288] sm:$0xff]
    %v4130 = vld [vmem:[#allocation8 + $0x290] sm:$0xff]
    %v4131 = vld [vmem:[#allocation8 + $0x298] sm:$0xff]
    %v4132 = vld [vmem:[#allocation8 + $0x2a0] sm:$0xff]
    %v4133 = vld [vmem:[#allocation8 + $0x2a8] sm:$0xff]
    %v4134 = vld [vmem:[#allocation8 + $0x2b0] sm:$0xff]
    %v4135 = vld [vmem:[#allocation8 + $0x2b8] sm:$0xff]
    %v4136 = vld [vmem:[#allocation8 + $0x2c0] sm:$0xff]
    %v4137 = vld [vmem:[#allocation8 + $0x2c8] sm:$0xff]
    %v4138 = vld [vmem:[#allocation8 + $0x2d0] sm:$0xff]
    %v4139 = vld [vmem:[#allocation8 + $0x2d8] sm:$0xff]
    %v4140 = vld [vmem:[#allocation8 + $0x2e0] sm:$0xff]
    %v4141 = vld [vmem:[#allocation8 + $0x2e8] sm:$0xff]
    %v4142 = vld [vmem:[#allocation8 + $0x2f0] sm:$0xff]
    %v4143 = vld [vmem:[#allocation8 + $0x2f8] sm:$0xff]
    %v4144 = vld [vmem:[#allocation8 + $0x300] sm:$0xff]
    %v4145 = vld [vmem:[#allocation8 + $0x308] sm:$0xff]
    %v4146 = vld [vmem:[#allocation8 + $0x310] sm:$0xff]
    %v4147 = vld [vmem:[#allocation8 + $0x318] sm:$0xff]
    %v4148 = vld [vmem:[#allocation8 + $0x320] sm:$0xff]
    %v4149 = vld [vmem:[#allocation8 + $0x328] sm:$0xff]
    %v4150 = vld [vmem:[#allocation8 + $0x330] sm:$0xff]
    %v4151 = vld [vmem:[#allocation8 + $0x338] sm:$0xff]
    %v4152 = vld [vmem:[#allocation8 + $0x340] sm:$0xff]
    %v4153 = vld [vmem:[#allocation8 + $0x348] sm:$0xff]
    %v4154 = vld [vmem:[#allocation8 + $0x350] sm:$0xff]
    %v4155 = vld [vmem:[#allocation8 + $0x358] sm:$0xff]
    %v4156 = vld [vmem:[#allocation8 + $0x360] sm:$0xff]
    %v4157 = vld [vmem:[#allocation8 + $0x368] sm:$0xff]
    %v4158 = vld [vmem:[#allocation8 + $0x370] sm:$0xff]
    %v4159 = vld [vmem:[#allocation8 + $0x378] sm:$0xff]
    %v4160 = vld [vmem:[#allocation8 + $0x380] sm:$0xff]
    %v4161 = vld [vmem:[#allocation8 + $0x388] sm:$0xff]
    %v4162 = vld [vmem:[#allocation8 + $0x390] sm:$0xff]
    %v4163 = vld [vmem:[#allocation8 + $0x398] sm:$0xff]
    %v4164 = vld [vmem:[#allocation8 + $0x3a0] sm:$0xff]
    %v4165 = vld [vmem:[#allocation8 + $0x3a8] sm:$0xff]
    %v4166 = vld [vmem:[#allocation8 + $0x3b0] sm:$0xff]
    %v4167 = vld [vmem:[#allocation8 + $0x3b8] sm:$0xff]
    %v4168 = vld [vmem:[#allocation8 + $0x3c0] sm:$0xff]
    %v4169 = vld [vmem:[#allocation8 + $0x3c8] sm:$0xff]
    %v4170 = vld [vmem:[#allocation8 + $0x3d0] sm:$0xff]
    %v4171 = vld [vmem:[#allocation8 + $0x3d8] sm:$0xff]
    %v4172 = vld [vmem:[#allocation8 + $0x3e0] sm:$0xff]
    %v4173 = vld [vmem:[#allocation8 + $0x3e8] sm:$0xff]
    %v4174 = vld [vmem:[#allocation8 + $0x3f0] sm:$0xff]
    %v4175 = vld [vmem:[#allocation8 + $0x3f8] sm:$0xff]
    %v4176 = vld [vmem:[#allocation8 + $0x400] sm:$0xff]
    %v4177 = vld [vmem:[#allocation8 + $0x408] sm:$0xff]
    %v4178 = vld [vmem:[#allocation8 + $0x410] sm:$0xff]
    %v4179 = vld [vmem:[#allocation8 + $0x418] sm:$0xff]
    %v4180 = vld [vmem:[#allocation8 + $0x420] sm:$0xff]
    %v4181 = vld [vmem:[#allocation8 + $0x428] sm:$0xff]
    %v4182 = vld [vmem:[#allocation8 + $0x430] sm:$0xff]
    %v4183 = vld [vmem:[#allocation8 + $0x438] sm:$0xff]
    %v4184 = vld [vmem:[#allocation8 + $0x440] sm:$0xff]
    %v4185 = vld [vmem:[#allocation8 + $0x448] sm:$0xff]
    %v4186 = vld [vmem:[#allocation8 + $0x450] sm:$0xff]
    %v4187 = vld [vmem:[#allocation8 + $0x458] sm:$0xff]
    %v4188 = vld [vmem:[#allocation8 + $0x460] sm:$0xff]
    %v4189 = vld [vmem:[#allocation8 + $0x468] sm:$0xff]
    %v4190 = vld [vmem:[#allocation8 + $0x470] sm:$0xff]
    %v4191 = vld [vmem:[#allocation8 + $0x478] sm:$0xff]
    %v4192 = vld [vmem:[#allocation8 + $0x480] sm:$0xff]
    %v4193 = vld [vmem:[#allocation8 + $0x488] sm:$0xff]
    %v4194 = vld [vmem:[#allocation8 + $0x490] sm:$0xff]
    %v4195 = vld [vmem:[#allocation8 + $0x498] sm:$0xff]
    %v4196 = vld [vmem:[#allocation8 + $0x4a0] sm:$0xff]
    %v4197 = vld [vmem:[#allocation8 + $0x4a8] sm:$0xff]
    %v4198 = vld [vmem:[#allocation8 + $0x4b0] sm:$0xff]
    %v4199 = vld [vmem:[#allocation8 + $0x4b8] sm:$0xff]
    %v4200 = vld [vmem:[#allocation8 + $0x4c0] sm:$0xff]
    %v4201 = vld [vmem:[#allocation8 + $0x4c8] sm:$0xff]
    %v4202 = vld [vmem:[#allocation8 + $0x4d0] sm:$0xff]
    %v4203 = vld [vmem:[#allocation8 + $0x4d8] sm:$0xff]
    %v4204 = vld [vmem:[#allocation8 + $0x4e0] sm:$0xff]
    %v4205 = vld [vmem:[#allocation8 + $0x4e8] sm:$0xff]
    %v4206 = vld [vmem:[#allocation8 + $0x4f0] sm:$0xff]
    %v4207 = vld [vmem:[#allocation8 + $0x4f8] sm:$0xff]
    %v4208 = vld [vmem:[#allocation8 + $0x500] sm:$0xff]
    %v4209 = vld [vmem:[#allocation8 + $0x508] sm:$0xff]
    %v4210 = vld [vmem:[#allocation8 + $0x510] sm:$0xff]
    %v4211 = vld [vmem:[#allocation8 + $0x518] sm:$0xff]
    %v4212 = vld [vmem:[#allocation8 + $0x520] sm:$0xff]
    %v4213 = vld [vmem:[#allocation8 + $0x528] sm:$0xff]
    %v4214 = vld [vmem:[#allocation8 + $0x530] sm:$0xff]
    %v4215 = vld [vmem:[#allocation8 + $0x538] sm:$0xff]
    %v4216 = vld [vmem:[#allocation8 + $0x540] sm:$0xff]
    %v4217 = vld [vmem:[#allocation8 + $0x548] sm:$0xff]
    %v4218 = vld [vmem:[#allocation8 + $0x550] sm:$0xff]
    %v4219 = vld [vmem:[#allocation8 + $0x558] sm:$0xff]
    %v4220 = vld [vmem:[#allocation8 + $0x560] sm:$0xff]
    %v4221 = vld [vmem:[#allocation8 + $0x568] sm:$0xff]
    %v4222 = vld [vmem:[#allocation8 + $0x570] sm:$0xff]
    %v4223 = vld [vmem:[#allocation8 + $0x578] sm:$0xff]
    %v4224 = vld [vmem:[#allocation8 + $0x580] sm:$0xff]
    %v4225 = vld [vmem:[#allocation8 + $0x588] sm:$0xff]
    %v4226 = vld [vmem:[#allocation8 + $0x590] sm:$0xff]
    %v4227 = vld [vmem:[#allocation8 + $0x598] sm:$0xff]
    %v4228 = vld [vmem:[#allocation8 + $0x5a0] sm:$0xff]
    %v4229 = vld [vmem:[#allocation8 + $0x5a8] sm:$0xff]
    %v4230 = vld [vmem:[#allocation8 + $0x5b0] sm:$0xff]
    %v4231 = vld [vmem:[#allocation8 + $0x5b8] sm:$0xff]
    %v4232 = vld [vmem:[#allocation8 + $0x5c0] sm:$0xff]
    %v4233 = vld [vmem:[#allocation8 + $0x5c8] sm:$0xff]
    %v4234 = vld [vmem:[#allocation8 + $0x5d0] sm:$0xff]
    %v4235 = vld [vmem:[#allocation8 + $0x5d8] sm:$0xff]
    %v4236 = vld [vmem:[#allocation8 + $0x5e0] sm:$0xff]
    %v4237 = vld [vmem:[#allocation8 + $0x5e8] sm:$0xff]
    %v4238 = vld [vmem:[#allocation8 + $0x5f0] sm:$0xff]
    %v4239 = vld [vmem:[#allocation8 + $0x5f8] sm:$0xff]
    %v4240 = vld [vmem:[#allocation8 + $0x600] sm:$0xff]
    %v4241 = vld [vmem:[#allocation8 + $0x608] sm:$0xff]
    %v4242 = vld [vmem:[#allocation8 + $0x610] sm:$0xff]
    %v4243 = vld [vmem:[#allocation8 + $0x618] sm:$0xff]
    %v4244 = vld [vmem:[#allocation8 + $0x620] sm:$0xff]
    %v4245 = vld [vmem:[#allocation8 + $0x628] sm:$0xff]
    %v4246 = vld [vmem:[#allocation8 + $0x630] sm:$0xff]
    %v4247 = vld [vmem:[#allocation8 + $0x638] sm:$0xff]
    %v4248 = vld [vmem:[#allocation8 + $0x640] sm:$0xff]
    %v4249 = vld [vmem:[#allocation8 + $0x648] sm:$0xff]
    %v4250 = vld [vmem:[#allocation8 + $0x650] sm:$0xff]
    %v4251 = vld [vmem:[#allocation8 + $0x658] sm:$0xff]
    %v4252 = vld [vmem:[#allocation8 + $0x660] sm:$0xff]
    %v4253 = vld [vmem:[#allocation8 + $0x668] sm:$0xff]
    %v4254 = vld [vmem:[#allocation8 + $0x670] sm:$0xff]
    %v4255 = vld [vmem:[#allocation8 + $0x678] sm:$0xff]
    %v4256 = vld [vmem:[#allocation8 + $0x680] sm:$0xff]
    %v4257 = vld [vmem:[#allocation8 + $0x688] sm:$0xff]
    %v4258 = vld [vmem:[#allocation8 + $0x690] sm:$0xff]
    %v4259 = vld [vmem:[#allocation8 + $0x698] sm:$0xff]
    %v4260 = vld [vmem:[#allocation8 + $0x6a0] sm:$0xff]
    %v4261 = vld [vmem:[#allocation8 + $0x6a8] sm:$0xff]
    %v4262 = vld [vmem:[#allocation8 + $0x6b0] sm:$0xff]
    %v4263 = vld [vmem:[#allocation8 + $0x6b8] sm:$0xff]
    %v4264 = vld [vmem:[#allocation8 + $0x6c0] sm:$0xff]
    %v4265 = vld [vmem:[#allocation8 + $0x6c8] sm:$0xff]
    %v4266 = vld [vmem:[#allocation8 + $0x6d0] sm:$0xff]
    %v4267 = vld [vmem:[#allocation8 + $0x6d8] sm:$0xff]
    %v4268 = vld [vmem:[#allocation8 + $0x6e0] sm:$0xff]
    %v4269 = vld [vmem:[#allocation8 + $0x6e8] sm:$0xff]
    %v4270 = vld [vmem:[#allocation8 + $0x6f0] sm:$0xff]
    %v4271 = vld [vmem:[#allocation8 + $0x6f8] sm:$0xff]
    %v4272 = vld [vmem:[#allocation8 + $0x700] sm:$0xff]
    %v4273 = vld [vmem:[#allocation8 + $0x708] sm:$0xff]
    %v4274 = vld [vmem:[#allocation8 + $0x710] sm:$0xff]
    %v4275 = vld [vmem:[#allocation8 + $0x718] sm:$0xff]
    %v4276 = vld [vmem:[#allocation8 + $0x720] sm:$0xff]
    %v4277 = vld [vmem:[#allocation8 + $0x728] sm:$0xff]
    %v4278 = vld [vmem:[#allocation8 + $0x730] sm:$0xff]
    %v4279 = vld [vmem:[#allocation8 + $0x738] sm:$0xff]
    %v4280 = vld [vmem:[#allocation8 + $0x740] sm:$0xff]
    %v4281 = vld [vmem:[#allocation8 + $0x748] sm:$0xff]
    %v4282 = vld [vmem:[#allocation8 + $0x750] sm:$0xff]
    %v4283 = vld [vmem:[#allocation8 + $0x758] sm:$0xff]
    %v4284 = vld [vmem:[#allocation8 + $0x760] sm:$0xff]
    %v4285 = vld [vmem:[#allocation8 + $0x768] sm:$0xff]
    %v4286 = vld [vmem:[#allocation8 + $0x770] sm:$0xff]
    %v4287 = vld [vmem:[#allocation8 + $0x778] sm:$0xff]
    %v4288 = vld [vmem:[#allocation8 + $0x780] sm:$0xff]
    %v4289 = vld [vmem:[#allocation8 + $0x788] sm:$0xff]
    %v4290 = vld [vmem:[#allocation8 + $0x790] sm:$0xff]
    %v4291 = vld [vmem:[#allocation8 + $0x798] sm:$0xff]
    %v4292 = vld [vmem:[#allocation8 + $0x7a0] sm:$0xff]
    %v4293 = vld [vmem:[#allocation8 + $0x7a8] sm:$0xff]
    %v4294 = vld [vmem:[#allocation8 + $0x7b0] sm:$0xff]
    %v4295 = vld [vmem:[#allocation8 + $0x7b8] sm:$0xff]
    %v4296 = vld [vmem:[#allocation8 + $0x7c0] sm:$0xff]
    %v4297 = vld [vmem:[#allocation8 + $0x7c8] sm:$0xff]
    %v4298 = vld [vmem:[#allocation8 + $0x7d0] sm:$0xff]
    %v4299 = vld [vmem:[#allocation8 + $0x7d8] sm:$0xff]
    %v4300 = vld [vmem:[#allocation8 + $0x7e0] sm:$0xff]
    %v4301 = vld [vmem:[#allocation8 + $0x7e8] sm:$0xff]
    %v4302 = vld [vmem:[#allocation8 + $0x7f0] sm:$0xff]
    %v4303 = vld [vmem:[#allocation8 + $0x7f8] sm:$0xff]
    %v4304 = vld [vmem:[#allocation8 + $0x800] sm:$0xff]
    %v4305 = vld [vmem:[#allocation8 + $0x808] sm:$0xff]
    %v4306 = vld [vmem:[#allocation8 + $0x810] sm:$0xff]
    %v4307 = vld [vmem:[#allocation8 + $0x818] sm:$0xff]
    %v4308 = vld [vmem:[#allocation8 + $0x820] sm:$0xff]
    %v4309 = vld [vmem:[#allocation8 + $0x828] sm:$0xff]
    %v4310 = vld [vmem:[#allocation8 + $0x830] sm:$0xff]
    %v4311 = vld [vmem:[#allocation8 + $0x838] sm:$0xff]
    %v4312 = vld [vmem:[#allocation8 + $0x840] sm:$0xff]
    %v4313 = vld [vmem:[#allocation8 + $0x848] sm:$0xff]
    %v4314 = vld [vmem:[#allocation8 + $0x850] sm:$0xff]
    %v4315 = vld [vmem:[#allocation8 + $0x858] sm:$0xff]
    %v4316 = vld [vmem:[#allocation8 + $0x860] sm:$0xff]
    %v4317 = vld [vmem:[#allocation8 + $0x868] sm:$0xff]
    %v4318 = vld [vmem:[#allocation8 + $0x870] sm:$0xff]
    %v4319 = vld [vmem:[#allocation8 + $0x878] sm:$0xff]
    %v4320 = vld [vmem:[#allocation8 + $0x880] sm:$0xff]
    %v4321 = vld [vmem:[#allocation8 + $0x888] sm:$0xff]
    %v4322 = vld [vmem:[#allocation8 + $0x890] sm:$0xff]
    %v4323 = vld [vmem:[#allocation8 + $0x898] sm:$0xff]
    %v4324 = vld [vmem:[#allocation8 + $0x8a0] sm:$0xff]
    %v4325 = vld [vmem:[#allocation8 + $0x8a8] sm:$0xff]
    %v4326 = vld [vmem:[#allocation8 + $0x8b0] sm:$0xff]
    %v4327 = vld [vmem:[#allocation8 + $0x8b8] sm:$0xff]
    %v4328 = vld [vmem:[#allocation8 + $0x8c0] sm:$0xff]
    %v4329 = vld [vmem:[#allocation8 + $0x8c8] sm:$0xff]
    %v4330 = vld [vmem:[#allocation8 + $0x8d0] sm:$0xff]
    %v4331 = vld [vmem:[#allocation8 + $0x8d8] sm:$0xff]
    %v4332 = vld [vmem:[#allocation8 + $0x8e0] sm:$0xff]
    %v4333 = vld [vmem:[#allocation8 + $0x8e8] sm:$0xff]
    %v4334 = vld [vmem:[#allocation8 + $0x8f0] sm:$0xff]
    %v4335 = vld [vmem:[#allocation8 + $0x8f8] sm:$0xff]
    %v4336 = vld [vmem:[#allocation10] sm:$0x3f]
    %v4338 = vlaneseq
    %v4339 = vshrl.u32 %v4338, 7
    %v4340 = vsub.s32 0, %v4339
    %v4341 = vrot.slane %v4336, %v4340
    %v4342 = vlaneseq
    %v4343 = vshrl.u32 %v4342, 7
    %v4344 = vsub.s32 1, %v4343
    %v4345 = vrot.slane %v4336, %v4344
    %v4346 = vlaneseq
    %v4347 = vshrl.u32 %v4346, 7
    %v4348 = vsub.s32 2, %v4347
    %v4349 = vrot.slane %v4336, %v4348
    %v4350 = vlaneseq
    %v4351 = vshrl.u32 %v4350, 7
    %v4352 = vsub.s32 3, %v4351
    %v4353 = vrot.slane %v4336, %v4352
    %v4354 = vlaneseq
    %v4355 = vshrl.u32 %v4354, 7
    %v4356 = vsub.s32 4, %v4355
    %v4357 = vrot.slane %v4336, %v4356
    %v4358 = vlaneseq
    %v4359 = vshrl.u32 %v4358, 7
    %v4360 = vsub.s32 5, %v4359
    %v4361 = vrot.slane %v4336, %v4360
    %v4656 = vunpack.c.l.b16 %v4048
    %v4657 = vunpack.c.h.b16 %v4048
    %v4658 = vunpack.c.l.b16 %v4049
    %v4659 = vunpack.c.h.b16 %v4049
    %v4660 = vunpack.c.l.b16 %v4050
    %v4661 = vunpack.c.h.b16 %v4050
    %v4662 = vunpack.c.l.b16 %v4051
    %v4663 = vunpack.c.h.b16 %v4051
    %v4664 = vunpack.c.l.b16 %v4052
    %v4665 = vunpack.c.h.b16 %v4052
    %v4666 = vunpack.c.l.b16 %v4053
    %v4667 = vunpack.c.h.b16 %v4053
    %v4668 = vunpack.c.l.b16 %v4054
    %v4669 = vunpack.c.h.b16 %v4054
    %v4670 = vunpack.c.l.b16 %v4055
    %v4671 = vunpack.c.h.b16 %v4055
    %v4672 = vunpack.c.l.b16 %v4056
    %v4673 = vunpack.c.h.b16 %v4056
    %v4674 = vunpack.c.l.b16 %v4057
    %v4675 = vunpack.c.h.b16 %v4057
    %v4676 = vunpack.c.l.b16 %v4058
    %v4677 = vunpack.c.h.b16 %v4058
    %v4678 = vunpack.c.l.b16 %v4059
    %v4679 = vunpack.c.h.b16 %v4059
    %v4680 = vunpack.c.l.b16 %v4060
    %v4681 = vunpack.c.h.b16 %v4060
    %v4682 = vunpack.c.l.b16 %v4061
    %v4683 = vunpack.c.h.b16 %v4061
    %v4684 = vunpack.c.l.b16 %v4062
    %v4685 = vunpack.c.h.b16 %v4062
    %v4686 = vunpack.c.l.b16 %v4063
    %v4687 = vunpack.c.h.b16 %v4063
    %v4688 = vunpack.c.l.b16 %v4064
    %v4689 = vunpack.c.h.b16 %v4064
    %v4690 = vunpack.c.l.b16 %v4065
    %v4691 = vunpack.c.h.b16 %v4065
    %v4692 = vunpack.c.l.b16 %v4066
    %v4693 = vunpack.c.h.b16 %v4066
    %v4694 = vunpack.c.l.b16 %v4067
    %v4695 = vunpack.c.h.b16 %v4067
    %v4696 = vunpack.c.l.b16 %v4068
    %v4697 = vunpack.c.h.b16 %v4068
    %v4698 = vunpack.c.l.b16 %v4069
    %v4699 = vunpack.c.h.b16 %v4069
    %v4700 = vunpack.c.l.b16 %v4070
    %v4701 = vunpack.c.h.b16 %v4070
    %v4702 = vunpack.c.l.b16 %v4071
    %v4703 = vunpack.c.h.b16 %v4071
    %v4704 = vunpack.c.l.b16 %v4072
    %v4705 = vunpack.c.h.b16 %v4072
    %v4706 = vunpack.c.l.b16 %v4073
    %v4707 = vunpack.c.h.b16 %v4073
    %v4708 = vunpack.c.l.b16 %v4074
    %v4709 = vunpack.c.h.b16 %v4074
    %v4710 = vunpack.c.l.b16 %v4075
    %v4711 = vunpack.c.h.b16 %v4075
    %v4712 = vunpack.c.l.b16 %v4076
    %v4713 = vunpack.c.h.b16 %v4076
    %v4714 = vunpack.c.l.b16 %v4077
    %v4715 = vunpack.c.h.b16 %v4077
    %v4716 = vunpack.c.l.b16 %v4078
    %v4717 = vunpack.c.h.b16 %v4078
    %v4718 = vunpack.c.l.b16 %v4079
    %v4719 = vunpack.c.h.b16 %v4079
    %v4720 = vunpack.c.l.b16 %v4080
    %v4721 = vunpack.c.h.b16 %v4080
    %v4722 = vunpack.c.l.b16 %v4081
    %v4723 = vunpack.c.h.b16 %v4081
    %v4724 = vunpack.c.l.b16 %v4082
    %v4725 = vunpack.c.h.b16 %v4082
    %v4726 = vunpack.c.l.b16 %v4083
    %v4727 = vunpack.c.h.b16 %v4083
    %v4728 = vunpack.c.l.b16 %v4084
    %v4729 = vunpack.c.h.b16 %v4084
    %v4730 = vunpack.c.l.b16 %v4085
    %v4731 = vunpack.c.h.b16 %v4085
    %v4732 = vunpack.c.l.b16 %v4086
    %v4733 = vunpack.c.h.b16 %v4086
    %v4734 = vunpack.c.l.b16 %v4087
    %v4735 = vunpack.c.h.b16 %v4087
    %v4736 = vunpack.c.l.b16 %v4088
    %v4737 = vunpack.c.h.b16 %v4088
    %v4738 = vunpack.c.l.b16 %v4089
    %v4739 = vunpack.c.h.b16 %v4089
    %v4740 = vunpack.c.l.b16 %v4090
    %v4741 = vunpack.c.h.b16 %v4090
    %v4742 = vunpack.c.l.b16 %v4091
    %v4743 = vunpack.c.h.b16 %v4091
    %v4744 = vunpack.c.l.b16 %v4092
    %v4745 = vunpack.c.h.b16 %v4092
    %v4746 = vunpack.c.l.b16 %v4093
    %v4747 = vunpack.c.h.b16 %v4093
    %v4748 = vunpack.c.l.b16 %v4094
    %v4749 = vunpack.c.h.b16 %v4094
    %v4750 = vunpack.c.l.b16 %v4095
    %v4751 = vunpack.c.h.b16 %v4095
    %v4752 = vunpack.c.l.b16 %v4096
    %v4753 = vunpack.c.h.b16 %v4096
    %v4754 = vunpack.c.l.b16 %v4097
    %v4755 = vunpack.c.h.b16 %v4097
    %v4756 = vunpack.c.l.b16 %v4098
    %v4757 = vunpack.c.h.b16 %v4098
    %v4758 = vunpack.c.l.b16 %v4099
    %v4759 = vunpack.c.h.b16 %v4099
    %v4760 = vunpack.c.l.b16 %v4100
    %v4761 = vunpack.c.h.b16 %v4100
    %v4762 = vunpack.c.l.b16 %v4101
    %v4763 = vunpack.c.h.b16 %v4101
    %v4764 = vunpack.c.l.b16 %v4102
    %v4765 = vunpack.c.h.b16 %v4102
    %v4766 = vunpack.c.l.b16 %v4103
    %v4767 = vunpack.c.h.b16 %v4103
    %v4768 = vunpack.c.l.b16 %v4104
    %v4769 = vunpack.c.h.b16 %v4104
    %v4770 = vunpack.c.l.b16 %v4105
    %v4771 = vunpack.c.h.b16 %v4105
    %v4772 = vunpack.c.l.b16 %v4106
    %v4773 = vunpack.c.h.b16 %v4106
    %v4774 = vunpack.c.l.b16 %v4107
    %v4775 = vunpack.c.h.b16 %v4107
    %v4776 = vunpack.c.l.b16 %v4108
    %v4777 = vunpack.c.h.b16 %v4108
    %v4778 = vunpack.c.l.b16 %v4109
    %v4779 = vunpack.c.h.b16 %v4109
    %v4780 = vunpack.c.l.b16 %v4110
    %v4781 = vunpack.c.h.b16 %v4110
    %v4782 = vunpack.c.l.b16 %v4111
    %v4783 = vunpack.c.h.b16 %v4111
    %v4784 = vunpack.c.l.b16 %v4112
    %v4785 = vunpack.c.h.b16 %v4112
    %v4786 = vunpack.c.l.b16 %v4113
    %v4787 = vunpack.c.h.b16 %v4113
    %v4788 = vunpack.c.l.b16 %v4114
    %v4789 = vunpack.c.h.b16 %v4114
    %v4790 = vunpack.c.l.b16 %v4115
    %v4791 = vunpack.c.h.b16 %v4115
    %v4792 = vunpack.c.l.b16 %v4116
    %v4793 = vunpack.c.h.b16 %v4116
    %v4794 = vunpack.c.l.b16 %v4117
    %v4795 = vunpack.c.h.b16 %v4117
    %v4796 = vunpack.c.l.b16 %v4118
    %v4797 = vunpack.c.h.b16 %v4118
    %v4798 = vunpack.c.l.b16 %v4119
    %v4799 = vunpack.c.h.b16 %v4119
    %v4800 = vunpack.c.l.b16 %v4120
    %v4801 = vunpack.c.h.b16 %v4120
    %v4802 = vunpack.c.l.b16 %v4121
    %v4803 = vunpack.c.h.b16 %v4121
    %v4804 = vunpack.c.l.b16 %v4122
    %v4805 = vunpack.c.h.b16 %v4122
    %v4806 = vunpack.c.l.b16 %v4123
    %v4807 = vunpack.c.h.b16 %v4123
    %v4808 = vunpack.c.l.b16 %v4124
    %v4809 = vunpack.c.h.b16 %v4124
    %v4810 = vunpack.c.l.b16 %v4125
    %v4811 = vunpack.c.h.b16 %v4125
    %v4812 = vunpack.c.l.b16 %v4126
    %v4813 = vunpack.c.h.b16 %v4126
    %v4814 = vunpack.c.l.b16 %v4127
    %v4815 = vunpack.c.h.b16 %v4127
    %v4816 = vunpack.c.l.b16 %v4128
    %v4817 = vunpack.c.h.b16 %v4128
    %v4818 = vunpack.c.l.b16 %v4129
    %v4819 = vunpack.c.h.b16 %v4129
    %v4820 = vunpack.c.l.b16 %v4130
    %v4821 = vunpack.c.h.b16 %v4130
    %v4822 = vunpack.c.l.b16 %v4131
    %v4823 = vunpack.c.h.b16 %v4131
    %v4824 = vunpack.c.l.b16 %v4132
    %v4825 = vunpack.c.h.b16 %v4132
    %v4826 = vunpack.c.l.b16 %v4133
    %v4827 = vunpack.c.h.b16 %v4133
    %v4828 = vunpack.c.l.b16 %v4134
    %v4829 = vunpack.c.h.b16 %v4134
    %v4830 = vunpack.c.l.b16 %v4135
    %v4831 = vunpack.c.h.b16 %v4135
    %v4832 = vunpack.c.l.b16 %v4136
    %v4833 = vunpack.c.h.b16 %v4136
    %v4834 = vunpack.c.l.b16 %v4137
    %v4835 = vunpack.c.h.b16 %v4137
    %v4836 = vunpack.c.l.b16 %v4138
    %v4837 = vunpack.c.h.b16 %v4138
    %v4838 = vunpack.c.l.b16 %v4139
    %v4839 = vunpack.c.h.b16 %v4139
    %v4840 = vunpack.c.l.b16 %v4140
    %v4841 = vunpack.c.h.b16 %v4140
    %v4842 = vunpack.c.l.b16 %v4141
    %v4843 = vunpack.c.h.b16 %v4141
    %v4844 = vunpack.c.l.b16 %v4142
    %v4845 = vunpack.c.h.b16 %v4142
    %v4846 = vunpack.c.l.b16 %v4143
    %v4847 = vunpack.c.h.b16 %v4143
    %v4848 = vunpack.c.l.b16 %v4144
    %v4849 = vunpack.c.h.b16 %v4144
    %v4850 = vunpack.c.l.b16 %v4145
    %v4851 = vunpack.c.h.b16 %v4145
    %v4852 = vunpack.c.l.b16 %v4146
    %v4853 = vunpack.c.h.b16 %v4146
    %v4854 = vunpack.c.l.b16 %v4147
    %v4855 = vunpack.c.h.b16 %v4147
    %v4856 = vunpack.c.l.b16 %v4148
    %v4857 = vunpack.c.h.b16 %v4148
    %v4858 = vunpack.c.l.b16 %v4149
    %v4859 = vunpack.c.h.b16 %v4149
    %v4860 = vunpack.c.l.b16 %v4150
    %v4861 = vunpack.c.h.b16 %v4150
    %v4862 = vunpack.c.l.b16 %v4151
    %v4863 = vunpack.c.h.b16 %v4151
    %v4864 = vunpack.c.l.b16 %v4152
    %v4865 = vunpack.c.h.b16 %v4152
    %v4866 = vunpack.c.l.b16 %v4153
    %v4867 = vunpack.c.h.b16 %v4153
    %v4868 = vunpack.c.l.b16 %v4154
    %v4869 = vunpack.c.h.b16 %v4154
    %v4870 = vunpack.c.l.b16 %v4155
    %v4871 = vunpack.c.h.b16 %v4155
    %v4872 = vunpack.c.l.b16 %v4156
    %v4873 = vunpack.c.h.b16 %v4156
    %v4874 = vunpack.c.l.b16 %v4157
    %v4875 = vunpack.c.h.b16 %v4157
    %v4876 = vunpack.c.l.b16 %v4158
    %v4877 = vunpack.c.h.b16 %v4158
    %v4878 = vunpack.c.l.b16 %v4159
    %v4879 = vunpack.c.h.b16 %v4159
    %v4880 = vunpack.c.l.b16 %v4160
    %v4881 = vunpack.c.h.b16 %v4160
    %v4882 = vunpack.c.l.b16 %v4161
    %v4883 = vunpack.c.h.b16 %v4161
    %v4884 = vunpack.c.l.b16 %v4162
    %v4885 = vunpack.c.h.b16 %v4162
    %v4886 = vunpack.c.l.b16 %v4163
    %v4887 = vunpack.c.h.b16 %v4163
    %v4888 = vunpack.c.l.b16 %v4164
    %v4889 = vunpack.c.h.b16 %v4164
    %v4890 = vunpack.c.l.b16 %v4165
    %v4891 = vunpack.c.h.b16 %v4165
    %v4892 = vunpack.c.l.b16 %v4166
    %v4893 = vunpack.c.h.b16 %v4166
    %v4894 = vunpack.c.l.b16 %v4167
    %v4895 = vunpack.c.h.b16 %v4167
    %v4896 = vunpack.c.l.b16 %v4168
    %v4897 = vunpack.c.h.b16 %v4168
    %v4898 = vunpack.c.l.b16 %v4169
    %v4899 = vunpack.c.h.b16 %v4169
    %v4900 = vunpack.c.l.b16 %v4170
    %v4901 = vunpack.c.h.b16 %v4170
    %v4902 = vunpack.c.l.b16 %v4171
    %v4903 = vunpack.c.h.b16 %v4171
    %v4904 = vunpack.c.l.b16 %v4172
    %v4905 = vunpack.c.h.b16 %v4172
    %v4906 = vunpack.c.l.b16 %v4173
    %v4907 = vunpack.c.h.b16 %v4173
    %v4908 = vunpack.c.l.b16 %v4174
    %v4909 = vunpack.c.h.b16 %v4174
    %v4910 = vunpack.c.l.b16 %v4175
    %v4911 = vunpack.c.h.b16 %v4175
    %v4912 = vunpack.c.l.b16 %v4176
    %v4913 = vunpack.c.h.b16 %v4176
    %v4914 = vunpack.c.l.b16 %v4177
    %v4915 = vunpack.c.h.b16 %v4177
    %v4916 = vunpack.c.l.b16 %v4178
    %v4917 = vunpack.c.h.b16 %v4178
    %v4918 = vunpack.c.l.b16 %v4179
    %v4919 = vunpack.c.h.b16 %v4179
    %v4920 = vunpack.c.l.b16 %v4180
    %v4921 = vunpack.c.h.b16 %v4180
    %v4922 = vunpack.c.l.b16 %v4181
    %v4923 = vunpack.c.h.b16 %v4181
    %v4924 = vunpack.c.l.b16 %v4182
    %v4925 = vunpack.c.h.b16 %v4182
    %v4926 = vunpack.c.l.b16 %v4183
    %v4927 = vunpack.c.h.b16 %v4183
    %v4928 = vunpack.c.l.b16 %v4184
    %v4929 = vunpack.c.h.b16 %v4184
    %v4930 = vunpack.c.l.b16 %v4185
    %v4931 = vunpack.c.h.b16 %v4185
    %v4932 = vunpack.c.l.b16 %v4186
    %v4933 = vunpack.c.h.b16 %v4186
    %v4934 = vunpack.c.l.b16 %v4187
    %v4935 = vunpack.c.h.b16 %v4187
    %v4936 = vunpack.c.l.b16 %v4188
    %v4937 = vunpack.c.h.b16 %v4188
    %v4938 = vunpack.c.l.b16 %v4189
    %v4939 = vunpack.c.h.b16 %v4189
    %v4940 = vunpack.c.l.b16 %v4190
    %v4941 = vunpack.c.h.b16 %v4190
    %v4942 = vunpack.c.l.b16 %v4191
    %v4943 = vunpack.c.h.b16 %v4191
    %v4944 = vunpack.c.l.b16 %v4192
    %v4945 = vunpack.c.h.b16 %v4192
    %v4946 = vunpack.c.l.b16 %v4193
    %v4947 = vunpack.c.h.b16 %v4193
    %v4948 = vunpack.c.l.b16 %v4194
    %v4949 = vunpack.c.h.b16 %v4194
    %v4950 = vunpack.c.l.b16 %v4195
    %v4951 = vunpack.c.h.b16 %v4195
    %v4952 = vunpack.c.l.b16 %v4196
    %v4953 = vunpack.c.h.b16 %v4196
    %v4954 = vunpack.c.l.b16 %v4197
    %v4955 = vunpack.c.h.b16 %v4197
    %v4956 = vunpack.c.l.b16 %v4198
    %v4957 = vunpack.c.h.b16 %v4198
    %v4958 = vunpack.c.l.b16 %v4199
    %v4959 = vunpack.c.h.b16 %v4199
    %v4960 = vunpack.c.l.b16 %v4200
    %v4961 = vunpack.c.h.b16 %v4200
    %v4962 = vunpack.c.l.b16 %v4201
    %v4963 = vunpack.c.h.b16 %v4201
    %v4964 = vunpack.c.l.b16 %v4202
    %v4965 = vunpack.c.h.b16 %v4202
    %v4966 = vunpack.c.l.b16 %v4203
    %v4967 = vunpack.c.h.b16 %v4203
    %v4968 = vunpack.c.l.b16 %v4204
    %v4969 = vunpack.c.h.b16 %v4204
    %v4970 = vunpack.c.l.b16 %v4205
    %v4971 = vunpack.c.h.b16 %v4205
    %v4972 = vunpack.c.l.b16 %v4206
    %v4973 = vunpack.c.h.b16 %v4206
    %v4974 = vunpack.c.l.b16 %v4207
    %v4975 = vunpack.c.h.b16 %v4207
    %v4976 = vunpack.c.l.b16 %v4208
    %v4977 = vunpack.c.h.b16 %v4208
    %v4978 = vunpack.c.l.b16 %v4209
    %v4979 = vunpack.c.h.b16 %v4209
    %v4980 = vunpack.c.l.b16 %v4210
    %v4981 = vunpack.c.h.b16 %v4210
    %v4982 = vunpack.c.l.b16 %v4211
    %v4983 = vunpack.c.h.b16 %v4211
    %v4984 = vunpack.c.l.b16 %v4212
    %v4985 = vunpack.c.h.b16 %v4212
    %v4986 = vunpack.c.l.b16 %v4213
    %v4987 = vunpack.c.h.b16 %v4213
    %v4988 = vunpack.c.l.b16 %v4214
    %v4989 = vunpack.c.h.b16 %v4214
    %v4990 = vunpack.c.l.b16 %v4215
    %v4991 = vunpack.c.h.b16 %v4215
    %v4992 = vunpack.c.l.b16 %v4216
    %v4993 = vunpack.c.h.b16 %v4216
    %v4994 = vunpack.c.l.b16 %v4217
    %v4995 = vunpack.c.h.b16 %v4217
    %v4996 = vunpack.c.l.b16 %v4218
    %v4997 = vunpack.c.h.b16 %v4218
    %v4998 = vunpack.c.l.b16 %v4219
    %v4999 = vunpack.c.h.b16 %v4219
    %v5000 = vunpack.c.l.b16 %v4220
    %v5001 = vunpack.c.h.b16 %v4220
    %v5002 = vunpack.c.l.b16 %v4221
    %v5003 = vunpack.c.h.b16 %v4221
    %v5004 = vunpack.c.l.b16 %v4222
    %v5005 = vunpack.c.h.b16 %v4222
    %v5006 = vunpack.c.l.b16 %v4223
    %v5007 = vunpack.c.h.b16 %v4223
    %v5008 = vunpack.c.l.b16 %v4224
    %v5009 = vunpack.c.h.b16 %v4224
    %v5010 = vunpack.c.l.b16 %v4225
    %v5011 = vunpack.c.h.b16 %v4225
    %v5012 = vunpack.c.l.b16 %v4226
    %v5013 = vunpack.c.h.b16 %v4226
    %v5014 = vunpack.c.l.b16 %v4227
    %v5015 = vunpack.c.h.b16 %v4227
    %v5016 = vunpack.c.l.b16 %v4228
    %v5017 = vunpack.c.h.b16 %v4228
    %v5018 = vunpack.c.l.b16 %v4229
    %v5019 = vunpack.c.h.b16 %v4229
    %v5020 = vunpack.c.l.b16 %v4230
    %v5021 = vunpack.c.h.b16 %v4230
    %v5022 = vunpack.c.l.b16 %v4231
    %v5023 = vunpack.c.h.b16 %v4231
    %v5024 = vunpack.c.l.b16 %v4232
    %v5025 = vunpack.c.h.b16 %v4232
    %v5026 = vunpack.c.l.b16 %v4233
    %v5027 = vunpack.c.h.b16 %v4233
    %v5028 = vunpack.c.l.b16 %v4234
    %v5029 = vunpack.c.h.b16 %v4234
    %v5030 = vunpack.c.l.b16 %v4235
    %v5031 = vunpack.c.h.b16 %v4235
    %v5032 = vunpack.c.l.b16 %v4236
    %v5033 = vunpack.c.h.b16 %v4236
    %v5034 = vunpack.c.l.b16 %v4237
    %v5035 = vunpack.c.h.b16 %v4237
    %v5036 = vunpack.c.l.b16 %v4238
    %v5037 = vunpack.c.h.b16 %v4238
    %v5038 = vunpack.c.l.b16 %v4239
    %v5039 = vunpack.c.h.b16 %v4239
    %v5040 = vunpack.c.l.b16 %v4240
    %v5041 = vunpack.c.h.b16 %v4240
    %v5042 = vunpack.c.l.b16 %v4241
    %v5043 = vunpack.c.h.b16 %v4241
    %v5044 = vunpack.c.l.b16 %v4242
    %v5045 = vunpack.c.h.b16 %v4242
    %v5046 = vunpack.c.l.b16 %v4243
    %v5047 = vunpack.c.h.b16 %v4243
    %v5048 = vunpack.c.l.b16 %v4244
    %v5049 = vunpack.c.h.b16 %v4244
    %v5050 = vunpack.c.l.b16 %v4245
    %v5051 = vunpack.c.h.b16 %v4245
    %v5052 = vunpack.c.l.b16 %v4246
    %v5053 = vunpack.c.h.b16 %v4246
    %v5054 = vunpack.c.l.b16 %v4247
    %v5055 = vunpack.c.h.b16 %v4247
    %v5056 = vunpack.c.l.b16 %v4248
    %v5057 = vunpack.c.h.b16 %v4248
    %v5058 = vunpack.c.l.b16 %v4249
    %v5059 = vunpack.c.h.b16 %v4249
    %v5060 = vunpack.c.l.b16 %v4250
    %v5061 = vunpack.c.h.b16 %v4250
    %v5062 = vunpack.c.l.b16 %v4251
    %v5063 = vunpack.c.h.b16 %v4251
    %v5064 = vunpack.c.l.b16 %v4252
    %v5065 = vunpack.c.h.b16 %v4252
    %v5066 = vunpack.c.l.b16 %v4253
    %v5067 = vunpack.c.h.b16 %v4253
    %v5068 = vunpack.c.l.b16 %v4254
    %v5069 = vunpack.c.h.b16 %v4254
    %v5070 = vunpack.c.l.b16 %v4255
    %v5071 = vunpack.c.h.b16 %v4255
    %v5072 = vunpack.c.l.b16 %v4256
    %v5073 = vunpack.c.h.b16 %v4256
    %v5074 = vunpack.c.l.b16 %v4257
    %v5075 = vunpack.c.h.b16 %v4257
    %v5076 = vunpack.c.l.b16 %v4258
    %v5077 = vunpack.c.h.b16 %v4258
    %v5078 = vunpack.c.l.b16 %v4259
    %v5079 = vunpack.c.h.b16 %v4259
    %v5080 = vunpack.c.l.b16 %v4260
    %v5081 = vunpack.c.h.b16 %v4260
    %v5082 = vunpack.c.l.b16 %v4261
    %v5083 = vunpack.c.h.b16 %v4261
    %v5084 = vunpack.c.l.b16 %v4262
    %v5085 = vunpack.c.h.b16 %v4262
    %v5086 = vunpack.c.l.b16 %v4263
    %v5087 = vunpack.c.h.b16 %v4263
    %v5088 = vunpack.c.l.b16 %v4264
    %v5089 = vunpack.c.h.b16 %v4264
    %v5090 = vunpack.c.l.b16 %v4265
    %v5091 = vunpack.c.h.b16 %v4265
    %v5092 = vunpack.c.l.b16 %v4266
    %v5093 = vunpack.c.h.b16 %v4266
    %v5094 = vunpack.c.l.b16 %v4267
    %v5095 = vunpack.c.h.b16 %v4267
    %v5096 = vunpack.c.l.b16 %v4268
    %v5097 = vunpack.c.h.b16 %v4268
    %v5098 = vunpack.c.l.b16 %v4269
    %v5099 = vunpack.c.h.b16 %v4269
    %v5100 = vunpack.c.l.b16 %v4270
    %v5101 = vunpack.c.h.b16 %v4270
    %v5102 = vunpack.c.l.b16 %v4271
    %v5103 = vunpack.c.h.b16 %v4271
    %v5104 = vunpack.c.l.b16 %v4272
    %v5105 = vunpack.c.h.b16 %v4272
    %v5106 = vunpack.c.l.b16 %v4273
    %v5107 = vunpack.c.h.b16 %v4273
    %v5108 = vunpack.c.l.b16 %v4274
    %v5109 = vunpack.c.h.b16 %v4274
    %v5110 = vunpack.c.l.b16 %v4275
    %v5111 = vunpack.c.h.b16 %v4275
    %v5112 = vunpack.c.l.b16 %v4276
    %v5113 = vunpack.c.h.b16 %v4276
    %v5114 = vunpack.c.l.b16 %v4277
    %v5115 = vunpack.c.h.b16 %v4277
    %v5116 = vunpack.c.l.b16 %v4278
    %v5117 = vunpack.c.h.b16 %v4278
    %v5118 = vunpack.c.l.b16 %v4279
    %v5119 = vunpack.c.h.b16 %v4279
    %v5120 = vunpack.c.l.b16 %v4280
    %v5121 = vunpack.c.h.b16 %v4280
    %v5122 = vunpack.c.l.b16 %v4281
    %v5123 = vunpack.c.h.b16 %v4281
    %v5124 = vunpack.c.l.b16 %v4282
    %v5125 = vunpack.c.h.b16 %v4282
    %v5126 = vunpack.c.l.b16 %v4283
    %v5127 = vunpack.c.h.b16 %v4283
    %v5128 = vunpack.c.l.b16 %v4284
    %v5129 = vunpack.c.h.b16 %v4284
    %v5130 = vunpack.c.l.b16 %v4285
    %v5131 = vunpack.c.h.b16 %v4285
    %v5132 = vunpack.c.l.b16 %v4286
    %v5133 = vunpack.c.h.b16 %v4286
    %v5134 = vunpack.c.l.b16 %v4287
    %v5135 = vunpack.c.h.b16 %v4287
    %v5136 = vunpack.c.l.b16 %v4288
    %v5137 = vunpack.c.h.b16 %v4288
    %v5138 = vunpack.c.l.b16 %v4289
    %v5139 = vunpack.c.h.b16 %v4289
    %v5140 = vunpack.c.l.b16 %v4290
    %v5141 = vunpack.c.h.b16 %v4290
    %v5142 = vunpack.c.l.b16 %v4291
    %v5143 = vunpack.c.h.b16 %v4291
    %v5144 = vunpack.c.l.b16 %v4292
    %v5145 = vunpack.c.h.b16 %v4292
    %v5146 = vunpack.c.l.b16 %v4293
    %v5147 = vunpack.c.h.b16 %v4293
    %v5148 = vunpack.c.l.b16 %v4294
    %v5149 = vunpack.c.h.b16 %v4294
    %v5150 = vunpack.c.l.b16 %v4295
    %v5151 = vunpack.c.h.b16 %v4295
    %v5152 = vunpack.c.l.b16 %v4296
    %v5153 = vunpack.c.h.b16 %v4296
    %v5154 = vunpack.c.l.b16 %v4297
    %v5155 = vunpack.c.h.b16 %v4297
    %v5156 = vunpack.c.l.b16 %v4298
    %v5157 = vunpack.c.h.b16 %v4298
    %v5158 = vunpack.c.l.b16 %v4299
    %v5159 = vunpack.c.h.b16 %v4299
    %v5160 = vunpack.c.l.b16 %v4300
    %v5161 = vunpack.c.h.b16 %v4300
    %v5162 = vunpack.c.l.b16 %v4301
    %v5163 = vunpack.c.h.b16 %v4301
    %v5164 = vunpack.c.l.b16 %v4302
    %v5165 = vunpack.c.h.b16 %v4302
    %v5166 = vunpack.c.l.b16 %v4303
    %v5167 = vunpack.c.h.b16 %v4303
    %v5168 = vunpack.c.l.b16 %v4304
    %v5169 = vunpack.c.h.b16 %v4304
    %v5170 = vunpack.c.l.b16 %v4305
    %v5171 = vunpack.c.h.b16 %v4305
    %v5172 = vunpack.c.l.b16 %v4306
    %v5173 = vunpack.c.h.b16 %v4306
    %v5174 = vunpack.c.l.b16 %v4307
    %v5175 = vunpack.c.h.b16 %v4307
    %v5176 = vunpack.c.l.b16 %v4308
    %v5177 = vunpack.c.h.b16 %v4308
    %v5178 = vunpack.c.l.b16 %v4309
    %v5179 = vunpack.c.h.b16 %v4309
    %v5180 = vunpack.c.l.b16 %v4310
    %v5181 = vunpack.c.h.b16 %v4310
    %v5182 = vunpack.c.l.b16 %v4311
    %v5183 = vunpack.c.h.b16 %v4311
    %v5184 = vunpack.c.l.b16 %v4312
    %v5185 = vunpack.c.h.b16 %v4312
    %v5186 = vunpack.c.l.b16 %v4313
    %v5187 = vunpack.c.h.b16 %v4313
    %v5188 = vunpack.c.l.b16 %v4314
    %v5189 = vunpack.c.h.b16 %v4314
    %v5190 = vunpack.c.l.b16 %v4315
    %v5191 = vunpack.c.h.b16 %v4315
    %v5192 = vunpack.c.l.b16 %v4316
    %v5193 = vunpack.c.h.b16 %v4316
    %v5194 = vunpack.c.l.b16 %v4317
    %v5195 = vunpack.c.h.b16 %v4317
    %v5196 = vunpack.c.l.b16 %v4318
    %v5197 = vunpack.c.h.b16 %v4318
    %v5198 = vunpack.c.l.b16 %v4319
    %v5199 = vunpack.c.h.b16 %v4319
    %v5200 = vunpack.c.l.b16 %v4320
    %v5201 = vunpack.c.h.b16 %v4320
    %v5202 = vunpack.c.l.b16 %v4321
    %v5203 = vunpack.c.h.b16 %v4321
    %v5204 = vunpack.c.l.b16 %v4322
    %v5205 = vunpack.c.h.b16 %v4322
    %v5206 = vunpack.c.l.b16 %v4323
    %v5207 = vunpack.c.h.b16 %v4323
    %v5208 = vunpack.c.l.b16 %v4324
    %v5209 = vunpack.c.h.b16 %v4324
    %v5210 = vunpack.c.l.b16 %v4325
    %v5211 = vunpack.c.h.b16 %v4325
    %v5212 = vunpack.c.l.b16 %v4326
    %v5213 = vunpack.c.h.b16 %v4326
    %v5214 = vunpack.c.l.b16 %v4327
    %v5215 = vunpack.c.h.b16 %v4327
    %v5216 = vunpack.c.l.b16 %v4328
    %v5217 = vunpack.c.h.b16 %v4328
    %v5218 = vunpack.c.l.b16 %v4329
    %v5219 = vunpack.c.h.b16 %v4329
    %v5220 = vunpack.c.l.b16 %v4330
    %v5221 = vunpack.c.h.b16 %v4330
    %v5222 = vunpack.c.l.b16 %v4331
    %v5223 = vunpack.c.h.b16 %v4331
    %v5224 = vunpack.c.l.b16 %v4332
    %v5225 = vunpack.c.h.b16 %v4332
    %v5226 = vunpack.c.l.b16 %v4333
    %v5227 = vunpack.c.h.b16 %v4333
    %v5228 = vunpack.c.l.b16 %v4334
    %v5229 = vunpack.c.h.b16 %v4334
    %v5230 = vunpack.c.l.b16 %v4335
    %v5231 = vunpack.c.h.b16 %v4335
    %v5232 = vpack.c.b16 %v4662, %v4656
    %v5233 = vpack.c.b16 %v4663, %v4657
    %v5234 = vpack.c.b16 %v4664, %v4658
    %v5235 = vpack.c.b16 %v4665, %v4659
    %v5236 = vpack.c.b16 %v4666, %v4660
    %v5237 = vpack.c.b16 %v4667, %v4661
    %v5238 = vpack.c.b16 %v4674, %v4668
    %v5239 = vpack.c.b16 %v4675, %v4669
    %v5240 = vpack.c.b16 %v4676, %v4670
    %v5241 = vpack.c.b16 %v4677, %v4671
    %v5242 = vpack.c.b16 %v4678, %v4672
    %v5243 = vpack.c.b16 %v4679, %v4673
    %v5244 = vpack.c.b16 %v4686, %v4680
    %v5245 = vpack.c.b16 %v4687, %v4681
    %v5246 = vpack.c.b16 %v4688, %v4682
    %v5247 = vpack.c.b16 %v4689, %v4683
    %v5248 = vpack.c.b16 %v4690, %v4684
    %v5249 = vpack.c.b16 %v4691, %v4685
    %v5250 = vpack.c.b16 %v4698, %v4692
    %v5251 = vpack.c.b16 %v4699, %v4693
    %v5252 = vpack.c.b16 %v4700, %v4694
    %v5253 = vpack.c.b16 %v4701, %v4695
    %v5254 = vpack.c.b16 %v4702, %v4696
    %v5255 = vpack.c.b16 %v4703, %v4697
    %v5256 = vpack.c.b16 %v4710, %v4704
    %v5257 = vpack.c.b16 %v4711, %v4705
    %v5258 = vpack.c.b16 %v4712, %v4706
    %v5259 = vpack.c.b16 %v4713, %v4707
    %v5260 = vpack.c.b16 %v4714, %v4708
    %v5261 = vpack.c.b16 %v4715, %v4709
    %v5262 = vpack.c.b16 %v4722, %v4716
    %v5263 = vpack.c.b16 %v4723, %v4717
    %v5264 = vpack.c.b16 %v4724, %v4718
    %v5265 = vpack.c.b16 %v4725, %v4719
    %v5266 = vpack.c.b16 %v4726, %v4720
    %v5267 = vpack.c.b16 %v4727, %v4721
    %v5268 = vpack.c.b16 %v4734, %v4728
    %v5269 = vpack.c.b16 %v4735, %v4729
    %v5270 = vpack.c.b16 %v4736, %v4730
    %v5271 = vpack.c.b16 %v4737, %v4731
    %v5272 = vpack.c.b16 %v4738, %v4732
    %v5273 = vpack.c.b16 %v4739, %v4733
    %v5274 = vpack.c.b16 %v4746, %v4740
    %v5275 = vpack.c.b16 %v4747, %v4741
    %v5276 = vpack.c.b16 %v4748, %v4742
    %v5277 = vpack.c.b16 %v4749, %v4743
    %v5278 = vpack.c.b16 %v4750, %v4744
    %v5279 = vpack.c.b16 %v4751, %v4745
    %v5280 = vpack.c.b16 %v4758, %v4752
    %v5281 = vpack.c.b16 %v4759, %v4753
    %v5282 = vpack.c.b16 %v4760, %v4754
    %v5283 = vpack.c.b16 %v4761, %v4755
    %v5284 = vpack.c.b16 %v4762, %v4756
    %v5285 = vpack.c.b16 %v4763, %v4757
    %v5286 = vpack.c.b16 %v4770, %v4764
    %v5287 = vpack.c.b16 %v4771, %v4765
    %v5288 = vpack.c.b16 %v4772, %v4766
    %v5289 = vpack.c.b16 %v4773, %v4767
    %v5290 = vpack.c.b16 %v4774, %v4768
    %v5291 = vpack.c.b16 %v4775, %v4769
    %v5292 = vpack.c.b16 %v4782, %v4776
    %v5293 = vpack.c.b16 %v4783, %v4777
    %v5294 = vpack.c.b16 %v4784, %v4778
    %v5295 = vpack.c.b16 %v4785, %v4779
    %v5296 = vpack.c.b16 %v4786, %v4780
    %v5297 = vpack.c.b16 %v4787, %v4781
    %v5298 = vpack.c.b16 %v4794, %v4788
    %v5299 = vpack.c.b16 %v4795, %v4789
    %v5300 = vpack.c.b16 %v4796, %v4790
    %v5301 = vpack.c.b16 %v4797, %v4791
    %v5302 = vpack.c.b16 %v4798, %v4792
    %v5303 = vpack.c.b16 %v4799, %v4793
    %v5304 = vpack.c.b16 %v4806, %v4800
    %v5305 = vpack.c.b16 %v4807, %v4801
    %v5306 = vpack.c.b16 %v4808, %v4802
    %v5307 = vpack.c.b16 %v4809, %v4803
    %v5308 = vpack.c.b16 %v4810, %v4804
    %v5309 = vpack.c.b16 %v4811, %v4805
    %v5310 = vpack.c.b16 %v4818, %v4812
    %v5311 = vpack.c.b16 %v4819, %v4813
    %v5312 = vpack.c.b16 %v4820, %v4814
    %v5313 = vpack.c.b16 %v4821, %v4815
    %v5314 = vpack.c.b16 %v4822, %v4816
    %v5315 = vpack.c.b16 %v4823, %v4817
    %v5316 = vpack.c.b16 %v4830, %v4824
    %v5317 = vpack.c.b16 %v4831, %v4825
    %v5318 = vpack.c.b16 %v4832, %v4826
    %v5319 = vpack.c.b16 %v4833, %v4827
    %v5320 = vpack.c.b16 %v4834, %v4828
    %v5321 = vpack.c.b16 %v4835, %v4829
    %v5322 = vpack.c.b16 %v4842, %v4836
    %v5323 = vpack.c.b16 %v4843, %v4837
    %v5324 = vpack.c.b16 %v4844, %v4838
    %v5325 = vpack.c.b16 %v4845, %v4839
    %v5326 = vpack.c.b16 %v4846, %v4840
    %v5327 = vpack.c.b16 %v4847, %v4841
    %v5328 = vpack.c.b16 %v4854, %v4848
    %v5329 = vpack.c.b16 %v4855, %v4849
    %v5330 = vpack.c.b16 %v4856, %v4850
    %v5331 = vpack.c.b16 %v4857, %v4851
    %v5332 = vpack.c.b16 %v4858, %v4852
    %v5333 = vpack.c.b16 %v4859, %v4853
    %v5334 = vpack.c.b16 %v4866, %v4860
    %v5335 = vpack.c.b16 %v4867, %v4861
    %v5336 = vpack.c.b16 %v4868, %v4862
    %v5337 = vpack.c.b16 %v4869, %v4863
    %v5338 = vpack.c.b16 %v4870, %v4864
    %v5339 = vpack.c.b16 %v4871, %v4865
    %v5340 = vpack.c.b16 %v4878, %v4872
    %v5341 = vpack.c.b16 %v4879, %v4873
    %v5342 = vpack.c.b16 %v4880, %v4874
    %v5343 = vpack.c.b16 %v4881, %v4875
    %v5344 = vpack.c.b16 %v4882, %v4876
    %v5345 = vpack.c.b16 %v4883, %v4877
    %v5346 = vpack.c.b16 %v4890, %v4884
    %v5347 = vpack.c.b16 %v4891, %v4885
    %v5348 = vpack.c.b16 %v4892, %v4886
    %v5349 = vpack.c.b16 %v4893, %v4887
    %v5350 = vpack.c.b16 %v4894, %v4888
    %v5351 = vpack.c.b16 %v4895, %v4889
    %v5352 = vpack.c.b16 %v4902, %v4896
    %v5353 = vpack.c.b16 %v4903, %v4897
    %v5354 = vpack.c.b16 %v4904, %v4898
    %v5355 = vpack.c.b16 %v4905, %v4899
    %v5356 = vpack.c.b16 %v4906, %v4900
    %v5357 = vpack.c.b16 %v4907, %v4901
    %v5358 = vpack.c.b16 %v4914, %v4908
    %v5359 = vpack.c.b16 %v4915, %v4909
    %v5360 = vpack.c.b16 %v4916, %v4910
    %v5361 = vpack.c.b16 %v4917, %v4911
    %v5362 = vpack.c.b16 %v4918, %v4912
    %v5363 = vpack.c.b16 %v4919, %v4913
    %v5364 = vpack.c.b16 %v4926, %v4920
    %v5365 = vpack.c.b16 %v4927, %v4921
    %v5366 = vpack.c.b16 %v4928, %v4922
    %v5367 = vpack.c.b16 %v4929, %v4923
    %v5368 = vpack.c.b16 %v4930, %v4924
    %v5369 = vpack.c.b16 %v4931, %v4925
    %v5370 = vpack.c.b16 %v4938, %v4932
    %v5371 = vpack.c.b16 %v4939, %v4933
    %v5372 = vpack.c.b16 %v4940, %v4934
    %v5373 = vpack.c.b16 %v4941, %v4935
    %v5374 = vpack.c.b16 %v4942, %v4936
    %v5375 = vpack.c.b16 %v4943, %v4937
    %v5376 = vpack.c.b16 %v4950, %v4944
    %v5377 = vpack.c.b16 %v4951, %v4945
    %v5378 = vpack.c.b16 %v4952, %v4946
    %v5379 = vpack.c.b16 %v4953, %v4947
    %v5380 = vpack.c.b16 %v4954, %v4948
    %v5381 = vpack.c.b16 %v4955, %v4949
    %v5382 = vpack.c.b16 %v4962, %v4956
    %v5383 = vpack.c.b16 %v4963, %v4957
    %v5384 = vpack.c.b16 %v4964, %v4958
    %v5385 = vpack.c.b16 %v4965, %v4959
    %v5386 = vpack.c.b16 %v4966, %v4960
    %v5387 = vpack.c.b16 %v4967, %v4961
    %v5388 = vpack.c.b16 %v4974, %v4968
    %v5389 = vpack.c.b16 %v4975, %v4969
    %v5390 = vpack.c.b16 %v4976, %v4970
    %v5391 = vpack.c.b16 %v4977, %v4971
    %v5392 = vpack.c.b16 %v4978, %v4972
    %v5393 = vpack.c.b16 %v4979, %v4973
    %v5394 = vpack.c.b16 %v4986, %v4980
    %v5395 = vpack.c.b16 %v4987, %v4981
    %v5396 = vpack.c.b16 %v4988, %v4982
    %v5397 = vpack.c.b16 %v4989, %v4983
    %v5398 = vpack.c.b16 %v4990, %v4984
    %v5399 = vpack.c.b16 %v4991, %v4985
    %v5400 = vpack.c.b16 %v4998, %v4992
    %v5401 = vpack.c.b16 %v4999, %v4993
    %v5402 = vpack.c.b16 %v5000, %v4994
    %v5403 = vpack.c.b16 %v5001, %v4995
    %v5404 = vpack.c.b16 %v5002, %v4996
    %v5405 = vpack.c.b16 %v5003, %v4997
    %v5406 = vpack.c.b16 %v5010, %v5004
    %v5407 = vpack.c.b16 %v5011, %v5005
    %v5408 = vpack.c.b16 %v5012, %v5006
    %v5409 = vpack.c.b16 %v5013, %v5007
    %v5410 = vpack.c.b16 %v5014, %v5008
    %v5411 = vpack.c.b16 %v5015, %v5009
    %v5412 = vpack.c.b16 %v5022, %v5016
    %v5413 = vpack.c.b16 %v5023, %v5017
    %v5414 = vpack.c.b16 %v5024, %v5018
    %v5415 = vpack.c.b16 %v5025, %v5019
    %v5416 = vpack.c.b16 %v5026, %v5020
    %v5417 = vpack.c.b16 %v5027, %v5021
    %v5418 = vpack.c.b16 %v5034, %v5028
    %v5419 = vpack.c.b16 %v5035, %v5029
    %v5420 = vpack.c.b16 %v5036, %v5030
    %v5421 = vpack.c.b16 %v5037, %v5031
    %v5422 = vpack.c.b16 %v5038, %v5032
    %v5423 = vpack.c.b16 %v5039, %v5033
    %v5424 = vpack.c.b16 %v5046, %v5040
    %v5425 = vpack.c.b16 %v5047, %v5041
    %v5426 = vpack.c.b16 %v5048, %v5042
    %v5427 = vpack.c.b16 %v5049, %v5043
    %v5428 = vpack.c.b16 %v5050, %v5044
    %v5429 = vpack.c.b16 %v5051, %v5045
    %v5430 = vpack.c.b16 %v5058, %v5052
    %v5431 = vpack.c.b16 %v5059, %v5053
    %v5432 = vpack.c.b16 %v5060, %v5054
    %v5433 = vpack.c.b16 %v5061, %v5055
    %v5434 = vpack.c.b16 %v5062, %v5056
    %v5435 = vpack.c.b16 %v5063, %v5057
    %v5436 = vpack.c.b16 %v5070, %v5064
    %v5437 = vpack.c.b16 %v5071, %v5065
    %v5438 = vpack.c.b16 %v5072, %v5066
    %v5439 = vpack.c.b16 %v5073, %v5067
    %v5440 = vpack.c.b16 %v5074, %v5068
    %v5441 = vpack.c.b16 %v5075, %v5069
    %v5442 = vpack.c.b16 %v5082, %v5076
    %v5443 = vpack.c.b16 %v5083, %v5077
    %v5444 = vpack.c.b16 %v5084, %v5078
    %v5445 = vpack.c.b16 %v5085, %v5079
    %v5446 = vpack.c.b16 %v5086, %v5080
    %v5447 = vpack.c.b16 %v5087, %v5081
    %v5448 = vpack.c.b16 %v5094, %v5088
    %v5449 = vpack.c.b16 %v5095, %v5089
    %v5450 = vpack.c.b16 %v5096, %v5090
    %v5451 = vpack.c.b16 %v5097, %v5091
    %v5452 = vpack.c.b16 %v5098, %v5092
    %v5453 = vpack.c.b16 %v5099, %v5093
    %v5454 = vpack.c.b16 %v5106, %v5100
    %v5455 = vpack.c.b16 %v5107, %v5101
    %v5456 = vpack.c.b16 %v5108, %v5102
    %v5457 = vpack.c.b16 %v5109, %v5103
    %v5458 = vpack.c.b16 %v5110, %v5104
    %v5459 = vpack.c.b16 %v5111, %v5105
    %v5460 = vpack.c.b16 %v5118, %v5112
    %v5461 = vpack.c.b16 %v5119, %v5113
    %v5462 = vpack.c.b16 %v5120, %v5114
    %v5463 = vpack.c.b16 %v5121, %v5115
    %v5464 = vpack.c.b16 %v5122, %v5116
    %v5465 = vpack.c.b16 %v5123, %v5117
    %v5466 = vpack.c.b16 %v5130, %v5124
    %v5467 = vpack.c.b16 %v5131, %v5125
    %v5468 = vpack.c.b16 %v5132, %v5126
    %v5469 = vpack.c.b16 %v5133, %v5127
    %v5470 = vpack.c.b16 %v5134, %v5128
    %v5471 = vpack.c.b16 %v5135, %v5129
    %v5472 = vpack.c.b16 %v5142, %v5136
    %v5473 = vpack.c.b16 %v5143, %v5137
    %v5474 = vpack.c.b16 %v5144, %v5138
    %v5475 = vpack.c.b16 %v5145, %v5139
    %v5476 = vpack.c.b16 %v5146, %v5140
    %v5477 = vpack.c.b16 %v5147, %v5141
    %v5478 = vpack.c.b16 %v5154, %v5148
    %v5479 = vpack.c.b16 %v5155, %v5149
    %v5480 = vpack.c.b16 %v5156, %v5150
    %v5481 = vpack.c.b16 %v5157, %v5151
    %v5482 = vpack.c.b16 %v5158, %v5152
    %v5483 = vpack.c.b16 %v5159, %v5153
    %v5484 = vpack.c.b16 %v5166, %v5160
    %v5485 = vpack.c.b16 %v5167, %v5161
    %v5486 = vpack.c.b16 %v5168, %v5162
    %v5487 = vpack.c.b16 %v5169, %v5163
    %v5488 = vpack.c.b16 %v5170, %v5164
    %v5489 = vpack.c.b16 %v5171, %v5165
    %v5490 = vpack.c.b16 %v5178, %v5172
    %v5491 = vpack.c.b16 %v5179, %v5173
    %v5492 = vpack.c.b16 %v5180, %v5174
    %v5493 = vpack.c.b16 %v5181, %v5175
    %v5494 = vpack.c.b16 %v5182, %v5176
    %v5495 = vpack.c.b16 %v5183, %v5177
    %v5496 = vpack.c.b16 %v5190, %v5184
    %v5497 = vpack.c.b16 %v5191, %v5185
    %v5498 = vpack.c.b16 %v5192, %v5186
    %v5499 = vpack.c.b16 %v5193, %v5187
    %v5500 = vpack.c.b16 %v5194, %v5188
    %v5501 = vpack.c.b16 %v5195, %v5189
    %v5502 = vpack.c.b16 %v5202, %v5196
    %v5503 = vpack.c.b16 %v5203, %v5197
    %v5504 = vpack.c.b16 %v5204, %v5198
    %v5505 = vpack.c.b16 %v5205, %v5199
    %v5506 = vpack.c.b16 %v5206, %v5200
    %v5507 = vpack.c.b16 %v5207, %v5201
    %v5508 = vpack.c.b16 %v5214, %v5208
    %v5509 = vpack.c.b16 %v5215, %v5209
    %v5510 = vpack.c.b16 %v5216, %v5210
    %v5511 = vpack.c.b16 %v5217, %v5211
    %v5512 = vpack.c.b16 %v5218, %v5212
    %v5513 = vpack.c.b16 %v5219, %v5213
    %v5514 = vpack.c.b16 %v5226, %v5220
    %v5515 = vpack.c.b16 %v5227, %v5221
    %v5516 = vpack.c.b16 %v5228, %v5222
    %v5517 = vpack.c.b16 %v5229, %v5223
    %v5518 = vpack.c.b16 %v5230, %v5224
    %v5519 = vpack.c.b16 %v5231, %v5225
    %5808 = vmatprep.subr.bf16.mxu0 %v5233
    %5809 = vmatpush1.bf16.msra.mxu0 %v5232
    %5810 = vmatprep.subr.bf16.mxu0 %v5239
    %5811 = vmatpush1.bf16.msra.mxu0 %v5238
    %5812 = vmatprep.subr.bf16.mxu0 %v5245
    %5813 = vmatpush1.bf16.msra.mxu0 %v5244
    %5814 = vmatprep.subr.bf16.mxu0 %v5251
    %5815 = vmatpush1.bf16.msra.mxu0 %v5250
    %5816 = vmatprep.subr.bf16.mxu0 %v5257
    %5817 = vmatpush1.bf16.msra.mxu0 %v5256
    %5818 = vmatprep.subr.bf16.mxu0 %v5263
    %5819 = vmatpush1.bf16.msra.mxu0 %v5262
    %5820 = vmatprep.subr.bf16.mxu0 %v5269
    %5821 = vmatpush1.bf16.msra.mxu0 %v5268
    %5822 = vmatprep.subr.bf16.mxu0 %v5275
    %5823 = vmatpush1.bf16.msra.mxu0 %v5274
    %5824 = vmatprep.subr.bf16.mxu0 %v5281
    %5825 = vmatpush1.bf16.msra.mxu0 %v5280
    %5826 = vmatprep.subr.bf16.mxu0 %v5287
    %5827 = vmatpush1.bf16.msra.mxu0 %v5286
    %5828 = vmatprep.subr.bf16.mxu0 %v5293
    %5829 = vmatpush1.bf16.msra.mxu0 %v5292
    %5830 = vmatprep.subr.bf16.mxu0 %v5299
    %5831 = vmatpush1.bf16.msra.mxu0 %v5298
    %5832 = vmatprep.subr.bf16.mxu0 %v5305
    %5833 = vmatpush1.bf16.msra.mxu0 %v5304
    %5834 = vmatprep.subr.bf16.mxu0 %v5311
    %5835 = vmatpush1.bf16.msra.mxu0 %v5310
    %5836 = vmatprep.subr.bf16.mxu0 %v5317
    %5837 = vmatpush1.bf16.msra.mxu0 %v5316
    %5838 = vmatprep.subr.bf16.mxu0 %v5323
    %5839 = vmatpush1.bf16.msra.mxu0 %v5322
    %5840 = vmatprep.mubr.bf16.mxu0 %v4001
    %5841 = vmatmul.mubr.bf16.gmra.mrb[0].mxu0 %v4000
    %v5842 = vpop.f32.mrb[0].mxu0
    %v5843 = vadd.f32 %v4341, %v5842
    %v5844 = vpop.f32.mrb[0].mxu0
    %v5845 = vadd.f32 %v4345, %v5844
    %v5846 = vpop.f32.mrb[0].mxu0
    %v5847 = vadd.f32 %v4341, %v5846
    %v5848 = vpop.f32.mrb[0].mxu0
    %v5849 = vadd.f32 %v4345, %v5848
    %5850 = vmatprep.mubr.bf16.mxu0 %v4007
    %5851 = vmatmul.mubr.bf16.gmra.mrb[0].mxu0 %v4006
    %v5852 = vpop.f32.mrb[0].mxu0
    %v5853 = vadd.f32 %v4341, %v5852
    %v5854 = vpop.f32.mrb[0].mxu0
    %v5855 = vadd.f32 %v4345, %v5854
    %v5856 = vpop.f32.mrb[0].mxu0
    %v5857 = vadd.f32 %v4341, %v5856
    %v5858 = vpop.f32.mrb[0].mxu0
    %v5859 = vadd.f32 %v4345, %v5858
    %5860 = vmatprep.mubr.bf16.mxu0 %v4013
    %5861 = vmatmul.mubr.bf16.gmra.mrb[0].mxu0 %v4012
    %v5862 = vpop.f32.mrb[0].mxu0
    %v5863 = vadd.f32 %v4341, %v5862
    %v5864 = vpop.f32.mrb[0].mxu0
    %v5865 = vadd.f32 %v4345, %v5864
    %v5866 = vpop.f32.mrb[0].mxu0
    %v5867 = vadd.f32 %v4341, %v5866
    %v5868 = vpop.f32.mrb[0].mxu0
    %v5869 = vadd.f32 %v4345, %v5868
    %5870 = vmatprep.mubr.bf16.mxu0 %v4019
    %5871 = vmatmul.mubr.bf16.gmra.mrb[0].mxu0 %v4018
    %v5872 = vpop.f32.mrb[0].mxu0
    %v5873 = vadd.f32 %v4341, %v5872
    %v5874 = vpop.f32.mrb[0].mxu0
    %v5875 = vadd.f32 %v4345, %v5874
    %v5876 = vpop.f32.mrb[0].mxu0
    %v5877 = vadd.f32 %v4341, %v5876
    %v5878 = vpop.f32.mrb[0].mxu0
    %v5879 = vadd.f32 %v4345, %v5878
    %5880 = vmatprep.mubr.bf16.mxu0 %v4025
    %5881 = vmatmul.mubr.bf16.gmra.mrb[0].mxu0 %v4024
    %v5882 = vpop.f32.mrb[0].mxu0
    %v5883 = vadd.f32 %v4341, %v5882
    %v5884 = vpop.f32.mrb[0].mxu0
    %v5885 = vadd.f32 %v4345, %v5884
    %v5886 = vpop.f32.mrb[0].mxu0
    %v5887 = vadd.f32 %v4341, %v5886
    %v5888 = vpop.f32.mrb[0].mxu0
    %v5889 = vadd.f32 %v4345, %v5888
    %5890 = vmatprep.mubr.bf16.mxu0 %v4031
    %5891 = vmatmul.mubr.bf16.gmra.mrb[0].mxu0 %v4030
    %v5892 = vpop.f32.mrb[0].mxu0
    %v5893 = vadd.f32 %v4341, %v5892
    %v5894 = vpop.f32.mrb[0].mxu0
    %v5895 = vadd.f32 %v4345, %v5894
    %v5896 = vpop.f32.mrb[0].mxu0
    %v5897 = vadd.f32 %v4341, %v5896
    %v5898 = vpop.f32.mrb[0].mxu0
    %v5899 = vadd.f32 %v4345, %v5898
    %5900 = vmatprep.mubr.bf16.mxu0 %v4037
    %5901 = vmatmul.mubr.bf16.gmra.mrb[0].mxu0 %v4036
    %v5902 = vpop.f32.mrb[0].mxu0
    %v5903 = vadd.f32 %v4341, %v5902
    %v5904 = vpop.f32.mrb[0].mxu0
    %v5905 = vadd.f32 %v4345, %v5904
    %v5906 = vpop.f32.mrb[0].mxu0
    %v5907 = vadd.f32 %v4341, %v5906
    %v5908 = vpop.f32.mrb[0].mxu0
    %v5909 = vadd.f32 %v4345, %v5908
    %5910 = vmatprep.mubr.bf16.mxu0 %v4043
    %5911 = vmatmul.mubr.bf16.gmra.mrb[0].mxu0 %v4042
    %v5912 = vpop.f32.mrb[0].mxu0
    %v5913 = vadd.f32 %v4341, %v5912
    %v5914 = vpop.f32.mrb[0].mxu0
    %v5915 = vadd.f32 %v4345, %v5914
    %v5916 = vpop.f32.mrb[0].mxu0
    %v5917 = vadd.f32 %v4341, %v5916
    %v5918 = vpop.f32.mrb[0].mxu0
    %v5919 = vadd.f32 %v4345, %v5918
    %5920 = vdwg.mxu0
    %5921 = vmatprep.subr.bf16.mxu0 %v5329
    %5922 = vmatpush1.bf16.msra.mxu0 %v5328
    %5923 = vmatprep.subr.bf16.mxu0 %v5335
    %5924 = vmatpush1.bf16.msra.mxu0 %v5334
    %5925 = vmatprep.subr.bf16.mxu0 %v5341
    %5926 = vmatpush1.bf16.msra.mxu0 %v5340
    %5927 = vmatprep.subr.bf16.mxu0 %v5347
    %5928 = vmatpush1.bf16.msra.mxu0 %v5346
    %5929 = vmatprep.subr.bf16.mxu0 %v5353
    %5930 = vmatpush1.bf16.msra.mxu0 %v5352
    %5931 = vmatprep.subr.bf16.mxu0 %v5359
    %5932 = vmatpush1.bf16.msra.mxu0 %v5358
    %5933 = vmatprep.subr.bf16.mxu0 %v5365
    %5934 = vmatpush1.bf16.msra.mxu0 %v5364
    %5935 = vmatprep.subr.bf16.mxu0 %v5371
    %5936 = vmatpush1.bf16.msra.mxu0 %v5370
    %5937 = vmatprep.subr.bf16.mxu0 %v5377
    %5938 = vmatpush1.bf16.msra.mxu0 %v5376
    %5939 = vmatprep.subr.bf16.mxu0 %v5383
    %5940 = vmatpush1.bf16.msra.mxu0 %v5382
    %5941 = vmatprep.subr.bf16.mxu0 %v5389
    %5942 = vmatpush1.bf16.msra.mxu0 %v5388
    %5943 = vmatprep.subr.bf16.mxu0 %v5395
    %5944 = vmatpush1.bf16.msra.mxu0 %v5394
    %5945 = vmatprep.subr.bf16.mxu0 %v5401
    %5946 = vmatpush1.bf16.msra.mxu0 %v5400
    %5947 = vmatprep.subr.bf16.mxu0 %v5407
    %5948 = vmatpush1.bf16.msra.mxu0 %v5406
    %5949 = vmatprep.subr.bf16.mxu0 %v5413
    %5950 = vmatpush1.bf16.msra.mxu0 %v5412
    %5951 = vmatprep.subr.bf16.mxu0 %v5419
    %5952 = vmatpush1.bf16.msra.mxu0 %v5418
    %5953 = vmatprep.mubr.bf16.mxu0 %v4003
    %5954 = vmatmul.mubr.bf16.gmra.mrb[0].mxu0 %v4002
    %v5955 = vpop.f32.mrb[0].mxu0
    %v5956 = vadd.f32 %v5843, %v5955
    %v5957 = vpop.f32.mrb[0].mxu0
    %v5958 = vadd.f32 %v5845, %v5957
    %v5959 = vpop.f32.mrb[0].mxu0
    %v5960 = vadd.f32 %v5847, %v5959
    %v5961 = vpop.f32.mrb[0].mxu0
    %v5962 = vadd.f32 %v5849, %v5961
    %5963 = vmatprep.mubr.bf16.mxu0 %v4009
    %5964 = vmatmul.mubr.bf16.gmra.mrb[0].mxu0 %v4008
    %v5965 = vpop.f32.mrb[0].mxu0
    %v5966 = vadd.f32 %v5853, %v5965
    %v5967 = vpop.f32.mrb[0].mxu0
    %v5968 = vadd.f32 %v5855, %v5967
    %v5969 = vpop.f32.mrb[0].mxu0
    %v5970 = vadd.f32 %v5857, %v5969
    %v5971 = vpop.f32.mrb[0].mxu0
    %v5972 = vadd.f32 %v5859, %v5971
    %5973 = vmatprep.mubr.bf16.mxu0 %v4015
    %5974 = vmatmul.mubr.bf16.gmra.mrb[0].mxu0 %v4014
    %v5975 = vpop.f32.mrb[0].mxu0
    %v5976 = vadd.f32 %v5863, %v5975
    %v5977 = vpop.f32.mrb[0].mxu0
    %v5978 = vadd.f32 %v5865, %v5977
    %v5979 = vpop.f32.mrb[0].mxu0
    %v5980 = vadd.f32 %v5867, %v5979
    %v5981 = vpop.f32.mrb[0].mxu0
    %v5982 = vadd.f32 %v5869, %v5981
    %5983 = vmatprep.mubr.bf16.mxu0 %v4021
    %5984 = vmatmul.mubr.bf16.gmra.mrb[0].mxu0 %v4020
    %v5985 = vpop.f32.mrb[0].mxu0
    %v5986 = vadd.f32 %v5873, %v5985
    %v5987 = vpop.f32.mrb[0].mxu0
    %v5988 = vadd.f32 %v5875, %v5987
    %v5989 = vpop.f32.mrb[0].mxu0
    %v5990 = vadd.f32 %v5877, %v5989
    %v5991 = vpop.f32.mrb[0].mxu0
    %v5992 = vadd.f32 %v5879, %v5991
    %5993 = vmatprep.mubr.bf16.mxu0 %v4027
    %5994 = vmatmul.mubr.bf16.gmra.mrb[0].mxu0 %v4026
    %v5995 = vpop.f32.mrb[0].mxu0
    %v5996 = vadd.f32 %v5883, %v5995
    %v5997 = vpop.f32.mrb[0].mxu0
    %v5998 = vadd.f32 %v5885, %v5997
    %v5999 = vpop.f32.mrb[0].mxu0
    %v6000 = vadd.f32 %v5887, %v5999
    %v6001 = vpop.f32.mrb[0].mxu0
    %v6002 = vadd.f32 %v5889, %v6001
    %6003 = vmatprep.mubr.bf16.mxu0 %v4033
    %6004 = vmatmul.mubr.bf16.gmra.mrb[0].mxu0 %v4032
    %v6005 = vpop.f32.mrb[0].mxu0
    %v6006 = vadd.f32 %v5893, %v6005
    %v6007 = vpop.f32.mrb[0].mxu0
    %v6008 = vadd.f32 %v5895, %v6007
    %v6009 = vpop.f32.mrb[0].mxu0
    %v6010 = vadd.f32 %v5897, %v6009
    %v6011 = vpop.f32.mrb[0].mxu0
    %v6012 = vadd.f32 %v5899, %v6011
    %6013 = vmatprep.mubr.bf16.mxu0 %v4039
    %6014 = vmatmul.mubr.bf16.gmra.mrb[0].mxu0 %v4038
    %v6015 = vpop.f32.mrb[0].mxu0
    %v6016 = vadd.f32 %v5903, %v6015
    %v6017 = vpop.f32.mrb[0].mxu0
    %v6018 = vadd.f32 %v5905, %v6017
    %v6019 = vpop.f32.mrb[0].mxu0
    %v6020 = vadd.f32 %v5907, %v6019
    %v6021 = vpop.f32.mrb[0].mxu0
    %v6022 = vadd.f32 %v5909, %v6021
    %6023 = vmatprep.mubr.bf16.mxu0 %v4045
    %6024 = vmatmul.mubr.bf16.gmra.mrb[0].mxu0 %v4044
    %v6025 = vpop.f32.mrb[0].mxu0
    %v6026 = vadd.f32 %v5913, %v6025
    %v6027 = vpop.f32.mrb[0].mxu0
    %v6028 = vadd.f32 %v5915, %v6027
    %v6029 = vpop.f32.mrb[0].mxu0
    %v6030 = vadd.f32 %v5917, %v6029
    %v6031 = vpop.f32.mrb[0].mxu0
    %v6032 = vadd.f32 %v5919, %v6031
    %6033 = vdwg.mxu0
    %6034 = vmatprep.subr.bf16.mxu0 %v5425
    %6035 = vmatpush1.bf16.msra.mxu0 %v5424
    %6036 = vmatprep.subr.bf16.mxu0 %v5431
    %6037 = vmatpush1.bf16.msra.mxu0 %v5430
    %6038 = vmatprep.subr.bf16.mxu0 %v5437
    %6039 = vmatpush1.bf16.msra.mxu0 %v5436
    %6040 = vmatprep.subr.bf16.mxu0 %v5443
    %6041 = vmatpush1.bf16.msra.mxu0 %v5442
    %6042 = vmatprep.subr.bf16.mxu0 %v5449
    %6043 = vmatpush1.bf16.msra.mxu0 %v5448
    %6044 = vmatprep.subr.bf16.mxu0 %v5455
    %6045 = vmatpush1.bf16.msra.mxu0 %v5454
    %6046 = vmatprep.subr.bf16.mxu0 %v5461
    %6047 = vmatpush1.bf16.msra.mxu0 %v5460
    %6048 = vmatprep.subr.bf16.mxu0 %v5467
    %6049 = vmatpush1.bf16.msra.mxu0 %v5466
    %6050 = vmatprep.subr.bf16.mxu0 %v5473
    %6051 = vmatpush1.bf16.msra.mxu0 %v5472
    %6052 = vmatprep.subr.bf16.mxu0 %v5479
    %6053 = vmatpush1.bf16.msra.mxu0 %v5478
    %6054 = vmatprep.subr.bf16.mxu0 %v5485
    %6055 = vmatpush1.bf16.msra.mxu0 %v5484
    %6056 = vmatprep.subr.bf16.mxu0 %v5491
    %6057 = vmatpush1.bf16.msra.mxu0 %v5490
    %6058 = vmatprep.subr.bf16.mxu0 %v5497
    %6059 = vmatpush1.bf16.msra.mxu0 %v5496
    %6060 = vmatprep.subr.bf16.mxu0 %v5503
    %6061 = vmatpush1.bf16.msra.mxu0 %v5502
    %6062 = vmatprep.subr.bf16.mxu0 %v5509
    %6063 = vmatpush1.bf16.msra.mxu0 %v5508
    %6064 = vmatprep.subr.bf16.mxu0 %v5515
    %6065 = vmatpush1.bf16.msra.mxu0 %v5514
    %6066 = vmatprep.mubr.bf16.mxu0 %v4005
    %6067 = vmatmul.mubr.bf16.gmra.mrb[0].mxu0 %v4004
    %v6068 = vpop.f32.mrb[0].mxu0
    %v6069 = vadd.f32 %v5956, %v6068
    %v6070 = vpop.f32.mrb[0].mxu0
    %v6071 = vadd.f32 %v5958, %v6070
    %v6072 = vpop.f32.mrb[0].mxu0
    %v6073 = vadd.f32 %v5960, %v6072
    %v6074 = vpop.f32.mrb[0].mxu0
    %v6075 = vadd.f32 %v5962, %v6074
    %6076 = vmatprep.mubr.bf16.mxu0 %v4011
    %6077 = vmatmul.mubr.bf16.gmra.mrb[0].mxu0 %v4010
    %v6078 = vpop.f32.mrb[0].mxu0
    %v6079 = vadd.f32 %v5966, %v6078
    %v6080 = vpop.f32.mrb[0].mxu0
    %v6081 = vadd.f32 %v5968, %v6080
    %v6082 = vpop.f32.mrb[0].mxu0
    %v6083 = vadd.f32 %v5970, %v6082
    %v6084 = vpop.f32.mrb[0].mxu0
    %v6085 = vadd.f32 %v5972, %v6084
    %6086 = vmatprep.mubr.bf16.mxu0 %v4017
    %6087 = vmatmul.mubr.bf16.gmra.mrb[0].mxu0 %v4016
    %v6088 = vpop.f32.mrb[0].mxu0
    %v6089 = vadd.f32 %v5976, %v6088
    %v6090 = vpop.f32.mrb[0].mxu0
    %v6091 = vadd.f32 %v5978, %v6090
    %v6092 = vpop.f32.mrb[0].mxu0
    %v6093 = vadd.f32 %v5980, %v6092
    %v6094 = vpop.f32.mrb[0].mxu0
    %v6095 = vadd.f32 %v5982, %v6094
    %6096 = vmatprep.mubr.bf16.mxu0 %v4023
    %6097 = vmatmul.mubr.bf16.gmra.mrb[0].mxu0 %v4022
    %v6098 = vpop.f32.mrb[0].mxu0
    %v6099 = vadd.f32 %v5986, %v6098
    %v6100 = vpop.f32.mrb[0].mxu0
    %v6101 = vadd.f32 %v5988, %v6100
    %v6102 = vpop.f32.mrb[0].mxu0
    %v6103 = vadd.f32 %v5990, %v6102
    %v6104 = vpop.f32.mrb[0].mxu0
    %v6105 = vadd.f32 %v5992, %v6104
    %6106 = vmatprep.mubr.bf16.mxu0 %v4029
    %6107 = vmatmul.mubr.bf16.gmra.mrb[0].mxu0 %v4028
    %v6108 = vpop.f32.mrb[0].mxu0
    %v6109 = vadd.f32 %v5996, %v6108
    %v6110 = vpop.f32.mrb[0].mxu0
    %v6111 = vadd.f32 %v5998, %v6110
    %v6112 = vpop.f32.mrb[0].mxu0
    %v6113 = vadd.f32 %v6000, %v6112
    %v6114 = vpop.f32.mrb[0].mxu0
    %v6115 = vadd.f32 %v6002, %v6114
    %6116 = vmatprep.mubr.bf16.mxu0 %v4035
    %6117 = vmatmul.mubr.bf16.gmra.mrb[0].mxu0 %v4034
    %v6118 = vpop.f32.mrb[0].mxu0
    %v6119 = vadd.f32 %v6006, %v6118
    %v6120 = vpop.f32.mrb[0].mxu0
    %v6121 = vadd.f32 %v6008, %v6120
    %v6122 = vpop.f32.mrb[0].mxu0
    %v6123 = vadd.f32 %v6010, %v6122
    %v6124 = vpop.f32.mrb[0].mxu0
    %v6125 = vadd.f32 %v6012, %v6124
    %6126 = vmatprep.mubr.bf16.mxu0 %v4041
    %6127 = vmatmul.mubr.bf16.gmra.mrb[0].mxu0 %v4040
    %v6128 = vpop.f32.mrb[0].mxu0
    %v6129 = vadd.f32 %v6016, %v6128
    %v6130 = vpop.f32.mrb[0].mxu0
    %v6131 = vadd.f32 %v6018, %v6130
    %v6132 = vpop.f32.mrb[0].mxu0
    %v6133 = vadd.f32 %v6020, %v6132
    %v6134 = vpop.f32.mrb[0].mxu0
    %v6135 = vadd.f32 %v6022, %v6134
    %6136 = vmatprep.mubr.bf16.mxu0 %v4047
    %6137 = vmatmul.mubr.bf16.gmra.mrb[0].mxu0 %v4046
    %v6138 = vpop.f32.mrb[0].mxu0
    %v6139 = vadd.f32 %v6026, %v6138
    %v6140 = vpop.f32.mrb[0].mxu0
    %v6141 = vadd.f32 %v6028, %v6140
    %v6142 = vpop.f32.mrb[0].mxu0
    %v6143 = vadd.f32 %v6030, %v6142
    %v6144 = vpop.f32.mrb[0].mxu0
    %v6145 = vadd.f32 %v6032, %v6144
    %6146 = vdwg.mxu0
    %6147 = vmatprep.subr.bf16.mxu0 %v5235
    %6148 = vmatpush1.bf16.msra.mxu0 %v5234
    %6149 = vmatprep.subr.bf16.mxu0 %v5241
    %6150 = vmatpush1.bf16.msra.mxu0 %v5240
    %6151 = vmatprep.subr.bf16.mxu0 %v5247
    %6152 = vmatpush1.bf16.msra.mxu0 %v5246
    %6153 = vmatprep.subr.bf16.mxu0 %v5253
    %6154 = vmatpush1.bf16.msra.mxu0 %v5252
    %6155 = vmatprep.subr.bf16.mxu0 %v5259
    %6156 = vmatpush1.bf16.msra.mxu0 %v5258
    %6157 = vmatprep.subr.bf16.mxu0 %v5265
    %6158 = vmatpush1.bf16.msra.mxu0 %v5264
    %6159 = vmatprep.subr.bf16.mxu0 %v5271
    %6160 = vmatpush1.bf16.msra.mxu0 %v5270
    %6161 = vmatprep.subr.bf16.mxu0 %v5277
    %6162 = vmatpush1.bf16.msra.mxu0 %v5276
    %6163 = vmatprep.subr.bf16.mxu0 %v5283
    %6164 = vmatpush1.bf16.msra.mxu0 %v5282
    %6165 = vmatprep.subr.bf16.mxu0 %v5289
    %6166 = vmatpush1.bf16.msra.mxu0 %v5288
    %6167 = vmatprep.subr.bf16.mxu0 %v5295
    %6168 = vmatpush1.bf16.msra.mxu0 %v5294
    %6169 = vmatprep.subr.bf16.mxu0 %v5301
    %6170 = vmatpush1.bf16.msra.mxu0 %v5300
    %6171 = vmatprep.subr.bf16.mxu0 %v5307
    %6172 = vmatpush1.bf16.msra.mxu0 %v5306
    %6173 = vmatprep.subr.bf16.mxu0 %v5313
    %6174 = vmatpush1.bf16.msra.mxu0 %v5312
    %6175 = vmatprep.subr.bf16.mxu0 %v5319
    %6176 = vmatpush1.bf16.msra.mxu0 %v5318
    %6177 = vmatprep.subr.bf16.mxu0 %v5325
    %6178 = vmatpush1.bf16.msra.mxu0 %v5324
    %6179 = vmatprep.mubr.bf16.mxu0 %v4001
    %6180 = vmatmul.mubr.bf16.gmra.mrb[0].mxu0 %v4000
    %v6181 = vpop.f32.mrb[0].mxu0
    %v6182 = vadd.f32 %v4349, %v6181
    %v6183 = vpop.f32.mrb[0].mxu0
    %v6184 = vadd.f32 %v4353, %v6183
    %v6185 = vpop.f32.mrb[0].mxu0
    %v6186 = vadd.f32 %v4349, %v6185
    %v6187 = vpop.f32.mrb[0].mxu0
    %v6188 = vadd.f32 %v4353, %v6187
    %6189 = vmatprep.mubr.bf16.mxu0 %v4007
    %6190 = vmatmul.mubr.bf16.gmra.mrb[0].mxu0 %v4006
    %v6191 = vpop.f32.mrb[0].mxu0
    %v6192 = vadd.f32 %v4349, %v6191
    %v6193 = vpop.f32.mrb[0].mxu0
    %v6194 = vadd.f32 %v4353, %v6193
    %v6195 = vpop.f32.mrb[0].mxu0
    %v6196 = vadd.f32 %v4349, %v6195
    %v6197 = vpop.f32.mrb[0].mxu0
    %v6198 = vadd.f32 %v4353, %v6197
    %6199 = vmatprep.mubr.bf16.mxu0 %v4013
    %6200 = vmatmul.mubr.bf16.gmra.mrb[0].mxu0 %v4012
    %v6201 = vpop.f32.mrb[0].mxu0
    %v6202 = vadd.f32 %v4349, %v6201
    %v6203 = vpop.f32.mrb[0].mxu0
    %v6204 = vadd.f32 %v4353, %v6203
    %v6205 = vpop.f32.mrb[0].mxu0
    %v6206 = vadd.f32 %v4349, %v6205
    %v6207 = vpop.f32.mrb[0].mxu0
    %v6208 = vadd.f32 %v4353, %v6207
    %6209 = vmatprep.mubr.bf16.mxu0 %v4019
    %6210 = vmatmul.mubr.bf16.gmra.mrb[0].mxu0 %v4018
    %v6211 = vpop.f32.mrb[0].mxu0
    %v6212 = vadd.f32 %v4349, %v6211
    %v6213 = vpop.f32.mrb[0].mxu0
    %v6214 = vadd.f32 %v4353, %v6213
    %v6215 = vpop.f32.mrb[0].mxu0
    %v6216 = vadd.f32 %v4349, %v6215
    %v6217 = vpop.f32.mrb[0].mxu0
    %v6218 = vadd.f32 %v4353, %v6217
    %6219 = vmatprep.mubr.bf16.mxu0 %v4025
    %6220 = vmatmul.mubr.bf16.gmra.mrb[0].mxu0 %v4024
    %v6221 = vpop.f32.mrb[0].mxu0
    %v6222 = vadd.f32 %v4349, %v6221
    %v6223 = vpop.f32.mrb[0].mxu0
    %v6224 = vadd.f32 %v4353, %v6223
    %v6225 = vpop.f32.mrb[0].mxu0
    %v6226 = vadd.f32 %v4349, %v6225
    %v6227 = vpop.f32.mrb[0].mxu0
    %v6228 = vadd.f32 %v4353, %v6227
    %6229 = vmatprep.mubr.bf16.mxu0 %v4031
    %6230 = vmatmul.mubr.bf16.gmra.mrb[0].mxu0 %v4030
    %v6231 = vpop.f32.mrb[0].mxu0
    %v6232 = vadd.f32 %v4349, %v6231
    %v6233 = vpop.f32.mrb[0].mxu0
    %v6234 = vadd.f32 %v4353, %v6233
    %v6235 = vpop.f32.mrb[0].mxu0
    %v6236 = vadd.f32 %v4349, %v6235
    %v6237 = vpop.f32.mrb[0].mxu0
    %v6238 = vadd.f32 %v4353, %v6237
    %6239 = vmatprep.mubr.bf16.mxu0 %v4037
    %6240 = vmatmul.mubr.bf16.gmra.mrb[0].mxu0 %v4036
    %v6241 = vpop.f32.mrb[0].mxu0
    %v6242 = vadd.f32 %v4349, %v6241
    %v6243 = vpop.f32.mrb[0].mxu0
    %v6244 = vadd.f32 %v4353, %v6243
    %v6245 = vpop.f32.mrb[0].mxu0
    %v6246 = vadd.f32 %v4349, %v6245
    %v6247 = vpop.f32.mrb[0].mxu0
    %v6248 = vadd.f32 %v4353, %v6247
    %6249 = vmatprep.mubr.bf16.mxu0 %v4043
    %6250 = vmatmul.mubr.bf16.gmra.mrb[0].mxu0 %v4042
    %v6251 = vpop.f32.mrb[0].mxu0
    %v6252 = vadd.f32 %v4349, %v6251
    %v6253 = vpop.f32.mrb[0].mxu0
    %v6254 = vadd.f32 %v4353, %v6253
    %v6255 = vpop.f32.mrb[0].mxu0
    %v6256 = vadd.f32 %v4349, %v6255
    %v6257 = vpop.f32.mrb[0].mxu0
    %v6258 = vadd.f32 %v4353, %v6257
    %6259 = vdwg.mxu0
    %6260 = vmatprep.subr.bf16.mxu0 %v5331
    %6261 = vmatpush1.bf16.msra.mxu0 %v5330
    %6262 = vmatprep.subr.bf16.mxu0 %v5337
    %6263 = vmatpush1.bf16.msra.mxu0 %v5336
    %6264 = vmatprep.subr.bf16.mxu0 %v5343
    %6265 = vmatpush1.bf16.msra.mxu0 %v5342
    %6266 = vmatprep.subr.bf16.mxu0 %v5349
    %6267 = vmatpush1.bf16.msra.mxu0 %v5348
    %6268 = vmatprep.subr.bf16.mxu0 %v5355
    %6269 = vmatpush1.bf16.msra.mxu0 %v5354
    %6270 = vmatprep.subr.bf16.mxu0 %v5361
    %6271 = vmatpush1.bf16.msra.mxu0 %v5360
    %6272 = vmatprep.subr.bf16.mxu0 %v5367
    %6273 = vmatpush1.bf16.msra.mxu0 %v5366
    %6274 = vmatprep.subr.bf16.mxu0 %v5373
    %6275 = vmatpush1.bf16.msra.mxu0 %v5372
    %6276 = vmatprep.subr.bf16.mxu0 %v5379
    %6277 = vmatpush1.bf16.msra.mxu0 %v5378
    %6278 = vmatprep.subr.bf16.mxu0 %v5385
    %6279 = vmatpush1.bf16.msra.mxu0 %v5384
    %6280 = vmatprep.subr.bf16.mxu0 %v5391
    %6281 = vmatpush1.bf16.msra.mxu0 %v5390
    %6282 = vmatprep.subr.bf16.mxu0 %v5397
    %6283 = vmatpush1.bf16.msra.mxu0 %v5396
    %6284 = vmatprep.subr.bf16.mxu0 %v5403
    %6285 = vmatpush1.bf16.msra.mxu0 %v5402
    %6286 = vmatprep.subr.bf16.mxu0 %v5409
    %6287 = vmatpush1.bf16.msra.mxu0 %v5408
    %6288 = vmatprep.subr.bf16.mxu0 %v5415
    %6289 = vmatpush1.bf16.msra.mxu0 %v5414
    %6290 = vmatprep.subr.bf16.mxu0 %v5421
    %6291 = vmatpush1.bf16.msra.mxu0 %v5420
    %6292 = vmatprep.mubr.bf16.mxu0 %v4003
    %6293 = vmatmul.mubr.bf16.gmra.mrb[0].mxu0 %v4002
    %v6294 = vpop.f32.mrb[0].mxu0
    %v6295 = vadd.f32 %v6182, %v6294
    %v6296 = vpop.f32.mrb[0].mxu0
    %v6297 = vadd.f32 %v6184, %v6296
    %v6298 = vpop.f32.mrb[0].mxu0
    %v6299 = vadd.f32 %v6186, %v6298
    %v6300 = vpop.f32.mrb[0].mxu0
    %v6301 = vadd.f32 %v6188, %v6300
    %6302 = vmatprep.mubr.bf16.mxu0 %v4009
    %6303 = vmatmul.mubr.bf16.gmra.mrb[0].mxu0 %v4008
    %v6304 = vpop.f32.mrb[0].mxu0
    %v6305 = vadd.f32 %v6192, %v6304
    %v6306 = vpop.f32.mrb[0].mxu0
    %v6307 = vadd.f32 %v6194, %v6306
    %v6308 = vpop.f32.mrb[0].mxu0
    %v6309 = vadd.f32 %v6196, %v6308
    %v6310 = vpop.f32.mrb[0].mxu0
    %v6311 = vadd.f32 %v6198, %v6310
    %6312 = vmatprep.mubr.bf16.mxu0 %v4015
    %6313 = vmatmul.mubr.bf16.gmra.mrb[0].mxu0 %v4014
    %v6314 = vpop.f32.mrb[0].mxu0
    %v6315 = vadd.f32 %v6202, %v6314
    %v6316 = vpop.f32.mrb[0].mxu0
    %v6317 = vadd.f32 %v6204, %v6316
    %v6318 = vpop.f32.mrb[0].mxu0
    %v6319 = vadd.f32 %v6206, %v6318
    %v6320 = vpop.f32.mrb[0].mxu0
    %v6321 = vadd.f32 %v6208, %v6320
    %6322 = vmatprep.mubr.bf16.mxu0 %v4021
    %6323 = vmatmul.mubr.bf16.gmra.mrb[0].mxu0 %v4020
    %v6324 = vpop.f32.mrb[0].mxu0
    %v6325 = vadd.f32 %v6212, %v6324
    %v6326 = vpop.f32.mrb[0].mxu0
    %v6327 = vadd.f32 %v6214, %v6326
    %v6328 = vpop.f32.mrb[0].mxu0
    %v6329 = vadd.f32 %v6216, %v6328
    %v6330 = vpop.f32.mrb[0].mxu0
    %v6331 = vadd.f32 %v6218, %v6330
    %6332 = vmatprep.mubr.bf16.mxu0 %v4027
    %6333 = vmatmul.mubr.bf16.gmra.mrb[0].mxu0 %v4026
    %v6334 = vpop.f32.mrb[0].mxu0
    %v6335 = vadd.f32 %v6222, %v6334
    %v6336 = vpop.f32.mrb[0].mxu0
    %v6337 = vadd.f32 %v6224, %v6336
    %v6338 = vpop.f32.mrb[0].mxu0
    %v6339 = vadd.f32 %v6226, %v6338
    %v6340 = vpop.f32.mrb[0].mxu0
    %v6341 = vadd.f32 %v6228, %v6340
    %6342 = vmatprep.mubr.bf16.mxu0 %v4033
    %6343 = vmatmul.mubr.bf16.gmra.mrb[0].mxu0 %v4032
    %v6344 = vpop.f32.mrb[0].mxu0
    %v6345 = vadd.f32 %v6232, %v6344
    %v6346 = vpop.f32.mrb[0].mxu0
    %v6347 = vadd.f32 %v6234, %v6346
    %v6348 = vpop.f32.mrb[0].mxu0
    %v6349 = vadd.f32 %v6236, %v6348
    %v6350 = vpop.f32.mrb[0].mxu0
    %v6351 = vadd.f32 %v6238, %v6350
    %6352 = vmatprep.mubr.bf16.mxu0 %v4039
    %6353 = vmatmul.mubr.bf16.gmra.mrb[0].mxu0 %v4038
    %v6354 = vpop.f32.mrb[0].mxu0
    %v6355 = vadd.f32 %v6242, %v6354
    %v6356 = vpop.f32.mrb[0].mxu0
    %v6357 = vadd.f32 %v6244, %v6356
    %v6358 = vpop.f32.mrb[0].mxu0
    %v6359 = vadd.f32 %v6246, %v6358
    %v6360 = vpop.f32.mrb[0].mxu0
    %v6361 = vadd.f32 %v6248, %v6360
    %6362 = vmatprep.mubr.bf16.mxu0 %v4045
    %6363 = vmatmul.mubr.bf16.gmra.mrb[0].mxu0 %v4044
    %v6364 = vpop.f32.mrb[0].mxu0
    %v6365 = vadd.f32 %v6252, %v6364
    %v6366 = vpop.f32.mrb[0].mxu0
    %v6367 = vadd.f32 %v6254, %v6366
    %v6368 = vpop.f32.mrb[0].mxu0
    %v6369 = vadd.f32 %v6256, %v6368
    %v6370 = vpop.f32.mrb[0].mxu0
    %v6371 = vadd.f32 %v6258, %v6370
    %6372 = vdwg.mxu0
    %6373 = vmatprep.subr.bf16.mxu0 %v5427
    %6374 = vmatpush1.bf16.msra.mxu0 %v5426
    %6375 = vmatprep.subr.bf16.mxu0 %v5433
    %6376 = vmatpush1.bf16.msra.mxu0 %v5432
    %6377 = vmatprep.subr.bf16.mxu0 %v5439
    %6378 = vmatpush1.bf16.msra.mxu0 %v5438
    %6379 = vmatprep.subr.bf16.mxu0 %v5445
    %6380 = vmatpush1.bf16.msra.mxu0 %v5444
    %6381 = vmatprep.subr.bf16.mxu0 %v5451
    %6382 = vmatpush1.bf16.msra.mxu0 %v5450
    %6383 = vmatprep.subr.bf16.mxu0 %v5457
    %6384 = vmatpush1.bf16.msra.mxu0 %v5456
    %6385 = vmatprep.subr.bf16.mxu0 %v5463
    %6386 = vmatpush1.bf16.msra.mxu0 %v5462
    %6387 = vmatprep.subr.bf16.mxu0 %v5469
    %6388 = vmatpush1.bf16.msra.mxu0 %v5468
    %6389 = vmatprep.subr.bf16.mxu0 %v5475
    %6390 = vmatpush1.bf16.msra.mxu0 %v5474
    %6391 = vmatprep.subr.bf16.mxu0 %v5481
    %6392 = vmatpush1.bf16.msra.mxu0 %v5480
    %6393 = vmatprep.subr.bf16.mxu0 %v5487
    %6394 = vmatpush1.bf16.msra.mxu0 %v5486
    %6395 = vmatprep.subr.bf16.mxu0 %v5493
    %6396 = vmatpush1.bf16.msra.mxu0 %v5492
    %6397 = vmatprep.subr.bf16.mxu0 %v5499
    %6398 = vmatpush1.bf16.msra.mxu0 %v5498
    %6399 = vmatprep.subr.bf16.mxu0 %v5505
    %6400 = vmatpush1.bf16.msra.mxu0 %v5504
    %6401 = vmatprep.subr.bf16.mxu0 %v5511
    %6402 = vmatpush1.bf16.msra.mxu0 %v5510
    %6403 = vmatprep.subr.bf16.mxu0 %v5517
    %6404 = vmatpush1.bf16.msra.mxu0 %v5516
    %6405 = vmatprep.mubr.bf16.mxu0 %v4005
    %6406 = vmatmul.mubr.bf16.gmra.mrb[0].mxu0 %v4004
    %v6407 = vpop.f32.mrb[0].mxu0
    %v6408 = vadd.f32 %v6295, %v6407
    %v6409 = vpop.f32.mrb[0].mxu0
    %v6410 = vadd.f32 %v6297, %v6409
    %v6411 = vpop.f32.mrb[0].mxu0
    %v6412 = vadd.f32 %v6299, %v6411
    %v6413 = vpop.f32.mrb[0].mxu0
    %v6414 = vadd.f32 %v6301, %v6413
    %6415 = vmatprep.mubr.bf16.mxu0 %v4011
    %6416 = vmatmul.mubr.bf16.gmra.mrb[0].mxu0 %v4010
    %v6417 = vpop.f32.mrb[0].mxu0
    %v6418 = vadd.f32 %v6305, %v6417
    %v6419 = vpop.f32.mrb[0].mxu0
    %v6420 = vadd.f32 %v6307, %v6419
    %v6421 = vpop.f32.mrb[0].mxu0
    %v6422 = vadd.f32 %v6309, %v6421
    %v6423 = vpop.f32.mrb[0].mxu0
    %v6424 = vadd.f32 %v6311, %v6423
    %6425 = vmatprep.mubr.bf16.mxu0 %v4017
    %6426 = vmatmul.mubr.bf16.gmra.mrb[0].mxu0 %v4016
    %v6427 = vpop.f32.mrb[0].mxu0
    %v6428 = vadd.f32 %v6315, %v6427
    %v6429 = vpop.f32.mrb[0].mxu0
    %v6430 = vadd.f32 %v6317, %v6429
    %v6431 = vpop.f32.mrb[0].mxu0
    %v6432 = vadd.f32 %v6319, %v6431
    %v6433 = vpop.f32.mrb[0].mxu0
    %v6434 = vadd.f32 %v6321, %v6433
    %6435 = vmatprep.mubr.bf16.mxu0 %v4023
    %6436 = vmatmul.mubr.bf16.gmra.mrb[0].mxu0 %v4022
    %v6437 = vpop.f32.mrb[0].mxu0
    %v6438 = vadd.f32 %v6325, %v6437
    %v6439 = vpop.f32.mrb[0].mxu0
    %v6440 = vadd.f32 %v6327, %v6439
    %v6441 = vpop.f32.mrb[0].mxu0
    %v6442 = vadd.f32 %v6329, %v6441
    %v6443 = vpop.f32.mrb[0].mxu0
    %v6444 = vadd.f32 %v6331, %v6443
    %6445 = vmatprep.mubr.bf16.mxu0 %v4029
    %6446 = vmatmul.mubr.bf16.gmra.mrb[0].mxu0 %v4028
    %v6447 = vpop.f32.mrb[0].mxu0
    %v6448 = vadd.f32 %v6335, %v6447
    %v6449 = vpop.f32.mrb[0].mxu0
    %v6450 = vadd.f32 %v6337, %v6449
    %v6451 = vpop.f32.mrb[0].mxu0
    %v6452 = vadd.f32 %v6339, %v6451
    %v6453 = vpop.f32.mrb[0].mxu0
    %v6454 = vadd.f32 %v6341, %v6453
    %6455 = vmatprep.mubr.bf16.mxu0 %v4035
    %6456 = vmatmul.mubr.bf16.gmra.mrb[0].mxu0 %v4034
    %v6457 = vpop.f32.mrb[0].mxu0
    %v6458 = vadd.f32 %v6345, %v6457
    %v6459 = vpop.f32.mrb[0].mxu0
    %v6460 = vadd.f32 %v6347, %v6459
    %v6461 = vpop.f32.mrb[0].mxu0
    %v6462 = vadd.f32 %v6349, %v6461
    %v6463 = vpop.f32.mrb[0].mxu0
    %v6464 = vadd.f32 %v6351, %v6463
    %6465 = vmatprep.mubr.bf16.mxu0 %v4041
    %6466 = vmatmul.mubr.bf16.gmra.mrb[0].mxu0 %v4040
    %v6467 = vpop.f32.mrb[0].mxu0
    %v6468 = vadd.f32 %v6355, %v6467
    %v6469 = vpop.f32.mrb[0].mxu0
    %v6470 = vadd.f32 %v6357, %v6469
    %v6471 = vpop.f32.mrb[0].mxu0
    %v6472 = vadd.f32 %v6359, %v6471
    %v6473 = vpop.f32.mrb[0].mxu0
    %v6474 = vadd.f32 %v6361, %v6473
    %6475 = vmatprep.mubr.bf16.mxu0 %v4047
    %6476 = vmatmul.mubr.bf16.gmra.mrb[0].mxu0 %v4046
    %v6477 = vpop.f32.mrb[0].mxu0
    %v6478 = vadd.f32 %v6365, %v6477
    %v6479 = vpop.f32.mrb[0].mxu0
    %v6480 = vadd.f32 %v6367, %v6479
    %v6481 = vpop.f32.mrb[0].mxu0
    %v6482 = vadd.f32 %v6369, %v6481
    %v6483 = vpop.f32.mrb[0].mxu0
    %v6484 = vadd.f32 %v6371, %v6483
    %6485 = vdwg.mxu0
    %6486 = vmatprep.subr.bf16.mxu0 %v5237
    %6487 = vmatpush1.bf16.msra.mxu0 %v5236
    %6488 = vmatprep.subr.bf16.mxu0 %v5243
    %6489 = vmatpush1.bf16.msra.mxu0 %v5242
    %6490 = vmatprep.subr.bf16.mxu0 %v5249
    %6491 = vmatpush1.bf16.msra.mxu0 %v5248
    %6492 = vmatprep.subr.bf16.mxu0 %v5255
    %6493 = vmatpush1.bf16.msra.mxu0 %v5254
    %6494 = vmatprep.subr.bf16.mxu0 %v5261
    %6495 = vmatpush1.bf16.msra.mxu0 %v5260
    %6496 = vmatprep.subr.bf16.mxu0 %v5267
    %6497 = vmatpush1.bf16.msra.mxu0 %v5266
    %6498 = vmatprep.subr.bf16.mxu0 %v5273
    %6499 = vmatpush1.bf16.msra.mxu0 %v5272
    %6500 = vmatprep.subr.bf16.mxu0 %v5279
    %6501 = vmatpush1.bf16.msra.mxu0 %v5278
    %6502 = vmatprep.subr.bf16.mxu0 %v5285
    %6503 = vmatpush1.bf16.msra.mxu0 %v5284
    %6504 = vmatprep.subr.bf16.mxu0 %v5291
    %6505 = vmatpush1.bf16.msra.mxu0 %v5290
    %6506 = vmatprep.subr.bf16.mxu0 %v5297
    %6507 = vmatpush1.bf16.msra.mxu0 %v5296
    %6508 = vmatprep.subr.bf16.mxu0 %v5303
    %6509 = vmatpush1.bf16.msra.mxu0 %v5302
    %6510 = vmatprep.subr.bf16.mxu0 %v5309
    %6511 = vmatpush1.bf16.msra.mxu0 %v5308
    %6512 = vmatprep.subr.bf16.mxu0 %v5315
    %6513 = vmatpush1.bf16.msra.mxu0 %v5314
    %6514 = vmatprep.subr.bf16.mxu0 %v5321
    %6515 = vmatpush1.bf16.msra.mxu0 %v5320
    %6516 = vmatprep.subr.bf16.mxu0 %v5327
    %6517 = vmatpush1.bf16.msra.mxu0 %v5326
    %6518 = vmatprep.mubr.bf16.mxu0 %v4001
    %6519 = vmatmul.mubr.bf16.gmra.mrb[0].mxu0 %v4000
    %v6520 = vpop.f32.mrb[0].mxu0
    %v6521 = vadd.f32 %v4357, %v6520
    %v6522 = vpop.f32.mrb[0].mxu0
    %v6523 = vadd.f32 %v4361, %v6522
    %v6524 = vpop.f32.mrb[0].mxu0
    %v6525 = vadd.f32 %v4357, %v6524
    %v6526 = vpop.f32.mrb[0].mxu0
    %v6527 = vadd.f32 %v4361, %v6526
    %6528 = vmatprep.mubr.bf16.mxu0 %v4007
    %6529 = vmatmul.mubr.bf16.gmra.mrb[0].mxu0 %v4006
    %v6530 = vpop.f32.mrb[0].mxu0
    %v6531 = vadd.f32 %v4357, %v6530
    %v6532 = vpop.f32.mrb[0].mxu0
    %v6533 = vadd.f32 %v4361, %v6532
    %v6534 = vpop.f32.mrb[0].mxu0
    %v6535 = vadd.f32 %v4357, %v6534
    %v6536 = vpop.f32.mrb[0].mxu0
    %v6537 = vadd.f32 %v4361, %v6536
    %6538 = vmatprep.mubr.bf16.mxu0 %v4013
    %6539 = vmatmul.mubr.bf16.gmra.mrb[0].mxu0 %v4012
    %v6540 = vpop.f32.mrb[0].mxu0
    %v6541 = vadd.f32 %v4357, %v6540
    %v6542 = vpop.f32.mrb[0].mxu0
    %v6543 = vadd.f32 %v4361, %v6542
    %v6544 = vpop.f32.mrb[0].mxu0
    %v6545 = vadd.f32 %v4357, %v6544
    %v6546 = vpop.f32.mrb[0].mxu0
    %v6547 = vadd.f32 %v4361, %v6546
    %6548 = vmatprep.mubr.bf16.mxu0 %v4019
    %6549 = vmatmul.mubr.bf16.gmra.mrb[0].mxu0 %v4018
    %v6550 = vpop.f32.mrb[0].mxu0
    %v6551 = vadd.f32 %v4357, %v6550
    %v6552 = vpop.f32.mrb[0].mxu0
    %v6553 = vadd.f32 %v4361, %v6552
    %v6554 = vpop.f32.mrb[0].mxu0
    %v6555 = vadd.f32 %v4357, %v6554
    %v6556 = vpop.f32.mrb[0].mxu0
    %v6557 = vadd.f32 %v4361, %v6556
    %6558 = vmatprep.mubr.bf16.mxu0 %v4025
    %6559 = vmatmul.mubr.bf16.gmra.mrb[0].mxu0 %v4024
    %v6560 = vpop.f32.mrb[0].mxu0
    %v6561 = vadd.f32 %v4357, %v6560
    %v6562 = vpop.f32.mrb[0].mxu0
    %v6563 = vadd.f32 %v4361, %v6562
    %v6564 = vpop.f32.mrb[0].mxu0
    %v6565 = vadd.f32 %v4357, %v6564
    %v6566 = vpop.f32.mrb[0].mxu0
    %v6567 = vadd.f32 %v4361, %v6566
    %6568 = vmatprep.mubr.bf16.mxu0 %v4031
    %6569 = vmatmul.mubr.bf16.gmra.mrb[0].mxu0 %v4030
    %v6570 = vpop.f32.mrb[0].mxu0
    %v6571 = vadd.f32 %v4357, %v6570
    %v6572 = vpop.f32.mrb[0].mxu0
    %v6573 = vadd.f32 %v4361, %v6572
    %v6574 = vpop.f32.mrb[0].mxu0
    %v6575 = vadd.f32 %v4357, %v6574
    %v6576 = vpop.f32.mrb[0].mxu0
    %v6577 = vadd.f32 %v4361, %v6576
    %6578 = vmatprep.mubr.bf16.mxu0 %v4037
    %6579 = vmatmul.mubr.bf16.gmra.mrb[0].mxu0 %v4036
    %v6580 = vpop.f32.mrb[0].mxu0
    %v6581 = vadd.f32 %v4357, %v6580
    %v6582 = vpop.f32.mrb[0].mxu0
    %v6583 = vadd.f32 %v4361, %v6582
    %v6584 = vpop.f32.mrb[0].mxu0
    %v6585 = vadd.f32 %v4357, %v6584
    %v6586 = vpop.f32.mrb[0].mxu0
    %v6587 = vadd.f32 %v4361, %v6586
    %6588 = vmatprep.mubr.bf16.mxu0 %v4043
    %6589 = vmatmul.mubr.bf16.gmra.mrb[0].mxu0 %v4042
    %v6590 = vpop.f32.mrb[0].mxu0
    %v6591 = vadd.f32 %v4357, %v6590
    %v6592 = vpop.f32.mrb[0].mxu0
    %v6593 = vadd.f32 %v4361, %v6592
    %v6594 = vpop.f32.mrb[0].mxu0
    %v6595 = vadd.f32 %v4357, %v6594
    %v6596 = vpop.f32.mrb[0].mxu0
    %v6597 = vadd.f32 %v4361, %v6596
    %6598 = vdwg.mxu0
    %6599 = vmatprep.subr.bf16.mxu0 %v5333
    %6600 = vmatpush1.bf16.msra.mxu0 %v5332
    %6601 = vmatprep.subr.bf16.mxu0 %v5339
    %6602 = vmatpush1.bf16.msra.mxu0 %v5338
    %6603 = vmatprep.subr.bf16.mxu0 %v5345
    %6604 = vmatpush1.bf16.msra.mxu0 %v5344
    %6605 = vmatprep.subr.bf16.mxu0 %v5351
    %6606 = vmatpush1.bf16.msra.mxu0 %v5350
    %6607 = vmatprep.subr.bf16.mxu0 %v5357
    %6608 = vmatpush1.bf16.msra.mxu0 %v5356
    %6609 = vmatprep.subr.bf16.mxu0 %v5363
    %6610 = vmatpush1.bf16.msra.mxu0 %v5362
    %6611 = vmatprep.subr.bf16.mxu0 %v5369
    %6612 = vmatpush1.bf16.msra.mxu0 %v5368
    %6613 = vmatprep.subr.bf16.mxu0 %v5375
    %6614 = vmatpush1.bf16.msra.mxu0 %v5374
    %6615 = vmatprep.subr.bf16.mxu0 %v5381
    %6616 = vmatpush1.bf16.msra.mxu0 %v5380
    %6617 = vmatprep.subr.bf16.mxu0 %v5387
    %6618 = vmatpush1.bf16.msra.mxu0 %v5386
    %6619 = vmatprep.subr.bf16.mxu0 %v5393
    %6620 = vmatpush1.bf16.msra.mxu0 %v5392
    %6621 = vmatprep.subr.bf16.mxu0 %v5399
    %6622 = vmatpush1.bf16.msra.mxu0 %v5398
    %6623 = vmatprep.subr.bf16.mxu0 %v5405
    %6624 = vmatpush1.bf16.msra.mxu0 %v5404
    %6625 = vmatprep.subr.bf16.mxu0 %v5411
    %6626 = vmatpush1.bf16.msra.mxu0 %v5410
    %6627 = vmatprep.subr.bf16.mxu0 %v5417
    %6628 = vmatpush1.bf16.msra.mxu0 %v5416
    %6629 = vmatprep.subr.bf16.mxu0 %v5423
    %6630 = vmatpush1.bf16.msra.mxu0 %v5422
    %6631 = vmatprep.mubr.bf16.mxu0 %v4003
    %6632 = vmatmul.mubr.bf16.gmra.mrb[0].mxu0 %v4002
    %v6633 = vpop.f32.mrb[0].mxu0
    %v6634 = vadd.f32 %v6521, %v6633
    %v6635 = vpop.f32.mrb[0].mxu0
    %v6636 = vadd.f32 %v6523, %v6635
    %v6637 = vpop.f32.mrb[0].mxu0
    %v6638 = vadd.f32 %v6525, %v6637
    %v6639 = vpop.f32.mrb[0].mxu0
    %v6640 = vadd.f32 %v6527, %v6639
    %6641 = vmatprep.mubr.bf16.mxu0 %v4009
    %6642 = vmatmul.mubr.bf16.gmra.mrb[0].mxu0 %v4008
    %v6643 = vpop.f32.mrb[0].mxu0
    %v6644 = vadd.f32 %v6531, %v6643
    %v6645 = vpop.f32.mrb[0].mxu0
    %v6646 = vadd.f32 %v6533, %v6645
    %v6647 = vpop.f32.mrb[0].mxu0
    %v6648 = vadd.f32 %v6535, %v6647
    %v6649 = vpop.f32.mrb[0].mxu0
    %v6650 = vadd.f32 %v6537, %v6649
    %6651 = vmatprep.mubr.bf16.mxu0 %v4015
    %6652 = vmatmul.mubr.bf16.gmra.mrb[0].mxu0 %v4014
    %v6653 = vpop.f32.mrb[0].mxu0
    %v6654 = vadd.f32 %v6541, %v6653
    %v6655 = vpop.f32.mrb[0].mxu0
    %v6656 = vadd.f32 %v6543, %v6655
    %v6657 = vpop.f32.mrb[0].mxu0
    %v6658 = vadd.f32 %v6545, %v6657
    %v6659 = vpop.f32.mrb[0].mxu0
    %v6660 = vadd.f32 %v6547, %v6659
    %6661 = vmatprep.mubr.bf16.mxu0 %v4021
    %6662 = vmatmul.mubr.bf16.gmra.mrb[0].mxu0 %v4020
    %v6663 = vpop.f32.mrb[0].mxu0
    %v6664 = vadd.f32 %v6551, %v6663
    %v6665 = vpop.f32.mrb[0].mxu0
    %v6666 = vadd.f32 %v6553, %v6665
    %v6667 = vpop.f32.mrb[0].mxu0
    %v6668 = vadd.f32 %v6555, %v6667
    %v6669 = vpop.f32.mrb[0].mxu0
    %v6670 = vadd.f32 %v6557, %v6669
    %6671 = vmatprep.mubr.bf16.mxu0 %v4027
    %6672 = vmatmul.mubr.bf16.gmra.mrb[0].mxu0 %v4026
    %v6673 = vpop.f32.mrb[0].mxu0
    %v6674 = vadd.f32 %v6561, %v6673
    %v6675 = vpop.f32.mrb[0].mxu0
    %v6676 = vadd.f32 %v6563, %v6675
    %v6677 = vpop.f32.mrb[0].mxu0
    %v6678 = vadd.f32 %v6565, %v6677
    %v6679 = vpop.f32.mrb[0].mxu0
    %v6680 = vadd.f32 %v6567, %v6679
    %6681 = vmatprep.mubr.bf16.mxu0 %v4033
    %6682 = vmatmul.mubr.bf16.gmra.mrb[0].mxu0 %v4032
    %v6683 = vpop.f32.mrb[0].mxu0
    %v6684 = vadd.f32 %v6571, %v6683
    %v6685 = vpop.f32.mrb[0].mxu0
    %v6686 = vadd.f32 %v6573, %v6685
    %v6687 = vpop.f32.mrb[0].mxu0
    %v6688 = vadd.f32 %v6575, %v6687
    %v6689 = vpop.f32.mrb[0].mxu0
    %v6690 = vadd.f32 %v6577, %v6689
    %6691 = vmatprep.mubr.bf16.mxu0 %v4039
    %6692 = vmatmul.mubr.bf16.gmra.mrb[0].mxu0 %v4038
    %v6693 = vpop.f32.mrb[0].mxu0
    %v6694 = vadd.f32 %v6581, %v6693
    %v6695 = vpop.f32.mrb[0].mxu0
    %v6696 = vadd.f32 %v6583, %v6695
    %v6697 = vpop.f32.mrb[0].mxu0
    %v6698 = vadd.f32 %v6585, %v6697
    %v6699 = vpop.f32.mrb[0].mxu0
    %v6700 = vadd.f32 %v6587, %v6699
    %6701 = vmatprep.mubr.bf16.mxu0 %v4045
    %6702 = vmatmul.mubr.bf16.gmra.mrb[0].mxu0 %v4044
    %v6703 = vpop.f32.mrb[0].mxu0
    %v6704 = vadd.f32 %v6591, %v6703
    %v6705 = vpop.f32.mrb[0].mxu0
    %v6706 = vadd.f32 %v6593, %v6705
    %v6707 = vpop.f32.mrb[0].mxu0
    %v6708 = vadd.f32 %v6595, %v6707
    %v6709 = vpop.f32.mrb[0].mxu0
    %v6710 = vadd.f32 %v6597, %v6709
    %6711 = vdwg.mxu0
    %6712 = vmatprep.subr.bf16.mxu0 %v5429
    %6713 = vmatpush1.bf16.msra.mxu0 %v5428
    %6714 = vmatprep.subr.bf16.mxu0 %v5435
    %6715 = vmatpush1.bf16.msra.mxu0 %v5434
    %6716 = vmatprep.subr.bf16.mxu0 %v5441
    %6717 = vmatpush1.bf16.msra.mxu0 %v5440
    %6718 = vmatprep.subr.bf16.mxu0 %v5447
    %6719 = vmatpush1.bf16.msra.mxu0 %v5446
    %6720 = vmatprep.subr.bf16.mxu0 %v5453
    %6721 = vmatpush1.bf16.msra.mxu0 %v5452
    %6722 = vmatprep.subr.bf16.mxu0 %v5459
    %6723 = vmatpush1.bf16.msra.mxu0 %v5458
    %6724 = vmatprep.subr.bf16.mxu0 %v5465
    %6725 = vmatpush1.bf16.msra.mxu0 %v5464
    %6726 = vmatprep.subr.bf16.mxu0 %v5471
    %6727 = vmatpush1.bf16.msra.mxu0 %v5470
    %6728 = vmatprep.subr.bf16.mxu0 %v5477
    %6729 = vmatpush1.bf16.msra.mxu0 %v5476
    %6730 = vmatprep.subr.bf16.mxu0 %v5483
    %6731 = vmatpush1.bf16.msra.mxu0 %v5482
    %6732 = vmatprep.subr.bf16.mxu0 %v5489
    %6733 = vmatpush1.bf16.msra.mxu0 %v5488
    %6734 = vmatprep.subr.bf16.mxu0 %v5495
    %6735 = vmatpush1.bf16.msra.mxu0 %v5494
    %6736 = vmatprep.subr.bf16.mxu0 %v5501
    %6737 = vmatpush1.bf16.msra.mxu0 %v5500
    %6738 = vmatprep.subr.bf16.mxu0 %v5507
    %6739 = vmatpush1.bf16.msra.mxu0 %v5506
    %6740 = vmatprep.subr.bf16.mxu0 %v5513
    %6741 = vmatpush1.bf16.msra.mxu0 %v5512
    %6742 = vmatprep.subr.bf16.mxu0 %v5519
    %6743 = vmatpush1.bf16.msra.mxu0 %v5518
    %6744 = vmatprep.mubr.bf16.mxu0 %v4005
    %6745 = vmatmul.mubr.bf16.gmra.mrb[0].mxu0 %v4004
    %v6746 = vpop.f32.mrb[0].mxu0
    %v6747 = vadd.f32 %v6634, %v6746
    %v6748 = vpop.f32.mrb[0].mxu0
    %v6749 = vadd.f32 %v6636, %v6748
    %v6750 = vpop.f32.mrb[0].mxu0
    %v6751 = vadd.f32 %v6638, %v6750
    %v6752 = vpop.f32.mrb[0].mxu0
    %v6753 = vadd.f32 %v6640, %v6752
    %6754 = vmatprep.mubr.bf16.mxu0 %v4011
    %6755 = vmatmul.mubr.bf16.gmra.mrb[0].mxu0 %v4010
    %v6756 = vpop.f32.mrb[0].mxu0
    %v6757 = vadd.f32 %v6644, %v6756
    %v6758 = vpop.f32.mrb[0].mxu0
    %v6759 = vadd.f32 %v6646, %v6758
    %v6760 = vpop.f32.mrb[0].mxu0
    %v6761 = vadd.f32 %v6648, %v6760
    %v6762 = vpop.f32.mrb[0].mxu0
    %v6763 = vadd.f32 %v6650, %v6762
    %6764 = vmatprep.mubr.bf16.mxu0 %v4017
    %6765 = vmatmul.mubr.bf16.gmra.mrb[0].mxu0 %v4016
    %v6766 = vpop.f32.mrb[0].mxu0
    %v6767 = vadd.f32 %v6654, %v6766
    %v6768 = vpop.f32.mrb[0].mxu0
    %v6769 = vadd.f32 %v6656, %v6768
    %v6770 = vpop.f32.mrb[0].mxu0
    %v6771 = vadd.f32 %v6658, %v6770
    %v6772 = vpop.f32.mrb[0].mxu0
    %v6773 = vadd.f32 %v6660, %v6772
    %6774 = vmatprep.mubr.bf16.mxu0 %v4023
    %6775 = vmatmul.mubr.bf16.gmra.mrb[0].mxu0 %v4022
    %v6776 = vpop.f32.mrb[0].mxu0
    %v6777 = vadd.f32 %v6664, %v6776
    %v6778 = vpop.f32.mrb[0].mxu0
    %v6779 = vadd.f32 %v6666, %v6778
    %v6780 = vpop.f32.mrb[0].mxu0
    %v6781 = vadd.f32 %v6668, %v6780
    %v6782 = vpop.f32.mrb[0].mxu0
    %v6783 = vadd.f32 %v6670, %v6782
    %6784 = vmatprep.mubr.bf16.mxu0 %v4029
    %6785 = vmatmul.mubr.bf16.gmra.mrb[0].mxu0 %v4028
    %v6786 = vpop.f32.mrb[0].mxu0
    %v6787 = vadd.f32 %v6674, %v6786
    %v6788 = vpop.f32.mrb[0].mxu0
    %v6789 = vadd.f32 %v6676, %v6788
    %v6790 = vpop.f32.mrb[0].mxu0
    %v6791 = vadd.f32 %v6678, %v6790
    %v6792 = vpop.f32.mrb[0].mxu0
    %v6793 = vadd.f32 %v6680, %v6792
    %6794 = vmatprep.mubr.bf16.mxu0 %v4035
    %6795 = vmatmul.mubr.bf16.gmra.mrb[0].mxu0 %v4034
    %v6796 = vpop.f32.mrb[0].mxu0
    %v6797 = vadd.f32 %v6684, %v6796
    %v6798 = vpop.f32.mrb[0].mxu0
    %v6799 = vadd.f32 %v6686, %v6798
    %v6800 = vpop.f32.mrb[0].mxu0
    %v6801 = vadd.f32 %v6688, %v6800
    %v6802 = vpop.f32.mrb[0].mxu0
    %v6803 = vadd.f32 %v6690, %v6802
    %6804 = vmatprep.mubr.bf16.mxu0 %v4041
    %6805 = vmatmul.mubr.bf16.gmra.mrb[0].mxu0 %v4040
    %v6806 = vpop.f32.mrb[0].mxu0
    %v6807 = vadd.f32 %v6694, %v6806
    %v6808 = vpop.f32.mrb[0].mxu0
    %v6809 = vadd.f32 %v6696, %v6808
    %v6810 = vpop.f32.mrb[0].mxu0
    %v6811 = vadd.f32 %v6698, %v6810
    %v6812 = vpop.f32.mrb[0].mxu0
    %v6813 = vadd.f32 %v6700, %v6812
    %6814 = vmatprep.mubr.bf16.mxu0 %v4047
    %6815 = vmatmul.mubr.bf16.gmra.mrb[0].mxu0 %v4046
    %v6816 = vpop.f32.mrb[0].mxu0
    %v6817 = vadd.f32 %v6704, %v6816
    %v6818 = vpop.f32.mrb[0].mxu0
    %v6819 = vadd.f32 %v6706, %v6818
    %v6820 = vpop.f32.mrb[0].mxu0
    %v6821 = vadd.f32 %v6708, %v6820
    %v6822 = vpop.f32.mrb[0].mxu0
    %v6823 = vadd.f32 %v6710, %v6822
    %6824 = vdwg.mxu0
    %v6825 = vmax.f32 %v6069, 0.0
    %v6826 = vmax.f32 %v6071, 0.0
    %v6827 = vmax.f32 %v6408, 0.0
    %v6828 = vmax.f32 %v6410, 0.0
    %v6829 = vmax.f32 %v6747, 0.0
    %v6830 = vmax.f32 %v6749, 0.0
    %v6831 = vmax.f32 %v6073, 0.0
    %v6832 = vmax.f32 %v6075, 0.0
    %v6833 = vmax.f32 %v6412, 0.0
    %v6834 = vmax.f32 %v6414, 0.0
    %v6835 = vmax.f32 %v6751, 0.0
    %v6836 = vmax.f32 %v6753, 0.0
    %v6837 = vmax.f32 %v6079, 0.0
    %v6838 = vmax.f32 %v6081, 0.0
    %v6839 = vmax.f32 %v6418, 0.0
    %v6840 = vmax.f32 %v6420, 0.0
    %v6841 = vmax.f32 %v6757, 0.0
    %v6842 = vmax.f32 %v6759, 0.0
    %v6843 = vmax.f32 %v6083, 0.0
    %v6844 = vmax.f32 %v6085, 0.0
    %v6845 = vmax.f32 %v6422, 0.0
    %v6846 = vmax.f32 %v6424, 0.0
    %v6847 = vmax.f32 %v6761, 0.0
    %v6848 = vmax.f32 %v6763, 0.0
    %v6849 = vmax.f32 %v6089, 0.0
    %v6850 = vmax.f32 %v6091, 0.0
    %v6851 = vmax.f32 %v6428, 0.0
    %v6852 = vmax.f32 %v6430, 0.0
    %v6853 = vmax.f32 %v6767, 0.0
    %v6854 = vmax.f32 %v6769, 0.0
    %v6855 = vmax.f32 %v6093, 0.0
    %v6856 = vmax.f32 %v6095, 0.0
    %v6857 = vmax.f32 %v6432, 0.0
    %v6858 = vmax.f32 %v6434, 0.0
    %v6859 = vmax.f32 %v6771, 0.0
    %v6860 = vmax.f32 %v6773, 0.0
    %v6861 = vmax.f32 %v6099, 0.0
    %v6862 = vmax.f32 %v6101, 0.0
    %v6863 = vmax.f32 %v6438, 0.0
    %v6864 = vmax.f32 %v6440, 0.0
    %v6865 = vmax.f32 %v6777, 0.0
    %v6866 = vmax.f32 %v6779, 0.0
    %v6867 = vmax.f32 %v6103, 0.0
    %v6868 = vmax.f32 %v6105, 0.0
    %v6869 = vmax.f32 %v6442, 0.0
    %v6870 = vmax.f32 %v6444, 0.0
    %v6871 = vmax.f32 %v6781, 0.0
    %v6872 = vmax.f32 %v6783, 0.0
    %v6873 = vmax.f32 %v6109, 0.0
    %v6874 = vmax.f32 %v6111, 0.0
    %v6875 = vmax.f32 %v6448, 0.0
    %v6876 = vmax.f32 %v6450, 0.0
    %v6877 = vmax.f32 %v6787, 0.0
    %v6878 = vmax.f32 %v6789, 0.0
    %v6879 = vmax.f32 %v6113, 0.0
    %v6880 = vmax.f32 %v6115, 0.0
    %v6881 = vmax.f32 %v6452, 0.0
    %v6882 = vmax.f32 %v6454, 0.0
    %v6883 = vmax.f32 %v6791, 0.0
    %v6884 = vmax.f32 %v6793, 0.0
    %v6885 = vmax.f32 %v6119, 0.0
    %v6886 = vmax.f32 %v6121, 0.0
    %v6887 = vmax.f32 %v6458, 0.0
    %v6888 = vmax.f32 %v6460, 0.0
    %v6889 = vmax.f32 %v6797, 0.0
    %v6890 = vmax.f32 %v6799, 0.0
    %v6891 = vmax.f32 %v6123, 0.0
    %v6892 = vmax.f32 %v6125, 0.0
    %v6893 = vmax.f32 %v6462, 0.0
    %v6894 = vmax.f32 %v6464, 0.0
    %v6895 = vmax.f32 %v6801, 0.0
    %v6896 = vmax.f32 %v6803, 0.0
    %v6897 = vmax.f32 %v6129, 0.0
    %v6898 = vmax.f32 %v6131, 0.0
    %v6899 = vmax.f32 %v6468, 0.0
    %v6900 = vmax.f32 %v6470, 0.0
    %v6901 = vmax.f32 %v6807, 0.0
    %v6902 = vmax.f32 %v6809, 0.0
    %v6903 = vmax.f32 %v6133, 0.0
    %v6904 = vmax.f32 %v6135, 0.0
    %v6905 = vmax.f32 %v6472, 0.0
    %v6906 = vmax.f32 %v6474, 0.0
    %v6907 = vmax.f32 %v6811, 0.0
    %v6908 = vmax.f32 %v6813, 0.0
    %v6909 = vmax.f32 %v6139, 0.0
    %v6910 = vmax.f32 %v6141, 0.0
    %v6911 = vmax.f32 %v6478, 0.0
    %v6912 = vmax.f32 %v6480, 0.0
    %v6913 = vmax.f32 %v6817, 0.0
    %v6914 = vmax.f32 %v6819, 0.0
    %v6915 = vmax.f32 %v6143, 0.0
    %v6916 = vmax.f32 %v6145, 0.0
    %v6917 = vmax.f32 %v6482, 0.0
    %v6918 = vmax.f32 %v6484, 0.0
    %v6919 = vmax.f32 %v6821, 0.0
    %v6920 = vmax.f32 %v6823, 0.0
    %v6921 = vpack.c.bf16 %v6831, %v6825
    %v6922 = vpack.c.bf16 %v6832, %v6826
    %v6923 = vpack.c.bf16 %v6833, %v6827
    %v6924 = vpack.c.bf16 %v6834, %v6828
    %v6925 = vpack.c.bf16 %v6835, %v6829
    %v6926 = vpack.c.bf16 %v6836, %v6830
    %v6927 = vpack.c.bf16 %v6843, %v6837
    %v6928 = vpack.c.bf16 %v6844, %v6838
    %v6929 = vpack.c.bf16 %v6845, %v6839
    %v6930 = vpack.c.bf16 %v6846, %v6840
    %v6931 = vpack.c.bf16 %v6847, %v6841
    %v6932 = vpack.c.bf16 %v6848, %v6842
    %v6933 = vpack.c.bf16 %v6855, %v6849
    %v6934 = vpack.c.bf16 %v6856, %v6850
    %v6935 = vpack.c.bf16 %v6857, %v6851
    %v6936 = vpack.c.bf16 %v6858, %v6852
    %v6937 = vpack.c.bf16 %v6859, %v6853
    %v6938 = vpack.c.bf16 %v6860, %v6854
    %v6939 = vpack.c.bf16 %v6867, %v6861
    %v6940 = vpack.c.bf16 %v6868, %v6862
    %v6941 = vpack.c.bf16 %v6869, %v6863
    %v6942 = vpack.c.bf16 %v6870, %v6864
    %v6943 = vpack.c.bf16 %v6871, %v6865
    %v6944 = vpack.c.bf16 %v6872, %v6866
    %v6945 = vpack.c.bf16 %v6879, %v6873
    %v6946 = vpack.c.bf16 %v6880, %v6874
    %v6947 = vpack.c.bf16 %v6881, %v6875
    %v6948 = vpack.c.bf16 %v6882, %v6876
    %v6949 = vpack.c.bf16 %v6883, %v6877
    %v6950 = vpack.c.bf16 %v6884, %v6878
    %v6951 = vpack.c.bf16 %v6891, %v6885
    %v6952 = vpack.c.bf16 %v6892, %v6886
    %v6953 = vpack.c.bf16 %v6893, %v6887
    %v6954 = vpack.c.bf16 %v6894, %v6888
    %v6955 = vpack.c.bf16 %v6895, %v6889
    %v6956 = vpack.c.bf16 %v6896, %v6890
    %v6957 = vpack.c.bf16 %v6903, %v6897
    %v6958 = vpack.c.bf16 %v6904, %v6898
    %v6959 = vpack.c.bf16 %v6905, %v6899
    %v6960 = vpack.c.bf16 %v6906, %v6900
    %v6961 = vpack.c.bf16 %v6907, %v6901
    %v6962 = vpack.c.bf16 %v6908, %v6902
    %v6963 = vpack.c.bf16 %v6915, %v6909
    %v6964 = vpack.c.bf16 %v6916, %v6910
    %v6965 = vpack.c.bf16 %v6917, %v6911
    %v6966 = vpack.c.bf16 %v6918, %v6912
    %v6967 = vpack.c.bf16 %v6919, %v6913
    %v6968 = vpack.c.bf16 %v6920, %v6914
    %v6969 = vld [vmem:[#allocation11] sm:$0xff]
    %v6970 = vld [vmem:[#allocation11 + $0x8] sm:$0xff]
    %v6971 = vld [vmem:[#allocation11 + $0x10] sm:$0xff]
    %v6972 = vld [vmem:[#allocation11 + $0x18] sm:$0xff]
    %v6973 = vld [vmem:[#allocation11 + $0x20] sm:$0xff]
    %v6974 = vld [vmem:[#allocation11 + $0x28] sm:$0xff]
    %v6975 = vld [vmem:[#allocation11 + $0x30] sm:$0xff]
    %v6976 = vld [vmem:[#allocation11 + $0x38] sm:$0xff]
    %v6977 = vld [vmem:[#allocation11 + $0x40] sm:$0xff]
    %v6978 = vld [vmem:[#allocation11 + $0x48] sm:$0xff]
    %v6979 = vld [vmem:[#allocation11 + $0x50] sm:$0xff]
    %v6980 = vld [vmem:[#allocation11 + $0x58] sm:$0xff]
    %v6981 = vld [vmem:[#allocation11 + $0x60] sm:$0xff]
    %v6982 = vld [vmem:[#allocation11 + $0x68] sm:$0xff]
    %v6983 = vld [vmem:[#allocation11 + $0x70] sm:$0xff]
    %v6984 = vld [vmem:[#allocation11 + $0x78] sm:$0xff]
    %v6985 = vld [vmem:[#allocation11 + $0x80] sm:$0xff]
    %v6986 = vld [vmem:[#allocation11 + $0x88] sm:$0xff]
    %v6987 = vld [vmem:[#allocation11 + $0x90] sm:$0xff]
    %v6988 = vld [vmem:[#allocation11 + $0x98] sm:$0xff]
    %v6989 = vld [vmem:[#allocation11 + $0xa0] sm:$0xff]
    %v6990 = vld [vmem:[#allocation11 + $0xa8] sm:$0xff]
    %v6991 = vld [vmem:[#allocation11 + $0xb0] sm:$0xff]
    %v6992 = vld [vmem:[#allocation11 + $0xb8] sm:$0xff]
    %v6993 = vld [vmem:[#allocation11 + $0xc0] sm:$0xff]
    %v6994 = vld [vmem:[#allocation11 + $0xc8] sm:$0xff]
    %v6995 = vld [vmem:[#allocation11 + $0xd0] sm:$0xff]
    %v6996 = vld [vmem:[#allocation11 + $0xd8] sm:$0xff]
    %v6997 = vld [vmem:[#allocation11 + $0xe0] sm:$0xff]
    %v6998 = vld [vmem:[#allocation11 + $0xe8] sm:$0xff]
    %v6999 = vld [vmem:[#allocation11 + $0xf0] sm:$0xff]
    %v7000 = vld [vmem:[#allocation11 + $0xf8] sm:$0xff]
    %v7001 = vld [vmem:[#allocation11 + $0x100] sm:$0xff]
    %v7002 = vld [vmem:[#allocation11 + $0x108] sm:$0xff]
    %v7003 = vld [vmem:[#allocation11 + $0x110] sm:$0xff]
    %v7004 = vld [vmem:[#allocation11 + $0x118] sm:$0xff]
    %v7005 = vld [vmem:[#allocation11 + $0x120] sm:$0xff]
    %v7006 = vld [vmem:[#allocation11 + $0x128] sm:$0xff]
    %v7007 = vld [vmem:[#allocation11 + $0x130] sm:$0xff]
    %v7008 = vld [vmem:[#allocation11 + $0x138] sm:$0xff]
    %v7009 = vld [vmem:[#allocation11 + $0x140] sm:$0xff]
    %v7010 = vld [vmem:[#allocation11 + $0x148] sm:$0xff]
    %v7011 = vld [vmem:[#allocation11 + $0x150] sm:$0xff]
    %v7012 = vld [vmem:[#allocation11 + $0x158] sm:$0xff]
    %v7013 = vld [vmem:[#allocation11 + $0x160] sm:$0xff]
    %v7014 = vld [vmem:[#allocation11 + $0x168] sm:$0xff]
    %v7015 = vld [vmem:[#allocation11 + $0x170] sm:$0xff]
    %v7016 = vld [vmem:[#allocation11 + $0x178] sm:$0xff]
    %v7017 = vld [vmem:[#allocation11 + $0x180] sm:$0xff]
    %v7018 = vld [vmem:[#allocation11 + $0x188] sm:$0xff]
    %v7019 = vld [vmem:[#allocation11 + $0x190] sm:$0xff]
    %v7020 = vld [vmem:[#allocation11 + $0x198] sm:$0xff]
    %v7021 = vld [vmem:[#allocation11 + $0x1a0] sm:$0xff]
    %v7022 = vld [vmem:[#allocation11 + $0x1a8] sm:$0xff]
    %v7023 = vld [vmem:[#allocation11 + $0x1b0] sm:$0xff]
    %v7024 = vld [vmem:[#allocation11 + $0x1b8] sm:$0xff]
    %v7025 = vld [vmem:[#allocation11 + $0x1c0] sm:$0xff]
    %v7026 = vld [vmem:[#allocation11 + $0x1c8] sm:$0xff]
    %v7027 = vld [vmem:[#allocation11 + $0x1d0] sm:$0xff]
    %v7028 = vld [vmem:[#allocation11 + $0x1d8] sm:$0xff]
    %v7029 = vld [vmem:[#allocation11 + $0x1e0] sm:$0xff]
    %v7030 = vld [vmem:[#allocation11 + $0x1e8] sm:$0xff]
    %v7031 = vld [vmem:[#allocation11 + $0x1f0] sm:$0xff]
    %v7032 = vld [vmem:[#allocation11 + $0x1f8] sm:$0xff]
    %v7033 = vld [vmem:[#allocation11 + $0x200] sm:$0xff]
    %v7034 = vld [vmem:[#allocation11 + $0x208] sm:$0xff]
    %v7035 = vld [vmem:[#allocation11 + $0x210] sm:$0xff]
    %v7036 = vld [vmem:[#allocation11 + $0x218] sm:$0xff]
    %v7037 = vld [vmem:[#allocation11 + $0x220] sm:$0xff]
    %v7038 = vld [vmem:[#allocation11 + $0x228] sm:$0xff]
    %v7039 = vld [vmem:[#allocation11 + $0x230] sm:$0xff]
    %v7040 = vld [vmem:[#allocation11 + $0x238] sm:$0xff]
    %v7041 = vld [vmem:[#allocation11 + $0x240] sm:$0xff]
    %v7042 = vld [vmem:[#allocation11 + $0x248] sm:$0xff]
    %v7043 = vld [vmem:[#allocation11 + $0x250] sm:$0xff]
    %v7044 = vld [vmem:[#allocation11 + $0x258] sm:$0xff]
    %v7045 = vld [vmem:[#allocation11 + $0x260] sm:$0xff]
    %v7046 = vld [vmem:[#allocation11 + $0x268] sm:$0xff]
    %v7047 = vld [vmem:[#allocation11 + $0x270] sm:$0xff]
    %v7048 = vld [vmem:[#allocation11 + $0x278] sm:$0xff]
    %v7049 = vld [vmem:[#allocation11 + $0x280] sm:$0xff]
    %v7050 = vld [vmem:[#allocation11 + $0x288] sm:$0xff]
    %v7051 = vld [vmem:[#allocation11 + $0x290] sm:$0xff]
    %v7052 = vld [vmem:[#allocation11 + $0x298] sm:$0xff]
    %v7053 = vld [vmem:[#allocation11 + $0x2a0] sm:$0xff]
    %v7054 = vld [vmem:[#allocation11 + $0x2a8] sm:$0xff]
    %v7055 = vld [vmem:[#allocation11 + $0x2b0] sm:$0xff]
    %v7056 = vld [vmem:[#allocation11 + $0x2b8] sm:$0xff]
    %v7057 = vld [vmem:[#allocation11 + $0x2c0] sm:$0xff]
    %v7058 = vld [vmem:[#allocation11 + $0x2c8] sm:$0xff]
    %v7059 = vld [vmem:[#allocation11 + $0x2d0] sm:$0xff]
    %v7060 = vld [vmem:[#allocation11 + $0x2d8] sm:$0xff]
    %v7061 = vld [vmem:[#allocation11 + $0x2e0] sm:$0xff]
    %v7062 = vld [vmem:[#allocation11 + $0x2e8] sm:$0xff]
    %v7063 = vld [vmem:[#allocation11 + $0x2f0] sm:$0xff]
    %v7064 = vld [vmem:[#allocation11 + $0x2f8] sm:$0xff]
    %v7065 = vld [vmem:[#allocation13] sm:$0x3]
    %v7067 = vlaneseq
    %v7068 = vshrl.u32 %v7067, 7
    %v7069 = vsub.s32 0, %v7068
    %v7070 = vrot.slane %v7065, %v7069
    %v7071 = vlaneseq
    %v7072 = vshrl.u32 %v7071, 7
    %v7073 = vsub.s32 1, %v7072
    %v7074 = vrot.slane %v7065, %v7073
    %v7173 = vunpack.c.l.b16 %v6969
    %v7174 = vunpack.c.h.b16 %v6969
    %v7175 = vunpack.c.l.b16 %v6970
    %v7176 = vunpack.c.h.b16 %v6970
    %v7177 = vunpack.c.l.b16 %v6971
    %v7178 = vunpack.c.h.b16 %v6971
    %v7179 = vunpack.c.l.b16 %v6972
    %v7180 = vunpack.c.h.b16 %v6972
    %v7181 = vunpack.c.l.b16 %v6973
    %v7182 = vunpack.c.h.b16 %v6973
    %v7183 = vunpack.c.l.b16 %v6974
    %v7184 = vunpack.c.h.b16 %v6974
    %v7185 = vunpack.c.l.b16 %v6975
    %v7186 = vunpack.c.h.b16 %v6975
    %v7187 = vunpack.c.l.b16 %v6976
    %v7188 = vunpack.c.h.b16 %v6976
    %v7189 = vunpack.c.l.b16 %v6977
    %v7190 = vunpack.c.h.b16 %v6977
    %v7191 = vunpack.c.l.b16 %v6978
    %v7192 = vunpack.c.h.b16 %v6978
    %v7193 = vunpack.c.l.b16 %v6979
    %v7194 = vunpack.c.h.b16 %v6979
    %v7195 = vunpack.c.l.b16 %v6980
    %v7196 = vunpack.c.h.b16 %v6980
    %v7197 = vunpack.c.l.b16 %v6981
    %v7198 = vunpack.c.h.b16 %v6981
    %v7199 = vunpack.c.l.b16 %v6982
    %v7200 = vunpack.c.h.b16 %v6982
    %v7201 = vunpack.c.l.b16 %v6983
    %v7202 = vunpack.c.h.b16 %v6983
    %v7203 = vunpack.c.l.b16 %v6984
    %v7204 = vunpack.c.h.b16 %v6984
    %v7205 = vunpack.c.l.b16 %v6985
    %v7206 = vunpack.c.h.b16 %v6985
    %v7207 = vunpack.c.l.b16 %v6986
    %v7208 = vunpack.c.h.b16 %v6986
    %v7209 = vunpack.c.l.b16 %v6987
    %v7210 = vunpack.c.h.b16 %v6987
    %v7211 = vunpack.c.l.b16 %v6988
    %v7212 = vunpack.c.h.b16 %v6988
    %v7213 = vunpack.c.l.b16 %v6989
    %v7214 = vunpack.c.h.b16 %v6989
    %v7215 = vunpack.c.l.b16 %v6990
    %v7216 = vunpack.c.h.b16 %v6990
    %v7217 = vunpack.c.l.b16 %v6991
    %v7218 = vunpack.c.h.b16 %v6991
    %v7219 = vunpack.c.l.b16 %v6992
    %v7220 = vunpack.c.h.b16 %v6992
    %v7221 = vunpack.c.l.b16 %v6993
    %v7222 = vunpack.c.h.b16 %v6993
    %v7223 = vunpack.c.l.b16 %v6994
    %v7224 = vunpack.c.h.b16 %v6994
    %v7225 = vunpack.c.l.b16 %v6995
    %v7226 = vunpack.c.h.b16 %v6995
    %v7227 = vunpack.c.l.b16 %v6996
    %v7228 = vunpack.c.h.b16 %v6996
    %v7229 = vunpack.c.l.b16 %v6997
    %v7230 = vunpack.c.h.b16 %v6997
    %v7231 = vunpack.c.l.b16 %v6998
    %v7232 = vunpack.c.h.b16 %v6998
    %v7233 = vunpack.c.l.b16 %v6999
    %v7234 = vunpack.c.h.b16 %v6999
    %v7235 = vunpack.c.l.b16 %v7000
    %v7236 = vunpack.c.h.b16 %v7000
    %v7237 = vunpack.c.l.b16 %v7001
    %v7238 = vunpack.c.h.b16 %v7001
    %v7239 = vunpack.c.l.b16 %v7002
    %v7240 = vunpack.c.h.b16 %v7002
    %v7241 = vunpack.c.l.b16 %v7003
    %v7242 = vunpack.c.h.b16 %v7003
    %v7243 = vunpack.c.l.b16 %v7004
    %v7244 = vunpack.c.h.b16 %v7004
    %v7245 = vunpack.c.l.b16 %v7005
    %v7246 = vunpack.c.h.b16 %v7005
    %v7247 = vunpack.c.l.b16 %v7006
    %v7248 = vunpack.c.h.b16 %v7006
    %v7249 = vunpack.c.l.b16 %v7007
    %v7250 = vunpack.c.h.b16 %v7007
    %v7251 = vunpack.c.l.b16 %v7008
    %v7252 = vunpack.c.h.b16 %v7008
    %v7253 = vunpack.c.l.b16 %v7009
    %v7254 = vunpack.c.h.b16 %v7009
    %v7255 = vunpack.c.l.b16 %v7010
    %v7256 = vunpack.c.h.b16 %v7010
    %v7257 = vunpack.c.l.b16 %v7011
    %v7258 = vunpack.c.h.b16 %v7011
    %v7259 = vunpack.c.l.b16 %v7012
    %v7260 = vunpack.c.h.b16 %v7012
    %v7261 = vunpack.c.l.b16 %v7013
    %v7262 = vunpack.c.h.b16 %v7013
    %v7263 = vunpack.c.l.b16 %v7014
    %v7264 = vunpack.c.h.b16 %v7014
    %v7265 = vunpack.c.l.b16 %v7015
    %v7266 = vunpack.c.h.b16 %v7015
    %v7267 = vunpack.c.l.b16 %v7016
    %v7268 = vunpack.c.h.b16 %v7016
    %v7269 = vunpack.c.l.b16 %v7017
    %v7270 = vunpack.c.h.b16 %v7017
    %v7271 = vunpack.c.l.b16 %v7018
    %v7272 = vunpack.c.h.b16 %v7018
    %v7273 = vunpack.c.l.b16 %v7019
    %v7274 = vunpack.c.h.b16 %v7019
    %v7275 = vunpack.c.l.b16 %v7020
    %v7276 = vunpack.c.h.b16 %v7020
    %v7277 = vunpack.c.l.b16 %v7021
    %v7278 = vunpack.c.h.b16 %v7021
    %v7279 = vunpack.c.l.b16 %v7022
    %v7280 = vunpack.c.h.b16 %v7022
    %v7281 = vunpack.c.l.b16 %v7023
    %v7282 = vunpack.c.h.b16 %v7023
    %v7283 = vunpack.c.l.b16 %v7024
    %v7284 = vunpack.c.h.b16 %v7024
    %v7285 = vunpack.c.l.b16 %v7025
    %v7286 = vunpack.c.h.b16 %v7025
    %v7287 = vunpack.c.l.b16 %v7026
    %v7288 = vunpack.c.h.b16 %v7026
    %v7289 = vunpack.c.l.b16 %v7027
    %v7290 = vunpack.c.h.b16 %v7027
    %v7291 = vunpack.c.l.b16 %v7028
    %v7292 = vunpack.c.h.b16 %v7028
    %v7293 = vunpack.c.l.b16 %v7029
    %v7294 = vunpack.c.h.b16 %v7029
    %v7295 = vunpack.c.l.b16 %v7030
    %v7296 = vunpack.c.h.b16 %v7030
    %v7297 = vunpack.c.l.b16 %v7031
    %v7298 = vunpack.c.h.b16 %v7031
    %v7299 = vunpack.c.l.b16 %v7032
    %v7300 = vunpack.c.h.b16 %v7032
    %v7301 = vunpack.c.l.b16 %v7033
    %v7302 = vunpack.c.h.b16 %v7033
    %v7303 = vunpack.c.l.b16 %v7034
    %v7304 = vunpack.c.h.b16 %v7034
    %v7305 = vunpack.c.l.b16 %v7035
    %v7306 = vunpack.c.h.b16 %v7035
    %v7307 = vunpack.c.l.b16 %v7036
    %v7308 = vunpack.c.h.b16 %v7036
    %v7309 = vunpack.c.l.b16 %v7037
    %v7310 = vunpack.c.h.b16 %v7037
    %v7311 = vunpack.c.l.b16 %v7038
    %v7312 = vunpack.c.h.b16 %v7038
    %v7313 = vunpack.c.l.b16 %v7039
    %v7314 = vunpack.c.h.b16 %v7039
    %v7315 = vunpack.c.l.b16 %v7040
    %v7316 = vunpack.c.h.b16 %v7040
    %v7317 = vunpack.c.l.b16 %v7041
    %v7318 = vunpack.c.h.b16 %v7041
    %v7319 = vunpack.c.l.b16 %v7042
    %v7320 = vunpack.c.h.b16 %v7042
    %v7321 = vunpack.c.l.b16 %v7043
    %v7322 = vunpack.c.h.b16 %v7043
    %v7323 = vunpack.c.l.b16 %v7044
    %v7324 = vunpack.c.h.b16 %v7044
    %v7325 = vunpack.c.l.b16 %v7045
    %v7326 = vunpack.c.h.b16 %v7045
    %v7327 = vunpack.c.l.b16 %v7046
    %v7328 = vunpack.c.h.b16 %v7046
    %v7329 = vunpack.c.l.b16 %v7047
    %v7330 = vunpack.c.h.b16 %v7047
    %v7331 = vunpack.c.l.b16 %v7048
    %v7332 = vunpack.c.h.b16 %v7048
    %v7333 = vunpack.c.l.b16 %v7049
    %v7334 = vunpack.c.h.b16 %v7049
    %v7335 = vunpack.c.l.b16 %v7050
    %v7336 = vunpack.c.h.b16 %v7050
    %v7337 = vunpack.c.l.b16 %v7051
    %v7338 = vunpack.c.h.b16 %v7051
    %v7339 = vunpack.c.l.b16 %v7052
    %v7340 = vunpack.c.h.b16 %v7052
    %v7341 = vunpack.c.l.b16 %v7053
    %v7342 = vunpack.c.h.b16 %v7053
    %v7343 = vunpack.c.l.b16 %v7054
    %v7344 = vunpack.c.h.b16 %v7054
    %v7345 = vunpack.c.l.b16 %v7055
    %v7346 = vunpack.c.h.b16 %v7055
    %v7347 = vunpack.c.l.b16 %v7056
    %v7348 = vunpack.c.h.b16 %v7056
    %v7349 = vunpack.c.l.b16 %v7057
    %v7350 = vunpack.c.h.b16 %v7057
    %v7351 = vunpack.c.l.b16 %v7058
    %v7352 = vunpack.c.h.b16 %v7058
    %v7353 = vunpack.c.l.b16 %v7059
    %v7354 = vunpack.c.h.b16 %v7059
    %v7355 = vunpack.c.l.b16 %v7060
    %v7356 = vunpack.c.h.b16 %v7060
    %v7357 = vunpack.c.l.b16 %v7061
    %v7358 = vunpack.c.h.b16 %v7061
    %v7359 = vunpack.c.l.b16 %v7062
    %v7360 = vunpack.c.h.b16 %v7062
    %v7361 = vunpack.c.l.b16 %v7063
    %v7362 = vunpack.c.h.b16 %v7063
    %v7363 = vunpack.c.l.b16 %v7064
    %v7364 = vunpack.c.h.b16 %v7064
    %v7365 = vpack.c.b16 %v7175, %v7173
    %v7366 = vpack.c.b16 %v7176, %v7174
    %v7367 = vpack.c.b16 %v7179, %v7177
    %v7368 = vpack.c.b16 %v7180, %v7178
    %v7369 = vpack.c.b16 %v7183, %v7181
    %v7370 = vpack.c.b16 %v7184, %v7182
    %v7371 = vpack.c.b16 %v7187, %v7185
    %v7372 = vpack.c.b16 %v7188, %v7186
    %v7373 = vpack.c.b16 %v7191, %v7189
    %v7374 = vpack.c.b16 %v7192, %v7190
    %v7375 = vpack.c.b16 %v7195, %v7193
    %v7376 = vpack.c.b16 %v7196, %v7194
    %v7377 = vpack.c.b16 %v7199, %v7197
    %v7378 = vpack.c.b16 %v7200, %v7198
    %v7379 = vpack.c.b16 %v7203, %v7201
    %v7380 = vpack.c.b16 %v7204, %v7202
    %v7381 = vpack.c.b16 %v7207, %v7205
    %v7382 = vpack.c.b16 %v7208, %v7206
    %v7383 = vpack.c.b16 %v7211, %v7209
    %v7384 = vpack.c.b16 %v7212, %v7210
    %v7385 = vpack.c.b16 %v7215, %v7213
    %v7386 = vpack.c.b16 %v7216, %v7214
    %v7387 = vpack.c.b16 %v7219, %v7217
    %v7388 = vpack.c.b16 %v7220, %v7218
    %v7389 = vpack.c.b16 %v7223, %v7221
    %v7390 = vpack.c.b16 %v7224, %v7222
    %v7391 = vpack.c.b16 %v7227, %v7225
    %v7392 = vpack.c.b16 %v7228, %v7226
    %v7393 = vpack.c.b16 %v7231, %v7229
    %v7394 = vpack.c.b16 %v7232, %v7230
    %v7395 = vpack.c.b16 %v7235, %v7233
    %v7396 = vpack.c.b16 %v7236, %v7234
    %v7397 = vpack.c.b16 %v7239, %v7237
    %v7398 = vpack.c.b16 %v7240, %v7238
    %v7399 = vpack.c.b16 %v7243, %v7241
    %v7400 = vpack.c.b16 %v7244, %v7242
    %v7401 = vpack.c.b16 %v7247, %v7245
    %v7402 = vpack.c.b16 %v7248, %v7246
    %v7403 = vpack.c.b16 %v7251, %v7249
    %v7404 = vpack.c.b16 %v7252, %v7250
    %v7405 = vpack.c.b16 %v7255, %v7253
    %v7406 = vpack.c.b16 %v7256, %v7254
    %v7407 = vpack.c.b16 %v7259, %v7257
    %v7408 = vpack.c.b16 %v7260, %v7258
    %v7409 = vpack.c.b16 %v7263, %v7261
    %v7410 = vpack.c.b16 %v7264, %v7262
    %v7411 = vpack.c.b16 %v7267, %v7265
    %v7412 = vpack.c.b16 %v7268, %v7266
    %v7413 = vpack.c.b16 %v7271, %v7269
    %v7414 = vpack.c.b16 %v7272, %v7270
    %v7415 = vpack.c.b16 %v7275, %v7273
    %v7416 = vpack.c.b16 %v7276, %v7274
    %v7417 = vpack.c.b16 %v7279, %v7277
    %v7418 = vpack.c.b16 %v7280, %v7278
    %v7419 = vpack.c.b16 %v7283, %v7281
    %v7420 = vpack.c.b16 %v7284, %v7282
    %v7421 = vpack.c.b16 %v7287, %v7285
    %v7422 = vpack.c.b16 %v7288, %v7286
    %v7423 = vpack.c.b16 %v7291, %v7289
    %v7424 = vpack.c.b16 %v7292, %v7290
    %v7425 = vpack.c.b16 %v7295, %v7293
    %v7426 = vpack.c.b16 %v7296, %v7294
    %v7427 = vpack.c.b16 %v7299, %v7297
    %v7428 = vpack.c.b16 %v7300, %v7298
    %v7429 = vpack.c.b16 %v7303, %v7301
    %v7430 = vpack.c.b16 %v7304, %v7302
    %v7431 = vpack.c.b16 %v7307, %v7305
    %v7432 = vpack.c.b16 %v7308, %v7306
    %v7433 = vpack.c.b16 %v7311, %v7309
    %v7434 = vpack.c.b16 %v7312, %v7310
    %v7435 = vpack.c.b16 %v7315, %v7313
    %v7436 = vpack.c.b16 %v7316, %v7314
    %v7437 = vpack.c.b16 %v7319, %v7317
    %v7438 = vpack.c.b16 %v7320, %v7318
    %v7439 = vpack.c.b16 %v7323, %v7321
    %v7440 = vpack.c.b16 %v7324, %v7322
    %v7441 = vpack.c.b16 %v7327, %v7325
    %v7442 = vpack.c.b16 %v7328, %v7326
    %v7443 = vpack.c.b16 %v7331, %v7329
    %v7444 = vpack.c.b16 %v7332, %v7330
    %v7445 = vpack.c.b16 %v7335, %v7333
    %v7446 = vpack.c.b16 %v7336, %v7334
    %v7447 = vpack.c.b16 %v7339, %v7337
    %v7448 = vpack.c.b16 %v7340, %v7338
    %v7449 = vpack.c.b16 %v7343, %v7341
    %v7450 = vpack.c.b16 %v7344, %v7342
    %v7451 = vpack.c.b16 %v7347, %v7345
    %v7452 = vpack.c.b16 %v7348, %v7346
    %v7453 = vpack.c.b16 %v7351, %v7349
    %v7454 = vpack.c.b16 %v7352, %v7350
    %v7455 = vpack.c.b16 %v7355, %v7353
    %v7456 = vpack.c.b16 %v7356, %v7354
    %v7457 = vpack.c.b16 %v7359, %v7357
    %v7458 = vpack.c.b16 %v7360, %v7358
    %v7459 = vpack.c.b16 %v7363, %v7361
    %v7460 = vpack.c.b16 %v7364, %v7362
    %7557 = vmatprep.subr.bf16.mxu0 %v7366
    %7558 = vmatpush1.bf16.msra.mxu0 %v7365
    %7559 = vmatprep.subr.bf16.mxu0 %v7368
    %7560 = vmatpush1.bf16.msra.mxu0 %v7367
    %7561 = vmatprep.subr.bf16.mxu0 %v7370
    %7562 = vmatpush1.bf16.msra.mxu0 %v7369
    %7563 = vmatprep.subr.bf16.mxu0 %v7372
    %7564 = vmatpush1.bf16.msra.mxu0 %v7371
    %7565 = vmatprep.subr.bf16.mxu0 %v7374
    %7566 = vmatpush1.bf16.msra.mxu0 %v7373
    %7567 = vmatprep.subr.bf16.mxu0 %v7376
    %7568 = vmatpush1.bf16.msra.mxu0 %v7375
    %7569 = vmatprep.subr.bf16.mxu0 %v7378
    %7570 = vmatpush1.bf16.msra.mxu0 %v7377
    %7571 = vmatprep.subr.bf16.mxu0 %v7380
    %7572 = vmatpush1.bf16.msra.mxu0 %v7379
    %7573 = vmatprep.subr.bf16.mxu0 %v7382
    %7574 = vmatpush1.bf16.msra.mxu0 %v7381
    %7575 = vmatprep.subr.bf16.mxu0 %v7384
    %7576 = vmatpush1.bf16.msra.mxu0 %v7383
    %7577 = vmatprep.subr.bf16.mxu0 %v7386
    %7578 = vmatpush1.bf16.msra.mxu0 %v7385
    %7579 = vmatprep.subr.bf16.mxu0 %v7388
    %7580 = vmatpush1.bf16.msra.mxu0 %v7387
    %7581 = vmatprep.subr.bf16.mxu0 %v7390
    %7582 = vmatpush1.bf16.msra.mxu0 %v7389
    %7583 = vmatprep.subr.bf16.mxu0 %v7392
    %7584 = vmatpush1.bf16.msra.mxu0 %v7391
    %7585 = vmatprep.subr.bf16.mxu0 %v7394
    %7586 = vmatpush1.bf16.msra.mxu0 %v7393
    %7587 = vmatprep.subr.bf16.mxu0 %v7396
    %7588 = vmatpush1.bf16.msra.mxu0 %v7395
    %7589 = vmatprep.mubr.bf16.mxu0 %v6922
    %7590 = vmatmul.mubr.bf16.gmra.mrb[0].mxu0 %v6921
    %v7591 = vpop.f32.mrb[0].mxu0
    %v7592 = vadd.f32 %v7070, %v7591
    %v7593 = vpop.f32.mrb[0].mxu0
    %v7594 = vadd.f32 %v7074, %v7593
    %v7595 = vpop.f32.mrb[0].mxu0
    %v7596 = vadd.f32 %v7070, %v7595
    %v7597 = vpop.f32.mrb[0].mxu0
    %v7598 = vadd.f32 %v7074, %v7597
    %7599 = vmatprep.mubr.bf16.mxu0 %v6928
    %7600 = vmatmul.mubr.bf16.gmra.mrb[0].mxu0 %v6927
    %v7601 = vpop.f32.mrb[0].mxu0
    %v7602 = vadd.f32 %v7070, %v7601
    %v7603 = vpop.f32.mrb[0].mxu0
    %v7604 = vadd.f32 %v7074, %v7603
    %v7605 = vpop.f32.mrb[0].mxu0
    %v7606 = vadd.f32 %v7070, %v7605
    %v7607 = vpop.f32.mrb[0].mxu0
    %v7608 = vadd.f32 %v7074, %v7607
    %7609 = vmatprep.mubr.bf16.mxu0 %v6934
    %7610 = vmatmul.mubr.bf16.gmra.mrb[0].mxu0 %v6933
    %v7611 = vpop.f32.mrb[0].mxu0
    %v7612 = vadd.f32 %v7070, %v7611
    %v7613 = vpop.f32.mrb[0].mxu0
    %v7614 = vadd.f32 %v7074, %v7613
    %v7615 = vpop.f32.mrb[0].mxu0
    %v7616 = vadd.f32 %v7070, %v7615
    %v7617 = vpop.f32.mrb[0].mxu0
    %v7618 = vadd.f32 %v7074, %v7617
    %7619 = vmatprep.mubr.bf16.mxu0 %v6940
    %7620 = vmatmul.mubr.bf16.gmra.mrb[0].mxu0 %v6939
    %v7621 = vpop.f32.mrb[0].mxu0
    %v7622 = vadd.f32 %v7070, %v7621
    %v7623 = vpop.f32.mrb[0].mxu0
    %v7624 = vadd.f32 %v7074, %v7623
    %v7625 = vpop.f32.mrb[0].mxu0
    %v7626 = vadd.f32 %v7070, %v7625
    %v7627 = vpop.f32.mrb[0].mxu0
    %v7628 = vadd.f32 %v7074, %v7627
    %7629 = vmatprep.mubr.bf16.mxu0 %v6946
    %7630 = vmatmul.mubr.bf16.gmra.mrb[0].mxu0 %v6945
    %v7631 = vpop.f32.mrb[0].mxu0
    %v7632 = vadd.f32 %v7070, %v7631
    %v7633 = vpop.f32.mrb[0].mxu0
    %v7634 = vadd.f32 %v7074, %v7633
    %v7635 = vpop.f32.mrb[0].mxu0
    %v7636 = vadd.f32 %v7070, %v7635
    %v7637 = vpop.f32.mrb[0].mxu0
    %v7638 = vadd.f32 %v7074, %v7637
    %7639 = vmatprep.mubr.bf16.mxu0 %v6952
    %7640 = vmatmul.mubr.bf16.gmra.mrb[0].mxu0 %v6951
    %v7641 = vpop.f32.mrb[0].mxu0
    %v7642 = vadd.f32 %v7070, %v7641
    %v7643 = vpop.f32.mrb[0].mxu0
    %v7644 = vadd.f32 %v7074, %v7643
    %v7645 = vpop.f32.mrb[0].mxu0
    %v7646 = vadd.f32 %v7070, %v7645
    %v7647 = vpop.f32.mrb[0].mxu0
    %v7648 = vadd.f32 %v7074, %v7647
    %7649 = vmatprep.mubr.bf16.mxu0 %v6958
    %7650 = vmatmul.mubr.bf16.gmra.mrb[0].mxu0 %v6957
    %v7651 = vpop.f32.mrb[0].mxu0
    %v7652 = vadd.f32 %v7070, %v7651
    %v7653 = vpop.f32.mrb[0].mxu0
    %v7654 = vadd.f32 %v7074, %v7653
    %v7655 = vpop.f32.mrb[0].mxu0
    %v7656 = vadd.f32 %v7070, %v7655
    %v7657 = vpop.f32.mrb[0].mxu0
    %v7658 = vadd.f32 %v7074, %v7657
    %7659 = vmatprep.mubr.bf16.mxu0 %v6964
    %7660 = vmatmul.mubr.bf16.gmra.mrb[0].mxu0 %v6963
    %v7661 = vpop.f32.mrb[0].mxu0
    %v7662 = vadd.f32 %v7070, %v7661
    %v7663 = vpop.f32.mrb[0].mxu0
    %v7664 = vadd.f32 %v7074, %v7663
    %v7665 = vpop.f32.mrb[0].mxu0
    %v7666 = vadd.f32 %v7070, %v7665
    %v7667 = vpop.f32.mrb[0].mxu0
    %v7668 = vadd.f32 %v7074, %v7667
    %7669 = vdwg.mxu0
    %7670 = vmatprep.subr.bf16.mxu0 %v7398
    %7671 = vmatpush1.bf16.msra.mxu0 %v7397
    %7672 = vmatprep.subr.bf16.mxu0 %v7400
    %7673 = vmatpush1.bf16.msra.mxu0 %v7399
    %7674 = vmatprep.subr.bf16.mxu0 %v7402
    %7675 = vmatpush1.bf16.msra.mxu0 %v7401
    %7676 = vmatprep.subr.bf16.mxu0 %v7404
    %7677 = vmatpush1.bf16.msra.mxu0 %v7403
    %7678 = vmatprep.subr.bf16.mxu0 %v7406
    %7679 = vmatpush1.bf16.msra.mxu0 %v7405
    %7680 = vmatprep.subr.bf16.mxu0 %v7408
    %7681 = vmatpush1.bf16.msra.mxu0 %v7407
    %7682 = vmatprep.subr.bf16.mxu0 %v7410
    %7683 = vmatpush1.bf16.msra.mxu0 %v7409
    %7684 = vmatprep.subr.bf16.mxu0 %v7412
    %7685 = vmatpush1.bf16.msra.mxu0 %v7411
    %7686 = vmatprep.subr.bf16.mxu0 %v7414
    %7687 = vmatpush1.bf16.msra.mxu0 %v7413
    %7688 = vmatprep.subr.bf16.mxu0 %v7416
    %7689 = vmatpush1.bf16.msra.mxu0 %v7415
    %7690 = vmatprep.subr.bf16.mxu0 %v7418
    %7691 = vmatpush1.bf16.msra.mxu0 %v7417
    %7692 = vmatprep.subr.bf16.mxu0 %v7420
    %7693 = vmatpush1.bf16.msra.mxu0 %v7419
    %7694 = vmatprep.subr.bf16.mxu0 %v7422
    %7695 = vmatpush1.bf16.msra.mxu0 %v7421
    %7696 = vmatprep.subr.bf16.mxu0 %v7424
    %7697 = vmatpush1.bf16.msra.mxu0 %v7423
    %7698 = vmatprep.subr.bf16.mxu0 %v7426
    %7699 = vmatpush1.bf16.msra.mxu0 %v7425
    %7700 = vmatprep.subr.bf16.mxu0 %v7428
    %7701 = vmatpush1.bf16.msra.mxu0 %v7427
    %7702 = vmatprep.mubr.bf16.mxu0 %v6924
    %7703 = vmatmul.mubr.bf16.gmra.mrb[0].mxu0 %v6923
    %v7704 = vpop.f32.mrb[0].mxu0
    %v7705 = vadd.f32 %v7592, %v7704
    %v7706 = vpop.f32.mrb[0].mxu0
    %v7707 = vadd.f32 %v7594, %v7706
    %v7708 = vpop.f32.mrb[0].mxu0
    %v7709 = vadd.f32 %v7596, %v7708
    %v7710 = vpop.f32.mrb[0].mxu0
    %v7711 = vadd.f32 %v7598, %v7710
    %7712 = vmatprep.mubr.bf16.mxu0 %v6930
    %7713 = vmatmul.mubr.bf16.gmra.mrb[0].mxu0 %v6929
    %v7714 = vpop.f32.mrb[0].mxu0
    %v7715 = vadd.f32 %v7602, %v7714
    %v7716 = vpop.f32.mrb[0].mxu0
    %v7717 = vadd.f32 %v7604, %v7716
    %v7718 = vpop.f32.mrb[0].mxu0
    %v7719 = vadd.f32 %v7606, %v7718
    %v7720 = vpop.f32.mrb[0].mxu0
    %v7721 = vadd.f32 %v7608, %v7720
    %7722 = vmatprep.mubr.bf16.mxu0 %v6936
    %7723 = vmatmul.mubr.bf16.gmra.mrb[0].mxu0 %v6935
    %v7724 = vpop.f32.mrb[0].mxu0
    %v7725 = vadd.f32 %v7612, %v7724
    %v7726 = vpop.f32.mrb[0].mxu0
    %v7727 = vadd.f32 %v7614, %v7726
    %v7728 = vpop.f32.mrb[0].mxu0
    %v7729 = vadd.f32 %v7616, %v7728
    %v7730 = vpop.f32.mrb[0].mxu0
    %v7731 = vadd.f32 %v7618, %v7730
    %7732 = vmatprep.mubr.bf16.mxu0 %v6942
    %7733 = vmatmul.mubr.bf16.gmra.mrb[0].mxu0 %v6941
    %v7734 = vpop.f32.mrb[0].mxu0
    %v7735 = vadd.f32 %v7622, %v7734
    %v7736 = vpop.f32.mrb[0].mxu0
    %v7737 = vadd.f32 %v7624, %v7736
    %v7738 = vpop.f32.mrb[0].mxu0
    %v7739 = vadd.f32 %v7626, %v7738
    %v7740 = vpop.f32.mrb[0].mxu0
    %v7741 = vadd.f32 %v7628, %v7740
    %7742 = vmatprep.mubr.bf16.mxu0 %v6948
    %7743 = vmatmul.mubr.bf16.gmra.mrb[0].mxu0 %v6947
    %v7744 = vpop.f32.mrb[0].mxu0
    %v7745 = vadd.f32 %v7632, %v7744
    %v7746 = vpop.f32.mrb[0].mxu0
    %v7747 = vadd.f32 %v7634, %v7746
    %v7748 = vpop.f32.mrb[0].mxu0
    %v7749 = vadd.f32 %v7636, %v7748
    %v7750 = vpop.f32.mrb[0].mxu0
    %v7751 = vadd.f32 %v7638, %v7750
    %7752 = vmatprep.mubr.bf16.mxu0 %v6954
    %7753 = vmatmul.mubr.bf16.gmra.mrb[0].mxu0 %v6953
    %v7754 = vpop.f32.mrb[0].mxu0
    %v7755 = vadd.f32 %v7642, %v7754
    %v7756 = vpop.f32.mrb[0].mxu0
    %v7757 = vadd.f32 %v7644, %v7756
    %v7758 = vpop.f32.mrb[0].mxu0
    %v7759 = vadd.f32 %v7646, %v7758
    %v7760 = vpop.f32.mrb[0].mxu0
    %v7761 = vadd.f32 %v7648, %v7760
    %7762 = vmatprep.mubr.bf16.mxu0 %v6960
    %7763 = vmatmul.mubr.bf16.gmra.mrb[0].mxu0 %v6959
    %v7764 = vpop.f32.mrb[0].mxu0
    %v7765 = vadd.f32 %v7652, %v7764
    %v7766 = vpop.f32.mrb[0].mxu0
    %v7767 = vadd.f32 %v7654, %v7766
    %v7768 = vpop.f32.mrb[0].mxu0
    %v7769 = vadd.f32 %v7656, %v7768
    %v7770 = vpop.f32.mrb[0].mxu0
    %v7771 = vadd.f32 %v7658, %v7770
    %7772 = vmatprep.mubr.bf16.mxu0 %v6966
    %7773 = vmatmul.mubr.bf16.gmra.mrb[0].mxu0 %v6965
    %v7774 = vpop.f32.mrb[0].mxu0
    %v7775 = vadd.f32 %v7662, %v7774
    %v7776 = vpop.f32.mrb[0].mxu0
    %v7777 = vadd.f32 %v7664, %v7776
    %v7778 = vpop.f32.mrb[0].mxu0
    %v7779 = vadd.f32 %v7666, %v7778
    %v7780 = vpop.f32.mrb[0].mxu0
    %v7781 = vadd.f32 %v7668, %v7780
    %7782 = vdwg.mxu0
    %7783 = vmatprep.subr.bf16.mxu0 %v7430
    %7784 = vmatpush1.bf16.msra.mxu0 %v7429
    %7785 = vmatprep.subr.bf16.mxu0 %v7432
    %7786 = vmatpush1.bf16.msra.mxu0 %v7431
    %7787 = vmatprep.subr.bf16.mxu0 %v7434
    %7788 = vmatpush1.bf16.msra.mxu0 %v7433
    %7789 = vmatprep.subr.bf16.mxu0 %v7436
    %7790 = vmatpush1.bf16.msra.mxu0 %v7435
    %7791 = vmatprep.subr.bf16.mxu0 %v7438
    %7792 = vmatpush1.bf16.msra.mxu0 %v7437
    %7793 = vmatprep.subr.bf16.mxu0 %v7440
    %7794 = vmatpush1.bf16.msra.mxu0 %v7439
    %7795 = vmatprep.subr.bf16.mxu0 %v7442
    %7796 = vmatpush1.bf16.msra.mxu0 %v7441
    %7797 = vmatprep.subr.bf16.mxu0 %v7444
    %7798 = vmatpush1.bf16.msra.mxu0 %v7443
    %7799 = vmatprep.subr.bf16.mxu0 %v7446
    %7800 = vmatpush1.bf16.msra.mxu0 %v7445
    %7801 = vmatprep.subr.bf16.mxu0 %v7448
    %7802 = vmatpush1.bf16.msra.mxu0 %v7447
    %7803 = vmatprep.subr.bf16.mxu0 %v7450
    %7804 = vmatpush1.bf16.msra.mxu0 %v7449
    %7805 = vmatprep.subr.bf16.mxu0 %v7452
    %7806 = vmatpush1.bf16.msra.mxu0 %v7451
    %7807 = vmatprep.subr.bf16.mxu0 %v7454
    %7808 = vmatpush1.bf16.msra.mxu0 %v7453
    %7809 = vmatprep.subr.bf16.mxu0 %v7456
    %7810 = vmatpush1.bf16.msra.mxu0 %v7455
    %7811 = vmatprep.subr.bf16.mxu0 %v7458
    %7812 = vmatpush1.bf16.msra.mxu0 %v7457
    %7813 = vmatprep.subr.bf16.mxu0 %v7460
    %7814 = vmatpush1.bf16.msra.mxu0 %v7459
    %7815 = vmatprep.mubr.bf16.mxu0 %v6926
    %7816 = vmatmul.mubr.bf16.gmra.mrb[0].mxu0 %v6925
    %v7817 = vpop.f32.mrb[0].mxu0
    %v7818 = vadd.f32 %v7705, %v7817
    %v7819 = vpop.f32.mrb[0].mxu0
    %v7820 = vadd.f32 %v7707, %v7819
    %v7821 = vpop.f32.mrb[0].mxu0
    %v7822 = vadd.f32 %v7709, %v7821
    %v7823 = vpop.f32.mrb[0].mxu0
    %v7824 = vadd.f32 %v7711, %v7823
    %7825 = vmatprep.mubr.bf16.mxu0 %v6932
    %7826 = vmatmul.mubr.bf16.gmra.mrb[0].mxu0 %v6931
    %v7827 = vpop.f32.mrb[0].mxu0
    %v7828 = vadd.f32 %v7715, %v7827
    %v7829 = vpop.f32.mrb[0].mxu0
    %v7830 = vadd.f32 %v7717, %v7829
    %v7831 = vpop.f32.mrb[0].mxu0
    %v7832 = vadd.f32 %v7719, %v7831
    %v7833 = vpop.f32.mrb[0].mxu0
    %v7834 = vadd.f32 %v7721, %v7833
    %7835 = vmatprep.mubr.bf16.mxu0 %v6938
    %7836 = vmatmul.mubr.bf16.gmra.mrb[0].mxu0 %v6937
    %v7837 = vpop.f32.mrb[0].mxu0
    %v7838 = vadd.f32 %v7725, %v7837
    %v7839 = vpop.f32.mrb[0].mxu0
    %v7840 = vadd.f32 %v7727, %v7839
    %v7841 = vpop.f32.mrb[0].mxu0
    %v7842 = vadd.f32 %v7729, %v7841
    %v7843 = vpop.f32.mrb[0].mxu0
    %v7844 = vadd.f32 %v7731, %v7843
    %7845 = vmatprep.mubr.bf16.mxu0 %v6944
    %7846 = vmatmul.mubr.bf16.gmra.mrb[0].mxu0 %v6943
    %v7847 = vpop.f32.mrb[0].mxu0
    %v7848 = vadd.f32 %v7735, %v7847
    %v7849 = vpop.f32.mrb[0].mxu0
    %v7850 = vadd.f32 %v7737, %v7849
    %v7851 = vpop.f32.mrb[0].mxu0
    %v7852 = vadd.f32 %v7739, %v7851
    %v7853 = vpop.f32.mrb[0].mxu0
    %v7854 = vadd.f32 %v7741, %v7853
    %7855 = vmatprep.mubr.bf16.mxu0 %v6950
    %7856 = vmatmul.mubr.bf16.gmra.mrb[0].mxu0 %v6949
    %v7857 = vpop.f32.mrb[0].mxu0
    %v7858 = vadd.f32 %v7745, %v7857
    %v7859 = vpop.f32.mrb[0].mxu0
    %v7860 = vadd.f32 %v7747, %v7859
    %v7861 = vpop.f32.mrb[0].mxu0
    %v7862 = vadd.f32 %v7749, %v7861
    %v7863 = vpop.f32.mrb[0].mxu0
    %v7864 = vadd.f32 %v7751, %v7863
    %7865 = vmatprep.mubr.bf16.mxu0 %v6956
    %7866 = vmatmul.mubr.bf16.gmra.mrb[0].mxu0 %v6955
    %v7867 = vpop.f32.mrb[0].mxu0
    %v7868 = vadd.f32 %v7755, %v7867
    %v7869 = vpop.f32.mrb[0].mxu0
    %v7870 = vadd.f32 %v7757, %v7869
    %v7871 = vpop.f32.mrb[0].mxu0
    %v7872 = vadd.f32 %v7759, %v7871
    %v7873 = vpop.f32.mrb[0].mxu0
    %v7874 = vadd.f32 %v7761, %v7873
    %7875 = vmatprep.mubr.bf16.mxu0 %v6962
    %7876 = vmatmul.mubr.bf16.gmra.mrb[0].mxu0 %v6961
    %v7877 = vpop.f32.mrb[0].mxu0
    %v7878 = vadd.f32 %v7765, %v7877
    %v7879 = vpop.f32.mrb[0].mxu0
    %v7880 = vadd.f32 %v7767, %v7879
    %v7881 = vpop.f32.mrb[0].mxu0
    %v7882 = vadd.f32 %v7769, %v7881
    %v7883 = vpop.f32.mrb[0].mxu0
    %v7884 = vadd.f32 %v7771, %v7883
    %7885 = vmatprep.mubr.bf16.mxu0 %v6968
    %7886 = vmatmul.mubr.bf16.gmra.mrb[0].mxu0 %v6967
    %v7887 = vpop.f32.mrb[0].mxu0
    %v7888 = vadd.f32 %v7775, %v7887
    %v7889 = vpop.f32.mrb[0].mxu0
    %v7890 = vadd.f32 %v7777, %v7889
    %v7891 = vpop.f32.mrb[0].mxu0
    %v7892 = vadd.f32 %v7779, %v7891
    %v7893 = vpop.f32.mrb[0].mxu0
    %v7894 = vadd.f32 %v7781, %v7893
    %7895 = vdwg.mxu0
    %v7896 = vmax.f32 %v7818, 0.0
    %v7897 = vmax.f32 %v7820, 0.0
    %v7898 = vmax.f32 %v7822, 0.0
    %v7899 = vmax.f32 %v7824, 0.0
    %v7900 = vmax.f32 %v7828, 0.0
    %v7901 = vmax.f32 %v7830, 0.0
    %v7902 = vmax.f32 %v7832, 0.0
    %v7903 = vmax.f32 %v7834, 0.0
    %v7904 = vmax.f32 %v7838, 0.0
    %v7905 = vmax.f32 %v7840, 0.0
    %v7906 = vmax.f32 %v7842, 0.0
    %v7907 = vmax.f32 %v7844, 0.0
    %v7908 = vmax.f32 %v7848, 0.0
    %v7909 = vmax.f32 %v7850, 0.0
    %v7910 = vmax.f32 %v7852, 0.0
    %v7911 = vmax.f32 %v7854, 0.0
    %v7912 = vmax.f32 %v7858, 0.0
    %v7913 = vmax.f32 %v7860, 0.0
    %v7914 = vmax.f32 %v7862, 0.0
    %v7915 = vmax.f32 %v7864, 0.0
    %v7916 = vmax.f32 %v7868, 0.0
    %v7917 = vmax.f32 %v7870, 0.0
    %v7918 = vmax.f32 %v7872, 0.0
    %v7919 = vmax.f32 %v7874, 0.0
    %v7920 = vmax.f32 %v7878, 0.0
    %v7921 = vmax.f32 %v7880, 0.0
    %v7922 = vmax.f32 %v7882, 0.0
    %v7923 = vmax.f32 %v7884, 0.0
    %v7924 = vmax.f32 %v7888, 0.0
    %v7925 = vmax.f32 %v7890, 0.0
    %v7926 = vmax.f32 %v7892, 0.0
    %v7927 = vmax.f32 %v7894, 0.0
    %v7928 = vpack.c.bf16 %v7898, %v7896
    %v7929 = vpack.c.bf16 %v7899, %v7897
    %v7930 = vpack.c.bf16 %v7902, %v7900
    %v7931 = vpack.c.bf16 %v7903, %v7901
    %v7932 = vpack.c.bf16 %v7906, %v7904
    %v7933 = vpack.c.bf16 %v7907, %v7905
    %v7934 = vpack.c.bf16 %v7910, %v7908
    %v7935 = vpack.c.bf16 %v7911, %v7909
    %v7936 = vpack.c.bf16 %v7914, %v7912
    %v7937 = vpack.c.bf16 %v7915, %v7913
    %v7938 = vpack.c.bf16 %v7918, %v7916
    %v7939 = vpack.c.bf16 %v7919, %v7917
    %v7940 = vpack.c.bf16 %v7922, %v7920
    %v7941 = vpack.c.bf16 %v7923, %v7921
    %v7942 = vpack.c.bf16 %v7926, %v7924
    %v7943 = vpack.c.bf16 %v7927, %v7925
    %v7944 = vld [vmem:[#allocation14] sm:$0xf]
    %v7945 = vld [vmem:[#allocation14 + $0x4] sm:$0xf]
    %v7946 = vld [vmem:[#allocation14 + $0x8] sm:$0xf]
    %v7947 = vld [vmem:[#allocation14 + $0xc] sm:$0xf]
    %v7948 = vld [vmem:[#allocation14 + $0x10] sm:$0xf]
    %v7949 = vld [vmem:[#allocation14 + $0x14] sm:$0xf]
    %v7950 = vld [vmem:[#allocation14 + $0x18] sm:$0xf]
    %v7951 = vld [vmem:[#allocation14 + $0x1c] sm:$0xf]
    %v7952 = vld [vmem:[#allocation14 + $0x20] sm:$0xf]
    %v7953 = vld [vmem:[#allocation14 + $0x24] sm:$0xf]
    %v7954 = vld [vmem:[#allocation14 + $0x28] sm:$0xf]
    %v7955 = vld [vmem:[#allocation14 + $0x2c] sm:$0xf]
    %v7956 = vld [vmem:[#allocation14 + $0x30] sm:$0xf]
    %v7957 = vld [vmem:[#allocation14 + $0x34] sm:$0xf]
    %v7958 = vld [vmem:[#allocation14 + $0x38] sm:$0xf]
    %v7959 = vld [vmem:[#allocation14 + $0x3c] sm:$0xf]
    %v7960 = vld [vmem:[#allocation14 + $0x40] sm:$0xf]
    %v7961 = vld [vmem:[#allocation14 + $0x44] sm:$0xf]
    %v7962 = vld [vmem:[#allocation14 + $0x48] sm:$0xf]
    %v7963 = vld [vmem:[#allocation14 + $0x4c] sm:$0xf]
    %v7964 = vld [vmem:[#allocation14 + $0x50] sm:$0xf]
    %v7965 = vld [vmem:[#allocation14 + $0x54] sm:$0xf]
    %v7966 = vld [vmem:[#allocation14 + $0x58] sm:$0xf]
    %v7967 = vld [vmem:[#allocation14 + $0x5c] sm:$0xf]
    %v7968 = vld [vmem:[#allocation14 + $0x60] sm:$0xf]
    %v7969 = vld [vmem:[#allocation14 + $0x64] sm:$0xf]
    %v7970 = vld [vmem:[#allocation14 + $0x68] sm:$0xf]
    %v7971 = vld [vmem:[#allocation14 + $0x6c] sm:$0xf]
    %v7972 = vld [vmem:[#allocation14 + $0x70] sm:$0xf]
    %v7973 = vld [vmem:[#allocation14 + $0x74] sm:$0xf]
    %v7974 = vld [vmem:[#allocation14 + $0x78] sm:$0xf]
    %v7975 = vld [vmem:[#allocation14 + $0x7c] sm:$0xf]
    %v7976 = vld [vmem:[#allocation16] sm:$0x1]
    %v7978 = vlaneseq
    %v7979 = vshrl.u32 %v7978, 7
    %v7980 = vsub.s32 0, %v7979
    %v7981 = vrot.slane %v7976, %v7980
    %v8015 = vunpack.c.l.b16 %v7944
    %v8016 = vunpack.c.l.b16 %v7945
    %v8017 = vunpack.c.l.b16 %v7946
    %v8018 = vunpack.c.l.b16 %v7947
    %v8019 = vunpack.c.l.b16 %v7948
    %v8020 = vunpack.c.l.b16 %v7949
    %v8021 = vunpack.c.l.b16 %v7950
    %v8022 = vunpack.c.l.b16 %v7951
    %v8023 = vunpack.c.l.b16 %v7952
    %v8024 = vunpack.c.l.b16 %v7953
    %v8025 = vunpack.c.l.b16 %v7954
    %v8026 = vunpack.c.l.b16 %v7955
    %v8027 = vunpack.c.l.b16 %v7956
    %v8028 = vunpack.c.l.b16 %v7957
    %v8029 = vunpack.c.l.b16 %v7958
    %v8030 = vunpack.c.l.b16 %v7959
    %v8031 = vunpack.c.l.b16 %v7960
    %v8032 = vunpack.c.l.b16 %v7961
    %v8033 = vunpack.c.l.b16 %v7962
    %v8034 = vunpack.c.l.b16 %v7963
    %v8035 = vunpack.c.l.b16 %v7964
    %v8036 = vunpack.c.l.b16 %v7965
    %v8037 = vunpack.c.l.b16 %v7966
    %v8038 = vunpack.c.l.b16 %v7967
    %v8039 = vunpack.c.l.b16 %v7968
    %v8040 = vunpack.c.l.b16 %v7969
    %v8041 = vunpack.c.l.b16 %v7970
    %v8042 = vunpack.c.l.b16 %v7971
    %v8043 = vunpack.c.l.b16 %v7972
    %v8044 = vunpack.c.l.b16 %v7973
    %v8045 = vunpack.c.l.b16 %v7974
    %v8046 = vunpack.c.l.b16 %v7975
    %v8047 = vpack.c.b16 %v8016, %v8015
    %v8048 = vpack.c.b16 %v8018, %v8017
    %v8049 = vpack.c.b16 %v8020, %v8019
    %v8050 = vpack.c.b16 %v8022, %v8021
    %v8051 = vpack.c.b16 %v8024, %v8023
    %v8052 = vpack.c.b16 %v8026, %v8025
    %v8053 = vpack.c.b16 %v8028, %v8027
    %v8054 = vpack.c.b16 %v8030, %v8029
    %v8055 = vpack.c.b16 %v8032, %v8031
    %v8056 = vpack.c.b16 %v8034, %v8033
    %v8057 = vpack.c.b16 %v8036, %v8035
    %v8058 = vpack.c.b16 %v8038, %v8037
    %v8059 = vpack.c.b16 %v8040, %v8039
    %v8060 = vpack.c.b16 %v8042, %v8041
    %v8061 = vpack.c.b16 %v8044, %v8043
    %v8062 = vpack.c.b16 %v8046, %v8045
    %8079 = vmatprep.subr.bf16.mxu0 0
    %8080 = vmatpush1.bf16.msra.mxu0 %v8047
    %8081 = vmatprep.subr.bf16.mxu0 0
    %8082 = vmatpush1.bf16.msra.mxu0 %v8048
    %8083 = vmatprep.subr.bf16.mxu0 0
    %8084 = vmatpush1.bf16.msra.mxu0 %v8049
    %8085 = vmatprep.subr.bf16.mxu0 0
    %8086 = vmatpush1.bf16.msra.mxu0 %v8050
    %8087 = vmatprep.subr.bf16.mxu0 0
    %8088 = vmatpush1.bf16.msra.mxu0 %v8051
    %8089 = vmatprep.subr.bf16.mxu0 0
    %8090 = vmatpush1.bf16.msra.mxu0 %v8052
    %8091 = vmatprep.subr.bf16.mxu0 0
    %8092 = vmatpush1.bf16.msra.mxu0 %v8053
    %8093 = vmatprep.subr.bf16.mxu0 0
    %8094 = vmatpush1.bf16.msra.mxu0 %v8054
    %8095 = vmatprep.subr.bf16.mxu0 0
    %8096 = vmatpush1.bf16.msra.mxu0 %v8055
    %8097 = vmatprep.subr.bf16.mxu0 0
    %8098 = vmatpush1.bf16.msra.mxu0 %v8056
    %8099 = vmatprep.subr.bf16.mxu0 0
    %8100 = vmatpush1.bf16.msra.mxu0 %v8057
    %8101 = vmatprep.subr.bf16.mxu0 0
    %8102 = vmatpush1.bf16.msra.mxu0 %v8058
    %8103 = vmatprep.subr.bf16.mxu0 0
    %8104 = vmatpush1.bf16.msra.mxu0 %v8059
    %8105 = vmatprep.subr.bf16.mxu0 0
    %8106 = vmatpush1.bf16.msra.mxu0 %v8060
    %8107 = vmatprep.subr.bf16.mxu0 0
    %8108 = vmatpush1.bf16.msra.mxu0 %v8061
    %8109 = vmatprep.subr.bf16.mxu0 0
    %8110 = vmatpush1.bf16.msra.mxu0 %v8062
    %8111 = vmatprep.mubr.bf16.mxu0 %v7929
    %8112 = vmatmul.mubr.bf16.gmra.mrb[0].mxu0 %v7928
    %v8113 = vpop.f32.mrb[0].mxu0
    %v8114 = vadd.f32 %v7981, %v8113
    %v8115 = vpop.f32.mrb[0].mxu0
    %v8116 = vpop.f32.mrb[0].mxu0
    %v8117 = vadd.f32 %v7981, %v8116
    %v8118 = vpop.f32.mrb[0].mxu0
    %8119 = vmatprep.mubr.bf16.mxu0 %v7931
    %8120 = vmatmul.mubr.bf16.gmra.mrb[0].mxu0 %v7930
    %v8121 = vpop.f32.mrb[0].mxu0
    %v8122 = vadd.f32 %v7981, %v8121
    %v8123 = vpop.f32.mrb[0].mxu0
    %v8124 = vpop.f32.mrb[0].mxu0
    %v8125 = vadd.f32 %v7981, %v8124
    %v8126 = vpop.f32.mrb[0].mxu0
    %8127 = vmatprep.mubr.bf16.mxu0 %v7933
    %8128 = vmatmul.mubr.bf16.gmra.mrb[0].mxu0 %v7932
    %v8129 = vpop.f32.mrb[0].mxu0
    %v8130 = vadd.f32 %v7981, %v8129
    %v8131 = vpop.f32.mrb[0].mxu0
    %v8132 = vpop.f32.mrb[0].mxu0
    %v8133 = vadd.f32 %v7981, %v8132
    %v8134 = vpop.f32.mrb[0].mxu0
    %8135 = vmatprep.mubr.bf16.mxu0 %v7935
    %8136 = vmatmul.mubr.bf16.gmra.mrb[0].mxu0 %v7934
    %v8137 = vpop.f32.mrb[0].mxu0
    %v8138 = vadd.f32 %v7981, %v8137
    %v8139 = vpop.f32.mrb[0].mxu0
    %v8140 = vpop.f32.mrb[0].mxu0
    %v8141 = vadd.f32 %v7981, %v8140
    %v8142 = vpop.f32.mrb[0].mxu0
    %8143 = vmatprep.mubr.bf16.mxu0 %v7937
    %8144 = vmatmul.mubr.bf16.gmra.mrb[0].mxu0 %v7936
    %v8145 = vpop.f32.mrb[0].mxu0
    %v8146 = vadd.f32 %v7981, %v8145
    %v8147 = vpop.f32.mrb[0].mxu0
    %v8148 = vpop.f32.mrb[0].mxu0
    %v8149 = vadd.f32 %v7981, %v8148
    %v8150 = vpop.f32.mrb[0].mxu0
    %8151 = vmatprep.mubr.bf16.mxu0 %v7939
    %8152 = vmatmul.mubr.bf16.gmra.mrb[0].mxu0 %v7938
    %v8153 = vpop.f32.mrb[0].mxu0
    %v8154 = vadd.f32 %v7981, %v8153
    %v8155 = vpop.f32.mrb[0].mxu0
    %v8156 = vpop.f32.mrb[0].mxu0
    %v8157 = vadd.f32 %v7981, %v8156
    %v8158 = vpop.f32.mrb[0].mxu0
    %8159 = vmatprep.mubr.bf16.mxu0 %v7941
    %8160 = vmatmul.mubr.bf16.gmra.mrb[0].mxu0 %v7940
    %v8161 = vpop.f32.mrb[0].mxu0
    %v8162 = vadd.f32 %v7981, %v8161
    %v8163 = vpop.f32.mrb[0].mxu0
    %v8164 = vpop.f32.mrb[0].mxu0
    %v8165 = vadd.f32 %v7981, %v8164
    %v8166 = vpop.f32.mrb[0].mxu0
    %8167 = vmatprep.mubr.bf16.mxu0 %v7943
    %8168 = vmatmul.mubr.bf16.gmra.mrb[0].mxu0 %v7942
    %v8169 = vpop.f32.mrb[0].mxu0
    %v8170 = vadd.f32 %v7981, %v8169
    %v8171 = vpop.f32.mrb[0].mxu0
    %v8172 = vpop.f32.mrb[0].mxu0
    %v8173 = vadd.f32 %v7981, %v8172
    %v8174 = vpop.f32.mrb[0].mxu0
    %8175 = vdwg.mxu0
    %v8176 = vmax.f32 %v8114, 0.0
    %v8177 = vmax.f32 %v8117, 0.0
    %v8178 = vmax.f32 %v8122, 0.0
    %v8179 = vmax.f32 %v8125, 0.0
    %v8180 = vmax.f32 %v8130, 0.0
    %v8181 = vmax.f32 %v8133, 0.0
    %v8182 = vmax.f32 %v8138, 0.0
    %v8183 = vmax.f32 %v8141, 0.0
    %v8184 = vmax.f32 %v8146, 0.0
    %v8185 = vmax.f32 %v8149, 0.0
    %v8186 = vmax.f32 %v8154, 0.0
    %v8187 = vmax.f32 %v8157, 0.0
    %v8188 = vmax.f32 %v8162, 0.0
    %v8189 = vmax.f32 %v8165, 0.0
    %v8190 = vmax.f32 %v8170, 0.0
    %v8191 = vmax.f32 %v8173, 0.0
    %8192 = vst [vmem:[#allocation17] sm:$0xff] %v8176
    %8193 = vst [vmem:[#allocation17 + $0x8] sm:$0xff] %v8177
    %8194 = vst [vmem:[#allocation17 + $0x10] sm:$0xff] %v8178
    %8195 = vst [vmem:[#allocation17 + $0x18] sm:$0xff] %v8179
    %8196 = vst [vmem:[#allocation17 + $0x20] sm:$0xff] %v8180
    %8197 = vst [vmem:[#allocation17 + $0x28] sm:$0xff] %v8181
    %8198 = vst [vmem:[#allocation17 + $0x30] sm:$0xff] %v8182
    %8199 = vst [vmem:[#allocation17 + $0x38] sm:$0xff] %v8183
    %8200 = vst [vmem:[#allocation17 + $0x40] sm:$0xff] %v8184
    %8201 = vst [vmem:[#allocation17 + $0x48] sm:$0xff] %v8185
    %8202 = vst [vmem:[#allocation17 + $0x50] sm:$0xff] %v8186
    %8203 = vst [vmem:[#allocation17 + $0x58] sm:$0xff] %v8187
    %8204 = vst [vmem:[#allocation17 + $0x60] sm:$0xff] %v8188
    %8205 = vst [vmem:[#allocation17 + $0x68] sm:$0xff] %v8189
    %8206 = vst [vmem:[#allocation17 + $0x70] sm:$0xff] %v8190
    %8207 = vst [vmem:[#allocation17 + $0x78] sm:$0xff] %v8191
    // Predicated region
    $region74: #{tpu_custom_call.1} parent=1 // pred_check
      _
    $region75: #{tpu_custom_call.1} parent=1 // pred_check_branch
      %8209 = sbr.rel (0) target = $region77
    $region76: #{tpu_custom_call.1} parent=1 // pred_region
      %s8211 = ssub.s32 2048, 2048
      %8212 = vsyncadd [#allocation4], %s8211
      %s8213 = sshll.u32 [#allocation17], 4
      %s8214 = int_to_ptr.vmem [resolvable:$true] %s8213
      %8219 = dma.vmem_to_hbm [thread:$0]  %s8214, 2048, %s9, [#allocation4], 128, 128, 8
    $region77: #{tpu_custom_call.1} parent=1 // pred_fallthru
      _
    // Predicated region
    $region78: #{tpu_custom_call.1} parent=1 // pred_check
      _
    $region79: #{tpu_custom_call.1} parent=1 // pred_check_branch
      %8221 = sbr.rel (0) target = $region81
    $region80: #{tpu_custom_call.1} parent=1 // pred_region
      %8222 = dma.done [#allocation4], 2048
    $region81: #{tpu_custom_call.1} parent=1 // pred_fallthru
      _
    %8223 = vsyncpa [#allocation3], 1
    %8224 = vsyncpa [#allocation6], 1
    %8225 = vsyncpa [#allocation9], 1
    %8226 = vsyncpa [#allocation12], 1
    %8227 = vsyncpa [#allocation15], 1
    %8228 = vsyncpa [#allocation4], 1

</llo_original>
